<compile_context>
chip_gen: v7x
topology: tpu7x:2x2x1
jax: 0.10.0
libtpu: 0.0.40
codegen_flags: <defaults>
</compile_context>

<pallas_src>
from functools import partial

import jax
import jax.numpy as jnp
from jax.experimental import pallas as pl
from jax.experimental.pallas import tpu as pltpu


def _lastlayer2_kernel(x_ref, bw1_ref, b1_ref, bw2_ref, b2_ref, bw3_ref, b3_ref,
                       o_ref, buf, *, H, W, F, K):
    """Fused ResBlock + trailing conv for one batch element (lane-dense).

    x_ref  : (1, H, W*F)     bf16   input block (row-major NHWC view)
    bw*_ref: (K, W*F, W*F)   bf16   banded (block-Toeplitz) conv weights,
                                    one (W*F, W*F) matrix per vertical tap dh
    b*_ref : (1, W*F)        f32    biases pre-tiled along W (res_scale folded)
    o_ref  : (1, H, W*F)            output block
    buf    : (H + 2p, W*F)   bf16   scratch with a zero vertical halo
    """
    p = K // 2
    WF = W * F

    # Zero only the 2*p halo rows (the interior is fully overwritten below).
    # Done every step so it is correct under any grid scheduling / megacore.
    if p > 0:
        zrow = jnp.zeros((p, WF), buf.dtype)
        buf[0:p, :] = zrow
        buf[p + H:p + H + p, :] = zrow

    def conv(bw_ref):
        # 'same' KxK conv as K row-shifted lane-dense matmuls; horizontal zero
        # padding is already folded into the banded weights.
        acc = jnp.zeros((H, WF), jnp.float32)
        for dh in range(K):                        # static unroll, K is small
            acc += jnp.dot(buf[dh:dh + H, :], bw_ref[dh],
                           preferred_element_type=jnp.float32)
        return acc

    x = x_ref[0]                                   # (H, W*F) bf16
    buf[p:p + H, :] = x

    # ResBlock conv1 + bias + ReLU
    a = jnp.maximum(conv(bw1_ref) + b1_ref[...], 0.0)
    buf[p:p + H, :] = a.astype(buf.dtype)

    # ResBlock conv2 (+ bias; res_scale folded in wrapper) + residual add
    r = conv(bw2_ref) + b2_ref[...] + x.astype(jnp.float32)
    buf[p:p + H, :] = r.astype(buf.dtype)

    # Trailing conv3 + bias  -> lane-dense (H, W*F) store
    o_ref[0] = (conv(bw3_ref) + b3_ref[...]).astype(o_ref.dtype)


def _banded_weight(w_hwio, W):
    """HWIO (K, K, Cin, Cout) conv weight -> (K, W*Cin, W*Cout) banded
    (block-Toeplitz) matrices, one per vertical tap dh.  Horizontal 'same'
    zero padding is folded in (taps falling outside [0, W) contribute 0).

    bw[dh][win*Cin + ci, wout*Cout + co] = w[dh, win - wout + p, ci, co]
    """
    K, _, Cin, Cout = w_hwio.shape
    p = K // 2
    win = jnp.arange(W)[:, None]                   # input column
    wout = jnp.arange(W)[None, :]                  # output column
    dw = win - wout + p                            # horizontal tap index
    valid = (dw >= 0) & (dw < K)
    dw_c = jnp.clip(dw, 0, K - 1)
    bw = w_hwio[:, dw_c]                           # (K, W, W, Cin, Cout)
    bw = jnp.where(valid[None, :, :, None, None], bw, 0)
    bw = bw.transpose(0, 1, 3, 2, 4)               # (K, win, Cin, wout, Cout)
    return bw.reshape(K, W * Cin, W * Cout)


@partial(jax.jit, static_argnames=("res_scale",))
def lastlayer2_forward(params, x0, x1, res_scale=1.0):
    """out0 = conv3(ResBlock(x0)); out1 = x1 (passthrough)."""
    N, H, W, F = x0.shape
    K = params["w1"].shape[0]
    assert K % 2 == 1, "only odd kernel sizes match PyTorch padding=k//2 geometry"
    p = K // 2
    WF = W * F
    cdt = jnp.bfloat16     # documented choice: bf16 compute, f32 accumulation

    xb = x0.astype(cdt).reshape(N, H, WF)          # free lane-dense view

    # res_scale folded into conv2:  (conv2(a) + b2) * s == conv2'(a) + b2'
    bw1 = _banded_weight(params["w1"], W).astype(cdt)
    bw2 = _banded_weight(params["w2"] * res_scale, W).astype(cdt)
    bw3 = _banded_weight(params["w3"], W).astype(cdt)

    def tile_bias(b, scale=1.0):
        return jnp.tile(b.astype(jnp.float32) * scale, W).reshape(1, WF)

    b1 = tile_bias(params["b1"])
    b2 = tile_bias(params["b2"], res_scale)
    b3 = tile_bias(params["b3"])

    kernel = partial(_lastlayer2_kernel, H=H, W=W, F=F, K=K)
    io_spec = pl.BlockSpec((1, H, WF), lambda n: (n, 0, 0))
    bw_spec = pl.BlockSpec((K, WF, WF), lambda n: (0, 0, 0))
    b_spec = pl.BlockSpec((1, WF), lambda n: (0, 0))

    out0 = pl.pallas_call(
        kernel,
        out_shape=jax.ShapeDtypeStruct((N, H, WF), x0.dtype),
        grid=(N,),
        in_specs=[io_spec, bw_spec, b_spec, bw_spec, b_spec, bw_spec, b_spec],
        out_specs=io_spec,
        scratch_shapes=[pltpu.VMEM((H + 2 * p, WF), cdt)],
        compiler_params=pltpu.CompilerParams(
            dimension_semantics=("parallel",),
            vmem_limit_bytes=48 * 1024 * 1024),
    )(xb, bw1, b1, bw2, b2, bw3, b3)
    return out0.reshape(N, H, W, F), x1


def init_params(key, n_feats, kernel_size, dtype=jnp.float32):
    k = jax.random.split(key, 6)
    scale = 1.0 / (kernel_size * kernel_size * n_feats) ** 0.5

    def w(key):
        return jax.random.normal(
            key, (kernel_size, kernel_size, n_feats, n_feats), dtype) * scale

    def b(key):
        return jax.random.normal(key, (n_feats,), dtype) * 0.01

    return {"w1": w(k[0]), "b1": b(k[1]),
            "w2": w(k[2]), "b2": b(k[3]),
            "w3": w(k[4]), "b3": b(k[5])}


def _ref_forward(params, x0, x1, res_scale=1.0):
    """Pure-JAX reference mirroring the kernel's bf16-compute / f32-accumulate."""
    cdt = jnp.bfloat16

    def conv(x, w, b):
        y = jax.lax.conv_general_dilated(
            x.astype(cdt), w.astype(cdt), (1, 1), "SAME",
            dimension_numbers=("NHWC", "HWIO", "NHWC"),
            preferred_element_type=jnp.float32)
        return y + b[None, None, None, :].astype(jnp.float32)

    xb = x0.astype(cdt)
    a = jnp.maximum(conv(xb, params["w1"], params["b1"]), 0.0)
    r = conv(a.astype(cdt), params["w2"], params["b2"]) * res_scale \
        + xb.astype(jnp.float32)
    out = conv(r.astype(cdt), params["w3"], params["b3"])
    return out.astype(x0.dtype), x1


if __name__ == "__main__":
    n_feats, kernel_size = 32, 3
    N, H, W = 2, 16, 16

    key = jax.random.PRNGKey(0)
    kp, kx0, kx1 = jax.random.split(key, 3)
    params = init_params(kp, n_feats, kernel_size)

    # x is a list of two feature maps; the second is passed through untouched.
    x0 = jax.random.normal(kx0, (N, H, W, n_feats), jnp.float32)
    x1 = jax.random.normal(kx1, (N, H, W, n_feats), jnp.float32)

    out0, out1 = lastlayer2_forward(params, x0, x1, res_scale=1.0)
    out0 = jax.block_until_ready(out0)
    assert out0.shape == (N, H, W, n_feats), out0.shape

    ref0, _ = _ref_forward(params, x0, x1, 1.0)
    ref0 = jax.block_until_ready(ref0)
    assert jnp.allclose(out0, ref0, atol=2e-2, rtol=2e-2), \
        "mismatch vs reference"
    assert jnp.array_equal(out1, x1), "passthrough branch modified"

    print("KERNEL_OK")
</pallas_src>

<mosaic_0001>
module attributes {stable_mosaic.version = 11 : i64} {
  func.func @_lastlayer2_kernel(%arg0: i32, %arg1: memref<1x16x512xbf16, #tpu.memory_space<vmem>>, %arg2: memref<3x512x512xbf16, #tpu.memory_space<vmem>>, %arg3: memref<1x512xf32, #tpu.memory_space<vmem>>, %arg4: memref<3x512x512xbf16, #tpu.memory_space<vmem>>, %arg5: memref<1x512xf32, #tpu.memory_space<vmem>>, %arg6: memref<3x512x512xbf16, #tpu.memory_space<vmem>>, %arg7: memref<1x512xf32, #tpu.memory_space<vmem>>, %arg8: memref<1x16x512xf32, #tpu.memory_space<vmem>>, %arg9: memref<18x512xbf16, #tpu.memory_space<vmem>>) attributes {dimension_semantics = [#tpu.dimension_semantics<parallel>], iteration_bounds = array<i64: 2>, scalar_prefetch = 0 : i64, scratch_operands = 1 : i64, tpu.core_type = #tpu.core_type<tc>, window_params = [{transform_indices = @transform_0, window_bounds = array<i64: 1, 16, 512>}, {pipeline_mode = #tpu.pipeline_mode<synchronous>, transform_indices = @transform_1, window_bounds = array<i64: 3, 512, 512>}, {pipeline_mode = #tpu.pipeline_mode<synchronous>, transform_indices = @transform_2, window_bounds = array<i64: 1, 512>}, {pipeline_mode = #tpu.pipeline_mode<synchronous>, transform_indices = @transform_3, window_bounds = array<i64: 3, 512, 512>}, {pipeline_mode = #tpu.pipeline_mode<synchronous>, transform_indices = @transform_4, window_bounds = array<i64: 1, 512>}, {pipeline_mode = #tpu.pipeline_mode<synchronous>, transform_indices = @transform_5, window_bounds = array<i64: 3, 512, 512>}, {pipeline_mode = #tpu.pipeline_mode<synchronous>, transform_indices = @transform_6, window_bounds = array<i64: 1, 512>}, {transform_indices = @transform_7, window_bounds = array<i64: 1, 16, 512>}]} {
    %cst = arith.constant 0.000000e+00 : bf16
    %0 = vector.broadcast %cst : bf16 to vector<1x512xbf16>
    %c0 = arith.constant 0 : index
    %c0_0 = arith.constant 0 : index
    %1 = vector.load %arg9[%c0, %c0_0] : memref<18x512xbf16, #tpu.memory_space<vmem>>, vector<1x512xbf16>
    tpu.vector_store %arg9[%c0, %c0_0], %0 {strides = array<i32>} : memref<18x512xbf16, #tpu.memory_space<vmem>>, vector<1x512xbf16>,
    %c17 = arith.constant 17 : index
    %c0_1 = arith.constant 0 : index
    %2 = vector.load %arg9[%c17, %c0_1] : memref<18x512xbf16, #tpu.memory_space<vmem>>, vector<1x512xbf16>
    tpu.vector_store %arg9[%c17, %c0_1], %0 {strides = array<i32>} : memref<18x512xbf16, #tpu.memory_space<vmem>>, vector<1x512xbf16>,
    %c0_2 = arith.constant 0 : index
    %c0_3 = arith.constant 0 : index
    %c0_4 = arith.constant 0 : index
    %3 = vector.load %arg1[%c0_2, %c0_3, %c0_4] : memref<1x16x512xbf16, #tpu.memory_space<vmem>>, vector<1x16x512xbf16>
    %4 = vector.shape_cast %3 : vector<1x16x512xbf16> to vector<16x512xbf16>
    %c1 = arith.constant 1 : index
    %c0_5 = arith.constant 0 : index
    %5 = vector.load %arg9[%c1, %c0_5] : memref<18x512xbf16, #tpu.memory_space<vmem>>, vector<16x512xbf16>
    tpu.vector_store %arg9[%c1, %c0_5], %4 {strides = array<i32>} : memref<18x512xbf16, #tpu.memory_space<vmem>>, vector<16x512xbf16>,
    %cst_6 = arith.constant 0.000000e+00 : f32
    %6 = vector.broadcast %cst_6 : f32 to vector<16x512xf32>
    %c0_7 = arith.constant 0 : index
    %c0_8 = arith.constant 0 : index
    %7 = vector.load %arg9[%c0_7, %c0_8] : memref<18x512xbf16, #tpu.memory_space<vmem>>, vector<16x512xbf16>
    %c0_9 = arith.constant 0 : index
    %c0_10 = arith.constant 0 : index
    %c0_11 = arith.constant 0 : index
    %8 = vector.load %arg2[%c0_9, %c0_10, %c0_11] : memref<3x512x512xbf16, #tpu.memory_space<vmem>>, vector<1x512x512xbf16>
    %9 = vector.shape_cast %8 : vector<1x512x512xbf16> to vector<512x512xbf16>
    %cst_12 = arith.constant dense<0.000000e+00> : vector<16x512xf32>
    %10 = tpu.matmul %7, %9, %cst_12 {dimension_numbers = #tpu.dot_dimension_numbers<[1], [0], [0], [1], [0, 0, 1, 1], [], []>} : vector<16x512xbf16>, vector<512x512xbf16>, vector<16x512xf32> -> vector<16x512xf32>
    %11 = arith.addf %6, %10 : vector<16x512xf32>
    %c1_13 = arith.constant 1 : index
    %c0_14 = arith.constant 0 : index
    %12 = vector.load %arg9[%c1_13, %c0_14] : memref<18x512xbf16, #tpu.memory_space<vmem>>, vector<16x512xbf16>
    %c1_15 = arith.constant 1 : index
    %c0_16 = arith.constant 0 : index
    %c0_17 = arith.constant 0 : index
    %13 = vector.load %arg2[%c1_15, %c0_16, %c0_17] : memref<3x512x512xbf16, #tpu.memory_space<vmem>>, vector<1x512x512xbf16>
    %14 = vector.shape_cast %13 : vector<1x512x512xbf16> to vector<512x512xbf16>
    %cst_18 = arith.constant dense<0.000000e+00> : vector<16x512xf32>
    %15 = tpu.matmul %12, %14, %cst_18 {dimension_numbers = #tpu.dot_dimension_numbers<[1], [0], [0], [1], [0, 0, 1, 1], [], []>} : vector<16x512xbf16>, vector<512x512xbf16>, vector<16x512xf32> -> vector<16x512xf32>
    %16 = arith.addf %11, %15 : vector<16x512xf32>
    %c2 = arith.constant 2 : index
    %c0_19 = arith.constant 0 : index
    %17 = vector.load %arg9[%c2, %c0_19] : memref<18x512xbf16, #tpu.memory_space<vmem>>, vector<16x512xbf16>
    %c2_20 = arith.constant 2 : index
    %c0_21 = arith.constant 0 : index
    %c0_22 = arith.constant 0 : index
    %18 = vector.load %arg2[%c2_20, %c0_21, %c0_22] : memref<3x512x512xbf16, #tpu.memory_space<vmem>>, vector<1x512x512xbf16>
    %19 = vector.shape_cast %18 : vector<1x512x512xbf16> to vector<512x512xbf16>
    %cst_23 = arith.constant dense<0.000000e+00> : vector<16x512xf32>
    %20 = tpu.matmul %17, %19, %cst_23 {dimension_numbers = #tpu.dot_dimension_numbers<[1], [0], [0], [1], [0, 0, 1, 1], [], []>} : vector<16x512xbf16>, vector<512x512xbf16>, vector<16x512xf32> -> vector<16x512xf32>
    %21 = arith.addf %16, %20 : vector<16x512xf32>
    %c0_24 = arith.constant 0 : index
    %c0_25 = arith.constant 0 : index
    %22 = vector.load %arg3[%c0_24, %c0_25] : memref<1x512xf32, #tpu.memory_space<vmem>>, vector<1x512xf32>
    %23 = vector.broadcast %22 : vector<1x512xf32> to vector<16x512xf32>
    %24 = arith.addf %21, %23 : vector<16x512xf32>
    %cst_26 = arith.constant 0.000000e+00 : f32
    %25 = vector.broadcast %cst_26 : f32 to vector<16x512xf32>
    %26 = arith.maximumf %24, %25 : vector<16x512xf32>
    %27 = arith.truncf %26 : vector<16x512xf32> to vector<16x512xbf16>
    %c1_27 = arith.constant 1 : index
    %c0_28 = arith.constant 0 : index
    %28 = vector.load %arg9[%c1_27, %c0_28] : memref<18x512xbf16, #tpu.memory_space<vmem>>, vector<16x512xbf16>
    tpu.vector_store %arg9[%c1_27, %c0_28], %27 {strides = array<i32>} : memref<18x512xbf16, #tpu.memory_space<vmem>>, vector<16x512xbf16>,
    %cst_29 = arith.constant 0.000000e+00 : f32
    %29 = vector.broadcast %cst_29 : f32 to vector<16x512xf32>
    %c0_30 = arith.constant 0 : index
    %c0_31 = arith.constant 0 : index
    %30 = vector.load %arg9[%c0_30, %c0_31] : memref<18x512xbf16, #tpu.memory_space<vmem>>, vector<16x512xbf16>
    %c0_32 = arith.constant 0 : index
    %c0_33 = arith.constant 0 : index
    %c0_34 = arith.constant 0 : index
    %31 = vector.load %arg4[%c0_32, %c0_33, %c0_34] : memref<3x512x512xbf16, #tpu.memory_space<vmem>>, vector<1x512x512xbf16>
    %32 = vector.shape_cast %31 : vector<1x512x512xbf16> to vector<512x512xbf16>
    %cst_35 = arith.constant dense<0.000000e+00> : vector<16x512xf32>
    %33 = tpu.matmul %30, %32, %cst_35 {dimension_numbers = #tpu.dot_dimension_numbers<[1], [0], [0], [1], [0, 0, 1, 1], [], []>} : vector<16x512xbf16>, vector<512x512xbf16>, vector<16x512xf32> -> vector<16x512xf32>
    %34 = arith.addf %29, %33 : vector<16x512xf32>
    %c1_36 = arith.constant 1 : index
    %c0_37 = arith.constant 0 : index
    %35 = vector.load %arg9[%c1_36, %c0_37] : memref<18x512xbf16, #tpu.memory_space<vmem>>, vector<16x512xbf16>
    %c1_38 = arith.constant 1 : index
    %c0_39 = arith.constant 0 : index
    %c0_40 = arith.constant 0 : index
    %36 = vector.load %arg4[%c1_38, %c0_39, %c0_40] : memref<3x512x512xbf16, #tpu.memory_space<vmem>>, vector<1x512x512xbf16>
    %37 = vector.shape_cast %36 : vector<1x512x512xbf16> to vector<512x512xbf16>
    %cst_41 = arith.constant dense<0.000000e+00> : vector<16x512xf32>
    %38 = tpu.matmul %35, %37, %cst_41 {dimension_numbers = #tpu.dot_dimension_numbers<[1], [0], [0], [1], [0, 0, 1, 1], [], []>} : vector<16x512xbf16>, vector<512x512xbf16>, vector<16x512xf32> -> vector<16x512xf32>
    %39 = arith.addf %34, %38 : vector<16x512xf32>
    %c2_42 = arith.constant 2 : index
    %c0_43 = arith.constant 0 : index
    %40 = vector.load %arg9[%c2_42, %c0_43] : memref<18x512xbf16, #tpu.memory_space<vmem>>, vector<16x512xbf16>
    %c2_44 = arith.constant 2 : index
    %c0_45 = arith.constant 0 : index
    %c0_46 = arith.constant 0 : index
    %41 = vector.load %arg4[%c2_44, %c0_45, %c0_46] : memref<3x512x512xbf16, #tpu.memory_space<vmem>>, vector<1x512x512xbf16>
    %42 = vector.shape_cast %41 : vector<1x512x512xbf16> to vector<512x512xbf16>
    %cst_47 = arith.constant dense<0.000000e+00> : vector<16x512xf32>
    %43 = tpu.matmul %40, %42, %cst_47 {dimension_numbers = #tpu.dot_dimension_numbers<[1], [0], [0], [1], [0, 0, 1, 1], [], []>} : vector<16x512xbf16>, vector<512x512xbf16>, vector<16x512xf32> -> vector<16x512xf32>
    %44 = arith.addf %39, %43 : vector<16x512xf32>
    %c0_48 = arith.constant 0 : index
    %c0_49 = arith.constant 0 : index
    %45 = vector.load %arg5[%c0_48, %c0_49] : memref<1x512xf32, #tpu.memory_space<vmem>>, vector<1x512xf32>
    %46 = vector.broadcast %45 : vector<1x512xf32> to vector<16x512xf32>
    %47 = arith.addf %44, %46 : vector<16x512xf32>
    %48 = arith.extf %4 : vector<16x512xbf16> to vector<16x512xf32>
    %49 = arith.addf %47, %48 : vector<16x512xf32>
    %50 = arith.truncf %49 : vector<16x512xf32> to vector<16x512xbf16>
    %c1_50 = arith.constant 1 : index
    %c0_51 = arith.constant 0 : index
    %51 = vector.load %arg9[%c1_50, %c0_51] : memref<18x512xbf16, #tpu.memory_space<vmem>>, vector<16x512xbf16>
    tpu.vector_store %arg9[%c1_50, %c0_51], %50 {strides = array<i32>} : memref<18x512xbf16, #tpu.memory_space<vmem>>, vector<16x512xbf16>,
    %cst_52 = arith.constant 0.000000e+00 : f32
    %52 = vector.broadcast %cst_52 : f32 to vector<16x512xf32>
    %c0_53 = arith.constant 0 : index
    %c0_54 = arith.constant 0 : index
    %53 = vector.load %arg9[%c0_53, %c0_54] : memref<18x512xbf16, #tpu.memory_space<vmem>>, vector<16x512xbf16>
    %c0_55 = arith.constant 0 : index
    %c0_56 = arith.constant 0 : index
    %c0_57 = arith.constant 0 : index
    %54 = vector.load %arg6[%c0_55, %c0_56, %c0_57] : memref<3x512x512xbf16, #tpu.memory_space<vmem>>, vector<1x512x512xbf16>
    %55 = vector.shape_cast %54 : vector<1x512x512xbf16> to vector<512x512xbf16>
    %cst_58 = arith.constant dense<0.000000e+00> : vector<16x512xf32>
    %56 = tpu.matmul %53, %55, %cst_58 {dimension_numbers = #tpu.dot_dimension_numbers<[1], [0], [0], [1], [0, 0, 1, 1], [], []>} : vector<16x512xbf16>, vector<512x512xbf16>, vector<16x512xf32> -> vector<16x512xf32>
    %57 = arith.addf %52, %56 : vector<16x512xf32>
    %c1_59 = arith.constant 1 : index
    %c0_60 = arith.constant 0 : index
    %58 = vector.load %arg9[%c1_59, %c0_60] : memref<18x512xbf16, #tpu.memory_space<vmem>>, vector<16x512xbf16>
    %c1_61 = arith.constant 1 : index
    %c0_62 = arith.constant 0 : index
    %c0_63 = arith.constant 0 : index
    %59 = vector.load %arg6[%c1_61, %c0_62, %c0_63] : memref<3x512x512xbf16, #tpu.memory_space<vmem>>, vector<1x512x512xbf16>
    %60 = vector.shape_cast %59 : vector<1x512x512xbf16> to vector<512x512xbf16>
    %cst_64 = arith.constant dense<0.000000e+00> : vector<16x512xf32>
    %61 = tpu.matmul %58, %60, %cst_64 {dimension_numbers = #tpu.dot_dimension_numbers<[1], [0], [0], [1], [0, 0, 1, 1], [], []>} : vector<16x512xbf16>, vector<512x512xbf16>, vector<16x512xf32> -> vector<16x512xf32>
    %62 = arith.addf %57, %61 : vector<16x512xf32>
    %c2_65 = arith.constant 2 : index
    %c0_66 = arith.constant 0 : index
    %63 = vector.load %arg9[%c2_65, %c0_66] : memref<18x512xbf16, #tpu.memory_space<vmem>>, vector<16x512xbf16>
    %c2_67 = arith.constant 2 : index
    %c0_68 = arith.constant 0 : index
    %c0_69 = arith.constant 0 : index
    %64 = vector.load %arg6[%c2_67, %c0_68, %c0_69] : memref<3x512x512xbf16, #tpu.memory_space<vmem>>, vector<1x512x512xbf16>
    %65 = vector.shape_cast %64 : vector<1x512x512xbf16> to vector<512x512xbf16>
    %cst_70 = arith.constant dense<0.000000e+00> : vector<16x512xf32>
    %66 = tpu.matmul %63, %65, %cst_70 {dimension_numbers = #tpu.dot_dimension_numbers<[1], [0], [0], [1], [0, 0, 1, 1], [], []>} : vector<16x512xbf16>, vector<512x512xbf16>, vector<16x512xf32> -> vector<16x512xf32>
    %67 = arith.addf %62, %66 : vector<16x512xf32>
    %c0_71 = arith.constant 0 : index
    %c0_72 = arith.constant 0 : index
    %68 = vector.load %arg7[%c0_71, %c0_72] : memref<1x512xf32, #tpu.memory_space<vmem>>, vector<1x512xf32>
    %69 = vector.broadcast %68 : vector<1x512xf32> to vector<16x512xf32>
    %70 = arith.addf %67, %69 : vector<16x512xf32>
    %c0_73 = arith.constant 0 : index
    %c0_74 = arith.constant 0 : index
    %c0_75 = arith.constant 0 : index
    %71 = vector.load %arg8[%c0_73, %c0_74, %c0_75] : memref<1x16x512xf32, #tpu.memory_space<vmem>>, vector<1x16x512xf32>
    %72 = vector.shape_cast %71 : vector<1x16x512xf32> to vector<16x512xf32>
    %73 = vector.shape_cast %70 : vector<16x512xf32> to vector<1x16x512xf32>
    tpu.vector_store %arg8[%c0_73, %c0_74, %c0_75], %73 {strides = array<i32>} : memref<1x16x512xf32, #tpu.memory_space<vmem>>, vector<1x16x512xf32>,
    return
  }
  func.func @transform_0(%arg0: i32) -> (i32, i32, i32) {
    %c0_i32 = arith.constant 0 : i32
    %c0_i32_0 = arith.constant 0 : i32
    %c0_i32_1 = arith.constant 0 : i32
    return %arg0, %c0_i32, %c0_i32_0 : i32, i32, i32
  }
  func.func @transform_1(%arg0: i32) -> (i32, i32, i32) {
    %c0_i32 = arith.constant 0 : i32
    %c0_i32_0 = arith.constant 0 : i32
    %c0_i32_1 = arith.constant 0 : i32
    %c0_i32_2 = arith.constant 0 : i32
    return %c0_i32, %c0_i32_0, %c0_i32_1 : i32, i32, i32
  }
  func.func @transform_2(%arg0: i32) -> (i32, i32) {
    %c0_i32 = arith.constant 0 : i32
    %c0_i32_0 = arith.constant 0 : i32
    %c0_i32_1 = arith.constant 0 : i32
    return %c0_i32, %c0_i32_0 : i32, i32
  }
  func.func @transform_3(%arg0: i32) -> (i32, i32, i32) {
    %c0_i32 = arith.constant 0 : i32
    %c0_i32_0 = arith.constant 0 : i32
    %c0_i32_1 = arith.constant 0 : i32
    %c0_i32_2 = arith.constant 0 : i32
    return %c0_i32, %c0_i32_0, %c0_i32_1 : i32, i32, i32
  }
  func.func @transform_4(%arg0: i32) -> (i32, i32) {
    %c0_i32 = arith.constant 0 : i32
    %c0_i32_0 = arith.constant 0 : i32
    %c0_i32_1 = arith.constant 0 : i32
    return %c0_i32, %c0_i32_0 : i32, i32
  }
  func.func @transform_5(%arg0: i32) -> (i32, i32, i32) {
    %c0_i32 = arith.constant 0 : i32
    %c0_i32_0 = arith.constant 0 : i32
    %c0_i32_1 = arith.constant 0 : i32
    %c0_i32_2 = arith.constant 0 : i32
    return %c0_i32, %c0_i32_0, %c0_i32_1 : i32, i32, i32
  }
  func.func @transform_6(%arg0: i32) -> (i32, i32) {
    %c0_i32 = arith.constant 0 : i32
    %c0_i32_0 = arith.constant 0 : i32
    %c0_i32_1 = arith.constant 0 : i32
    return %c0_i32, %c0_i32_0 : i32, i32
  }
  func.func @transform_7(%arg0: i32) -> (i32, i32, i32) {
    %c0_i32 = arith.constant 0 : i32
    %c0_i32_0 = arith.constant 0 : i32
    %c0_i32_1 = arith.constant 0 : i32
    return %arg0, %c0_i32, %c0_i32_0 : i32, i32, i32
  }
}

</mosaic_0001>

<llo_original>
// kernel: tile.18
$region0: #{tile.18}
  #allocation0 [shape = 's32[1]{0}', space=sflag, size = 0x4, scoped, tag = 'scoped memory for tile.18']
  %s0 = inlined_call_operand.vmem [shape: f32[32], index: 0, kind: input, shape index: {}]
  %s1 = inlined_call_operand.vmem [shape: f32[16,32], index: 1, kind: output, shape index: {}]
  // Predicated region
  $region2: #{tile.18} parent=0 // pred_check
    _
  $region3: #{tile.18} parent=0 // pred_check_branch
    %3 = sbr.rel (0) target = $region5
  $region4: #{tile.18} parent=0 // pred_region
    _
  $region5: #{tile.18} parent=0 // pred_fallthru
    _
  %v4 = vld [vmem:[%s0] ss:$0 sm:$0xff]
  %5 = vst [vmem:[%s1] sm:$0xff] %v4
  %s6 = scalar_lea.vmem %s1, 8
  %7 = vst [vmem:[%s6] sm:$0xff] %v4

// kernel: tile.19
$region0: #{tile.19}
  %s0 = inlined_call_operand.vmem [shape: f32[16,32], index: 0, kind: input, shape index: {}]
  %s1 = inlined_call_operand.vmem [shape: f32[1,512], index: 1, kind: output, shape index: {}]
  $region1: #{tile.19} parent=0
    #allocation0 [shape = 'u8[16384]{0}', space=vmem, size = 0x4000, scoped, tag = 'scoped mem for output reshape']
    %v2 = vld [vmem:[%s0] ss:$4 sm:$0xf]
    %vm3 = vcmask 261120
    %4 = vst.msk [vmem:[#allocation0] ss:$8 sm:$0xf] %vm3, %v2
    %s5 = scalar_lea.vmem %s0, 3
    %v6 = vld [vmem:[%s5] ss:$4 sm:$0xf]
    %7 = vrot.lane.b32.xlu0 %v6, 96
    %v8 = vpop.permute.xlu0 %7
    %vm9 = vcmask 1048320
    %10 = vst.msk [vmem:[#allocation0] ss:$8 sm:$0xf] %vm9, %v8
    %s11 = scalar_lea.vmem %s0, 2
    %v12 = vld [vmem:[%s11] ss:$4 sm:$0xf]
    %13 = vrot.lane.b32.xlu0 %v12, 64
    %v14 = vpop.permute.xlu0 %13
    %vm15 = vcmask 785920
    %16 = vst.msk [vmem:[#allocation0] ss:$8 sm:$0xf] %vm15, %v14
    %s17 = scalar_lea.vmem %s0, 1
    %v18 = vld [vmem:[%s17] ss:$4 sm:$0xf]
    %19 = vrot.lane.b32.xlu0 %v18, 32
    %v20 = vpop.permute.xlu0 %19
    %vm21 = vcmask 523520
    %22 = vst.msk [vmem:[#allocation0] ss:$8 sm:$0xf] %vm21, %v20
    %s24 = sshllo.u32 0, 1
    %v26 = vld [vmem:[#allocation0] sm:%s24]
    %s27 = sshllo.u32 0, 1
    %28 = vst [vmem:[%s1] sm:%s27] %v26
    %s29 = scalar_lea.vmem [#allocation0], 8
    %v30 = vld [vmem:[%s29] sm:%s24]
    %s31 = sshllo.u32 0, 1
    %s32 = scalar_lea.vmem %s1, 1
    %33 = vst [vmem:[%s32] sm:%s31] %v30
    %s34 = scalar_lea.vmem [#allocation0], 16
    %v35 = vld [vmem:[%s34] sm:%s24]
    %s36 = sshllo.u32 0, 1
    %s37 = smul.addr 1, 2
    %s38 = scalar_lea.vmem %s1, %s37
    %39 = vst [vmem:[%s38] sm:%s36] %v35
    %s40 = scalar_lea.vmem [#allocation0], 24
    %v41 = vld [vmem:[%s40] sm:%s24]
    %s42 = sshllo.u32 0, 1
    %s43 = smul.addr 1, 3
    %s44 = scalar_lea.vmem %s1, %s43
    %45 = vst [vmem:[%s44] sm:%s42] %v41

// kernel: lastlayer2_forward.1
$region0: #{lastlayer2_forward.1}
  #allocation0 [shape = 'u32[]', space=smem, size = 0x4, offset = 0x4, fixed_abs, tag = 'smem constant byte address 0x4 - core index']
  #allocation1 [shape = 'u32[144,128]{1,0:T(1,128)}', space=vmem, size = 0x12000, scoped, tag = 'internal scratch']
  #allocation2 [shape = 'bf16[18,512]{1,0:T(8,128)(2,1)}', space=vmem, size = 0x6000, scoped, tag = 'scratch operand']
  %s0 = inlined_call_operand.vmem [shape: bf16[2,16,512], index: 0, kind: input, shape index: {}]
  %s1 = inlined_call_operand.vmem [shape: bf16[3,512,512], index: 1, kind: input, shape index: {}]
  %s2 = inlined_call_operand.vmem [shape: f32[1,512], index: 2, kind: input, shape index: {}]
  %s3 = inlined_call_operand.vmem [shape: bf16[3,512,512], index: 3, kind: input, shape index: {}]
  %s4 = inlined_call_operand.vmem [shape: f32[1,512], index: 4, kind: input, shape index: {}]
  %s5 = inlined_call_operand.vmem [shape: bf16[3,512,512], index: 5, kind: input, shape index: {}]
  %s6 = inlined_call_operand.vmem [shape: f32[1,512], index: 6, kind: input, shape index: {}]
  %s7 = inlined_call_operand.vmem [shape: f32[2,16,512], index: 7, kind: output, shape index: {}]
  %s8 = sld [smem:[#allocation0]]
  $region61: #{lastlayer2_forward.1} parent=0
    _
  %s10 = ssub.s32 1, %s8
  %s11 = scalar_select 0, %s10, %s8
  loop: start=0, step=1, limit=4
  $region2: #{lastlayer2_forward.1} parent=0 // loop_pre_header
    _
  $region3: #{lastlayer2_forward.1} parent=0 // loop_header
    %s13 = sphi 0, %s17
    %p14 = scmp.ge.s32.totalorder %s13, 4
    %s23 = sphi 0, %s25
    %s26 = sphi 0, %s23
    %s27 = sphi 0, %s26
    %s43 = sphi 0, %s27
    %s47 = sphi 0, %s47
    %s49 = sphi 0, %s47
    %s50 = sphi 0, %s49
    %s64 = sphi 0, %s50
    %s68 = sphi 0, %s68
    %s70 = sphi 0, %s68
    %s71 = sphi 0, %s70
    %s85 = sphi 0, %s71
    %s89 = sphi 0, %s89
    %s91 = sphi 0, %s89
    %s92 = sphi 0, %s91
    %s106 = sphi 0, %s92
    %s110 = sphi 0, %s110
    %s112 = sphi 0, %s110
    %s113 = sphi 0, %s112
    %s127 = sphi 0, %s113
    %s131 = sphi 0, %s131
    %s133 = sphi 0, %s131
    %s134 = sphi 0, %s133
    %s148 = sphi 0, %s134
    %s152 = sphi 0, %s152
    %s154 = sphi 0, %s152
    %s155 = sphi 0, %s154
    %s169 = sphi 0, %s155
    %s175 = sphi 0, %s177
    %s178 = sphi 0, %s175
    %s179 = sphi 0, %s178
    %s195 = sphi 0, %s179
  $region4: #{lastlayer2_forward.1} parent=0 // loop_header_branch
    %16 = sbr.rel (%p14) target = $region8
  $region5: #{lastlayer2_forward.1} parent=0 // loop_body
    %s18 = ssub.s32 %s13, 1
    %s19 = ssub.s32 %s13, 2
    %s20 = sadd.s32 %s13, 1
    %s21 = ssub.s32 %s13, %s20
    %p22 = scmp.eq.s32.totalorder %s21, 0
    %s24 = sadd.s32 %s23, 1
    %s25 = scalar_select %p22, %s23, %s24
    %p28 = pneg %p22
    %p29 = scmp.eq.s32.totalorder %s13, 1
    %p30 = por %p28, %p29
    %p31 = scmp.ne.s32.totalorder %s23, %s26
    %p32 = scmp.eq.s32.totalorder %s13, 0
    %p33 = por %p31, %p32
    %p34 = scmp.ne.s32.totalorder %s23, %s26
    %p35 = scmp.eq.s32.totalorder %s18, 1
    %p36 = por %p34, %p35
    %p37 = scmp.ne.s32.totalorder %s26, %s27
    %p38 = scmp.eq.s32.totalorder %s18, 0
    %p39 = por %p37, %p38
    %p40 = scmp.ne.s32.totalorder %s26, %s27
    %p41 = scmp.eq.s32.totalorder %s19, 1
    %p42 = por %p40, %p41
    %p44 = scmp.ne.s32.totalorder %s27, %s43
    %p45 = scmp.eq.s32.totalorder %s19, 0
    %p46 = por %p44, %p45
    %s48 = sadd.s32 %s47, 1
    %p51 = scmp.eq.s32.totalorder %s13, 1
    %p52 = scmp.ne.s32.totalorder %s47, %s49
    %p53 = scmp.eq.s32.totalorder %s13, 0
    %p54 = por %p52, %p53
    %p55 = scmp.ne.s32.totalorder %s47, %s49
    %p56 = scmp.eq.s32.totalorder %s18, 1
    %p57 = por %p55, %p56
    %p58 = scmp.ne.s32.totalorder %s49, %s50
    %p59 = scmp.eq.s32.totalorder %s18, 0
    %p60 = por %p58, %p59
    %p61 = scmp.ne.s32.totalorder %s49, %s50
    %p62 = scmp.eq.s32.totalorder %s19, 1
    %p63 = por %p61, %p62
    %p65 = scmp.ne.s32.totalorder %s50, %s64
    %p66 = scmp.eq.s32.totalorder %s19, 0
    %p67 = por %p65, %p66
    %s69 = sadd.s32 %s68, 1
    %p72 = scmp.eq.s32.totalorder %s13, 1
    %p73 = scmp.ne.s32.totalorder %s68, %s70
    %p74 = scmp.eq.s32.totalorder %s13, 0
    %p75 = por %p73, %p74
    %p76 = scmp.ne.s32.totalorder %s68, %s70
    %p77 = scmp.eq.s32.totalorder %s18, 1
    %p78 = por %p76, %p77
    %p79 = scmp.ne.s32.totalorder %s70, %s71
    %p80 = scmp.eq.s32.totalorder %s18, 0
    %p81 = por %p79, %p80
    %p82 = scmp.ne.s32.totalorder %s70, %s71
    %p83 = scmp.eq.s32.totalorder %s19, 1
    %p84 = por %p82, %p83
    %p86 = scmp.ne.s32.totalorder %s71, %s85
    %p87 = scmp.eq.s32.totalorder %s19, 0
    %p88 = por %p86, %p87
    %s90 = sadd.s32 %s89, 1
    %p93 = scmp.eq.s32.totalorder %s13, 1
    %p94 = scmp.ne.s32.totalorder %s89, %s91
    %p95 = scmp.eq.s32.totalorder %s13, 0
    %p96 = por %p94, %p95
    %p97 = scmp.ne.s32.totalorder %s89, %s91
    %p98 = scmp.eq.s32.totalorder %s18, 1
    %p99 = por %p97, %p98
    %p100 = scmp.ne.s32.totalorder %s91, %s92
    %p101 = scmp.eq.s32.totalorder %s18, 0
    %p102 = por %p100, %p101
    %p103 = scmp.ne.s32.totalorder %s91, %s92
    %p104 = scmp.eq.s32.totalorder %s19, 1
    %p105 = por %p103, %p104
    %p107 = scmp.ne.s32.totalorder %s92, %s106
    %p108 = scmp.eq.s32.totalorder %s19, 0
    %p109 = por %p107, %p108
    %s111 = sadd.s32 %s110, 1
    %p114 = scmp.eq.s32.totalorder %s13, 1
    %p115 = scmp.ne.s32.totalorder %s110, %s112
    %p116 = scmp.eq.s32.totalorder %s13, 0
    %p117 = por %p115, %p116
    %p118 = scmp.ne.s32.totalorder %s110, %s112
    %p119 = scmp.eq.s32.totalorder %s18, 1
    %p120 = por %p118, %p119
    %p121 = scmp.ne.s32.totalorder %s112, %s113
    %p122 = scmp.eq.s32.totalorder %s18, 0
    %p123 = por %p121, %p122
    %p124 = scmp.ne.s32.totalorder %s112, %s113
    %p125 = scmp.eq.s32.totalorder %s19, 1
    %p126 = por %p124, %p125
    %p128 = scmp.ne.s32.totalorder %s113, %s127
    %p129 = scmp.eq.s32.totalorder %s19, 0
    %p130 = por %p128, %p129
    %s132 = sadd.s32 %s131, 1
    %p135 = scmp.eq.s32.totalorder %s13, 1
    %p136 = scmp.ne.s32.totalorder %s131, %s133
    %p137 = scmp.eq.s32.totalorder %s13, 0
    %p138 = por %p136, %p137
    %p139 = scmp.ne.s32.totalorder %s131, %s133
    %p140 = scmp.eq.s32.totalorder %s18, 1
    %p141 = por %p139, %p140
    %p142 = scmp.ne.s32.totalorder %s133, %s134
    %p143 = scmp.eq.s32.totalorder %s18, 0
    %p144 = por %p142, %p143
    %p145 = scmp.ne.s32.totalorder %s133, %s134
    %p146 = scmp.eq.s32.totalorder %s19, 1
    %p147 = por %p145, %p146
    %p149 = scmp.ne.s32.totalorder %s134, %s148
    %p150 = scmp.eq.s32.totalorder %s19, 0
    %p151 = por %p149, %p150
    %s153 = sadd.s32 %s152, 1
    %p156 = scmp.eq.s32.totalorder %s13, 1
    %p157 = scmp.ne.s32.totalorder %s152, %s154
    %p158 = scmp.eq.s32.totalorder %s13, 0
    %p159 = por %p157, %p158
    %p160 = scmp.ne.s32.totalorder %s152, %s154
    %p161 = scmp.eq.s32.totalorder %s18, 1
    %p162 = por %p160, %p161
    %p163 = scmp.ne.s32.totalorder %s154, %s155
    %p164 = scmp.eq.s32.totalorder %s18, 0
    %p165 = por %p163, %p164
    %p166 = scmp.ne.s32.totalorder %s154, %s155
    %p167 = scmp.eq.s32.totalorder %s19, 1
    %p168 = por %p166, %p167
    %p170 = scmp.ne.s32.totalorder %s155, %s169
    %p171 = scmp.eq.s32.totalorder %s19, 0
    %p172 = por %p170, %p171
    %s173 = ssub.s32 %s13, %s20
    %p174 = scmp.eq.s32.totalorder %s173, 0
    %s176 = sadd.s32 %s175, 1
    %s177 = scalar_select %p174, %s175, %s176
    %p180 = pneg %p174
    %p181 = scmp.eq.s32.totalorder %s13, 1
    %p182 = por %p180, %p181
    %p183 = scmp.ne.s32.totalorder %s175, %s178
    %p184 = scmp.eq.s32.totalorder %s13, 0
    %p185 = por %p183, %p184
    %p186 = scmp.ne.s32.totalorder %s175, %s178
    %p187 = scmp.eq.s32.totalorder %s18, 1
    %p188 = por %p186, %p187
    %p189 = scmp.ne.s32.totalorder %s178, %s179
    %p190 = scmp.eq.s32.totalorder %s18, 0
    %p191 = por %p189, %p190
    %p192 = scmp.ne.s32.totalorder %s178, %s179
    %p193 = scmp.eq.s32.totalorder %s19, 1
    %p194 = por %p192, %p193
    %p196 = scmp.ne.s32.totalorder %s179, %s195
    %p197 = scmp.eq.s32.totalorder %s19, 0
    %p198 = por %p196, %p197
    %p199 = scmp.le.s32.totalorder 1, %s13
    %p200 = scmp.lt.s32.totalorder %s13, 3
    %p201 = pnand %p199, %p200
    %p202 = pneg %p201
    // Predicated region
    $region9: #{lastlayer2_forward.1} parent=5 // pred_check
      _
    $region10: #{lastlayer2_forward.1} parent=5 // pred_check_branch
      %204 = sbr.rel (%p201) target = $region12
    $region11: #{lastlayer2_forward.1} parent=5 // pred_region
      %s205 = ssub.s32 %s13, 1
      // Predicated region
      $region13: #{lastlayer2_forward.1} parent=11 // pred_check
        %p206 = pneg %p60
      $region14: #{lastlayer2_forward.1} parent=11 // pred_check_branch
        %208 = sbr.rel (%p206) target = $region16
      $region15: #{lastlayer2_forward.1} parent=11 // pred_region
        _
      $region16: #{lastlayer2_forward.1} parent=11 // pred_fallthru
        _
      // Predicated region
      $region17: #{lastlayer2_forward.1} parent=11 // pred_check
        %p209 = pneg %p81
      $region18: #{lastlayer2_forward.1} parent=11 // pred_check_branch
        %211 = sbr.rel (%p209) target = $region20
      $region19: #{lastlayer2_forward.1} parent=11 // pred_region
        _
      $region20: #{lastlayer2_forward.1} parent=11 // pred_fallthru
        _
      // Predicated region
      $region21: #{lastlayer2_forward.1} parent=11 // pred_check
        %p212 = pneg %p102
      $region22: #{lastlayer2_forward.1} parent=11 // pred_check_branch
        %214 = sbr.rel (%p212) target = $region24
      $region23: #{lastlayer2_forward.1} parent=11 // pred_region
        _
      $region24: #{lastlayer2_forward.1} parent=11 // pred_fallthru
        _
      // Predicated region
      $region25: #{lastlayer2_forward.1} parent=11 // pred_check
        %p215 = pneg %p123
      $region26: #{lastlayer2_forward.1} parent=11 // pred_check_branch
        %217 = sbr.rel (%p215) target = $region28
      $region27: #{lastlayer2_forward.1} parent=11 // pred_region
        _
      $region28: #{lastlayer2_forward.1} parent=11 // pred_fallthru
        _
      // Predicated region
      $region29: #{lastlayer2_forward.1} parent=11 // pred_check
        %p218 = pneg %p144
      $region30: #{lastlayer2_forward.1} parent=11 // pred_check_branch
        %220 = sbr.rel (%p218) target = $region32
      $region31: #{lastlayer2_forward.1} parent=11 // pred_region
        _
      $region32: #{lastlayer2_forward.1} parent=11 // pred_fallthru
        _
      // Predicated region
      $region33: #{lastlayer2_forward.1} parent=11 // pred_check
        %p221 = pneg %p165
      $region34: #{lastlayer2_forward.1} parent=11 // pred_check_branch
        %223 = sbr.rel (%p221) target = $region36
      $region35: #{lastlayer2_forward.1} parent=11 // pred_region
        _
      $region36: #{lastlayer2_forward.1} parent=11 // pred_fallthru
        _
    $region12: #{lastlayer2_forward.1} parent=5 // pred_fallthru
      _
    %p224 = scmp.lt.s32.totalorder %s13, 2
    // Predicated region
    $region37: #{lastlayer2_forward.1} parent=5 // pred_check
      %p225 = pneg %p224
    $region38: #{lastlayer2_forward.1} parent=5 // pred_check_branch
      %227 = sbr.rel (%p225) target = $region40
    $region39: #{lastlayer2_forward.1} parent=5 // pred_region
      // Predicated region
      $region41: #{lastlayer2_forward.1} parent=39 // pred_check
        %p228 = pneg %p33
      $region42: #{lastlayer2_forward.1} parent=39 // pred_check_branch
        %230 = sbr.rel (%p228) target = $region44
      $region43: #{lastlayer2_forward.1} parent=39 // pred_region
        %p231 = scmp.lt.s32.totalorder %s13, 1
        %s232 = scalar_select %p231, %s13, 1
        %s233 = smul.addr %s232, 8
        %s234 = smul.addr %s233, 4
        %s235 = scalar_lea.vmem %s0, %s234
      $region44: #{lastlayer2_forward.1} parent=39 // pred_fallthru
        _
    $region40: #{lastlayer2_forward.1} parent=5 // pred_fallthru
      _
    %p236 = scmp.le.s32.totalorder 1, %s13
    %p237 = scmp.lt.s32.totalorder %s13, 3
    %p238 = pnand %p236, %p237
    %p239 = pneg %p238
    // Predicated region
    $region45: #{lastlayer2_forward.1} parent=5 // pred_check
      _
    $region46: #{lastlayer2_forward.1} parent=5 // pred_check_branch
      %241 = sbr.rel (%p238) target = $region48
    $region47: #{lastlayer2_forward.1} parent=5 // pred_region
      %s242 = ssub.s32 %s13, 1
      %p243 = scmp.lt.s32.totalorder %s18, 1
      %s244 = scalar_select %p243, %s18, 1
      %s245 = smul.addr %s244, 8
      %s246 = smul.addr %s245, 4
      %s247 = scalar_lea.vmem %s0, %s246
      %p248 = pneg %p39
      %p249 = pneg %p36
      %p250 = pneg %p60
      %p251 = pneg %p57
      %p252 = pneg %p81
      %p253 = pneg %p78
      %p254 = pneg %p102
      %p255 = pneg %p99
      %p256 = pneg %p123
      %p257 = pneg %p120
      %p258 = pneg %p144
      %p259 = pneg %p141
      %p260 = pneg %p165
      %p261 = pneg %p162
      %p262 = pneg %p191
      %p263 = pneg %p188
      %p264 = scmp.lt.s32.totalorder %s18, 1
      %s265 = scalar_select %p264, %s18, 1
      %s266 = smul.addr %s265, 8
      %s267 = smul.addr %s266, 8
      %s268 = scalar_lea.vmem %s7, %s267
      %p269 = scmp.lt.s32.totalorder %s18, 1
      %s270 = scalar_select %p269, %s18, 1
      %s271 = smul.addr %s270, 8
      %s272 = smul.addr %s271, 4
      %s273 = scalar_lea.vmem %s0, %s272
      %p274 = scmp.lt.s32.totalorder %s18, 1
      %s275 = scalar_select %p274, %s18, 1
      %s276 = smul.addr %s275, 8
      %s277 = smul.addr %s276, 8
      %s278 = scalar_lea.vmem %s7, %s277
      %vm280 = vcmask 1040384
      %vm281 = vsmask.f32 256
      %vm282 = vmand %vm280, %vm281
      %vm283 = vcmask 1044484
      %vm284 = vsmask.f32 4352
      %vm285 = vmand %vm283, %vm284
      %vm286 = vmor %vm285, %vm282
      %v287 = vld [vmem:[#allocation2] sm:$0x11]
      %v288 = vsel %vm286, 0, %v287
      %289 = vst [vmem:[#allocation2] sm:$0x11] %v288
      %v290 = vld [vmem:[#allocation2 + $0x8] sm:$0x11]
      %v291 = vsel %vm286, 0, %v290
      %292 = vst [vmem:[#allocation2 + $0x8] sm:$0x11] %v291
      %vm293 = vsmask.f32 7938
      %vm294 = vmand %vm280, %vm293
      %vm295 = vsmask.f32 7954
      %vm296 = vmand %vm283, %vm295
      %vm297 = vmor %vm296, %vm294
      %v298 = vld [vmem:[#allocation2 + $0x20] sm:$0x11]
      %v299 = vsel %vm297, 0, %v298
      %300 = vst [vmem:[#allocation2 + $0x20] sm:$0x11] %v299
      %v301 = vld [vmem:[#allocation2 + $0x28] sm:$0x11]
      %v302 = vsel %vm297, 0, %v301
      %303 = vst [vmem:[#allocation2 + $0x28] sm:$0x11] %v302
      %v304 = vld [vmem:[%s273] sm:$0xff]
      %v305 = vld [vmem:[%s273 + $0x8] sm:$0xff]
      %v306 = vld [vmem:[%s273 + $0x10] sm:$0xff]
      %v307 = vld [vmem:[%s273 + $0x18] sm:$0xff]
      %vm308 = vsmask.f32 4368
      %vm309 = vmor %vm281, %vm308
      %v311 = vshrl.u32 %v304, 16
      %v313 = vrot.slane %v311, 7
      %v314 = vshll.u32 %v304, 16
      %v316 = vor.u32 %v313, %v314
      %v318 = vshrl.u32 %v305, 16
      %v320 = vrot.slane %v318, 7
      %v321 = vshll.u32 %v305, 16
      %v323 = vor.u32 %v320, %v321
      %v324 = vrot.slane %v313, 4
      %v326 = vshrl.u32 %v306, 16
      %v328 = vrot.slane %v326, 7
      %v329 = vshll.u32 %v306, 16
      %v331 = vor.u32 %v328, %v329
      %v332 = vsel %vm309, %v324, %v331
      %v333 = vrot.slane %v320, 4
      %v335 = vshrl.u32 %v307, 16
      %v337 = vrot.slane %v335, 7
      %v338 = vshll.u32 %v307, 16
      %v340 = vor.u32 %v337, %v338
      %v341 = vsel %vm309, %v333, %v340
      %v342 = vrot.slane %v328, 4
      %v343 = vrot.slane %v337, 4
      %vm350 = vcmask 1043456
      %vm351 = vmand %vm350, %vm293
      %vm352 = vcmask 1047556
      %vm353 = vmand %vm352, %vm295
      %vm354 = vmor %vm353, %vm351
      %v355 = vld [vmem:[#allocation2] sm:$0xff]
      %v356 = vsel %vm354, %v316, %v355
      %357 = vst [vmem:[#allocation2] sm:$0xff] %v356
      %v358 = vld [vmem:[#allocation2 + $0x8] sm:$0xff]
      %v359 = vsel %vm354, %v323, %v358
      %360 = vst [vmem:[#allocation2 + $0x8] sm:$0xff] %v359
      %361 = vst [vmem:[#allocation2 + $0x10] sm:$0xff] %v332
      %362 = vst [vmem:[#allocation2 + $0x18] sm:$0xff] %v341
      %v363 = vld [vmem:[#allocation2 + $0x20] sm:$0x11]
      %v364 = vsel %vm286, %v342, %v363
      %365 = vst [vmem:[#allocation2 + $0x20] sm:$0x11] %v364
      %v366 = vld [vmem:[#allocation2 + $0x28] sm:$0x11]
      %v367 = vsel %vm286, %v343, %v366
      %368 = vst [vmem:[#allocation2 + $0x28] sm:$0x11] %v367
      %v369 = vld [vmem:[#allocation2] sm:$0xff]
      %v370 = vld [vmem:[#allocation2 + $0x8] sm:$0xff]
      %v371 = vld [vmem:[#allocation2 + $0x10] sm:$0xff]
      %v372 = vld [vmem:[#allocation2 + $0x18] sm:$0xff]
      %v373 = vld [vmem:[%s1] sm:$0xff]
      %v374 = vld [vmem:[%s1 + $0x8] sm:$0xff]
      %v375 = vld [vmem:[%s1 + $0x10] sm:$0xff]
      %v376 = vld [vmem:[%s1 + $0x18] sm:$0xff]
      %v377 = vld [vmem:[%s1 + $0x20] sm:$0xff]
      %v378 = vld [vmem:[%s1 + $0x28] sm:$0xff]
      %v379 = vld [vmem:[%s1 + $0x30] sm:$0xff]
      %v380 = vld [vmem:[%s1 + $0x38] sm:$0xff]
      %v381 = vld [vmem:[%s1 + $0x40] sm:$0xff]
      %v382 = vld [vmem:[%s1 + $0x48] sm:$0xff]
      %v383 = vld [vmem:[%s1 + $0x50] sm:$0xff]
      %v384 = vld [vmem:[%s1 + $0x58] sm:$0xff]
      %v385 = vld [vmem:[%s1 + $0x60] sm:$0xff]
      %v386 = vld [vmem:[%s1 + $0x68] sm:$0xff]
      %v387 = vld [vmem:[%s1 + $0x70] sm:$0xff]
      %v388 = vld [vmem:[%s1 + $0x78] sm:$0xff]
      %v389 = vld [vmem:[%s1 + $0x80] sm:$0xff]
      %v390 = vld [vmem:[%s1 + $0x88] sm:$0xff]
      %v391 = vld [vmem:[%s1 + $0x90] sm:$0xff]
      %v392 = vld [vmem:[%s1 + $0x98] sm:$0xff]
      %v393 = vld [vmem:[%s1 + $0xa0] sm:$0xff]
      %v394 = vld [vmem:[%s1 + $0xa8] sm:$0xff]
      %v395 = vld [vmem:[%s1 + $0xb0] sm:$0xff]
      %v396 = vld [vmem:[%s1 + $0xb8] sm:$0xff]
      %v397 = vld [vmem:[%s1 + $0xc0] sm:$0xff]
      %v398 = vld [vmem:[%s1 + $0xc8] sm:$0xff]
      %v399 = vld [vmem:[%s1 + $0xd0] sm:$0xff]
      %v400 = vld [vmem:[%s1 + $0xd8] sm:$0xff]
      %v401 = vld [vmem:[%s1 + $0xe0] sm:$0xff]
      %v402 = vld [vmem:[%s1 + $0xe8] sm:$0xff]
      %v403 = vld [vmem:[%s1 + $0xf0] sm:$0xff]
      %v404 = vld [vmem:[%s1 + $0xf8] sm:$0xff]
      %v405 = vld [vmem:[%s1 + $0x100] sm:$0xff]
      %v406 = vld [vmem:[%s1 + $0x108] sm:$0xff]
      %v407 = vld [vmem:[%s1 + $0x110] sm:$0xff]
      %v408 = vld [vmem:[%s1 + $0x118] sm:$0xff]
      %v409 = vld [vmem:[%s1 + $0x120] sm:$0xff]
      %v410 = vld [vmem:[%s1 + $0x128] sm:$0xff]
      %v411 = vld [vmem:[%s1 + $0x130] sm:$0xff]
      %v412 = vld [vmem:[%s1 + $0x138] sm:$0xff]
      %v413 = vld [vmem:[%s1 + $0x140] sm:$0xff]
      %v414 = vld [vmem:[%s1 + $0x148] sm:$0xff]
      %v415 = vld [vmem:[%s1 + $0x150] sm:$0xff]
      %v416 = vld [vmem:[%s1 + $0x158] sm:$0xff]
      %v417 = vld [vmem:[%s1 + $0x160] sm:$0xff]
      %v418 = vld [vmem:[%s1 + $0x168] sm:$0xff]
      %v419 = vld [vmem:[%s1 + $0x170] sm:$0xff]
      %v420 = vld [vmem:[%s1 + $0x178] sm:$0xff]
      %v421 = vld [vmem:[%s1 + $0x180] sm:$0xff]
      %v422 = vld [vmem:[%s1 + $0x188] sm:$0xff]
      %v423 = vld [vmem:[%s1 + $0x190] sm:$0xff]
      %v424 = vld [vmem:[%s1 + $0x198] sm:$0xff]
      %v425 = vld [vmem:[%s1 + $0x1a0] sm:$0xff]
      %v426 = vld [vmem:[%s1 + $0x1a8] sm:$0xff]
      %v427 = vld [vmem:[%s1 + $0x1b0] sm:$0xff]
      %v428 = vld [vmem:[%s1 + $0x1b8] sm:$0xff]
      %v429 = vld [vmem:[%s1 + $0x1c0] sm:$0xff]
      %v430 = vld [vmem:[%s1 + $0x1c8] sm:$0xff]
      %v431 = vld [vmem:[%s1 + $0x1d0] sm:$0xff]
      %v432 = vld [vmem:[%s1 + $0x1d8] sm:$0xff]
      %v433 = vld [vmem:[%s1 + $0x1e0] sm:$0xff]
      %v434 = vld [vmem:[%s1 + $0x1e8] sm:$0xff]
      %v435 = vld [vmem:[%s1 + $0x1f0] sm:$0xff]
      %v436 = vld [vmem:[%s1 + $0x1f8] sm:$0xff]
      %v437 = vld [vmem:[%s1 + $0x200] sm:$0xff]
      %v438 = vld [vmem:[%s1 + $0x208] sm:$0xff]
      %v439 = vld [vmem:[%s1 + $0x210] sm:$0xff]
      %v440 = vld [vmem:[%s1 + $0x218] sm:$0xff]
      %v441 = vld [vmem:[%s1 + $0x220] sm:$0xff]
      %v442 = vld [vmem:[%s1 + $0x228] sm:$0xff]
      %v443 = vld [vmem:[%s1 + $0x230] sm:$0xff]
      %v444 = vld [vmem:[%s1 + $0x238] sm:$0xff]
      %v445 = vld [vmem:[%s1 + $0x240] sm:$0xff]
      %v446 = vld [vmem:[%s1 + $0x248] sm:$0xff]
      %v447 = vld [vmem:[%s1 + $0x250] sm:$0xff]
      %v448 = vld [vmem:[%s1 + $0x258] sm:$0xff]
      %v449 = vld [vmem:[%s1 + $0x260] sm:$0xff]
      %v450 = vld [vmem:[%s1 + $0x268] sm:$0xff]
      %v451 = vld [vmem:[%s1 + $0x270] sm:$0xff]
      %v452 = vld [vmem:[%s1 + $0x278] sm:$0xff]
      %v453 = vld [vmem:[%s1 + $0x280] sm:$0xff]
      %v454 = vld [vmem:[%s1 + $0x288] sm:$0xff]
      %v455 = vld [vmem:[%s1 + $0x290] sm:$0xff]
      %v456 = vld [vmem:[%s1 + $0x298] sm:$0xff]
      %v457 = vld [vmem:[%s1 + $0x2a0] sm:$0xff]
      %v458 = vld [vmem:[%s1 + $0x2a8] sm:$0xff]
      %v459 = vld [vmem:[%s1 + $0x2b0] sm:$0xff]
      %v460 = vld [vmem:[%s1 + $0x2b8] sm:$0xff]
      %v461 = vld [vmem:[%s1 + $0x2c0] sm:$0xff]
      %v462 = vld [vmem:[%s1 + $0x2c8] sm:$0xff]
      %v463 = vld [vmem:[%s1 + $0x2d0] sm:$0xff]
      %v464 = vld [vmem:[%s1 + $0x2d8] sm:$0xff]
      %v465 = vld [vmem:[%s1 + $0x2e0] sm:$0xff]
      %v466 = vld [vmem:[%s1 + $0x2e8] sm:$0xff]
      %v467 = vld [vmem:[%s1 + $0x2f0] sm:$0xff]
      %v468 = vld [vmem:[%s1 + $0x2f8] sm:$0xff]
      %v469 = vld [vmem:[%s1 + $0x300] sm:$0xff]
      %v470 = vld [vmem:[%s1 + $0x308] sm:$0xff]
      %v471 = vld [vmem:[%s1 + $0x310] sm:$0xff]
      %v472 = vld [vmem:[%s1 + $0x318] sm:$0xff]
      %v473 = vld [vmem:[%s1 + $0x320] sm:$0xff]
      %v474 = vld [vmem:[%s1 + $0x328] sm:$0xff]
      %v475 = vld [vmem:[%s1 + $0x330] sm:$0xff]
      %v476 = vld [vmem:[%s1 + $0x338] sm:$0xff]
      %v477 = vld [vmem:[%s1 + $0x340] sm:$0xff]
      %v478 = vld [vmem:[%s1 + $0x348] sm:$0xff]
      %v479 = vld [vmem:[%s1 + $0x350] sm:$0xff]
      %v480 = vld [vmem:[%s1 + $0x358] sm:$0xff]
      %v481 = vld [vmem:[%s1 + $0x360] sm:$0xff]
      %v482 = vld [vmem:[%s1 + $0x368] sm:$0xff]
      %v483 = vld [vmem:[%s1 + $0x370] sm:$0xff]
      %v484 = vld [vmem:[%s1 + $0x378] sm:$0xff]
      %v485 = vld [vmem:[%s1 + $0x380] sm:$0xff]
      %v486 = vld [vmem:[%s1 + $0x388] sm:$0xff]
      %v487 = vld [vmem:[%s1 + $0x390] sm:$0xff]
      %v488 = vld [vmem:[%s1 + $0x398] sm:$0xff]
      %v489 = vld [vmem:[%s1 + $0x3a0] sm:$0xff]
      %v490 = vld [vmem:[%s1 + $0x3a8] sm:$0xff]
      %v491 = vld [vmem:[%s1 + $0x3b0] sm:$0xff]
      %v492 = vld [vmem:[%s1 + $0x3b8] sm:$0xff]
      %v493 = vld [vmem:[%s1 + $0x3c0] sm:$0xff]
      %v494 = vld [vmem:[%s1 + $0x3c8] sm:$0xff]
      %v495 = vld [vmem:[%s1 + $0x3d0] sm:$0xff]
      %v496 = vld [vmem:[%s1 + $0x3d8] sm:$0xff]
      %v497 = vld [vmem:[%s1 + $0x3e0] sm:$0xff]
      %v498 = vld [vmem:[%s1 + $0x3e8] sm:$0xff]
      %v499 = vld [vmem:[%s1 + $0x3f0] sm:$0xff]
      %v500 = vld [vmem:[%s1 + $0x3f8] sm:$0xff]
      %v501 = vld [vmem:[#allocation2 + $0x20] sm:$0x11]
      %v502 = vld [vmem:[#allocation2 + $0x28] sm:$0x11]
      %s503 = scalar_lea.vmem %s1, 1024
      %v504 = vld [vmem:[%s503] sm:$0xff]
      %v505 = vld [vmem:[%s503 + $0x8] sm:$0xff]
      %v506 = vld [vmem:[%s503 + $0x10] sm:$0xff]
      %v507 = vld [vmem:[%s503 + $0x18] sm:$0xff]
      %v508 = vld [vmem:[%s503 + $0x20] sm:$0xff]
      %v509 = vld [vmem:[%s503 + $0x28] sm:$0xff]
      %v510 = vld [vmem:[%s503 + $0x30] sm:$0xff]
      %v511 = vld [vmem:[%s503 + $0x38] sm:$0xff]
      %v512 = vld [vmem:[%s503 + $0x40] sm:$0xff]
      %v513 = vld [vmem:[%s503 + $0x48] sm:$0xff]
      %v514 = vld [vmem:[%s503 + $0x50] sm:$0xff]
      %v515 = vld [vmem:[%s503 + $0x58] sm:$0xff]
      %v516 = vld [vmem:[%s503 + $0x60] sm:$0xff]
      %v517 = vld [vmem:[%s503 + $0x68] sm:$0xff]
      %v518 = vld [vmem:[%s503 + $0x70] sm:$0xff]
      %v519 = vld [vmem:[%s503 + $0x78] sm:$0xff]
      %v520 = vld [vmem:[%s503 + $0x80] sm:$0xff]
      %v521 = vld [vmem:[%s503 + $0x88] sm:$0xff]
      %v522 = vld [vmem:[%s503 + $0x90] sm:$0xff]
      %v523 = vld [vmem:[%s503 + $0x98] sm:$0xff]
      %v524 = vld [vmem:[%s503 + $0xa0] sm:$0xff]
      %v525 = vld [vmem:[%s503 + $0xa8] sm:$0xff]
      %v526 = vld [vmem:[%s503 + $0xb0] sm:$0xff]
      %v527 = vld [vmem:[%s503 + $0xb8] sm:$0xff]
      %v528 = vld [vmem:[%s503 + $0xc0] sm:$0xff]
      %v529 = vld [vmem:[%s503 + $0xc8] sm:$0xff]
      %v530 = vld [vmem:[%s503 + $0xd0] sm:$0xff]
      %v531 = vld [vmem:[%s503 + $0xd8] sm:$0xff]
      %v532 = vld [vmem:[%s503 + $0xe0] sm:$0xff]
      %v533 = vld [vmem:[%s503 + $0xe8] sm:$0xff]
      %v534 = vld [vmem:[%s503 + $0xf0] sm:$0xff]
      %v535 = vld [vmem:[%s503 + $0xf8] sm:$0xff]
      %v536 = vld [vmem:[%s503 + $0x100] sm:$0xff]
      %v537 = vld [vmem:[%s503 + $0x108] sm:$0xff]
      %v538 = vld [vmem:[%s503 + $0x110] sm:$0xff]
      %v539 = vld [vmem:[%s503 + $0x118] sm:$0xff]
      %v540 = vld [vmem:[%s503 + $0x120] sm:$0xff]
      %v541 = vld [vmem:[%s503 + $0x128] sm:$0xff]
      %v542 = vld [vmem:[%s503 + $0x130] sm:$0xff]
      %v543 = vld [vmem:[%s503 + $0x138] sm:$0xff]
      %v544 = vld [vmem:[%s503 + $0x140] sm:$0xff]
      %v545 = vld [vmem:[%s503 + $0x148] sm:$0xff]
      %v546 = vld [vmem:[%s503 + $0x150] sm:$0xff]
      %v547 = vld [vmem:[%s503 + $0x158] sm:$0xff]
      %v548 = vld [vmem:[%s503 + $0x160] sm:$0xff]
      %v549 = vld [vmem:[%s503 + $0x168] sm:$0xff]
      %v550 = vld [vmem:[%s503 + $0x170] sm:$0xff]
      %v551 = vld [vmem:[%s503 + $0x178] sm:$0xff]
      %v552 = vld [vmem:[%s503 + $0x180] sm:$0xff]
      %v553 = vld [vmem:[%s503 + $0x188] sm:$0xff]
      %v554 = vld [vmem:[%s503 + $0x190] sm:$0xff]
      %v555 = vld [vmem:[%s503 + $0x198] sm:$0xff]
      %v556 = vld [vmem:[%s503 + $0x1a0] sm:$0xff]
      %v557 = vld [vmem:[%s503 + $0x1a8] sm:$0xff]
      %v558 = vld [vmem:[%s503 + $0x1b0] sm:$0xff]
      %v559 = vld [vmem:[%s503 + $0x1b8] sm:$0xff]
      %v560 = vld [vmem:[%s503 + $0x1c0] sm:$0xff]
      %v561 = vld [vmem:[%s503 + $0x1c8] sm:$0xff]
      %v562 = vld [vmem:[%s503 + $0x1d0] sm:$0xff]
      %v563 = vld [vmem:[%s503 + $0x1d8] sm:$0xff]
      %v564 = vld [vmem:[%s503 + $0x1e0] sm:$0xff]
      %v565 = vld [vmem:[%s503 + $0x1e8] sm:$0xff]
      %v566 = vld [vmem:[%s503 + $0x1f0] sm:$0xff]
      %v567 = vld [vmem:[%s503 + $0x1f8] sm:$0xff]
      %v568 = vld [vmem:[%s503 + $0x200] sm:$0xff]
      %v569 = vld [vmem:[%s503 + $0x208] sm:$0xff]
      %v570 = vld [vmem:[%s503 + $0x210] sm:$0xff]
      %v571 = vld [vmem:[%s503 + $0x218] sm:$0xff]
      %v572 = vld [vmem:[%s503 + $0x220] sm:$0xff]
      %v573 = vld [vmem:[%s503 + $0x228] sm:$0xff]
      %v574 = vld [vmem:[%s503 + $0x230] sm:$0xff]
      %v575 = vld [vmem:[%s503 + $0x238] sm:$0xff]
      %v576 = vld [vmem:[%s503 + $0x240] sm:$0xff]
      %v577 = vld [vmem:[%s503 + $0x248] sm:$0xff]
      %v578 = vld [vmem:[%s503 + $0x250] sm:$0xff]
      %v579 = vld [vmem:[%s503 + $0x258] sm:$0xff]
      %v580 = vld [vmem:[%s503 + $0x260] sm:$0xff]
      %v581 = vld [vmem:[%s503 + $0x268] sm:$0xff]
      %v582 = vld [vmem:[%s503 + $0x270] sm:$0xff]
      %v583 = vld [vmem:[%s503 + $0x278] sm:$0xff]
      %v584 = vld [vmem:[%s503 + $0x280] sm:$0xff]
      %v585 = vld [vmem:[%s503 + $0x288] sm:$0xff]
      %v586 = vld [vmem:[%s503 + $0x290] sm:$0xff]
      %v587 = vld [vmem:[%s503 + $0x298] sm:$0xff]
      %v588 = vld [vmem:[%s503 + $0x2a0] sm:$0xff]
      %v589 = vld [vmem:[%s503 + $0x2a8] sm:$0xff]
      %v590 = vld [vmem:[%s503 + $0x2b0] sm:$0xff]
      %v591 = vld [vmem:[%s503 + $0x2b8] sm:$0xff]
      %v592 = vld [vmem:[%s503 + $0x2c0] sm:$0xff]
      %v593 = vld [vmem:[%s503 + $0x2c8] sm:$0xff]
      %v594 = vld [vmem:[%s503 + $0x2d0] sm:$0xff]
      %v595 = vld [vmem:[%s503 + $0x2d8] sm:$0xff]
      %v596 = vld [vmem:[%s503 + $0x2e0] sm:$0xff]
      %v597 = vld [vmem:[%s503 + $0x2e8] sm:$0xff]
      %v598 = vld [vmem:[%s503 + $0x2f0] sm:$0xff]
      %v599 = vld [vmem:[%s503 + $0x2f8] sm:$0xff]
      %v600 = vld [vmem:[%s503 + $0x300] sm:$0xff]
      %v601 = vld [vmem:[%s503 + $0x308] sm:$0xff]
      %v602 = vld [vmem:[%s503 + $0x310] sm:$0xff]
      %v603 = vld [vmem:[%s503 + $0x318] sm:$0xff]
      %v604 = vld [vmem:[%s503 + $0x320] sm:$0xff]
      %v605 = vld [vmem:[%s503 + $0x328] sm:$0xff]
      %v606 = vld [vmem:[%s503 + $0x330] sm:$0xff]
      %v607 = vld [vmem:[%s503 + $0x338] sm:$0xff]
      %v608 = vld [vmem:[%s503 + $0x340] sm:$0xff]
      %v609 = vld [vmem:[%s503 + $0x348] sm:$0xff]
      %v610 = vld [vmem:[%s503 + $0x350] sm:$0xff]
      %v611 = vld [vmem:[%s503 + $0x358] sm:$0xff]
      %v612 = vld [vmem:[%s503 + $0x360] sm:$0xff]
      %v613 = vld [vmem:[%s503 + $0x368] sm:$0xff]
      %v614 = vld [vmem:[%s503 + $0x370] sm:$0xff]
      %v615 = vld [vmem:[%s503 + $0x378] sm:$0xff]
      %v616 = vld [vmem:[%s503 + $0x380] sm:$0xff]
      %v617 = vld [vmem:[%s503 + $0x388] sm:$0xff]
      %v618 = vld [vmem:[%s503 + $0x390] sm:$0xff]
      %v619 = vld [vmem:[%s503 + $0x398] sm:$0xff]
      %v620 = vld [vmem:[%s503 + $0x3a0] sm:$0xff]
      %v621 = vld [vmem:[%s503 + $0x3a8] sm:$0xff]
      %v622 = vld [vmem:[%s503 + $0x3b0] sm:$0xff]
      %v623 = vld [vmem:[%s503 + $0x3b8] sm:$0xff]
      %v624 = vld [vmem:[%s503 + $0x3c0] sm:$0xff]
      %v625 = vld [vmem:[%s503 + $0x3c8] sm:$0xff]
      %v626 = vld [vmem:[%s503 + $0x3d0] sm:$0xff]
      %v627 = vld [vmem:[%s503 + $0x3d8] sm:$0xff]
      %v628 = vld [vmem:[%s503 + $0x3e0] sm:$0xff]
      %v629 = vld [vmem:[%s503 + $0x3e8] sm:$0xff]
      %v630 = vld [vmem:[%s503 + $0x3f0] sm:$0xff]
      %v631 = vld [vmem:[%s503 + $0x3f8] sm:$0xff]
      %v638 = vunpack.c.l.b16 %v369
      %v639 = vunpack.c.h.b16 %v369
      %v640 = vunpack.c.l.b16 %v370
      %v641 = vunpack.c.h.b16 %v370
      %v642 = vunpack.c.l.b16 %v371
      %v643 = vunpack.c.h.b16 %v371
      %v644 = vunpack.c.l.b16 %v372
      %v645 = vunpack.c.h.b16 %v372
      %v646 = vunpack.c.l.b16 %v501
      %v647 = vunpack.c.h.b16 %v501
      %v648 = vunpack.c.l.b16 %v502
      %v649 = vunpack.c.h.b16 %v502
      %v650 = vpack.c.b16 %v642, %v638
      %v651 = vpack.c.b16 %v643, %v639
      %v652 = vpack.c.b16 %v644, %v640
      %v653 = vpack.c.b16 %v645, %v641
      %v654 = vpack.c.b16 %v646, %v646
      %v655 = vpack.c.b16 %v647, %v647
      %v656 = vpack.c.b16 %v648, %v648
      %v657 = vpack.c.b16 %v649, %v649
      %vm658 = vsmask.f32 7424
      %v660 = vshrl.u32 %v650, 16
      %v662 = vshll.u32 %v650, 16
      %v664 = vrot.slane %v662, 1
      %v665 = vor.u32 %v660, %v664
      %v667 = vshll.u32 %v654, 16
      %v669 = vrot.slane %v667, 1
      %v670 = vsel %vm658, %v665, %v669
      %v672 = vshrl.u32 %v651, 16
      %v674 = vshll.u32 %v651, 16
      %v676 = vrot.slane %v674, 1
      %v677 = vor.u32 %v672, %v676
      %v679 = vshll.u32 %v655, 16
      %v681 = vrot.slane %v679, 1
      %v682 = vsel %vm658, %v677, %v681
      %v684 = vshrl.u32 %v652, 16
      %v686 = vshll.u32 %v652, 16
      %v688 = vrot.slane %v686, 1
      %v689 = vor.u32 %v684, %v688
      %v691 = vshll.u32 %v656, 16
      %v693 = vrot.slane %v691, 1
      %v694 = vsel %vm658, %v689, %v693
      %v696 = vshrl.u32 %v653, 16
      %v698 = vshll.u32 %v653, 16
      %v700 = vrot.slane %v698, 1
      %v701 = vor.u32 %v696, %v700
      %v703 = vshll.u32 %v657, 16
      %v705 = vrot.slane %v703, 1
      %v706 = vsel %vm658, %v701, %v705
      %v839 = vunpack.c.l.b16 %v504
      %v840 = vunpack.c.h.b16 %v504
      %v841 = vunpack.c.l.b16 %v505
      %v842 = vunpack.c.h.b16 %v505
      %v843 = vunpack.c.l.b16 %v506
      %v844 = vunpack.c.h.b16 %v506
      %v845 = vunpack.c.l.b16 %v507
      %v846 = vunpack.c.h.b16 %v507
      %v847 = vunpack.c.l.b16 %v508
      %v848 = vunpack.c.h.b16 %v508
      %v849 = vunpack.c.l.b16 %v509
      %v850 = vunpack.c.h.b16 %v509
      %v851 = vunpack.c.l.b16 %v510
      %v852 = vunpack.c.h.b16 %v510
      %v853 = vunpack.c.l.b16 %v511
      %v854 = vunpack.c.h.b16 %v511
      %v855 = vunpack.c.l.b16 %v512
      %v856 = vunpack.c.h.b16 %v512
      %v857 = vunpack.c.l.b16 %v513
      %v858 = vunpack.c.h.b16 %v513
      %v859 = vunpack.c.l.b16 %v514
      %v860 = vunpack.c.h.b16 %v514
      %v861 = vunpack.c.l.b16 %v515
      %v862 = vunpack.c.h.b16 %v515
      %v863 = vunpack.c.l.b16 %v516
      %v864 = vunpack.c.h.b16 %v516
      %v865 = vunpack.c.l.b16 %v517
      %v866 = vunpack.c.h.b16 %v517
      %v867 = vunpack.c.l.b16 %v518
      %v868 = vunpack.c.h.b16 %v518
      %v869 = vunpack.c.l.b16 %v519
      %v870 = vunpack.c.h.b16 %v519
      %v871 = vunpack.c.l.b16 %v520
      %v872 = vunpack.c.h.b16 %v520
      %v873 = vunpack.c.l.b16 %v521
      %v874 = vunpack.c.h.b16 %v521
      %v875 = vunpack.c.l.b16 %v522
      %v876 = vunpack.c.h.b16 %v522
      %v877 = vunpack.c.l.b16 %v523
      %v878 = vunpack.c.h.b16 %v523
      %v879 = vunpack.c.l.b16 %v524
      %v880 = vunpack.c.h.b16 %v524
      %v881 = vunpack.c.l.b16 %v525
      %v882 = vunpack.c.h.b16 %v525
      %v883 = vunpack.c.l.b16 %v526
      %v884 = vunpack.c.h.b16 %v526
      %v885 = vunpack.c.l.b16 %v527
      %v886 = vunpack.c.h.b16 %v527
      %v887 = vunpack.c.l.b16 %v528
      %v888 = vunpack.c.h.b16 %v528
      %v889 = vunpack.c.l.b16 %v529
      %v890 = vunpack.c.h.b16 %v529
      %v891 = vunpack.c.l.b16 %v530
      %v892 = vunpack.c.h.b16 %v530
      %v893 = vunpack.c.l.b16 %v531
      %v894 = vunpack.c.h.b16 %v531
      %v895 = vunpack.c.l.b16 %v532
      %v896 = vunpack.c.h.b16 %v532
      %v897 = vunpack.c.l.b16 %v533
      %v898 = vunpack.c.h.b16 %v533
      %v899 = vunpack.c.l.b16 %v534
      %v900 = vunpack.c.h.b16 %v534
      %v901 = vunpack.c.l.b16 %v535
      %v902 = vunpack.c.h.b16 %v535
      %v903 = vunpack.c.l.b16 %v536
      %v904 = vunpack.c.h.b16 %v536
      %v905 = vunpack.c.l.b16 %v537
      %v906 = vunpack.c.h.b16 %v537
      %v907 = vunpack.c.l.b16 %v538
      %v908 = vunpack.c.h.b16 %v538
      %v909 = vunpack.c.l.b16 %v539
      %v910 = vunpack.c.h.b16 %v539
      %v911 = vunpack.c.l.b16 %v540
      %v912 = vunpack.c.h.b16 %v540
      %v913 = vunpack.c.l.b16 %v541
      %v914 = vunpack.c.h.b16 %v541
      %v915 = vunpack.c.l.b16 %v542
      %v916 = vunpack.c.h.b16 %v542
      %v917 = vunpack.c.l.b16 %v543
      %v918 = vunpack.c.h.b16 %v543
      %v919 = vunpack.c.l.b16 %v544
      %v920 = vunpack.c.h.b16 %v544
      %v921 = vunpack.c.l.b16 %v545
      %v922 = vunpack.c.h.b16 %v545
      %v923 = vunpack.c.l.b16 %v546
      %v924 = vunpack.c.h.b16 %v546
      %v925 = vunpack.c.l.b16 %v547
      %v926 = vunpack.c.h.b16 %v547
      %v927 = vunpack.c.l.b16 %v548
      %v928 = vunpack.c.h.b16 %v548
      %v929 = vunpack.c.l.b16 %v549
      %v930 = vunpack.c.h.b16 %v549
      %v931 = vunpack.c.l.b16 %v550
      %v932 = vunpack.c.h.b16 %v550
      %v933 = vunpack.c.l.b16 %v551
      %v934 = vunpack.c.h.b16 %v551
      %v935 = vunpack.c.l.b16 %v552
      %v936 = vunpack.c.h.b16 %v552
      %v937 = vunpack.c.l.b16 %v553
      %v938 = vunpack.c.h.b16 %v553
      %v939 = vunpack.c.l.b16 %v554
      %v940 = vunpack.c.h.b16 %v554
      %v941 = vunpack.c.l.b16 %v555
      %v942 = vunpack.c.h.b16 %v555
      %v943 = vunpack.c.l.b16 %v556
      %v944 = vunpack.c.h.b16 %v556
      %v945 = vunpack.c.l.b16 %v557
      %v946 = vunpack.c.h.b16 %v557
      %v947 = vunpack.c.l.b16 %v558
      %v948 = vunpack.c.h.b16 %v558
      %v949 = vunpack.c.l.b16 %v559
      %v950 = vunpack.c.h.b16 %v559
      %v951 = vunpack.c.l.b16 %v560
      %v952 = vunpack.c.h.b16 %v560
      %v953 = vunpack.c.l.b16 %v561
      %v954 = vunpack.c.h.b16 %v561
      %v955 = vunpack.c.l.b16 %v562
      %v956 = vunpack.c.h.b16 %v562
      %v957 = vunpack.c.l.b16 %v563
      %v958 = vunpack.c.h.b16 %v563
      %v959 = vunpack.c.l.b16 %v564
      %v960 = vunpack.c.h.b16 %v564
      %v961 = vunpack.c.l.b16 %v565
      %v962 = vunpack.c.h.b16 %v565
      %v963 = vunpack.c.l.b16 %v566
      %v964 = vunpack.c.h.b16 %v566
      %v965 = vunpack.c.l.b16 %v567
      %v966 = vunpack.c.h.b16 %v567
      %v967 = vunpack.c.l.b16 %v568
      %v968 = vunpack.c.h.b16 %v568
      %v969 = vunpack.c.l.b16 %v569
      %v970 = vunpack.c.h.b16 %v569
      %v971 = vunpack.c.l.b16 %v570
      %v972 = vunpack.c.h.b16 %v570
      %v973 = vunpack.c.l.b16 %v571
      %v974 = vunpack.c.h.b16 %v571
      %v975 = vunpack.c.l.b16 %v572
      %v976 = vunpack.c.h.b16 %v572
      %v977 = vunpack.c.l.b16 %v573
      %v978 = vunpack.c.h.b16 %v573
      %v979 = vunpack.c.l.b16 %v574
      %v980 = vunpack.c.h.b16 %v574
      %v981 = vunpack.c.l.b16 %v575
      %v982 = vunpack.c.h.b16 %v575
      %v983 = vunpack.c.l.b16 %v576
      %v984 = vunpack.c.h.b16 %v576
      %v985 = vunpack.c.l.b16 %v577
      %v986 = vunpack.c.h.b16 %v577
      %v987 = vunpack.c.l.b16 %v578
      %v988 = vunpack.c.h.b16 %v578
      %v989 = vunpack.c.l.b16 %v579
      %v990 = vunpack.c.h.b16 %v579
      %v991 = vunpack.c.l.b16 %v580
      %v992 = vunpack.c.h.b16 %v580
      %v993 = vunpack.c.l.b16 %v581
      %v994 = vunpack.c.h.b16 %v581
      %v995 = vunpack.c.l.b16 %v582
      %v996 = vunpack.c.h.b16 %v582
      %v997 = vunpack.c.l.b16 %v583
      %v998 = vunpack.c.h.b16 %v583
      %v999 = vunpack.c.l.b16 %v584
      %v1000 = vunpack.c.h.b16 %v584
      %v1001 = vunpack.c.l.b16 %v585
      %v1002 = vunpack.c.h.b16 %v585
      %v1003 = vunpack.c.l.b16 %v586
      %v1004 = vunpack.c.h.b16 %v586
      %v1005 = vunpack.c.l.b16 %v587
      %v1006 = vunpack.c.h.b16 %v587
      %v1007 = vunpack.c.l.b16 %v588
      %v1008 = vunpack.c.h.b16 %v588
      %v1009 = vunpack.c.l.b16 %v589
      %v1010 = vunpack.c.h.b16 %v589
      %v1011 = vunpack.c.l.b16 %v590
      %v1012 = vunpack.c.h.b16 %v590
      %v1013 = vunpack.c.l.b16 %v591
      %v1014 = vunpack.c.h.b16 %v591
      %v1015 = vunpack.c.l.b16 %v592
      %v1016 = vunpack.c.h.b16 %v592
      %v1017 = vunpack.c.l.b16 %v593
      %v1018 = vunpack.c.h.b16 %v593
      %v1019 = vunpack.c.l.b16 %v594
      %v1020 = vunpack.c.h.b16 %v594
      %v1021 = vunpack.c.l.b16 %v595
      %v1022 = vunpack.c.h.b16 %v595
      %v1023 = vunpack.c.l.b16 %v596
      %v1024 = vunpack.c.h.b16 %v596
      %v1025 = vunpack.c.l.b16 %v597
      %v1026 = vunpack.c.h.b16 %v597
      %v1027 = vunpack.c.l.b16 %v598
      %v1028 = vunpack.c.h.b16 %v598
      %v1029 = vunpack.c.l.b16 %v599
      %v1030 = vunpack.c.h.b16 %v599
      %v1031 = vunpack.c.l.b16 %v600
      %v1032 = vunpack.c.h.b16 %v600
      %v1033 = vunpack.c.l.b16 %v601
      %v1034 = vunpack.c.h.b16 %v601
      %v1035 = vunpack.c.l.b16 %v602
      %v1036 = vunpack.c.h.b16 %v602
      %v1037 = vunpack.c.l.b16 %v603
      %v1038 = vunpack.c.h.b16 %v603
      %v1039 = vunpack.c.l.b16 %v604
      %v1040 = vunpack.c.h.b16 %v604
      %v1041 = vunpack.c.l.b16 %v605
      %v1042 = vunpack.c.h.b16 %v605
      %v1043 = vunpack.c.l.b16 %v606
      %v1044 = vunpack.c.h.b16 %v606
      %v1045 = vunpack.c.l.b16 %v607
      %v1046 = vunpack.c.h.b16 %v607
      %v1047 = vunpack.c.l.b16 %v608
      %v1048 = vunpack.c.h.b16 %v608
      %v1049 = vunpack.c.l.b16 %v609
      %v1050 = vunpack.c.h.b16 %v609
      %v1051 = vunpack.c.l.b16 %v610
      %v1052 = vunpack.c.h.b16 %v610
      %v1053 = vunpack.c.l.b16 %v611
      %v1054 = vunpack.c.h.b16 %v611
      %v1055 = vunpack.c.l.b16 %v612
      %v1056 = vunpack.c.h.b16 %v612
      %v1057 = vunpack.c.l.b16 %v613
      %v1058 = vunpack.c.h.b16 %v613
      %v1059 = vunpack.c.l.b16 %v614
      %v1060 = vunpack.c.h.b16 %v614
      %v1061 = vunpack.c.l.b16 %v615
      %v1062 = vunpack.c.h.b16 %v615
      %v1063 = vunpack.c.l.b16 %v616
      %v1064 = vunpack.c.h.b16 %v616
      %v1065 = vunpack.c.l.b16 %v617
      %v1066 = vunpack.c.h.b16 %v617
      %v1067 = vunpack.c.l.b16 %v618
      %v1068 = vunpack.c.h.b16 %v618
      %v1069 = vunpack.c.l.b16 %v619
      %v1070 = vunpack.c.h.b16 %v619
      %v1071 = vunpack.c.l.b16 %v620
      %v1072 = vunpack.c.h.b16 %v620
      %v1073 = vunpack.c.l.b16 %v621
      %v1074 = vunpack.c.h.b16 %v621
      %v1075 = vunpack.c.l.b16 %v622
      %v1076 = vunpack.c.h.b16 %v622
      %v1077 = vunpack.c.l.b16 %v623
      %v1078 = vunpack.c.h.b16 %v623
      %v1079 = vunpack.c.l.b16 %v624
      %v1080 = vunpack.c.h.b16 %v624
      %v1081 = vunpack.c.l.b16 %v625
      %v1082 = vunpack.c.h.b16 %v625
      %v1083 = vunpack.c.l.b16 %v626
      %v1084 = vunpack.c.h.b16 %v626
      %v1085 = vunpack.c.l.b16 %v627
      %v1086 = vunpack.c.h.b16 %v627
      %v1087 = vunpack.c.l.b16 %v628
      %v1088 = vunpack.c.h.b16 %v628
      %v1089 = vunpack.c.l.b16 %v629
      %v1090 = vunpack.c.h.b16 %v629
      %v1091 = vunpack.c.l.b16 %v630
      %v1092 = vunpack.c.h.b16 %v630
      %v1093 = vunpack.c.l.b16 %v631
      %v1094 = vunpack.c.h.b16 %v631
      %v1095 = vpack.c.b16 %v843, %v839
      %v1096 = vpack.c.b16 %v844, %v840
      %v1097 = vpack.c.b16 %v845, %v841
      %v1098 = vpack.c.b16 %v846, %v842
      %v1099 = vpack.c.b16 %v851, %v847
      %v1100 = vpack.c.b16 %v852, %v848
      %v1101 = vpack.c.b16 %v853, %v849
      %v1102 = vpack.c.b16 %v854, %v850
      %v1103 = vpack.c.b16 %v859, %v855
      %v1104 = vpack.c.b16 %v860, %v856
      %v1105 = vpack.c.b16 %v861, %v857
      %v1106 = vpack.c.b16 %v862, %v858
      %v1107 = vpack.c.b16 %v867, %v863
      %v1108 = vpack.c.b16 %v868, %v864
      %v1109 = vpack.c.b16 %v869, %v865
      %v1110 = vpack.c.b16 %v870, %v866
      %v1111 = vpack.c.b16 %v875, %v871
      %v1112 = vpack.c.b16 %v876, %v872
      %v1113 = vpack.c.b16 %v877, %v873
      %v1114 = vpack.c.b16 %v878, %v874
      %v1115 = vpack.c.b16 %v883, %v879
      %v1116 = vpack.c.b16 %v884, %v880
      %v1117 = vpack.c.b16 %v885, %v881
      %v1118 = vpack.c.b16 %v886, %v882
      %v1119 = vpack.c.b16 %v891, %v887
      %v1120 = vpack.c.b16 %v892, %v888
      %v1121 = vpack.c.b16 %v893, %v889
      %v1122 = vpack.c.b16 %v894, %v890
      %v1123 = vpack.c.b16 %v899, %v895
      %v1124 = vpack.c.b16 %v900, %v896
      %v1125 = vpack.c.b16 %v901, %v897
      %v1126 = vpack.c.b16 %v902, %v898
      %v1127 = vpack.c.b16 %v907, %v903
      %v1128 = vpack.c.b16 %v908, %v904
      %v1129 = vpack.c.b16 %v909, %v905
      %v1130 = vpack.c.b16 %v910, %v906
      %v1131 = vpack.c.b16 %v915, %v911
      %v1132 = vpack.c.b16 %v916, %v912
      %v1133 = vpack.c.b16 %v917, %v913
      %v1134 = vpack.c.b16 %v918, %v914
      %v1135 = vpack.c.b16 %v923, %v919
      %v1136 = vpack.c.b16 %v924, %v920
      %v1137 = vpack.c.b16 %v925, %v921
      %v1138 = vpack.c.b16 %v926, %v922
      %v1139 = vpack.c.b16 %v931, %v927
      %v1140 = vpack.c.b16 %v932, %v928
      %v1141 = vpack.c.b16 %v933, %v929
      %v1142 = vpack.c.b16 %v934, %v930
      %v1143 = vpack.c.b16 %v939, %v935
      %v1144 = vpack.c.b16 %v940, %v936
      %v1145 = vpack.c.b16 %v941, %v937
      %v1146 = vpack.c.b16 %v942, %v938
      %v1147 = vpack.c.b16 %v947, %v943
      %v1148 = vpack.c.b16 %v948, %v944
      %v1149 = vpack.c.b16 %v949, %v945
      %v1150 = vpack.c.b16 %v950, %v946
      %v1151 = vpack.c.b16 %v955, %v951
      %v1152 = vpack.c.b16 %v956, %v952
      %v1153 = vpack.c.b16 %v957, %v953
      %v1154 = vpack.c.b16 %v958, %v954
      %v1155 = vpack.c.b16 %v963, %v959
      %v1156 = vpack.c.b16 %v964, %v960
      %v1157 = vpack.c.b16 %v965, %v961
      %v1158 = vpack.c.b16 %v966, %v962
      %v1159 = vpack.c.b16 %v971, %v967
      %v1160 = vpack.c.b16 %v972, %v968
      %v1161 = vpack.c.b16 %v973, %v969
      %v1162 = vpack.c.b16 %v974, %v970
      %v1163 = vpack.c.b16 %v979, %v975
      %v1164 = vpack.c.b16 %v980, %v976
      %v1165 = vpack.c.b16 %v981, %v977
      %v1166 = vpack.c.b16 %v982, %v978
      %v1167 = vpack.c.b16 %v987, %v983
      %v1168 = vpack.c.b16 %v988, %v984
      %v1169 = vpack.c.b16 %v989, %v985
      %v1170 = vpack.c.b16 %v990, %v986
      %v1171 = vpack.c.b16 %v995, %v991
      %v1172 = vpack.c.b16 %v996, %v992
      %v1173 = vpack.c.b16 %v997, %v993
      %v1174 = vpack.c.b16 %v998, %v994
      %v1175 = vpack.c.b16 %v1003, %v999
      %v1176 = vpack.c.b16 %v1004, %v1000
      %v1177 = vpack.c.b16 %v1005, %v1001
      %v1178 = vpack.c.b16 %v1006, %v1002
      %v1179 = vpack.c.b16 %v1011, %v1007
      %v1180 = vpack.c.b16 %v1012, %v1008
      %v1181 = vpack.c.b16 %v1013, %v1009
      %v1182 = vpack.c.b16 %v1014, %v1010
      %v1183 = vpack.c.b16 %v1019, %v1015
      %v1184 = vpack.c.b16 %v1020, %v1016
      %v1185 = vpack.c.b16 %v1021, %v1017
      %v1186 = vpack.c.b16 %v1022, %v1018
      %v1187 = vpack.c.b16 %v1027, %v1023
      %v1188 = vpack.c.b16 %v1028, %v1024
      %v1189 = vpack.c.b16 %v1029, %v1025
      %v1190 = vpack.c.b16 %v1030, %v1026
      %v1191 = vpack.c.b16 %v1035, %v1031
      %v1192 = vpack.c.b16 %v1036, %v1032
      %v1193 = vpack.c.b16 %v1037, %v1033
      %v1194 = vpack.c.b16 %v1038, %v1034
      %v1195 = vpack.c.b16 %v1043, %v1039
      %v1196 = vpack.c.b16 %v1044, %v1040
      %v1197 = vpack.c.b16 %v1045, %v1041
      %v1198 = vpack.c.b16 %v1046, %v1042
      %v1199 = vpack.c.b16 %v1051, %v1047
      %v1200 = vpack.c.b16 %v1052, %v1048
      %v1201 = vpack.c.b16 %v1053, %v1049
      %v1202 = vpack.c.b16 %v1054, %v1050
      %v1203 = vpack.c.b16 %v1059, %v1055
      %v1204 = vpack.c.b16 %v1060, %v1056
      %v1205 = vpack.c.b16 %v1061, %v1057
      %v1206 = vpack.c.b16 %v1062, %v1058
      %v1207 = vpack.c.b16 %v1067, %v1063
      %v1208 = vpack.c.b16 %v1068, %v1064
      %v1209 = vpack.c.b16 %v1069, %v1065
      %v1210 = vpack.c.b16 %v1070, %v1066
      %v1211 = vpack.c.b16 %v1075, %v1071
      %v1212 = vpack.c.b16 %v1076, %v1072
      %v1213 = vpack.c.b16 %v1077, %v1073
      %v1214 = vpack.c.b16 %v1078, %v1074
      %v1215 = vpack.c.b16 %v1083, %v1079
      %v1216 = vpack.c.b16 %v1084, %v1080
      %v1217 = vpack.c.b16 %v1085, %v1081
      %v1218 = vpack.c.b16 %v1086, %v1082
      %v1219 = vpack.c.b16 %v1091, %v1087
      %v1220 = vpack.c.b16 %v1092, %v1088
      %v1221 = vpack.c.b16 %v1093, %v1089
      %v1222 = vpack.c.b16 %v1094, %v1090
      %1351 = vmatprep.subr.bf16.mxu0 %v1096
      %1352 = vmatpush1.bf16.msra.mxu0 %v1095
      %1353 = vmatprep.subr.bf16.mxu0 %v1100
      %1354 = vmatpush1.bf16.msra.mxu0 %v1099
      %1355 = vmatprep.subr.bf16.mxu0 %v1104
      %1356 = vmatpush1.bf16.msra.mxu0 %v1103
      %1357 = vmatprep.subr.bf16.mxu0 %v1108
      %1358 = vmatpush1.bf16.msra.mxu0 %v1107
      %1359 = vmatprep.subr.bf16.mxu0 %v1112
      %1360 = vmatpush1.bf16.msra.mxu0 %v1111
      %1361 = vmatprep.subr.bf16.mxu0 %v1116
      %1362 = vmatpush1.bf16.msra.mxu0 %v1115
      %1363 = vmatprep.subr.bf16.mxu0 %v1120
      %1364 = vmatpush1.bf16.msra.mxu0 %v1119
      %1365 = vmatprep.subr.bf16.mxu0 %v1124
      %1366 = vmatpush1.bf16.msra.mxu0 %v1123
      %1367 = vmatprep.subr.bf16.mxu0 %v1128
      %1368 = vmatpush1.bf16.msra.mxu0 %v1127
      %1369 = vmatprep.subr.bf16.mxu0 %v1132
      %1370 = vmatpush1.bf16.msra.mxu0 %v1131
      %1371 = vmatprep.subr.bf16.mxu0 %v1136
      %1372 = vmatpush1.bf16.msra.mxu0 %v1135
      %1373 = vmatprep.subr.bf16.mxu0 %v1140
      %1374 = vmatpush1.bf16.msra.mxu0 %v1139
      %1375 = vmatprep.subr.bf16.mxu0 %v1144
      %1376 = vmatpush1.bf16.msra.mxu0 %v1143
      %1377 = vmatprep.subr.bf16.mxu0 %v1148
      %1378 = vmatpush1.bf16.msra.mxu0 %v1147
      %1379 = vmatprep.subr.bf16.mxu0 %v1152
      %1380 = vmatpush1.bf16.msra.mxu0 %v1151
      %1381 = vmatprep.subr.bf16.mxu0 %v1156
      %1382 = vmatpush1.bf16.msra.mxu0 %v1155
      %1383 = vmatprep.mubr.bf16.mxu0 %v682
      %1384 = vmatmul.mubr.bf16.gmra.mrb[0].mxu0 %v670
      %v1385 = vpop.f32.mrb[0].mxu0
      %v1386 = vadd.f32 0.0, %v1385
      %v1387 = vpop.f32.mrb[0].mxu0
      %v1388 = vadd.f32 0.0, %v1387
      %v1389 = vpop.f32.mrb[0].mxu0
      %v1390 = vadd.f32 0.0, %v1389
      %v1391 = vpop.f32.mrb[0].mxu0
      %v1392 = vadd.f32 0.0, %v1391
      %1393 = vdwg.mxu0
      %1394 = vmatprep.subr.bf16.mxu0 %v1160
      %1395 = vmatpush1.bf16.msra.mxu0 %v1159
      %1396 = vmatprep.subr.bf16.mxu0 %v1164
      %1397 = vmatpush1.bf16.msra.mxu0 %v1163
      %1398 = vmatprep.subr.bf16.mxu0 %v1168
      %1399 = vmatpush1.bf16.msra.mxu0 %v1167
      %1400 = vmatprep.subr.bf16.mxu0 %v1172
      %1401 = vmatpush1.bf16.msra.mxu0 %v1171
      %1402 = vmatprep.subr.bf16.mxu0 %v1176
      %1403 = vmatpush1.bf16.msra.mxu0 %v1175
      %1404 = vmatprep.subr.bf16.mxu0 %v1180
      %1405 = vmatpush1.bf16.msra.mxu0 %v1179
      %1406 = vmatprep.subr.bf16.mxu0 %v1184
      %1407 = vmatpush1.bf16.msra.mxu0 %v1183
      %1408 = vmatprep.subr.bf16.mxu0 %v1188
      %1409 = vmatpush1.bf16.msra.mxu0 %v1187
      %1410 = vmatprep.subr.bf16.mxu0 %v1192
      %1411 = vmatpush1.bf16.msra.mxu0 %v1191
      %1412 = vmatprep.subr.bf16.mxu0 %v1196
      %1413 = vmatpush1.bf16.msra.mxu0 %v1195
      %1414 = vmatprep.subr.bf16.mxu0 %v1200
      %1415 = vmatpush1.bf16.msra.mxu0 %v1199
      %1416 = vmatprep.subr.bf16.mxu0 %v1204
      %1417 = vmatpush1.bf16.msra.mxu0 %v1203
      %1418 = vmatprep.subr.bf16.mxu0 %v1208
      %1419 = vmatpush1.bf16.msra.mxu0 %v1207
      %1420 = vmatprep.subr.bf16.mxu0 %v1212
      %1421 = vmatpush1.bf16.msra.mxu0 %v1211
      %1422 = vmatprep.subr.bf16.mxu0 %v1216
      %1423 = vmatpush1.bf16.msra.mxu0 %v1215
      %1424 = vmatprep.subr.bf16.mxu0 %v1220
      %1425 = vmatpush1.bf16.msra.mxu0 %v1219
      %1426 = vmatprep.mubr.bf16.mxu0 %v706
      %1427 = vmatmul.mubr.bf16.gmra.mrb[0].mxu0 %v694
      %v1428 = vpop.f32.mrb[0].mxu0
      %v1429 = vadd.f32 %v1386, %v1428
      %v1430 = vpop.f32.mrb[0].mxu0
      %v1431 = vadd.f32 %v1388, %v1430
      %v1432 = vpop.f32.mrb[0].mxu0
      %v1433 = vadd.f32 %v1390, %v1432
      %v1434 = vpop.f32.mrb[0].mxu0
      %v1435 = vadd.f32 %v1392, %v1434
      %1436 = vdwg.mxu0
      %1437 = vmatprep.subr.bf16.mxu0 %v1098
      %1438 = vmatpush1.bf16.msra.mxu0 %v1097
      %1439 = vmatprep.subr.bf16.mxu0 %v1102
      %1440 = vmatpush1.bf16.msra.mxu0 %v1101
      %1441 = vmatprep.subr.bf16.mxu0 %v1106
      %1442 = vmatpush1.bf16.msra.mxu0 %v1105
      %1443 = vmatprep.subr.bf16.mxu0 %v1110
      %1444 = vmatpush1.bf16.msra.mxu0 %v1109
      %1445 = vmatprep.subr.bf16.mxu0 %v1114
      %1446 = vmatpush1.bf16.msra.mxu0 %v1113
      %1447 = vmatprep.subr.bf16.mxu0 %v1118
      %1448 = vmatpush1.bf16.msra.mxu0 %v1117
      %1449 = vmatprep.subr.bf16.mxu0 %v1122
      %1450 = vmatpush1.bf16.msra.mxu0 %v1121
      %1451 = vmatprep.subr.bf16.mxu0 %v1126
      %1452 = vmatpush1.bf16.msra.mxu0 %v1125
      %1453 = vmatprep.subr.bf16.mxu0 %v1130
      %1454 = vmatpush1.bf16.msra.mxu0 %v1129
      %1455 = vmatprep.subr.bf16.mxu0 %v1134
      %1456 = vmatpush1.bf16.msra.mxu0 %v1133
      %1457 = vmatprep.subr.bf16.mxu0 %v1138
      %1458 = vmatpush1.bf16.msra.mxu0 %v1137
      %1459 = vmatprep.subr.bf16.mxu0 %v1142
      %1460 = vmatpush1.bf16.msra.mxu0 %v1141
      %1461 = vmatprep.subr.bf16.mxu0 %v1146
      %1462 = vmatpush1.bf16.msra.mxu0 %v1145
      %1463 = vmatprep.subr.bf16.mxu0 %v1150
      %1464 = vmatpush1.bf16.msra.mxu0 %v1149
      %1465 = vmatprep.subr.bf16.mxu0 %v1154
      %1466 = vmatpush1.bf16.msra.mxu0 %v1153
      %1467 = vmatprep.subr.bf16.mxu0 %v1158
      %1468 = vmatpush1.bf16.msra.mxu0 %v1157
      %1469 = vmatprep.mubr.bf16.mxu0 %v682
      %1470 = vmatmul.mubr.bf16.gmra.mrb[0].mxu0 %v670
      %v1471 = vpop.f32.mrb[0].mxu0
      %v1472 = vadd.f32 0.0, %v1471
      %v1473 = vpop.f32.mrb[0].mxu0
      %v1474 = vadd.f32 0.0, %v1473
      %v1475 = vpop.f32.mrb[0].mxu0
      %v1476 = vadd.f32 0.0, %v1475
      %v1477 = vpop.f32.mrb[0].mxu0
      %v1478 = vadd.f32 0.0, %v1477
      %1479 = vdwg.mxu0
      %1480 = vmatprep.subr.bf16.mxu0 %v1162
      %1481 = vmatpush1.bf16.msra.mxu0 %v1161
      %1482 = vmatprep.subr.bf16.mxu0 %v1166
      %1483 = vmatpush1.bf16.msra.mxu0 %v1165
      %1484 = vmatprep.subr.bf16.mxu0 %v1170
      %1485 = vmatpush1.bf16.msra.mxu0 %v1169
      %1486 = vmatprep.subr.bf16.mxu0 %v1174
      %1487 = vmatpush1.bf16.msra.mxu0 %v1173
      %1488 = vmatprep.subr.bf16.mxu0 %v1178
      %1489 = vmatpush1.bf16.msra.mxu0 %v1177
      %1490 = vmatprep.subr.bf16.mxu0 %v1182
      %1491 = vmatpush1.bf16.msra.mxu0 %v1181
      %1492 = vmatprep.subr.bf16.mxu0 %v1186
      %1493 = vmatpush1.bf16.msra.mxu0 %v1185
      %1494 = vmatprep.subr.bf16.mxu0 %v1190
      %1495 = vmatpush1.bf16.msra.mxu0 %v1189
      %1496 = vmatprep.subr.bf16.mxu0 %v1194
      %1497 = vmatpush1.bf16.msra.mxu0 %v1193
      %1498 = vmatprep.subr.bf16.mxu0 %v1198
      %1499 = vmatpush1.bf16.msra.mxu0 %v1197
      %1500 = vmatprep.subr.bf16.mxu0 %v1202
      %1501 = vmatpush1.bf16.msra.mxu0 %v1201
      %1502 = vmatprep.subr.bf16.mxu0 %v1206
      %1503 = vmatpush1.bf16.msra.mxu0 %v1205
      %1504 = vmatprep.subr.bf16.mxu0 %v1210
      %1505 = vmatpush1.bf16.msra.mxu0 %v1209
      %1506 = vmatprep.subr.bf16.mxu0 %v1214
      %1507 = vmatpush1.bf16.msra.mxu0 %v1213
      %1508 = vmatprep.subr.bf16.mxu0 %v1218
      %1509 = vmatpush1.bf16.msra.mxu0 %v1217
      %1510 = vmatprep.subr.bf16.mxu0 %v1222
      %1511 = vmatpush1.bf16.msra.mxu0 %v1221
      %1512 = vmatprep.mubr.bf16.mxu0 %v706
      %1513 = vmatmul.mubr.bf16.gmra.mrb[0].mxu0 %v694
      %v1514 = vpop.f32.mrb[0].mxu0
      %v1515 = vadd.f32 %v1472, %v1514
      %v1516 = vpop.f32.mrb[0].mxu0
      %v1517 = vadd.f32 %v1474, %v1516
      %v1518 = vpop.f32.mrb[0].mxu0
      %v1519 = vadd.f32 %v1476, %v1518
      %v1520 = vpop.f32.mrb[0].mxu0
      %v1521 = vadd.f32 %v1478, %v1520
      %1522 = vdwg.mxu0
      %v1655 = vunpack.c.l.b16 %v373
      %v1656 = vunpack.c.h.b16 %v373
      %v1657 = vunpack.c.l.b16 %v374
      %v1658 = vunpack.c.h.b16 %v374
      %v1659 = vunpack.c.l.b16 %v375
      %v1660 = vunpack.c.h.b16 %v375
      %v1661 = vunpack.c.l.b16 %v376
      %v1662 = vunpack.c.h.b16 %v376
      %v1663 = vunpack.c.l.b16 %v377
      %v1664 = vunpack.c.h.b16 %v377
      %v1665 = vunpack.c.l.b16 %v378
      %v1666 = vunpack.c.h.b16 %v378
      %v1667 = vunpack.c.l.b16 %v379
      %v1668 = vunpack.c.h.b16 %v379
      %v1669 = vunpack.c.l.b16 %v380
      %v1670 = vunpack.c.h.b16 %v380
      %v1671 = vunpack.c.l.b16 %v381
      %v1672 = vunpack.c.h.b16 %v381
      %v1673 = vunpack.c.l.b16 %v382
      %v1674 = vunpack.c.h.b16 %v382
      %v1675 = vunpack.c.l.b16 %v383
      %v1676 = vunpack.c.h.b16 %v383
      %v1677 = vunpack.c.l.b16 %v384
      %v1678 = vunpack.c.h.b16 %v384
      %v1679 = vunpack.c.l.b16 %v385
      %v1680 = vunpack.c.h.b16 %v385
      %v1681 = vunpack.c.l.b16 %v386
      %v1682 = vunpack.c.h.b16 %v386
      %v1683 = vunpack.c.l.b16 %v387
      %v1684 = vunpack.c.h.b16 %v387
      %v1685 = vunpack.c.l.b16 %v388
      %v1686 = vunpack.c.h.b16 %v388
      %v1687 = vunpack.c.l.b16 %v389
      %v1688 = vunpack.c.h.b16 %v389
      %v1689 = vunpack.c.l.b16 %v390
      %v1690 = vunpack.c.h.b16 %v390
      %v1691 = vunpack.c.l.b16 %v391
      %v1692 = vunpack.c.h.b16 %v391
      %v1693 = vunpack.c.l.b16 %v392
      %v1694 = vunpack.c.h.b16 %v392
      %v1695 = vunpack.c.l.b16 %v393
      %v1696 = vunpack.c.h.b16 %v393
      %v1697 = vunpack.c.l.b16 %v394
      %v1698 = vunpack.c.h.b16 %v394
      %v1699 = vunpack.c.l.b16 %v395
      %v1700 = vunpack.c.h.b16 %v395
      %v1701 = vunpack.c.l.b16 %v396
      %v1702 = vunpack.c.h.b16 %v396
      %v1703 = vunpack.c.l.b16 %v397
      %v1704 = vunpack.c.h.b16 %v397
      %v1705 = vunpack.c.l.b16 %v398
      %v1706 = vunpack.c.h.b16 %v398
      %v1707 = vunpack.c.l.b16 %v399
      %v1708 = vunpack.c.h.b16 %v399
      %v1709 = vunpack.c.l.b16 %v400
      %v1710 = vunpack.c.h.b16 %v400
      %v1711 = vunpack.c.l.b16 %v401
      %v1712 = vunpack.c.h.b16 %v401
      %v1713 = vunpack.c.l.b16 %v402
      %v1714 = vunpack.c.h.b16 %v402
      %v1715 = vunpack.c.l.b16 %v403
      %v1716 = vunpack.c.h.b16 %v403
      %v1717 = vunpack.c.l.b16 %v404
      %v1718 = vunpack.c.h.b16 %v404
      %v1719 = vunpack.c.l.b16 %v405
      %v1720 = vunpack.c.h.b16 %v405
      %v1721 = vunpack.c.l.b16 %v406
      %v1722 = vunpack.c.h.b16 %v406
      %v1723 = vunpack.c.l.b16 %v407
      %v1724 = vunpack.c.h.b16 %v407
      %v1725 = vunpack.c.l.b16 %v408
      %v1726 = vunpack.c.h.b16 %v408
      %v1727 = vunpack.c.l.b16 %v409
      %v1728 = vunpack.c.h.b16 %v409
      %v1729 = vunpack.c.l.b16 %v410
      %v1730 = vunpack.c.h.b16 %v410
      %v1731 = vunpack.c.l.b16 %v411
      %v1732 = vunpack.c.h.b16 %v411
      %v1733 = vunpack.c.l.b16 %v412
      %v1734 = vunpack.c.h.b16 %v412
      %v1735 = vunpack.c.l.b16 %v413
      %v1736 = vunpack.c.h.b16 %v413
      %v1737 = vunpack.c.l.b16 %v414
      %v1738 = vunpack.c.h.b16 %v414
      %v1739 = vunpack.c.l.b16 %v415
      %v1740 = vunpack.c.h.b16 %v415
      %v1741 = vunpack.c.l.b16 %v416
      %v1742 = vunpack.c.h.b16 %v416
      %v1743 = vunpack.c.l.b16 %v417
      %v1744 = vunpack.c.h.b16 %v417
      %v1745 = vunpack.c.l.b16 %v418
      %v1746 = vunpack.c.h.b16 %v418
      %v1747 = vunpack.c.l.b16 %v419
      %v1748 = vunpack.c.h.b16 %v419
      %v1749 = vunpack.c.l.b16 %v420
      %v1750 = vunpack.c.h.b16 %v420
      %v1751 = vunpack.c.l.b16 %v421
      %v1752 = vunpack.c.h.b16 %v421
      %v1753 = vunpack.c.l.b16 %v422
      %v1754 = vunpack.c.h.b16 %v422
      %v1755 = vunpack.c.l.b16 %v423
      %v1756 = vunpack.c.h.b16 %v423
      %v1757 = vunpack.c.l.b16 %v424
      %v1758 = vunpack.c.h.b16 %v424
      %v1759 = vunpack.c.l.b16 %v425
      %v1760 = vunpack.c.h.b16 %v425
      %v1761 = vunpack.c.l.b16 %v426
      %v1762 = vunpack.c.h.b16 %v426
      %v1763 = vunpack.c.l.b16 %v427
      %v1764 = vunpack.c.h.b16 %v427
      %v1765 = vunpack.c.l.b16 %v428
      %v1766 = vunpack.c.h.b16 %v428
      %v1767 = vunpack.c.l.b16 %v429
      %v1768 = vunpack.c.h.b16 %v429
      %v1769 = vunpack.c.l.b16 %v430
      %v1770 = vunpack.c.h.b16 %v430
      %v1771 = vunpack.c.l.b16 %v431
      %v1772 = vunpack.c.h.b16 %v431
      %v1773 = vunpack.c.l.b16 %v432
      %v1774 = vunpack.c.h.b16 %v432
      %v1775 = vunpack.c.l.b16 %v433
      %v1776 = vunpack.c.h.b16 %v433
      %v1777 = vunpack.c.l.b16 %v434
      %v1778 = vunpack.c.h.b16 %v434
      %v1779 = vunpack.c.l.b16 %v435
      %v1780 = vunpack.c.h.b16 %v435
      %v1781 = vunpack.c.l.b16 %v436
      %v1782 = vunpack.c.h.b16 %v436
      %v1783 = vunpack.c.l.b16 %v437
      %v1784 = vunpack.c.h.b16 %v437
      %v1785 = vunpack.c.l.b16 %v438
      %v1786 = vunpack.c.h.b16 %v438
      %v1787 = vunpack.c.l.b16 %v439
      %v1788 = vunpack.c.h.b16 %v439
      %v1789 = vunpack.c.l.b16 %v440
      %v1790 = vunpack.c.h.b16 %v440
      %v1791 = vunpack.c.l.b16 %v441
      %v1792 = vunpack.c.h.b16 %v441
      %v1793 = vunpack.c.l.b16 %v442
      %v1794 = vunpack.c.h.b16 %v442
      %v1795 = vunpack.c.l.b16 %v443
      %v1796 = vunpack.c.h.b16 %v443
      %v1797 = vunpack.c.l.b16 %v444
      %v1798 = vunpack.c.h.b16 %v444
      %v1799 = vunpack.c.l.b16 %v445
      %v1800 = vunpack.c.h.b16 %v445
      %v1801 = vunpack.c.l.b16 %v446
      %v1802 = vunpack.c.h.b16 %v446
      %v1803 = vunpack.c.l.b16 %v447
      %v1804 = vunpack.c.h.b16 %v447
      %v1805 = vunpack.c.l.b16 %v448
      %v1806 = vunpack.c.h.b16 %v448
      %v1807 = vunpack.c.l.b16 %v449
      %v1808 = vunpack.c.h.b16 %v449
      %v1809 = vunpack.c.l.b16 %v450
      %v1810 = vunpack.c.h.b16 %v450
      %v1811 = vunpack.c.l.b16 %v451
      %v1812 = vunpack.c.h.b16 %v451
      %v1813 = vunpack.c.l.b16 %v452
      %v1814 = vunpack.c.h.b16 %v452
      %v1815 = vunpack.c.l.b16 %v453
      %v1816 = vunpack.c.h.b16 %v453
      %v1817 = vunpack.c.l.b16 %v454
      %v1818 = vunpack.c.h.b16 %v454
      %v1819 = vunpack.c.l.b16 %v455
      %v1820 = vunpack.c.h.b16 %v455
      %v1821 = vunpack.c.l.b16 %v456
      %v1822 = vunpack.c.h.b16 %v456
      %v1823 = vunpack.c.l.b16 %v457
      %v1824 = vunpack.c.h.b16 %v457
      %v1825 = vunpack.c.l.b16 %v458
      %v1826 = vunpack.c.h.b16 %v458
      %v1827 = vunpack.c.l.b16 %v459
      %v1828 = vunpack.c.h.b16 %v459
      %v1829 = vunpack.c.l.b16 %v460
      %v1830 = vunpack.c.h.b16 %v460
      %v1831 = vunpack.c.l.b16 %v461
      %v1832 = vunpack.c.h.b16 %v461
      %v1833 = vunpack.c.l.b16 %v462
      %v1834 = vunpack.c.h.b16 %v462
      %v1835 = vunpack.c.l.b16 %v463
      %v1836 = vunpack.c.h.b16 %v463
      %v1837 = vunpack.c.l.b16 %v464
      %v1838 = vunpack.c.h.b16 %v464
      %v1839 = vunpack.c.l.b16 %v465
      %v1840 = vunpack.c.h.b16 %v465
      %v1841 = vunpack.c.l.b16 %v466
      %v1842 = vunpack.c.h.b16 %v466
      %v1843 = vunpack.c.l.b16 %v467
      %v1844 = vunpack.c.h.b16 %v467
      %v1845 = vunpack.c.l.b16 %v468
      %v1846 = vunpack.c.h.b16 %v468
      %v1847 = vunpack.c.l.b16 %v469
      %v1848 = vunpack.c.h.b16 %v469
      %v1849 = vunpack.c.l.b16 %v470
      %v1850 = vunpack.c.h.b16 %v470
      %v1851 = vunpack.c.l.b16 %v471
      %v1852 = vunpack.c.h.b16 %v471
      %v1853 = vunpack.c.l.b16 %v472
      %v1854 = vunpack.c.h.b16 %v472
      %v1855 = vunpack.c.l.b16 %v473
      %v1856 = vunpack.c.h.b16 %v473
      %v1857 = vunpack.c.l.b16 %v474
      %v1858 = vunpack.c.h.b16 %v474
      %v1859 = vunpack.c.l.b16 %v475
      %v1860 = vunpack.c.h.b16 %v475
      %v1861 = vunpack.c.l.b16 %v476
      %v1862 = vunpack.c.h.b16 %v476
      %v1863 = vunpack.c.l.b16 %v477
      %v1864 = vunpack.c.h.b16 %v477
      %v1865 = vunpack.c.l.b16 %v478
      %v1866 = vunpack.c.h.b16 %v478
      %v1867 = vunpack.c.l.b16 %v479
      %v1868 = vunpack.c.h.b16 %v479
      %v1869 = vunpack.c.l.b16 %v480
      %v1870 = vunpack.c.h.b16 %v480
      %v1871 = vunpack.c.l.b16 %v481
      %v1872 = vunpack.c.h.b16 %v481
      %v1873 = vunpack.c.l.b16 %v482
      %v1874 = vunpack.c.h.b16 %v482
      %v1875 = vunpack.c.l.b16 %v483
      %v1876 = vunpack.c.h.b16 %v483
      %v1877 = vunpack.c.l.b16 %v484
      %v1878 = vunpack.c.h.b16 %v484
      %v1879 = vunpack.c.l.b16 %v485
      %v1880 = vunpack.c.h.b16 %v485
      %v1881 = vunpack.c.l.b16 %v486
      %v1882 = vunpack.c.h.b16 %v486
      %v1883 = vunpack.c.l.b16 %v487
      %v1884 = vunpack.c.h.b16 %v487
      %v1885 = vunpack.c.l.b16 %v488
      %v1886 = vunpack.c.h.b16 %v488
      %v1887 = vunpack.c.l.b16 %v489
      %v1888 = vunpack.c.h.b16 %v489
      %v1889 = vunpack.c.l.b16 %v490
      %v1890 = vunpack.c.h.b16 %v490
      %v1891 = vunpack.c.l.b16 %v491
      %v1892 = vunpack.c.h.b16 %v491
      %v1893 = vunpack.c.l.b16 %v492
      %v1894 = vunpack.c.h.b16 %v492
      %v1895 = vunpack.c.l.b16 %v493
      %v1896 = vunpack.c.h.b16 %v493
      %v1897 = vunpack.c.l.b16 %v494
      %v1898 = vunpack.c.h.b16 %v494
      %v1899 = vunpack.c.l.b16 %v495
      %v1900 = vunpack.c.h.b16 %v495
      %v1901 = vunpack.c.l.b16 %v496
      %v1902 = vunpack.c.h.b16 %v496
      %v1903 = vunpack.c.l.b16 %v497
      %v1904 = vunpack.c.h.b16 %v497
      %v1905 = vunpack.c.l.b16 %v498
      %v1906 = vunpack.c.h.b16 %v498
      %v1907 = vunpack.c.l.b16 %v499
      %v1908 = vunpack.c.h.b16 %v499
      %v1909 = vunpack.c.l.b16 %v500
      %v1910 = vunpack.c.h.b16 %v500
      %v1911 = vpack.c.b16 %v1659, %v1655
      %v1912 = vpack.c.b16 %v1660, %v1656
      %v1913 = vpack.c.b16 %v1661, %v1657
      %v1914 = vpack.c.b16 %v1662, %v1658
      %v1915 = vpack.c.b16 %v1667, %v1663
      %v1916 = vpack.c.b16 %v1668, %v1664
      %v1917 = vpack.c.b16 %v1669, %v1665
      %v1918 = vpack.c.b16 %v1670, %v1666
      %v1919 = vpack.c.b16 %v1675, %v1671
      %v1920 = vpack.c.b16 %v1676, %v1672
      %v1921 = vpack.c.b16 %v1677, %v1673
      %v1922 = vpack.c.b16 %v1678, %v1674
      %v1923 = vpack.c.b16 %v1683, %v1679
      %v1924 = vpack.c.b16 %v1684, %v1680
      %v1925 = vpack.c.b16 %v1685, %v1681
      %v1926 = vpack.c.b16 %v1686, %v1682
      %v1927 = vpack.c.b16 %v1691, %v1687
      %v1928 = vpack.c.b16 %v1692, %v1688
      %v1929 = vpack.c.b16 %v1693, %v1689
      %v1930 = vpack.c.b16 %v1694, %v1690
      %v1931 = vpack.c.b16 %v1699, %v1695
      %v1932 = vpack.c.b16 %v1700, %v1696
      %v1933 = vpack.c.b16 %v1701, %v1697
      %v1934 = vpack.c.b16 %v1702, %v1698
      %v1935 = vpack.c.b16 %v1707, %v1703
      %v1936 = vpack.c.b16 %v1708, %v1704
      %v1937 = vpack.c.b16 %v1709, %v1705
      %v1938 = vpack.c.b16 %v1710, %v1706
      %v1939 = vpack.c.b16 %v1715, %v1711
      %v1940 = vpack.c.b16 %v1716, %v1712
      %v1941 = vpack.c.b16 %v1717, %v1713
      %v1942 = vpack.c.b16 %v1718, %v1714
      %v1943 = vpack.c.b16 %v1723, %v1719
      %v1944 = vpack.c.b16 %v1724, %v1720
      %v1945 = vpack.c.b16 %v1725, %v1721
      %v1946 = vpack.c.b16 %v1726, %v1722
      %v1947 = vpack.c.b16 %v1731, %v1727
      %v1948 = vpack.c.b16 %v1732, %v1728
      %v1949 = vpack.c.b16 %v1733, %v1729
      %v1950 = vpack.c.b16 %v1734, %v1730
      %v1951 = vpack.c.b16 %v1739, %v1735
      %v1952 = vpack.c.b16 %v1740, %v1736
      %v1953 = vpack.c.b16 %v1741, %v1737
      %v1954 = vpack.c.b16 %v1742, %v1738
      %v1955 = vpack.c.b16 %v1747, %v1743
      %v1956 = vpack.c.b16 %v1748, %v1744
      %v1957 = vpack.c.b16 %v1749, %v1745
      %v1958 = vpack.c.b16 %v1750, %v1746
      %v1959 = vpack.c.b16 %v1755, %v1751
      %v1960 = vpack.c.b16 %v1756, %v1752
      %v1961 = vpack.c.b16 %v1757, %v1753
      %v1962 = vpack.c.b16 %v1758, %v1754
      %v1963 = vpack.c.b16 %v1763, %v1759
      %v1964 = vpack.c.b16 %v1764, %v1760
      %v1965 = vpack.c.b16 %v1765, %v1761
      %v1966 = vpack.c.b16 %v1766, %v1762
      %v1967 = vpack.c.b16 %v1771, %v1767
      %v1968 = vpack.c.b16 %v1772, %v1768
      %v1969 = vpack.c.b16 %v1773, %v1769
      %v1970 = vpack.c.b16 %v1774, %v1770
      %v1971 = vpack.c.b16 %v1779, %v1775
      %v1972 = vpack.c.b16 %v1780, %v1776
      %v1973 = vpack.c.b16 %v1781, %v1777
      %v1974 = vpack.c.b16 %v1782, %v1778
      %v1975 = vpack.c.b16 %v1787, %v1783
      %v1976 = vpack.c.b16 %v1788, %v1784
      %v1977 = vpack.c.b16 %v1789, %v1785
      %v1978 = vpack.c.b16 %v1790, %v1786
      %v1979 = vpack.c.b16 %v1795, %v1791
      %v1980 = vpack.c.b16 %v1796, %v1792
      %v1981 = vpack.c.b16 %v1797, %v1793
      %v1982 = vpack.c.b16 %v1798, %v1794
      %v1983 = vpack.c.b16 %v1803, %v1799
      %v1984 = vpack.c.b16 %v1804, %v1800
      %v1985 = vpack.c.b16 %v1805, %v1801
      %v1986 = vpack.c.b16 %v1806, %v1802
      %v1987 = vpack.c.b16 %v1811, %v1807
      %v1988 = vpack.c.b16 %v1812, %v1808
      %v1989 = vpack.c.b16 %v1813, %v1809
      %v1990 = vpack.c.b16 %v1814, %v1810
      %v1991 = vpack.c.b16 %v1819, %v1815
      %v1992 = vpack.c.b16 %v1820, %v1816
      %v1993 = vpack.c.b16 %v1821, %v1817
      %v1994 = vpack.c.b16 %v1822, %v1818
      %v1995 = vpack.c.b16 %v1827, %v1823
      %v1996 = vpack.c.b16 %v1828, %v1824
      %v1997 = vpack.c.b16 %v1829, %v1825
      %v1998 = vpack.c.b16 %v1830, %v1826
      %v1999 = vpack.c.b16 %v1835, %v1831
      %v2000 = vpack.c.b16 %v1836, %v1832
      %v2001 = vpack.c.b16 %v1837, %v1833
      %v2002 = vpack.c.b16 %v1838, %v1834
      %v2003 = vpack.c.b16 %v1843, %v1839
      %v2004 = vpack.c.b16 %v1844, %v1840
      %v2005 = vpack.c.b16 %v1845, %v1841
      %v2006 = vpack.c.b16 %v1846, %v1842
      %v2007 = vpack.c.b16 %v1851, %v1847
      %v2008 = vpack.c.b16 %v1852, %v1848
      %v2009 = vpack.c.b16 %v1853, %v1849
      %v2010 = vpack.c.b16 %v1854, %v1850
      %v2011 = vpack.c.b16 %v1859, %v1855
      %v2012 = vpack.c.b16 %v1860, %v1856
      %v2013 = vpack.c.b16 %v1861, %v1857
      %v2014 = vpack.c.b16 %v1862, %v1858
      %v2015 = vpack.c.b16 %v1867, %v1863
      %v2016 = vpack.c.b16 %v1868, %v1864
      %v2017 = vpack.c.b16 %v1869, %v1865
      %v2018 = vpack.c.b16 %v1870, %v1866
      %v2019 = vpack.c.b16 %v1875, %v1871
      %v2020 = vpack.c.b16 %v1876, %v1872
      %v2021 = vpack.c.b16 %v1877, %v1873
      %v2022 = vpack.c.b16 %v1878, %v1874
      %v2023 = vpack.c.b16 %v1883, %v1879
      %v2024 = vpack.c.b16 %v1884, %v1880
      %v2025 = vpack.c.b16 %v1885, %v1881
      %v2026 = vpack.c.b16 %v1886, %v1882
      %v2027 = vpack.c.b16 %v1891, %v1887
      %v2028 = vpack.c.b16 %v1892, %v1888
      %v2029 = vpack.c.b16 %v1893, %v1889
      %v2030 = vpack.c.b16 %v1894, %v1890
      %v2031 = vpack.c.b16 %v1899, %v1895
      %v2032 = vpack.c.b16 %v1900, %v1896
      %v2033 = vpack.c.b16 %v1901, %v1897
      %v2034 = vpack.c.b16 %v1902, %v1898
      %v2035 = vpack.c.b16 %v1907, %v1903
      %v2036 = vpack.c.b16 %v1908, %v1904
      %v2037 = vpack.c.b16 %v1909, %v1905
      %v2038 = vpack.c.b16 %v1910, %v1906
      %2167 = vmatprep.subr.bf16.mxu0 %v1912
      %2168 = vmatpush1.bf16.msra.mxu0 %v1911
      %2169 = vmatprep.subr.bf16.mxu0 %v1916
      %2170 = vmatpush1.bf16.msra.mxu0 %v1915
      %2171 = vmatprep.subr.bf16.mxu0 %v1920
      %2172 = vmatpush1.bf16.msra.mxu0 %v1919
      %2173 = vmatprep.subr.bf16.mxu0 %v1924
      %2174 = vmatpush1.bf16.msra.mxu0 %v1923
      %2175 = vmatprep.subr.bf16.mxu0 %v1928
      %2176 = vmatpush1.bf16.msra.mxu0 %v1927
      %2177 = vmatprep.subr.bf16.mxu0 %v1932
      %2178 = vmatpush1.bf16.msra.mxu0 %v1931
      %2179 = vmatprep.subr.bf16.mxu0 %v1936
      %2180 = vmatpush1.bf16.msra.mxu0 %v1935
      %2181 = vmatprep.subr.bf16.mxu0 %v1940
      %2182 = vmatpush1.bf16.msra.mxu0 %v1939
      %2183 = vmatprep.subr.bf16.mxu0 %v1944
      %2184 = vmatpush1.bf16.msra.mxu0 %v1943
      %2185 = vmatprep.subr.bf16.mxu0 %v1948
      %2186 = vmatpush1.bf16.msra.mxu0 %v1947
      %2187 = vmatprep.subr.bf16.mxu0 %v1952
      %2188 = vmatpush1.bf16.msra.mxu0 %v1951
      %2189 = vmatprep.subr.bf16.mxu0 %v1956
      %2190 = vmatpush1.bf16.msra.mxu0 %v1955
      %2191 = vmatprep.subr.bf16.mxu0 %v1960
      %2192 = vmatpush1.bf16.msra.mxu0 %v1959
      %2193 = vmatprep.subr.bf16.mxu0 %v1964
      %2194 = vmatpush1.bf16.msra.mxu0 %v1963
      %2195 = vmatprep.subr.bf16.mxu0 %v1968
      %2196 = vmatpush1.bf16.msra.mxu0 %v1967
      %2197 = vmatprep.subr.bf16.mxu0 %v1972
      %2198 = vmatpush1.bf16.msra.mxu0 %v1971
      %2199 = vmatprep.mubr.bf16.mxu0 %v651
      %2200 = vmatmul.mubr.bf16.gmra.mrb[0].mxu0 %v650
      %v2201 = vpop.f32.mrb[0].mxu0
      %v2202 = vadd.f32 %v1429, %v2201
      %v2203 = vpop.f32.mrb[0].mxu0
      %v2204 = vadd.f32 %v1431, %v2203
      %v2205 = vpop.f32.mrb[0].mxu0
      %v2206 = vadd.f32 %v1433, %v2205
      %v2207 = vpop.f32.mrb[0].mxu0
      %v2208 = vadd.f32 %v1435, %v2207
      %2209 = vdwg.mxu0
      %2210 = vmatprep.subr.bf16.mxu0 %v1976
      %2211 = vmatpush1.bf16.msra.mxu0 %v1975
      %2212 = vmatprep.subr.bf16.mxu0 %v1980
      %2213 = vmatpush1.bf16.msra.mxu0 %v1979
      %2214 = vmatprep.subr.bf16.mxu0 %v1984
      %2215 = vmatpush1.bf16.msra.mxu0 %v1983
      %2216 = vmatprep.subr.bf16.mxu0 %v1988
      %2217 = vmatpush1.bf16.msra.mxu0 %v1987
      %2218 = vmatprep.subr.bf16.mxu0 %v1992
      %2219 = vmatpush1.bf16.msra.mxu0 %v1991
      %2220 = vmatprep.subr.bf16.mxu0 %v1996
      %2221 = vmatpush1.bf16.msra.mxu0 %v1995
      %2222 = vmatprep.subr.bf16.mxu0 %v2000
      %2223 = vmatpush1.bf16.msra.mxu0 %v1999
      %2224 = vmatprep.subr.bf16.mxu0 %v2004
      %2225 = vmatpush1.bf16.msra.mxu0 %v2003
      %2226 = vmatprep.subr.bf16.mxu0 %v2008
      %2227 = vmatpush1.bf16.msra.mxu0 %v2007
      %2228 = vmatprep.subr.bf16.mxu0 %v2012
      %2229 = vmatpush1.bf16.msra.mxu0 %v2011
      %2230 = vmatprep.subr.bf16.mxu0 %v2016
      %2231 = vmatpush1.bf16.msra.mxu0 %v2015
      %2232 = vmatprep.subr.bf16.mxu0 %v2020
      %2233 = vmatpush1.bf16.msra.mxu0 %v2019
      %2234 = vmatprep.subr.bf16.mxu0 %v2024
      %2235 = vmatpush1.bf16.msra.mxu0 %v2023
      %2236 = vmatprep.subr.bf16.mxu0 %v2028
      %2237 = vmatpush1.bf16.msra.mxu0 %v2027
      %2238 = vmatprep.subr.bf16.mxu0 %v2032
      %2239 = vmatpush1.bf16.msra.mxu0 %v2031
      %2240 = vmatprep.subr.bf16.mxu0 %v2036
      %2241 = vmatpush1.bf16.msra.mxu0 %v2035
      %2242 = vmatprep.mubr.bf16.mxu0 %v653
      %2243 = vmatmul.mubr.bf16.gmra.mrb[0].mxu0 %v652
      %v2244 = vpop.f32.mrb[0].mxu0
      %v2245 = vadd.f32 %v2202, %v2244
      %v2246 = vpop.f32.mrb[0].mxu0
      %v2247 = vadd.f32 %v2204, %v2246
      %v2248 = vpop.f32.mrb[0].mxu0
      %v2249 = vadd.f32 %v2206, %v2248
      %v2250 = vpop.f32.mrb[0].mxu0
      %v2251 = vadd.f32 %v2208, %v2250
      %2252 = vdwg.mxu0
      %2253 = vmatprep.subr.bf16.mxu0 %v1914
      %2254 = vmatpush1.bf16.msra.mxu0 %v1913
      %2255 = vmatprep.subr.bf16.mxu0 %v1918
      %2256 = vmatpush1.bf16.msra.mxu0 %v1917
      %2257 = vmatprep.subr.bf16.mxu0 %v1922
      %2258 = vmatpush1.bf16.msra.mxu0 %v1921
      %2259 = vmatprep.subr.bf16.mxu0 %v1926
      %2260 = vmatpush1.bf16.msra.mxu0 %v1925
      %2261 = vmatprep.subr.bf16.mxu0 %v1930
      %2262 = vmatpush1.bf16.msra.mxu0 %v1929
      %2263 = vmatprep.subr.bf16.mxu0 %v1934
      %2264 = vmatpush1.bf16.msra.mxu0 %v1933
      %2265 = vmatprep.subr.bf16.mxu0 %v1938
      %2266 = vmatpush1.bf16.msra.mxu0 %v1937
      %2267 = vmatprep.subr.bf16.mxu0 %v1942
      %2268 = vmatpush1.bf16.msra.mxu0 %v1941
      %2269 = vmatprep.subr.bf16.mxu0 %v1946
      %2270 = vmatpush1.bf16.msra.mxu0 %v1945
      %2271 = vmatprep.subr.bf16.mxu0 %v1950
      %2272 = vmatpush1.bf16.msra.mxu0 %v1949
      %2273 = vmatprep.subr.bf16.mxu0 %v1954
      %2274 = vmatpush1.bf16.msra.mxu0 %v1953
      %2275 = vmatprep.subr.bf16.mxu0 %v1958
      %2276 = vmatpush1.bf16.msra.mxu0 %v1957
      %2277 = vmatprep.subr.bf16.mxu0 %v1962
      %2278 = vmatpush1.bf16.msra.mxu0 %v1961
      %2279 = vmatprep.subr.bf16.mxu0 %v1966
      %2280 = vmatpush1.bf16.msra.mxu0 %v1965
      %2281 = vmatprep.subr.bf16.mxu0 %v1970
      %2282 = vmatpush1.bf16.msra.mxu0 %v1969
      %2283 = vmatprep.subr.bf16.mxu0 %v1974
      %2284 = vmatpush1.bf16.msra.mxu0 %v1973
      %2285 = vmatprep.mubr.bf16.mxu0 %v651
      %2286 = vmatmul.mubr.bf16.gmra.mrb[0].mxu0 %v650
      %v2287 = vpop.f32.mrb[0].mxu0
      %v2288 = vadd.f32 %v1515, %v2287
      %v2289 = vpop.f32.mrb[0].mxu0
      %v2290 = vadd.f32 %v1517, %v2289
      %v2291 = vpop.f32.mrb[0].mxu0
      %v2292 = vadd.f32 %v1519, %v2291
      %v2293 = vpop.f32.mrb[0].mxu0
      %v2294 = vadd.f32 %v1521, %v2293
      %2295 = vdwg.mxu0
      %2296 = vmatprep.subr.bf16.mxu0 %v1978
      %2297 = vmatpush1.bf16.msra.mxu0 %v1977
      %2298 = vmatprep.subr.bf16.mxu0 %v1982
      %2299 = vmatpush1.bf16.msra.mxu0 %v1981
      %2300 = vmatprep.subr.bf16.mxu0 %v1986
      %2301 = vmatpush1.bf16.msra.mxu0 %v1985
      %2302 = vmatprep.subr.bf16.mxu0 %v1990
      %2303 = vmatpush1.bf16.msra.mxu0 %v1989
      %2304 = vmatprep.subr.bf16.mxu0 %v1994
      %2305 = vmatpush1.bf16.msra.mxu0 %v1993
      %2306 = vmatprep.subr.bf16.mxu0 %v1998
      %2307 = vmatpush1.bf16.msra.mxu0 %v1997
      %2308 = vmatprep.subr.bf16.mxu0 %v2002
      %2309 = vmatpush1.bf16.msra.mxu0 %v2001
      %2310 = vmatprep.subr.bf16.mxu0 %v2006
      %2311 = vmatpush1.bf16.msra.mxu0 %v2005
      %2312 = vmatprep.subr.bf16.mxu0 %v2010
      %2313 = vmatpush1.bf16.msra.mxu0 %v2009
      %2314 = vmatprep.subr.bf16.mxu0 %v2014
      %2315 = vmatpush1.bf16.msra.mxu0 %v2013
      %2316 = vmatprep.subr.bf16.mxu0 %v2018
      %2317 = vmatpush1.bf16.msra.mxu0 %v2017
      %2318 = vmatprep.subr.bf16.mxu0 %v2022
      %2319 = vmatpush1.bf16.msra.mxu0 %v2021
      %2320 = vmatprep.subr.bf16.mxu0 %v2026
      %2321 = vmatpush1.bf16.msra.mxu0 %v2025
      %2322 = vmatprep.subr.bf16.mxu0 %v2030
      %2323 = vmatpush1.bf16.msra.mxu0 %v2029
      %2324 = vmatprep.subr.bf16.mxu0 %v2034
      %2325 = vmatpush1.bf16.msra.mxu0 %v2033
      %2326 = vmatprep.subr.bf16.mxu0 %v2038
      %2327 = vmatpush1.bf16.msra.mxu0 %v2037
      %2328 = vmatprep.mubr.bf16.mxu0 %v653
      %2329 = vmatmul.mubr.bf16.gmra.mrb[0].mxu0 %v652
      %v2330 = vpop.f32.mrb[0].mxu0
      %v2331 = vadd.f32 %v2288, %v2330
      %v2332 = vpop.f32.mrb[0].mxu0
      %v2333 = vadd.f32 %v2290, %v2332
      %v2334 = vpop.f32.mrb[0].mxu0
      %v2335 = vadd.f32 %v2292, %v2334
      %v2336 = vpop.f32.mrb[0].mxu0
      %v2337 = vadd.f32 %v2294, %v2336
      %2338 = vdwg.mxu0
      %v2339 = vld [vmem:[#allocation2] sm:$0xee]
      %v2340 = vld [vmem:[#allocation2 + $0x8] sm:$0xee]
      %s2341 = scalar_lea.vmem %s1, 2048
      %v2342 = vld [vmem:[%s2341] sm:$0xff]
      %v2343 = vld [vmem:[%s2341 + $0x8] sm:$0xff]
      %v2344 = vld [vmem:[%s2341 + $0x10] sm:$0xff]
      %v2345 = vld [vmem:[%s2341 + $0x18] sm:$0xff]
      %v2346 = vld [vmem:[%s2341 + $0x20] sm:$0xff]
      %v2347 = vld [vmem:[%s2341 + $0x28] sm:$0xff]
      %v2348 = vld [vmem:[%s2341 + $0x30] sm:$0xff]
      %v2349 = vld [vmem:[%s2341 + $0x38] sm:$0xff]
      %v2350 = vld [vmem:[%s2341 + $0x40] sm:$0xff]
      %v2351 = vld [vmem:[%s2341 + $0x48] sm:$0xff]
      %v2352 = vld [vmem:[%s2341 + $0x50] sm:$0xff]
      %v2353 = vld [vmem:[%s2341 + $0x58] sm:$0xff]
      %v2354 = vld [vmem:[%s2341 + $0x60] sm:$0xff]
      %v2355 = vld [vmem:[%s2341 + $0x68] sm:$0xff]
      %v2356 = vld [vmem:[%s2341 + $0x70] sm:$0xff]
      %v2357 = vld [vmem:[%s2341 + $0x78] sm:$0xff]
      %v2358 = vld [vmem:[%s2341 + $0x80] sm:$0xff]
      %v2359 = vld [vmem:[%s2341 + $0x88] sm:$0xff]
      %v2360 = vld [vmem:[%s2341 + $0x90] sm:$0xff]
      %v2361 = vld [vmem:[%s2341 + $0x98] sm:$0xff]
      %v2362 = vld [vmem:[%s2341 + $0xa0] sm:$0xff]
      %v2363 = vld [vmem:[%s2341 + $0xa8] sm:$0xff]
      %v2364 = vld [vmem:[%s2341 + $0xb0] sm:$0xff]
      %v2365 = vld [vmem:[%s2341 + $0xb8] sm:$0xff]
      %v2366 = vld [vmem:[%s2341 + $0xc0] sm:$0xff]
      %v2367 = vld [vmem:[%s2341 + $0xc8] sm:$0xff]
      %v2368 = vld [vmem:[%s2341 + $0xd0] sm:$0xff]
      %v2369 = vld [vmem:[%s2341 + $0xd8] sm:$0xff]
      %v2370 = vld [vmem:[%s2341 + $0xe0] sm:$0xff]
      %v2371 = vld [vmem:[%s2341 + $0xe8] sm:$0xff]
      %v2372 = vld [vmem:[%s2341 + $0xf0] sm:$0xff]
      %v2373 = vld [vmem:[%s2341 + $0xf8] sm:$0xff]
      %v2374 = vld [vmem:[%s2341 + $0x100] sm:$0xff]
      %v2375 = vld [vmem:[%s2341 + $0x108] sm:$0xff]
      %v2376 = vld [vmem:[%s2341 + $0x110] sm:$0xff]
      %v2377 = vld [vmem:[%s2341 + $0x118] sm:$0xff]
      %v2378 = vld [vmem:[%s2341 + $0x120] sm:$0xff]
      %v2379 = vld [vmem:[%s2341 + $0x128] sm:$0xff]
      %v2380 = vld [vmem:[%s2341 + $0x130] sm:$0xff]
      %v2381 = vld [vmem:[%s2341 + $0x138] sm:$0xff]
      %v2382 = vld [vmem:[%s2341 + $0x140] sm:$0xff]
      %v2383 = vld [vmem:[%s2341 + $0x148] sm:$0xff]
      %v2384 = vld [vmem:[%s2341 + $0x150] sm:$0xff]
      %v2385 = vld [vmem:[%s2341 + $0x158] sm:$0xff]
      %v2386 = vld [vmem:[%s2341 + $0x160] sm:$0xff]
      %v2387 = vld [vmem:[%s2341 + $0x168] sm:$0xff]
      %v2388 = vld [vmem:[%s2341 + $0x170] sm:$0xff]
      %v2389 = vld [vmem:[%s2341 + $0x178] sm:$0xff]
      %v2390 = vld [vmem:[%s2341 + $0x180] sm:$0xff]
      %v2391 = vld [vmem:[%s2341 + $0x188] sm:$0xff]
      %v2392 = vld [vmem:[%s2341 + $0x190] sm:$0xff]
      %v2393 = vld [vmem:[%s2341 + $0x198] sm:$0xff]
      %v2394 = vld [vmem:[%s2341 + $0x1a0] sm:$0xff]
      %v2395 = vld [vmem:[%s2341 + $0x1a8] sm:$0xff]
      %v2396 = vld [vmem:[%s2341 + $0x1b0] sm:$0xff]
      %v2397 = vld [vmem:[%s2341 + $0x1b8] sm:$0xff]
      %v2398 = vld [vmem:[%s2341 + $0x1c0] sm:$0xff]
      %v2399 = vld [vmem:[%s2341 + $0x1c8] sm:$0xff]
      %v2400 = vld [vmem:[%s2341 + $0x1d0] sm:$0xff]
      %v2401 = vld [vmem:[%s2341 + $0x1d8] sm:$0xff]
      %v2402 = vld [vmem:[%s2341 + $0x1e0] sm:$0xff]
      %v2403 = vld [vmem:[%s2341 + $0x1e8] sm:$0xff]
      %v2404 = vld [vmem:[%s2341 + $0x1f0] sm:$0xff]
      %v2405 = vld [vmem:[%s2341 + $0x1f8] sm:$0xff]
      %v2406 = vld [vmem:[%s2341 + $0x200] sm:$0xff]
      %v2407 = vld [vmem:[%s2341 + $0x208] sm:$0xff]
      %v2408 = vld [vmem:[%s2341 + $0x210] sm:$0xff]
      %v2409 = vld [vmem:[%s2341 + $0x218] sm:$0xff]
      %v2410 = vld [vmem:[%s2341 + $0x220] sm:$0xff]
      %v2411 = vld [vmem:[%s2341 + $0x228] sm:$0xff]
      %v2412 = vld [vmem:[%s2341 + $0x230] sm:$0xff]
      %v2413 = vld [vmem:[%s2341 + $0x238] sm:$0xff]
      %v2414 = vld [vmem:[%s2341 + $0x240] sm:$0xff]
      %v2415 = vld [vmem:[%s2341 + $0x248] sm:$0xff]
      %v2416 = vld [vmem:[%s2341 + $0x250] sm:$0xff]
      %v2417 = vld [vmem:[%s2341 + $0x258] sm:$0xff]
      %v2418 = vld [vmem:[%s2341 + $0x260] sm:$0xff]
      %v2419 = vld [vmem:[%s2341 + $0x268] sm:$0xff]
      %v2420 = vld [vmem:[%s2341 + $0x270] sm:$0xff]
      %v2421 = vld [vmem:[%s2341 + $0x278] sm:$0xff]
      %v2422 = vld [vmem:[%s2341 + $0x280] sm:$0xff]
      %v2423 = vld [vmem:[%s2341 + $0x288] sm:$0xff]
      %v2424 = vld [vmem:[%s2341 + $0x290] sm:$0xff]
      %v2425 = vld [vmem:[%s2341 + $0x298] sm:$0xff]
      %v2426 = vld [vmem:[%s2341 + $0x2a0] sm:$0xff]
      %v2427 = vld [vmem:[%s2341 + $0x2a8] sm:$0xff]
      %v2428 = vld [vmem:[%s2341 + $0x2b0] sm:$0xff]
      %v2429 = vld [vmem:[%s2341 + $0x2b8] sm:$0xff]
      %v2430 = vld [vmem:[%s2341 + $0x2c0] sm:$0xff]
      %v2431 = vld [vmem:[%s2341 + $0x2c8] sm:$0xff]
      %v2432 = vld [vmem:[%s2341 + $0x2d0] sm:$0xff]
      %v2433 = vld [vmem:[%s2341 + $0x2d8] sm:$0xff]
      %v2434 = vld [vmem:[%s2341 + $0x2e0] sm:$0xff]
      %v2435 = vld [vmem:[%s2341 + $0x2e8] sm:$0xff]
      %v2436 = vld [vmem:[%s2341 + $0x2f0] sm:$0xff]
      %v2437 = vld [vmem:[%s2341 + $0x2f8] sm:$0xff]
      %v2438 = vld [vmem:[%s2341 + $0x300] sm:$0xff]
      %v2439 = vld [vmem:[%s2341 + $0x308] sm:$0xff]
      %v2440 = vld [vmem:[%s2341 + $0x310] sm:$0xff]
      %v2441 = vld [vmem:[%s2341 + $0x318] sm:$0xff]
      %v2442 = vld [vmem:[%s2341 + $0x320] sm:$0xff]
      %v2443 = vld [vmem:[%s2341 + $0x328] sm:$0xff]
      %v2444 = vld [vmem:[%s2341 + $0x330] sm:$0xff]
      %v2445 = vld [vmem:[%s2341 + $0x338] sm:$0xff]
      %v2446 = vld [vmem:[%s2341 + $0x340] sm:$0xff]
      %v2447 = vld [vmem:[%s2341 + $0x348] sm:$0xff]
      %v2448 = vld [vmem:[%s2341 + $0x350] sm:$0xff]
      %v2449 = vld [vmem:[%s2341 + $0x358] sm:$0xff]
      %v2450 = vld [vmem:[%s2341 + $0x360] sm:$0xff]
      %v2451 = vld [vmem:[%s2341 + $0x368] sm:$0xff]
      %v2452 = vld [vmem:[%s2341 + $0x370] sm:$0xff]
      %v2453 = vld [vmem:[%s2341 + $0x378] sm:$0xff]
      %v2454 = vld [vmem:[%s2341 + $0x380] sm:$0xff]
      %v2455 = vld [vmem:[%s2341 + $0x388] sm:$0xff]
      %v2456 = vld [vmem:[%s2341 + $0x390] sm:$0xff]
      %v2457 = vld [vmem:[%s2341 + $0x398] sm:$0xff]
      %v2458 = vld [vmem:[%s2341 + $0x3a0] sm:$0xff]
      %v2459 = vld [vmem:[%s2341 + $0x3a8] sm:$0xff]
      %v2460 = vld [vmem:[%s2341 + $0x3b0] sm:$0xff]
      %v2461 = vld [vmem:[%s2341 + $0x3b8] sm:$0xff]
      %v2462 = vld [vmem:[%s2341 + $0x3c0] sm:$0xff]
      %v2463 = vld [vmem:[%s2341 + $0x3c8] sm:$0xff]
      %v2464 = vld [vmem:[%s2341 + $0x3d0] sm:$0xff]
      %v2465 = vld [vmem:[%s2341 + $0x3d8] sm:$0xff]
      %v2466 = vld [vmem:[%s2341 + $0x3e0] sm:$0xff]
      %v2467 = vld [vmem:[%s2341 + $0x3e8] sm:$0xff]
      %v2468 = vld [vmem:[%s2341 + $0x3f0] sm:$0xff]
      %v2469 = vld [vmem:[%s2341 + $0x3f8] sm:$0xff]
      %v2472 = vunpack.c.l.b16 %v2339
      %v2473 = vunpack.c.h.b16 %v2339
      %v2474 = vunpack.c.l.b16 %v2340
      %v2475 = vunpack.c.h.b16 %v2340
      %v2476 = vpack.c.b16 %v642, %v2472
      %v2477 = vpack.c.b16 %v643, %v2473
      %v2478 = vpack.c.b16 %v644, %v2474
      %v2479 = vpack.c.b16 %v645, %v2475
      %vm2480 = vcmask 1046528
      %v2481 = vrot.slane %v2476, 1
      %v2482 = vrot.slane %v654, 1
      %v2483 = vsel %vm2480, %v2481, %v2482
      %v2484 = vrot.slane %v2477, 1
      %v2485 = vrot.slane %v655, 1
      %v2486 = vsel %vm2480, %v2484, %v2485
      %v2487 = vrot.slane %v2478, 1
      %v2488 = vrot.slane %v656, 1
      %v2489 = vsel %vm2480, %v2487, %v2488
      %v2490 = vrot.slane %v2479, 1
      %v2491 = vrot.slane %v657, 1
      %v2492 = vsel %vm2480, %v2490, %v2491
      %v2625 = vunpack.c.l.b16 %v2342
      %v2626 = vunpack.c.h.b16 %v2342
      %v2627 = vunpack.c.l.b16 %v2343
      %v2628 = vunpack.c.h.b16 %v2343
      %v2629 = vunpack.c.l.b16 %v2344
      %v2630 = vunpack.c.h.b16 %v2344
      %v2631 = vunpack.c.l.b16 %v2345
      %v2632 = vunpack.c.h.b16 %v2345
      %v2633 = vunpack.c.l.b16 %v2346
      %v2634 = vunpack.c.h.b16 %v2346
      %v2635 = vunpack.c.l.b16 %v2347
      %v2636 = vunpack.c.h.b16 %v2347
      %v2637 = vunpack.c.l.b16 %v2348
      %v2638 = vunpack.c.h.b16 %v2348
      %v2639 = vunpack.c.l.b16 %v2349
      %v2640 = vunpack.c.h.b16 %v2349
      %v2641 = vunpack.c.l.b16 %v2350
      %v2642 = vunpack.c.h.b16 %v2350
      %v2643 = vunpack.c.l.b16 %v2351
      %v2644 = vunpack.c.h.b16 %v2351
      %v2645 = vunpack.c.l.b16 %v2352
      %v2646 = vunpack.c.h.b16 %v2352
      %v2647 = vunpack.c.l.b16 %v2353
      %v2648 = vunpack.c.h.b16 %v2353
      %v2649 = vunpack.c.l.b16 %v2354
      %v2650 = vunpack.c.h.b16 %v2354
      %v2651 = vunpack.c.l.b16 %v2355
      %v2652 = vunpack.c.h.b16 %v2355
      %v2653 = vunpack.c.l.b16 %v2356
      %v2654 = vunpack.c.h.b16 %v2356
      %v2655 = vunpack.c.l.b16 %v2357
      %v2656 = vunpack.c.h.b16 %v2357
      %v2657 = vunpack.c.l.b16 %v2358
      %v2658 = vunpack.c.h.b16 %v2358
      %v2659 = vunpack.c.l.b16 %v2359
      %v2660 = vunpack.c.h.b16 %v2359
      %v2661 = vunpack.c.l.b16 %v2360
      %v2662 = vunpack.c.h.b16 %v2360
      %v2663 = vunpack.c.l.b16 %v2361
      %v2664 = vunpack.c.h.b16 %v2361
      %v2665 = vunpack.c.l.b16 %v2362
      %v2666 = vunpack.c.h.b16 %v2362
      %v2667 = vunpack.c.l.b16 %v2363
      %v2668 = vunpack.c.h.b16 %v2363
      %v2669 = vunpack.c.l.b16 %v2364
      %v2670 = vunpack.c.h.b16 %v2364
      %v2671 = vunpack.c.l.b16 %v2365
      %v2672 = vunpack.c.h.b16 %v2365
      %v2673 = vunpack.c.l.b16 %v2366
      %v2674 = vunpack.c.h.b16 %v2366
      %v2675 = vunpack.c.l.b16 %v2367
      %v2676 = vunpack.c.h.b16 %v2367
      %v2677 = vunpack.c.l.b16 %v2368
      %v2678 = vunpack.c.h.b16 %v2368
      %v2679 = vunpack.c.l.b16 %v2369
      %v2680 = vunpack.c.h.b16 %v2369
      %v2681 = vunpack.c.l.b16 %v2370
      %v2682 = vunpack.c.h.b16 %v2370
      %v2683 = vunpack.c.l.b16 %v2371
      %v2684 = vunpack.c.h.b16 %v2371
      %v2685 = vunpack.c.l.b16 %v2372
      %v2686 = vunpack.c.h.b16 %v2372
      %v2687 = vunpack.c.l.b16 %v2373
      %v2688 = vunpack.c.h.b16 %v2373
      %v2689 = vunpack.c.l.b16 %v2374
      %v2690 = vunpack.c.h.b16 %v2374
      %v2691 = vunpack.c.l.b16 %v2375
      %v2692 = vunpack.c.h.b16 %v2375
      %v2693 = vunpack.c.l.b16 %v2376
      %v2694 = vunpack.c.h.b16 %v2376
      %v2695 = vunpack.c.l.b16 %v2377
      %v2696 = vunpack.c.h.b16 %v2377
      %v2697 = vunpack.c.l.b16 %v2378
      %v2698 = vunpack.c.h.b16 %v2378
      %v2699 = vunpack.c.l.b16 %v2379
      %v2700 = vunpack.c.h.b16 %v2379
      %v2701 = vunpack.c.l.b16 %v2380
      %v2702 = vunpack.c.h.b16 %v2380
      %v2703 = vunpack.c.l.b16 %v2381
      %v2704 = vunpack.c.h.b16 %v2381
      %v2705 = vunpack.c.l.b16 %v2382
      %v2706 = vunpack.c.h.b16 %v2382
      %v2707 = vunpack.c.l.b16 %v2383
      %v2708 = vunpack.c.h.b16 %v2383
      %v2709 = vunpack.c.l.b16 %v2384
      %v2710 = vunpack.c.h.b16 %v2384
      %v2711 = vunpack.c.l.b16 %v2385
      %v2712 = vunpack.c.h.b16 %v2385
      %v2713 = vunpack.c.l.b16 %v2386
      %v2714 = vunpack.c.h.b16 %v2386
      %v2715 = vunpack.c.l.b16 %v2387
      %v2716 = vunpack.c.h.b16 %v2387
      %v2717 = vunpack.c.l.b16 %v2388
      %v2718 = vunpack.c.h.b16 %v2388
      %v2719 = vunpack.c.l.b16 %v2389
      %v2720 = vunpack.c.h.b16 %v2389
      %v2721 = vunpack.c.l.b16 %v2390
      %v2722 = vunpack.c.h.b16 %v2390
      %v2723 = vunpack.c.l.b16 %v2391
      %v2724 = vunpack.c.h.b16 %v2391
      %v2725 = vunpack.c.l.b16 %v2392
      %v2726 = vunpack.c.h.b16 %v2392
      %v2727 = vunpack.c.l.b16 %v2393
      %v2728 = vunpack.c.h.b16 %v2393
      %v2729 = vunpack.c.l.b16 %v2394
      %v2730 = vunpack.c.h.b16 %v2394
      %v2731 = vunpack.c.l.b16 %v2395
      %v2732 = vunpack.c.h.b16 %v2395
      %v2733 = vunpack.c.l.b16 %v2396
      %v2734 = vunpack.c.h.b16 %v2396
      %v2735 = vunpack.c.l.b16 %v2397
      %v2736 = vunpack.c.h.b16 %v2397
      %v2737 = vunpack.c.l.b16 %v2398
      %v2738 = vunpack.c.h.b16 %v2398
      %v2739 = vunpack.c.l.b16 %v2399
      %v2740 = vunpack.c.h.b16 %v2399
      %v2741 = vunpack.c.l.b16 %v2400
      %v2742 = vunpack.c.h.b16 %v2400
      %v2743 = vunpack.c.l.b16 %v2401
      %v2744 = vunpack.c.h.b16 %v2401
      %v2745 = vunpack.c.l.b16 %v2402
      %v2746 = vunpack.c.h.b16 %v2402
      %v2747 = vunpack.c.l.b16 %v2403
      %v2748 = vunpack.c.h.b16 %v2403
      %v2749 = vunpack.c.l.b16 %v2404
      %v2750 = vunpack.c.h.b16 %v2404
      %v2751 = vunpack.c.l.b16 %v2405
      %v2752 = vunpack.c.h.b16 %v2405
      %v2753 = vunpack.c.l.b16 %v2406
      %v2754 = vunpack.c.h.b16 %v2406
      %v2755 = vunpack.c.l.b16 %v2407
      %v2756 = vunpack.c.h.b16 %v2407
      %v2757 = vunpack.c.l.b16 %v2408
      %v2758 = vunpack.c.h.b16 %v2408
      %v2759 = vunpack.c.l.b16 %v2409
      %v2760 = vunpack.c.h.b16 %v2409
      %v2761 = vunpack.c.l.b16 %v2410
      %v2762 = vunpack.c.h.b16 %v2410
      %v2763 = vunpack.c.l.b16 %v2411
      %v2764 = vunpack.c.h.b16 %v2411
      %v2765 = vunpack.c.l.b16 %v2412
      %v2766 = vunpack.c.h.b16 %v2412
      %v2767 = vunpack.c.l.b16 %v2413
      %v2768 = vunpack.c.h.b16 %v2413
      %v2769 = vunpack.c.l.b16 %v2414
      %v2770 = vunpack.c.h.b16 %v2414
      %v2771 = vunpack.c.l.b16 %v2415
      %v2772 = vunpack.c.h.b16 %v2415
      %v2773 = vunpack.c.l.b16 %v2416
      %v2774 = vunpack.c.h.b16 %v2416
      %v2775 = vunpack.c.l.b16 %v2417
      %v2776 = vunpack.c.h.b16 %v2417
      %v2777 = vunpack.c.l.b16 %v2418
      %v2778 = vunpack.c.h.b16 %v2418
      %v2779 = vunpack.c.l.b16 %v2419
      %v2780 = vunpack.c.h.b16 %v2419
      %v2781 = vunpack.c.l.b16 %v2420
      %v2782 = vunpack.c.h.b16 %v2420
      %v2783 = vunpack.c.l.b16 %v2421
      %v2784 = vunpack.c.h.b16 %v2421
      %v2785 = vunpack.c.l.b16 %v2422
      %v2786 = vunpack.c.h.b16 %v2422
      %v2787 = vunpack.c.l.b16 %v2423
      %v2788 = vunpack.c.h.b16 %v2423
      %v2789 = vunpack.c.l.b16 %v2424
      %v2790 = vunpack.c.h.b16 %v2424
      %v2791 = vunpack.c.l.b16 %v2425
      %v2792 = vunpack.c.h.b16 %v2425
      %v2793 = vunpack.c.l.b16 %v2426
      %v2794 = vunpack.c.h.b16 %v2426
      %v2795 = vunpack.c.l.b16 %v2427
      %v2796 = vunpack.c.h.b16 %v2427
      %v2797 = vunpack.c.l.b16 %v2428
      %v2798 = vunpack.c.h.b16 %v2428
      %v2799 = vunpack.c.l.b16 %v2429
      %v2800 = vunpack.c.h.b16 %v2429
      %v2801 = vunpack.c.l.b16 %v2430
      %v2802 = vunpack.c.h.b16 %v2430
      %v2803 = vunpack.c.l.b16 %v2431
      %v2804 = vunpack.c.h.b16 %v2431
      %v2805 = vunpack.c.l.b16 %v2432
      %v2806 = vunpack.c.h.b16 %v2432
      %v2807 = vunpack.c.l.b16 %v2433
      %v2808 = vunpack.c.h.b16 %v2433
      %v2809 = vunpack.c.l.b16 %v2434
      %v2810 = vunpack.c.h.b16 %v2434
      %v2811 = vunpack.c.l.b16 %v2435
      %v2812 = vunpack.c.h.b16 %v2435
      %v2813 = vunpack.c.l.b16 %v2436
      %v2814 = vunpack.c.h.b16 %v2436
      %v2815 = vunpack.c.l.b16 %v2437
      %v2816 = vunpack.c.h.b16 %v2437
      %v2817 = vunpack.c.l.b16 %v2438
      %v2818 = vunpack.c.h.b16 %v2438
      %v2819 = vunpack.c.l.b16 %v2439
      %v2820 = vunpack.c.h.b16 %v2439
      %v2821 = vunpack.c.l.b16 %v2440
      %v2822 = vunpack.c.h.b16 %v2440
      %v2823 = vunpack.c.l.b16 %v2441
      %v2824 = vunpack.c.h.b16 %v2441
      %v2825 = vunpack.c.l.b16 %v2442
      %v2826 = vunpack.c.h.b16 %v2442
      %v2827 = vunpack.c.l.b16 %v2443
      %v2828 = vunpack.c.h.b16 %v2443
      %v2829 = vunpack.c.l.b16 %v2444
      %v2830 = vunpack.c.h.b16 %v2444
      %v2831 = vunpack.c.l.b16 %v2445
      %v2832 = vunpack.c.h.b16 %v2445
      %v2833 = vunpack.c.l.b16 %v2446
      %v2834 = vunpack.c.h.b16 %v2446
      %v2835 = vunpack.c.l.b16 %v2447
      %v2836 = vunpack.c.h.b16 %v2447
      %v2837 = vunpack.c.l.b16 %v2448
      %v2838 = vunpack.c.h.b16 %v2448
      %v2839 = vunpack.c.l.b16 %v2449
      %v2840 = vunpack.c.h.b16 %v2449
      %v2841 = vunpack.c.l.b16 %v2450
      %v2842 = vunpack.c.h.b16 %v2450
      %v2843 = vunpack.c.l.b16 %v2451
      %v2844 = vunpack.c.h.b16 %v2451
      %v2845 = vunpack.c.l.b16 %v2452
      %v2846 = vunpack.c.h.b16 %v2452
      %v2847 = vunpack.c.l.b16 %v2453
      %v2848 = vunpack.c.h.b16 %v2453
      %v2849 = vunpack.c.l.b16 %v2454
      %v2850 = vunpack.c.h.b16 %v2454
      %v2851 = vunpack.c.l.b16 %v2455
      %v2852 = vunpack.c.h.b16 %v2455
      %v2853 = vunpack.c.l.b16 %v2456
      %v2854 = vunpack.c.h.b16 %v2456
      %v2855 = vunpack.c.l.b16 %v2457
      %v2856 = vunpack.c.h.b16 %v2457
      %v2857 = vunpack.c.l.b16 %v2458
      %v2858 = vunpack.c.h.b16 %v2458
      %v2859 = vunpack.c.l.b16 %v2459
      %v2860 = vunpack.c.h.b16 %v2459
      %v2861 = vunpack.c.l.b16 %v2460
      %v2862 = vunpack.c.h.b16 %v2460
      %v2863 = vunpack.c.l.b16 %v2461
      %v2864 = vunpack.c.h.b16 %v2461
      %v2865 = vunpack.c.l.b16 %v2462
      %v2866 = vunpack.c.h.b16 %v2462
      %v2867 = vunpack.c.l.b16 %v2463
      %v2868 = vunpack.c.h.b16 %v2463
      %v2869 = vunpack.c.l.b16 %v2464
      %v2870 = vunpack.c.h.b16 %v2464
      %v2871 = vunpack.c.l.b16 %v2465
      %v2872 = vunpack.c.h.b16 %v2465
      %v2873 = vunpack.c.l.b16 %v2466
      %v2874 = vunpack.c.h.b16 %v2466
      %v2875 = vunpack.c.l.b16 %v2467
      %v2876 = vunpack.c.h.b16 %v2467
      %v2877 = vunpack.c.l.b16 %v2468
      %v2878 = vunpack.c.h.b16 %v2468
      %v2879 = vunpack.c.l.b16 %v2469
      %v2880 = vunpack.c.h.b16 %v2469
      %v2881 = vpack.c.b16 %v2629, %v2625
      %v2882 = vpack.c.b16 %v2630, %v2626
      %v2883 = vpack.c.b16 %v2631, %v2627
      %v2884 = vpack.c.b16 %v2632, %v2628
      %v2885 = vpack.c.b16 %v2637, %v2633
      %v2886 = vpack.c.b16 %v2638, %v2634
      %v2887 = vpack.c.b16 %v2639, %v2635
      %v2888 = vpack.c.b16 %v2640, %v2636
      %v2889 = vpack.c.b16 %v2645, %v2641
      %v2890 = vpack.c.b16 %v2646, %v2642
      %v2891 = vpack.c.b16 %v2647, %v2643
      %v2892 = vpack.c.b16 %v2648, %v2644
      %v2893 = vpack.c.b16 %v2653, %v2649
      %v2894 = vpack.c.b16 %v2654, %v2650
      %v2895 = vpack.c.b16 %v2655, %v2651
      %v2896 = vpack.c.b16 %v2656, %v2652
      %v2897 = vpack.c.b16 %v2661, %v2657
      %v2898 = vpack.c.b16 %v2662, %v2658
      %v2899 = vpack.c.b16 %v2663, %v2659
      %v2900 = vpack.c.b16 %v2664, %v2660
      %v2901 = vpack.c.b16 %v2669, %v2665
      %v2902 = vpack.c.b16 %v2670, %v2666
      %v2903 = vpack.c.b16 %v2671, %v2667
      %v2904 = vpack.c.b16 %v2672, %v2668
      %v2905 = vpack.c.b16 %v2677, %v2673
      %v2906 = vpack.c.b16 %v2678, %v2674
      %v2907 = vpack.c.b16 %v2679, %v2675
      %v2908 = vpack.c.b16 %v2680, %v2676
      %v2909 = vpack.c.b16 %v2685, %v2681
      %v2910 = vpack.c.b16 %v2686, %v2682
      %v2911 = vpack.c.b16 %v2687, %v2683
      %v2912 = vpack.c.b16 %v2688, %v2684
      %v2913 = vpack.c.b16 %v2693, %v2689
      %v2914 = vpack.c.b16 %v2694, %v2690
      %v2915 = vpack.c.b16 %v2695, %v2691
      %v2916 = vpack.c.b16 %v2696, %v2692
      %v2917 = vpack.c.b16 %v2701, %v2697
      %v2918 = vpack.c.b16 %v2702, %v2698
      %v2919 = vpack.c.b16 %v2703, %v2699
      %v2920 = vpack.c.b16 %v2704, %v2700
      %v2921 = vpack.c.b16 %v2709, %v2705
      %v2922 = vpack.c.b16 %v2710, %v2706
      %v2923 = vpack.c.b16 %v2711, %v2707
      %v2924 = vpack.c.b16 %v2712, %v2708
      %v2925 = vpack.c.b16 %v2717, %v2713
      %v2926 = vpack.c.b16 %v2718, %v2714
      %v2927 = vpack.c.b16 %v2719, %v2715
      %v2928 = vpack.c.b16 %v2720, %v2716
      %v2929 = vpack.c.b16 %v2725, %v2721
      %v2930 = vpack.c.b16 %v2726, %v2722
      %v2931 = vpack.c.b16 %v2727, %v2723
      %v2932 = vpack.c.b16 %v2728, %v2724
      %v2933 = vpack.c.b16 %v2733, %v2729
      %v2934 = vpack.c.b16 %v2734, %v2730
      %v2935 = vpack.c.b16 %v2735, %v2731
      %v2936 = vpack.c.b16 %v2736, %v2732
      %v2937 = vpack.c.b16 %v2741, %v2737
      %v2938 = vpack.c.b16 %v2742, %v2738
      %v2939 = vpack.c.b16 %v2743, %v2739
      %v2940 = vpack.c.b16 %v2744, %v2740
      %v2941 = vpack.c.b16 %v2749, %v2745
      %v2942 = vpack.c.b16 %v2750, %v2746
      %v2943 = vpack.c.b16 %v2751, %v2747
      %v2944 = vpack.c.b16 %v2752, %v2748
      %v2945 = vpack.c.b16 %v2757, %v2753
      %v2946 = vpack.c.b16 %v2758, %v2754
      %v2947 = vpack.c.b16 %v2759, %v2755
      %v2948 = vpack.c.b16 %v2760, %v2756
      %v2949 = vpack.c.b16 %v2765, %v2761
      %v2950 = vpack.c.b16 %v2766, %v2762
      %v2951 = vpack.c.b16 %v2767, %v2763
      %v2952 = vpack.c.b16 %v2768, %v2764
      %v2953 = vpack.c.b16 %v2773, %v2769
      %v2954 = vpack.c.b16 %v2774, %v2770
      %v2955 = vpack.c.b16 %v2775, %v2771
      %v2956 = vpack.c.b16 %v2776, %v2772
      %v2957 = vpack.c.b16 %v2781, %v2777
      %v2958 = vpack.c.b16 %v2782, %v2778
      %v2959 = vpack.c.b16 %v2783, %v2779
      %v2960 = vpack.c.b16 %v2784, %v2780
      %v2961 = vpack.c.b16 %v2789, %v2785
      %v2962 = vpack.c.b16 %v2790, %v2786
      %v2963 = vpack.c.b16 %v2791, %v2787
      %v2964 = vpack.c.b16 %v2792, %v2788
      %v2965 = vpack.c.b16 %v2797, %v2793
      %v2966 = vpack.c.b16 %v2798, %v2794
      %v2967 = vpack.c.b16 %v2799, %v2795
      %v2968 = vpack.c.b16 %v2800, %v2796
      %v2969 = vpack.c.b16 %v2805, %v2801
      %v2970 = vpack.c.b16 %v2806, %v2802
      %v2971 = vpack.c.b16 %v2807, %v2803
      %v2972 = vpack.c.b16 %v2808, %v2804
      %v2973 = vpack.c.b16 %v2813, %v2809
      %v2974 = vpack.c.b16 %v2814, %v2810
      %v2975 = vpack.c.b16 %v2815, %v2811
      %v2976 = vpack.c.b16 %v2816, %v2812
      %v2977 = vpack.c.b16 %v2821, %v2817
      %v2978 = vpack.c.b16 %v2822, %v2818
      %v2979 = vpack.c.b16 %v2823, %v2819
      %v2980 = vpack.c.b16 %v2824, %v2820
      %v2981 = vpack.c.b16 %v2829, %v2825
      %v2982 = vpack.c.b16 %v2830, %v2826
      %v2983 = vpack.c.b16 %v2831, %v2827
      %v2984 = vpack.c.b16 %v2832, %v2828
      %v2985 = vpack.c.b16 %v2837, %v2833
      %v2986 = vpack.c.b16 %v2838, %v2834
      %v2987 = vpack.c.b16 %v2839, %v2835
      %v2988 = vpack.c.b16 %v2840, %v2836
      %v2989 = vpack.c.b16 %v2845, %v2841
      %v2990 = vpack.c.b16 %v2846, %v2842
      %v2991 = vpack.c.b16 %v2847, %v2843
      %v2992 = vpack.c.b16 %v2848, %v2844
      %v2993 = vpack.c.b16 %v2853, %v2849
      %v2994 = vpack.c.b16 %v2854, %v2850
      %v2995 = vpack.c.b16 %v2855, %v2851
      %v2996 = vpack.c.b16 %v2856, %v2852
      %v2997 = vpack.c.b16 %v2861, %v2857
      %v2998 = vpack.c.b16 %v2862, %v2858
      %v2999 = vpack.c.b16 %v2863, %v2859
      %v3000 = vpack.c.b16 %v2864, %v2860
      %v3001 = vpack.c.b16 %v2869, %v2865
      %v3002 = vpack.c.b16 %v2870, %v2866
      %v3003 = vpack.c.b16 %v2871, %v2867
      %v3004 = vpack.c.b16 %v2872, %v2868
      %v3005 = vpack.c.b16 %v2877, %v2873
      %v3006 = vpack.c.b16 %v2878, %v2874
      %v3007 = vpack.c.b16 %v2879, %v2875
      %v3008 = vpack.c.b16 %v2880, %v2876
      %3137 = vmatprep.subr.bf16.mxu0 %v2882
      %3138 = vmatpush1.bf16.msra.mxu0 %v2881
      %3139 = vmatprep.subr.bf16.mxu0 %v2886
      %3140 = vmatpush1.bf16.msra.mxu0 %v2885
      %3141 = vmatprep.subr.bf16.mxu0 %v2890
      %3142 = vmatpush1.bf16.msra.mxu0 %v2889
      %3143 = vmatprep.subr.bf16.mxu0 %v2894
      %3144 = vmatpush1.bf16.msra.mxu0 %v2893
      %3145 = vmatprep.subr.bf16.mxu0 %v2898
      %3146 = vmatpush1.bf16.msra.mxu0 %v2897
      %3147 = vmatprep.subr.bf16.mxu0 %v2902
      %3148 = vmatpush1.bf16.msra.mxu0 %v2901
      %3149 = vmatprep.subr.bf16.mxu0 %v2906
      %3150 = vmatpush1.bf16.msra.mxu0 %v2905
      %3151 = vmatprep.subr.bf16.mxu0 %v2910
      %3152 = vmatpush1.bf16.msra.mxu0 %v2909
      %3153 = vmatprep.subr.bf16.mxu0 %v2914
      %3154 = vmatpush1.bf16.msra.mxu0 %v2913
      %3155 = vmatprep.subr.bf16.mxu0 %v2918
      %3156 = vmatpush1.bf16.msra.mxu0 %v2917
      %3157 = vmatprep.subr.bf16.mxu0 %v2922
      %3158 = vmatpush1.bf16.msra.mxu0 %v2921
      %3159 = vmatprep.subr.bf16.mxu0 %v2926
      %3160 = vmatpush1.bf16.msra.mxu0 %v2925
      %3161 = vmatprep.subr.bf16.mxu0 %v2930
      %3162 = vmatpush1.bf16.msra.mxu0 %v2929
      %3163 = vmatprep.subr.bf16.mxu0 %v2934
      %3164 = vmatpush1.bf16.msra.mxu0 %v2933
      %3165 = vmatprep.subr.bf16.mxu0 %v2938
      %3166 = vmatpush1.bf16.msra.mxu0 %v2937
      %3167 = vmatprep.subr.bf16.mxu0 %v2942
      %3168 = vmatpush1.bf16.msra.mxu0 %v2941
      %3169 = vmatprep.mubr.bf16.mxu0 %v2486
      %3170 = vmatmul.mubr.bf16.gmra.mrb[0].mxu0 %v2483
      %v3171 = vpop.f32.mrb[0].mxu0
      %v3172 = vadd.f32 0.0, %v3171
      %v3173 = vpop.f32.mrb[0].mxu0
      %v3174 = vadd.f32 0.0, %v3173
      %v3175 = vpop.f32.mrb[0].mxu0
      %v3176 = vadd.f32 0.0, %v3175
      %v3177 = vpop.f32.mrb[0].mxu0
      %v3178 = vadd.f32 0.0, %v3177
      %3179 = vdwg.mxu0
      %3180 = vmatprep.subr.bf16.mxu0 %v2946
      %3181 = vmatpush1.bf16.msra.mxu0 %v2945
      %3182 = vmatprep.subr.bf16.mxu0 %v2950
      %3183 = vmatpush1.bf16.msra.mxu0 %v2949
      %3184 = vmatprep.subr.bf16.mxu0 %v2954
      %3185 = vmatpush1.bf16.msra.mxu0 %v2953
      %3186 = vmatprep.subr.bf16.mxu0 %v2958
      %3187 = vmatpush1.bf16.msra.mxu0 %v2957
      %3188 = vmatprep.subr.bf16.mxu0 %v2962
      %3189 = vmatpush1.bf16.msra.mxu0 %v2961
      %3190 = vmatprep.subr.bf16.mxu0 %v2966
      %3191 = vmatpush1.bf16.msra.mxu0 %v2965
      %3192 = vmatprep.subr.bf16.mxu0 %v2970
      %3193 = vmatpush1.bf16.msra.mxu0 %v2969
      %3194 = vmatprep.subr.bf16.mxu0 %v2974
      %3195 = vmatpush1.bf16.msra.mxu0 %v2973
      %3196 = vmatprep.subr.bf16.mxu0 %v2978
      %3197 = vmatpush1.bf16.msra.mxu0 %v2977
      %3198 = vmatprep.subr.bf16.mxu0 %v2982
      %3199 = vmatpush1.bf16.msra.mxu0 %v2981
      %3200 = vmatprep.subr.bf16.mxu0 %v2986
      %3201 = vmatpush1.bf16.msra.mxu0 %v2985
      %3202 = vmatprep.subr.bf16.mxu0 %v2990
      %3203 = vmatpush1.bf16.msra.mxu0 %v2989
      %3204 = vmatprep.subr.bf16.mxu0 %v2994
      %3205 = vmatpush1.bf16.msra.mxu0 %v2993
      %3206 = vmatprep.subr.bf16.mxu0 %v2998
      %3207 = vmatpush1.bf16.msra.mxu0 %v2997
      %3208 = vmatprep.subr.bf16.mxu0 %v3002
      %3209 = vmatpush1.bf16.msra.mxu0 %v3001
      %3210 = vmatprep.subr.bf16.mxu0 %v3006
      %3211 = vmatpush1.bf16.msra.mxu0 %v3005
      %3212 = vmatprep.mubr.bf16.mxu0 %v2492
      %3213 = vmatmul.mubr.bf16.gmra.mrb[0].mxu0 %v2489
      %v3214 = vpop.f32.mrb[0].mxu0
      %v3215 = vadd.f32 %v3172, %v3214
      %v3216 = vpop.f32.mrb[0].mxu0
      %v3217 = vadd.f32 %v3174, %v3216
      %v3218 = vpop.f32.mrb[0].mxu0
      %v3219 = vadd.f32 %v3176, %v3218
      %v3220 = vpop.f32.mrb[0].mxu0
      %v3221 = vadd.f32 %v3178, %v3220
      %3222 = vdwg.mxu0
      %3223 = vmatprep.subr.bf16.mxu0 %v2884
      %3224 = vmatpush1.bf16.msra.mxu0 %v2883
      %3225 = vmatprep.subr.bf16.mxu0 %v2888
      %3226 = vmatpush1.bf16.msra.mxu0 %v2887
      %3227 = vmatprep.subr.bf16.mxu0 %v2892
      %3228 = vmatpush1.bf16.msra.mxu0 %v2891
      %3229 = vmatprep.subr.bf16.mxu0 %v2896
      %3230 = vmatpush1.bf16.msra.mxu0 %v2895
      %3231 = vmatprep.subr.bf16.mxu0 %v2900
      %3232 = vmatpush1.bf16.msra.mxu0 %v2899
      %3233 = vmatprep.subr.bf16.mxu0 %v2904
      %3234 = vmatpush1.bf16.msra.mxu0 %v2903
      %3235 = vmatprep.subr.bf16.mxu0 %v2908
      %3236 = vmatpush1.bf16.msra.mxu0 %v2907
      %3237 = vmatprep.subr.bf16.mxu0 %v2912
      %3238 = vmatpush1.bf16.msra.mxu0 %v2911
      %3239 = vmatprep.subr.bf16.mxu0 %v2916
      %3240 = vmatpush1.bf16.msra.mxu0 %v2915
      %3241 = vmatprep.subr.bf16.mxu0 %v2920
      %3242 = vmatpush1.bf16.msra.mxu0 %v2919
      %3243 = vmatprep.subr.bf16.mxu0 %v2924
      %3244 = vmatpush1.bf16.msra.mxu0 %v2923
      %3245 = vmatprep.subr.bf16.mxu0 %v2928
      %3246 = vmatpush1.bf16.msra.mxu0 %v2927
      %3247 = vmatprep.subr.bf16.mxu0 %v2932
      %3248 = vmatpush1.bf16.msra.mxu0 %v2931
      %3249 = vmatprep.subr.bf16.mxu0 %v2936
      %3250 = vmatpush1.bf16.msra.mxu0 %v2935
      %3251 = vmatprep.subr.bf16.mxu0 %v2940
      %3252 = vmatpush1.bf16.msra.mxu0 %v2939
      %3253 = vmatprep.subr.bf16.mxu0 %v2944
      %3254 = vmatpush1.bf16.msra.mxu0 %v2943
      %3255 = vmatprep.mubr.bf16.mxu0 %v2486
      %3256 = vmatmul.mubr.bf16.gmra.mrb[0].mxu0 %v2483
      %v3257 = vpop.f32.mrb[0].mxu0
      %v3258 = vadd.f32 0.0, %v3257
      %v3259 = vpop.f32.mrb[0].mxu0
      %v3260 = vadd.f32 0.0, %v3259
      %v3261 = vpop.f32.mrb[0].mxu0
      %v3262 = vadd.f32 0.0, %v3261
      %v3263 = vpop.f32.mrb[0].mxu0
      %v3264 = vadd.f32 0.0, %v3263
      %3265 = vdwg.mxu0
      %3266 = vmatprep.subr.bf16.mxu0 %v2948
      %3267 = vmatpush1.bf16.msra.mxu0 %v2947
      %3268 = vmatprep.subr.bf16.mxu0 %v2952
      %3269 = vmatpush1.bf16.msra.mxu0 %v2951
      %3270 = vmatprep.subr.bf16.mxu0 %v2956
      %3271 = vmatpush1.bf16.msra.mxu0 %v2955
      %3272 = vmatprep.subr.bf16.mxu0 %v2960
      %3273 = vmatpush1.bf16.msra.mxu0 %v2959
      %3274 = vmatprep.subr.bf16.mxu0 %v2964
      %3275 = vmatpush1.bf16.msra.mxu0 %v2963
      %3276 = vmatprep.subr.bf16.mxu0 %v2968
      %3277 = vmatpush1.bf16.msra.mxu0 %v2967
      %3278 = vmatprep.subr.bf16.mxu0 %v2972
      %3279 = vmatpush1.bf16.msra.mxu0 %v2971
      %3280 = vmatprep.subr.bf16.mxu0 %v2976
      %3281 = vmatpush1.bf16.msra.mxu0 %v2975
      %3282 = vmatprep.subr.bf16.mxu0 %v2980
      %3283 = vmatpush1.bf16.msra.mxu0 %v2979
      %3284 = vmatprep.subr.bf16.mxu0 %v2984
      %3285 = vmatpush1.bf16.msra.mxu0 %v2983
      %3286 = vmatprep.subr.bf16.mxu0 %v2988
      %3287 = vmatpush1.bf16.msra.mxu0 %v2987
      %3288 = vmatprep.subr.bf16.mxu0 %v2992
      %3289 = vmatpush1.bf16.msra.mxu0 %v2991
      %3290 = vmatprep.subr.bf16.mxu0 %v2996
      %3291 = vmatpush1.bf16.msra.mxu0 %v2995
      %3292 = vmatprep.subr.bf16.mxu0 %v3000
      %3293 = vmatpush1.bf16.msra.mxu0 %v2999
      %3294 = vmatprep.subr.bf16.mxu0 %v3004
      %3295 = vmatpush1.bf16.msra.mxu0 %v3003
      %3296 = vmatprep.subr.bf16.mxu0 %v3008
      %3297 = vmatpush1.bf16.msra.mxu0 %v3007
      %3298 = vmatprep.mubr.bf16.mxu0 %v2492
      %3299 = vmatmul.mubr.bf16.gmra.mrb[0].mxu0 %v2489
      %v3300 = vpop.f32.mrb[0].mxu0
      %v3301 = vadd.f32 %v3258, %v3300
      %v3302 = vpop.f32.mrb[0].mxu0
      %v3303 = vadd.f32 %v3260, %v3302
      %v3304 = vpop.f32.mrb[0].mxu0
      %v3305 = vadd.f32 %v3262, %v3304
      %v3306 = vpop.f32.mrb[0].mxu0
      %v3307 = vadd.f32 %v3264, %v3306
      %3308 = vdwg.mxu0
      %v3309 = vadd.f32 %v2245, %v3215
      %v3310 = vadd.f32 %v2247, %v3217
      %v3311 = vadd.f32 %v2331, %v3301
      %v3312 = vadd.f32 %v2333, %v3303
      %v3313 = vadd.f32 %v2249, %v3219
      %v3314 = vadd.f32 %v2251, %v3221
      %v3315 = vadd.f32 %v2335, %v3305
      %v3316 = vadd.f32 %v2337, %v3307
      %v3317 = vld [vmem:[%s2] sm:$0xf]
      %v3319 = vlaneseq
      %v3320 = vshrl.u32 %v3319, 7
      %v3321 = vsub.s32 0, %v3320
      %v3322 = vrot.slane %v3317, %v3321
      %v3323 = vlaneseq
      %v3324 = vshrl.u32 %v3323, 7
      %v3325 = vsub.s32 1, %v3324
      %v3326 = vrot.slane %v3317, %v3325
      %v3327 = vlaneseq
      %v3328 = vshrl.u32 %v3327, 7
      %v3329 = vsub.s32 2, %v3328
      %v3330 = vrot.slane %v3317, %v3329
      %v3331 = vlaneseq
      %v3332 = vshrl.u32 %v3331, 7
      %v3333 = vsub.s32 3, %v3332
      %v3334 = vrot.slane %v3317, %v3333
      %v3339 = vadd.f32 %v3309, %v3322
      %v3340 = vadd.f32 %v3310, %v3326
      %v3341 = vadd.f32 %v3311, %v3330
      %v3342 = vadd.f32 %v3312, %v3334
      %v3343 = vadd.f32 %v3313, %v3322
      %v3344 = vadd.f32 %v3314, %v3326
      %v3345 = vadd.f32 %v3315, %v3330
      %v3346 = vadd.f32 %v3316, %v3334
      %v3347 = vmax.f32 %v3339, 0.0
      %v3348 = vmax.f32 %v3340, 0.0
      %v3349 = vmax.f32 %v3341, 0.0
      %v3350 = vmax.f32 %v3342, 0.0
      %v3351 = vmax.f32 %v3343, 0.0
      %v3352 = vmax.f32 %v3344, 0.0
      %v3353 = vmax.f32 %v3345, 0.0
      %v3354 = vmax.f32 %v3346, 0.0
      %v3355 = vpack.c.bf16 %v3351, %v3347
      %v3356 = vpack.c.bf16 %v3352, %v3348
      %v3357 = vpack.c.bf16 %v3353, %v3349
      %v3358 = vpack.c.bf16 %v3354, %v3350
      %v3363 = vunpack.c.l.b16 %v3355
      %v3364 = vunpack.c.l.b16 %v3356
      %v3365 = vunpack.c.l.b16 %v3357
      %v3366 = vunpack.c.l.b16 %v3358
      %v3367 = vunpack.c.h.b16 %v3355
      %v3368 = vunpack.c.h.b16 %v3356
      %v3369 = vunpack.c.h.b16 %v3357
      %v3370 = vunpack.c.h.b16 %v3358
      %v3371 = vpack.c.b16 %v3364, %v3363
      %v3372 = vpack.c.b16 %v3366, %v3365
      %v3373 = vpack.c.b16 %v3368, %v3367
      %v3374 = vpack.c.b16 %v3370, %v3369
      %v3376 = vshrl.u32 %v3371, 16
      %v3378 = vrot.slane %v3376, 7
      %v3379 = vshll.u32 %v3371, 16
      %v3381 = vor.u32 %v3378, %v3379
      %v3383 = vshrl.u32 %v3372, 16
      %v3385 = vrot.slane %v3383, 7
      %v3386 = vshll.u32 %v3372, 16
      %v3388 = vor.u32 %v3385, %v3386
      %v3389 = vrot.slane %v3378, 4
      %v3391 = vshrl.u32 %v3373, 16
      %v3393 = vrot.slane %v3391, 7
      %v3394 = vshll.u32 %v3373, 16
      %v3396 = vor.u32 %v3393, %v3394
      %v3397 = vsel %vm309, %v3389, %v3396
      %v3398 = vrot.slane %v3385, 4
      %v3400 = vshrl.u32 %v3374, 16
      %v3402 = vrot.slane %v3400, 7
      %v3403 = vshll.u32 %v3374, 16
      %v3405 = vor.u32 %v3402, %v3403
      %v3406 = vsel %vm309, %v3398, %v3405
      %v3407 = vrot.slane %v3393, 4
      %v3408 = vrot.slane %v3402, 4
      %v3415 = vsel %vm354, %v3381, %v369
      %3416 = vst [vmem:[#allocation2] sm:$0xff] %v3415
      %v3417 = vld [vmem:[#allocation2 + $0x8] sm:$0xff]
      %v3418 = vsel %vm354, %v3388, %v3417
      %3419 = vst [vmem:[#allocation2 + $0x8] sm:$0xff] %v3418
      %3420 = vst [vmem:[#allocation2 + $0x10] sm:$0xff] %v3397
      %3421 = vst [vmem:[#allocation2 + $0x18] sm:$0xff] %v3406
      %v3422 = vld [vmem:[#allocation2 + $0x20] sm:$0x11]
      %v3423 = vsel %vm286, %v3407, %v3422
      %3424 = vst [vmem:[#allocation2 + $0x20] sm:$0x11] %v3423
      %v3425 = vld [vmem:[#allocation2 + $0x28] sm:$0x11]
      %v3426 = vsel %vm286, %v3408, %v3425
      %3427 = vst [vmem:[#allocation2 + $0x28] sm:$0x11] %v3426
      %v3428 = vld [vmem:[#allocation2] sm:$0xff]
      %v3429 = vld [vmem:[#allocation2 + $0x8] sm:$0xff]
      %v3430 = vld [vmem:[#allocation2 + $0x10] sm:$0xff]
      %v3431 = vld [vmem:[#allocation2 + $0x18] sm:$0xff]
      %v3432 = vld [vmem:[%s3] sm:$0xff]
      %v3433 = vld [vmem:[%s3 + $0x8] sm:$0xff]
      %v3434 = vld [vmem:[%s3 + $0x10] sm:$0xff]
      %v3435 = vld [vmem:[%s3 + $0x18] sm:$0xff]
      %v3436 = vld [vmem:[%s3 + $0x20] sm:$0xff]
      %v3437 = vld [vmem:[%s3 + $0x28] sm:$0xff]
      %v3438 = vld [vmem:[%s3 + $0x30] sm:$0xff]
      %v3439 = vld [vmem:[%s3 + $0x38] sm:$0xff]
      %v3440 = vld [vmem:[%s3 + $0x40] sm:$0xff]
      %v3441 = vld [vmem:[%s3 + $0x48] sm:$0xff]
      %v3442 = vld [vmem:[%s3 + $0x50] sm:$0xff]
      %v3443 = vld [vmem:[%s3 + $0x58] sm:$0xff]
      %v3444 = vld [vmem:[%s3 + $0x60] sm:$0xff]
      %v3445 = vld [vmem:[%s3 + $0x68] sm:$0xff]
      %v3446 = vld [vmem:[%s3 + $0x70] sm:$0xff]
      %v3447 = vld [vmem:[%s3 + $0x78] sm:$0xff]
      %v3448 = vld [vmem:[%s3 + $0x80] sm:$0xff]
      %v3449 = vld [vmem:[%s3 + $0x88] sm:$0xff]
      %v3450 = vld [vmem:[%s3 + $0x90] sm:$0xff]
      %v3451 = vld [vmem:[%s3 + $0x98] sm:$0xff]
      %v3452 = vld [vmem:[%s3 + $0xa0] sm:$0xff]
      %v3453 = vld [vmem:[%s3 + $0xa8] sm:$0xff]
      %v3454 = vld [vmem:[%s3 + $0xb0] sm:$0xff]
      %v3455 = vld [vmem:[%s3 + $0xb8] sm:$0xff]
      %v3456 = vld [vmem:[%s3 + $0xc0] sm:$0xff]
      %v3457 = vld [vmem:[%s3 + $0xc8] sm:$0xff]
      %v3458 = vld [vmem:[%s3 + $0xd0] sm:$0xff]
      %v3459 = vld [vmem:[%s3 + $0xd8] sm:$0xff]
      %v3460 = vld [vmem:[%s3 + $0xe0] sm:$0xff]
      %v3461 = vld [vmem:[%s3 + $0xe8] sm:$0xff]
      %v3462 = vld [vmem:[%s3 + $0xf0] sm:$0xff]
      %v3463 = vld [vmem:[%s3 + $0xf8] sm:$0xff]
      %v3464 = vld [vmem:[%s3 + $0x100] sm:$0xff]
      %v3465 = vld [vmem:[%s3 + $0x108] sm:$0xff]
      %v3466 = vld [vmem:[%s3 + $0x110] sm:$0xff]
      %v3467 = vld [vmem:[%s3 + $0x118] sm:$0xff]
      %v3468 = vld [vmem:[%s3 + $0x120] sm:$0xff]
      %v3469 = vld [vmem:[%s3 + $0x128] sm:$0xff]
      %v3470 = vld [vmem:[%s3 + $0x130] sm:$0xff]
      %v3471 = vld [vmem:[%s3 + $0x138] sm:$0xff]
      %v3472 = vld [vmem:[%s3 + $0x140] sm:$0xff]
      %v3473 = vld [vmem:[%s3 + $0x148] sm:$0xff]
      %v3474 = vld [vmem:[%s3 + $0x150] sm:$0xff]
      %v3475 = vld [vmem:[%s3 + $0x158] sm:$0xff]
      %v3476 = vld [vmem:[%s3 + $0x160] sm:$0xff]
      %v3477 = vld [vmem:[%s3 + $0x168] sm:$0xff]
      %v3478 = vld [vmem:[%s3 + $0x170] sm:$0xff]
      %v3479 = vld [vmem:[%s3 + $0x178] sm:$0xff]
      %v3480 = vld [vmem:[%s3 + $0x180] sm:$0xff]
      %v3481 = vld [vmem:[%s3 + $0x188] sm:$0xff]
      %v3482 = vld [vmem:[%s3 + $0x190] sm:$0xff]
      %v3483 = vld [vmem:[%s3 + $0x198] sm:$0xff]
      %v3484 = vld [vmem:[%s3 + $0x1a0] sm:$0xff]
      %v3485 = vld [vmem:[%s3 + $0x1a8] sm:$0xff]
      %v3486 = vld [vmem:[%s3 + $0x1b0] sm:$0xff]
      %v3487 = vld [vmem:[%s3 + $0x1b8] sm:$0xff]
      %v3488 = vld [vmem:[%s3 + $0x1c0] sm:$0xff]
      %v3489 = vld [vmem:[%s3 + $0x1c8] sm:$0xff]
      %v3490 = vld [vmem:[%s3 + $0x1d0] sm:$0xff]
      %v3491 = vld [vmem:[%s3 + $0x1d8] sm:$0xff]
      %v3492 = vld [vmem:[%s3 + $0x1e0] sm:$0xff]
      %v3493 = vld [vmem:[%s3 + $0x1e8] sm:$0xff]
      %v3494 = vld [vmem:[%s3 + $0x1f0] sm:$0xff]
      %v3495 = vld [vmem:[%s3 + $0x1f8] sm:$0xff]
      %v3496 = vld [vmem:[%s3 + $0x200] sm:$0xff]
      %v3497 = vld [vmem:[%s3 + $0x208] sm:$0xff]
      %v3498 = vld [vmem:[%s3 + $0x210] sm:$0xff]
      %v3499 = vld [vmem:[%s3 + $0x218] sm:$0xff]
      %v3500 = vld [vmem:[%s3 + $0x220] sm:$0xff]
      %v3501 = vld [vmem:[%s3 + $0x228] sm:$0xff]
      %v3502 = vld [vmem:[%s3 + $0x230] sm:$0xff]
      %v3503 = vld [vmem:[%s3 + $0x238] sm:$0xff]
      %v3504 = vld [vmem:[%s3 + $0x240] sm:$0xff]
      %v3505 = vld [vmem:[%s3 + $0x248] sm:$0xff]
      %v3506 = vld [vmem:[%s3 + $0x250] sm:$0xff]
      %v3507 = vld [vmem:[%s3 + $0x258] sm:$0xff]
      %v3508 = vld [vmem:[%s3 + $0x260] sm:$0xff]
      %v3509 = vld [vmem:[%s3 + $0x268] sm:$0xff]
      %v3510 = vld [vmem:[%s3 + $0x270] sm:$0xff]
      %v3511 = vld [vmem:[%s3 + $0x278] sm:$0xff]
      %v3512 = vld [vmem:[%s3 + $0x280] sm:$0xff]
      %v3513 = vld [vmem:[%s3 + $0x288] sm:$0xff]
      %v3514 = vld [vmem:[%s3 + $0x290] sm:$0xff]
      %v3515 = vld [vmem:[%s3 + $0x298] sm:$0xff]
      %v3516 = vld [vmem:[%s3 + $0x2a0] sm:$0xff]
      %v3517 = vld [vmem:[%s3 + $0x2a8] sm:$0xff]
      %v3518 = vld [vmem:[%s3 + $0x2b0] sm:$0xff]
      %v3519 = vld [vmem:[%s3 + $0x2b8] sm:$0xff]
      %v3520 = vld [vmem:[%s3 + $0x2c0] sm:$0xff]
      %v3521 = vld [vmem:[%s3 + $0x2c8] sm:$0xff]
      %v3522 = vld [vmem:[%s3 + $0x2d0] sm:$0xff]
      %v3523 = vld [vmem:[%s3 + $0x2d8] sm:$0xff]
      %v3524 = vld [vmem:[%s3 + $0x2e0] sm:$0xff]
      %v3525 = vld [vmem:[%s3 + $0x2e8] sm:$0xff]
      %v3526 = vld [vmem:[%s3 + $0x2f0] sm:$0xff]
      %v3527 = vld [vmem:[%s3 + $0x2f8] sm:$0xff]
      %v3528 = vld [vmem:[%s3 + $0x300] sm:$0xff]
      %v3529 = vld [vmem:[%s3 + $0x308] sm:$0xff]
      %v3530 = vld [vmem:[%s3 + $0x310] sm:$0xff]
      %v3531 = vld [vmem:[%s3 + $0x318] sm:$0xff]
      %v3532 = vld [vmem:[%s3 + $0x320] sm:$0xff]
      %v3533 = vld [vmem:[%s3 + $0x328] sm:$0xff]
      %v3534 = vld [vmem:[%s3 + $0x330] sm:$0xff]
      %v3535 = vld [vmem:[%s3 + $0x338] sm:$0xff]
      %v3536 = vld [vmem:[%s3 + $0x340] sm:$0xff]
      %v3537 = vld [vmem:[%s3 + $0x348] sm:$0xff]
      %v3538 = vld [vmem:[%s3 + $0x350] sm:$0xff]
      %v3539 = vld [vmem:[%s3 + $0x358] sm:$0xff]
      %v3540 = vld [vmem:[%s3 + $0x360] sm:$0xff]
      %v3541 = vld [vmem:[%s3 + $0x368] sm:$0xff]
      %v3542 = vld [vmem:[%s3 + $0x370] sm:$0xff]
      %v3543 = vld [vmem:[%s3 + $0x378] sm:$0xff]
      %v3544 = vld [vmem:[%s3 + $0x380] sm:$0xff]
      %v3545 = vld [vmem:[%s3 + $0x388] sm:$0xff]
      %v3546 = vld [vmem:[%s3 + $0x390] sm:$0xff]
      %v3547 = vld [vmem:[%s3 + $0x398] sm:$0xff]
      %v3548 = vld [vmem:[%s3 + $0x3a0] sm:$0xff]
      %v3549 = vld [vmem:[%s3 + $0x3a8] sm:$0xff]
      %v3550 = vld [vmem:[%s3 + $0x3b0] sm:$0xff]
      %v3551 = vld [vmem:[%s3 + $0x3b8] sm:$0xff]
      %v3552 = vld [vmem:[%s3 + $0x3c0] sm:$0xff]
      %v3553 = vld [vmem:[%s3 + $0x3c8] sm:$0xff]
      %v3554 = vld [vmem:[%s3 + $0x3d0] sm:$0xff]
      %v3555 = vld [vmem:[%s3 + $0x3d8] sm:$0xff]
      %v3556 = vld [vmem:[%s3 + $0x3e0] sm:$0xff]
      %v3557 = vld [vmem:[%s3 + $0x3e8] sm:$0xff]
      %v3558 = vld [vmem:[%s3 + $0x3f0] sm:$0xff]
      %v3559 = vld [vmem:[%s3 + $0x3f8] sm:$0xff]
      %v3560 = vld [vmem:[#allocation2 + $0x20] sm:$0x11]
      %v3561 = vld [vmem:[#allocation2 + $0x28] sm:$0x11]
      %s3562 = scalar_lea.vmem %s3, 1024
      %v3563 = vld [vmem:[%s3562] sm:$0xff]
      %v3564 = vld [vmem:[%s3562 + $0x8] sm:$0xff]
      %v3565 = vld [vmem:[%s3562 + $0x10] sm:$0xff]
      %v3566 = vld [vmem:[%s3562 + $0x18] sm:$0xff]
      %v3567 = vld [vmem:[%s3562 + $0x20] sm:$0xff]
      %v3568 = vld [vmem:[%s3562 + $0x28] sm:$0xff]
      %v3569 = vld [vmem:[%s3562 + $0x30] sm:$0xff]
      %v3570 = vld [vmem:[%s3562 + $0x38] sm:$0xff]
      %v3571 = vld [vmem:[%s3562 + $0x40] sm:$0xff]
      %v3572 = vld [vmem:[%s3562 + $0x48] sm:$0xff]
      %v3573 = vld [vmem:[%s3562 + $0x50] sm:$0xff]
      %v3574 = vld [vmem:[%s3562 + $0x58] sm:$0xff]
      %v3575 = vld [vmem:[%s3562 + $0x60] sm:$0xff]
      %v3576 = vld [vmem:[%s3562 + $0x68] sm:$0xff]
      %v3577 = vld [vmem:[%s3562 + $0x70] sm:$0xff]
      %v3578 = vld [vmem:[%s3562 + $0x78] sm:$0xff]
      %v3579 = vld [vmem:[%s3562 + $0x80] sm:$0xff]
      %v3580 = vld [vmem:[%s3562 + $0x88] sm:$0xff]
      %v3581 = vld [vmem:[%s3562 + $0x90] sm:$0xff]
      %v3582 = vld [vmem:[%s3562 + $0x98] sm:$0xff]
      %v3583 = vld [vmem:[%s3562 + $0xa0] sm:$0xff]
      %v3584 = vld [vmem:[%s3562 + $0xa8] sm:$0xff]
      %v3585 = vld [vmem:[%s3562 + $0xb0] sm:$0xff]
      %v3586 = vld [vmem:[%s3562 + $0xb8] sm:$0xff]
      %v3587 = vld [vmem:[%s3562 + $0xc0] sm:$0xff]
      %v3588 = vld [vmem:[%s3562 + $0xc8] sm:$0xff]
      %v3589 = vld [vmem:[%s3562 + $0xd0] sm:$0xff]
      %v3590 = vld [vmem:[%s3562 + $0xd8] sm:$0xff]
      %v3591 = vld [vmem:[%s3562 + $0xe0] sm:$0xff]
      %v3592 = vld [vmem:[%s3562 + $0xe8] sm:$0xff]
      %v3593 = vld [vmem:[%s3562 + $0xf0] sm:$0xff]
      %v3594 = vld [vmem:[%s3562 + $0xf8] sm:$0xff]
      %v3595 = vld [vmem:[%s3562 + $0x100] sm:$0xff]
      %v3596 = vld [vmem:[%s3562 + $0x108] sm:$0xff]
      %v3597 = vld [vmem:[%s3562 + $0x110] sm:$0xff]
      %v3598 = vld [vmem:[%s3562 + $0x118] sm:$0xff]
      %v3599 = vld [vmem:[%s3562 + $0x120] sm:$0xff]
      %v3600 = vld [vmem:[%s3562 + $0x128] sm:$0xff]
      %v3601 = vld [vmem:[%s3562 + $0x130] sm:$0xff]
      %v3602 = vld [vmem:[%s3562 + $0x138] sm:$0xff]
      %v3603 = vld [vmem:[%s3562 + $0x140] sm:$0xff]
      %v3604 = vld [vmem:[%s3562 + $0x148] sm:$0xff]
      %v3605 = vld [vmem:[%s3562 + $0x150] sm:$0xff]
      %v3606 = vld [vmem:[%s3562 + $0x158] sm:$0xff]
      %v3607 = vld [vmem:[%s3562 + $0x160] sm:$0xff]
      %v3608 = vld [vmem:[%s3562 + $0x168] sm:$0xff]
      %v3609 = vld [vmem:[%s3562 + $0x170] sm:$0xff]
      %v3610 = vld [vmem:[%s3562 + $0x178] sm:$0xff]
      %v3611 = vld [vmem:[%s3562 + $0x180] sm:$0xff]
      %v3612 = vld [vmem:[%s3562 + $0x188] sm:$0xff]
      %v3613 = vld [vmem:[%s3562 + $0x190] sm:$0xff]
      %v3614 = vld [vmem:[%s3562 + $0x198] sm:$0xff]
      %v3615 = vld [vmem:[%s3562 + $0x1a0] sm:$0xff]
      %v3616 = vld [vmem:[%s3562 + $0x1a8] sm:$0xff]
      %v3617 = vld [vmem:[%s3562 + $0x1b0] sm:$0xff]
      %v3618 = vld [vmem:[%s3562 + $0x1b8] sm:$0xff]
      %v3619 = vld [vmem:[%s3562 + $0x1c0] sm:$0xff]
      %v3620 = vld [vmem:[%s3562 + $0x1c8] sm:$0xff]
      %v3621 = vld [vmem:[%s3562 + $0x1d0] sm:$0xff]
      %v3622 = vld [vmem:[%s3562 + $0x1d8] sm:$0xff]
      %v3623 = vld [vmem:[%s3562 + $0x1e0] sm:$0xff]
      %v3624 = vld [vmem:[%s3562 + $0x1e8] sm:$0xff]
      %v3625 = vld [vmem:[%s3562 + $0x1f0] sm:$0xff]
      %v3626 = vld [vmem:[%s3562 + $0x1f8] sm:$0xff]
      %v3627 = vld [vmem:[%s3562 + $0x200] sm:$0xff]
      %v3628 = vld [vmem:[%s3562 + $0x208] sm:$0xff]
      %v3629 = vld [vmem:[%s3562 + $0x210] sm:$0xff]
      %v3630 = vld [vmem:[%s3562 + $0x218] sm:$0xff]
      %v3631 = vld [vmem:[%s3562 + $0x220] sm:$0xff]
      %v3632 = vld [vmem:[%s3562 + $0x228] sm:$0xff]
      %v3633 = vld [vmem:[%s3562 + $0x230] sm:$0xff]
      %v3634 = vld [vmem:[%s3562 + $0x238] sm:$0xff]
      %v3635 = vld [vmem:[%s3562 + $0x240] sm:$0xff]
      %v3636 = vld [vmem:[%s3562 + $0x248] sm:$0xff]
      %v3637 = vld [vmem:[%s3562 + $0x250] sm:$0xff]
      %v3638 = vld [vmem:[%s3562 + $0x258] sm:$0xff]
      %v3639 = vld [vmem:[%s3562 + $0x260] sm:$0xff]
      %v3640 = vld [vmem:[%s3562 + $0x268] sm:$0xff]
      %v3641 = vld [vmem:[%s3562 + $0x270] sm:$0xff]
      %v3642 = vld [vmem:[%s3562 + $0x278] sm:$0xff]
      %v3643 = vld [vmem:[%s3562 + $0x280] sm:$0xff]
      %v3644 = vld [vmem:[%s3562 + $0x288] sm:$0xff]
      %v3645 = vld [vmem:[%s3562 + $0x290] sm:$0xff]
      %v3646 = vld [vmem:[%s3562 + $0x298] sm:$0xff]
      %v3647 = vld [vmem:[%s3562 + $0x2a0] sm:$0xff]
      %v3648 = vld [vmem:[%s3562 + $0x2a8] sm:$0xff]
      %v3649 = vld [vmem:[%s3562 + $0x2b0] sm:$0xff]
      %v3650 = vld [vmem:[%s3562 + $0x2b8] sm:$0xff]
      %v3651 = vld [vmem:[%s3562 + $0x2c0] sm:$0xff]
      %v3652 = vld [vmem:[%s3562 + $0x2c8] sm:$0xff]
      %v3653 = vld [vmem:[%s3562 + $0x2d0] sm:$0xff]
      %v3654 = vld [vmem:[%s3562 + $0x2d8] sm:$0xff]
      %v3655 = vld [vmem:[%s3562 + $0x2e0] sm:$0xff]
      %v3656 = vld [vmem:[%s3562 + $0x2e8] sm:$0xff]
      %v3657 = vld [vmem:[%s3562 + $0x2f0] sm:$0xff]
      %v3658 = vld [vmem:[%s3562 + $0x2f8] sm:$0xff]
      %v3659 = vld [vmem:[%s3562 + $0x300] sm:$0xff]
      %v3660 = vld [vmem:[%s3562 + $0x308] sm:$0xff]
      %v3661 = vld [vmem:[%s3562 + $0x310] sm:$0xff]
      %v3662 = vld [vmem:[%s3562 + $0x318] sm:$0xff]
      %v3663 = vld [vmem:[%s3562 + $0x320] sm:$0xff]
      %v3664 = vld [vmem:[%s3562 + $0x328] sm:$0xff]
      %v3665 = vld [vmem:[%s3562 + $0x330] sm:$0xff]
      %v3666 = vld [vmem:[%s3562 + $0x338] sm:$0xff]
      %v3667 = vld [vmem:[%s3562 + $0x340] sm:$0xff]
      %v3668 = vld [vmem:[%s3562 + $0x348] sm:$0xff]
      %v3669 = vld [vmem:[%s3562 + $0x350] sm:$0xff]
      %v3670 = vld [vmem:[%s3562 + $0x358] sm:$0xff]
      %v3671 = vld [vmem:[%s3562 + $0x360] sm:$0xff]
      %v3672 = vld [vmem:[%s3562 + $0x368] sm:$0xff]
      %v3673 = vld [vmem:[%s3562 + $0x370] sm:$0xff]
      %v3674 = vld [vmem:[%s3562 + $0x378] sm:$0xff]
      %v3675 = vld [vmem:[%s3562 + $0x380] sm:$0xff]
      %v3676 = vld [vmem:[%s3562 + $0x388] sm:$0xff]
      %v3677 = vld [vmem:[%s3562 + $0x390] sm:$0xff]
      %v3678 = vld [vmem:[%s3562 + $0x398] sm:$0xff]
      %v3679 = vld [vmem:[%s3562 + $0x3a0] sm:$0xff]
      %v3680 = vld [vmem:[%s3562 + $0x3a8] sm:$0xff]
      %v3681 = vld [vmem:[%s3562 + $0x3b0] sm:$0xff]
      %v3682 = vld [vmem:[%s3562 + $0x3b8] sm:$0xff]
      %v3683 = vld [vmem:[%s3562 + $0x3c0] sm:$0xff]
      %v3684 = vld [vmem:[%s3562 + $0x3c8] sm:$0xff]
      %v3685 = vld [vmem:[%s3562 + $0x3d0] sm:$0xff]
      %v3686 = vld [vmem:[%s3562 + $0x3d8] sm:$0xff]
      %v3687 = vld [vmem:[%s3562 + $0x3e0] sm:$0xff]
      %v3688 = vld [vmem:[%s3562 + $0x3e8] sm:$0xff]
      %v3689 = vld [vmem:[%s3562 + $0x3f0] sm:$0xff]
      %v3690 = vld [vmem:[%s3562 + $0x3f8] sm:$0xff]
      %v3697 = vunpack.c.l.b16 %v3428
      %v3698 = vunpack.c.h.b16 %v3428
      %v3699 = vunpack.c.l.b16 %v3429
      %v3700 = vunpack.c.h.b16 %v3429
      %v3701 = vunpack.c.l.b16 %v3430
      %v3702 = vunpack.c.h.b16 %v3430
      %v3703 = vunpack.c.l.b16 %v3431
      %v3704 = vunpack.c.h.b16 %v3431
      %v3705 = vunpack.c.l.b16 %v3560
      %v3706 = vunpack.c.h.b16 %v3560
      %v3707 = vunpack.c.l.b16 %v3561
      %v3708 = vunpack.c.h.b16 %v3561
      %v3709 = vpack.c.b16 %v3701, %v3697
      %v3710 = vpack.c.b16 %v3702, %v3698
      %v3711 = vpack.c.b16 %v3703, %v3699
      %v3712 = vpack.c.b16 %v3704, %v3700
      %v3713 = vpack.c.b16 %v3705, %v3705
      %v3714 = vpack.c.b16 %v3706, %v3706
      %v3715 = vpack.c.b16 %v3707, %v3707
      %v3716 = vpack.c.b16 %v3708, %v3708
      %v3718 = vshrl.u32 %v3709, 16
      %v3720 = vshll.u32 %v3709, 16
      %v3722 = vrot.slane %v3720, 1
      %v3723 = vor.u32 %v3718, %v3722
      %v3725 = vshll.u32 %v3713, 16
      %v3727 = vrot.slane %v3725, 1
      %v3728 = vsel %vm658, %v3723, %v3727
      %v3730 = vshrl.u32 %v3710, 16
      %v3732 = vshll.u32 %v3710, 16
      %v3734 = vrot.slane %v3732, 1
      %v3735 = vor.u32 %v3730, %v3734
      %v3737 = vshll.u32 %v3714, 16
      %v3739 = vrot.slane %v3737, 1
      %v3740 = vsel %vm658, %v3735, %v3739
      %v3742 = vshrl.u32 %v3711, 16
      %v3744 = vshll.u32 %v3711, 16
      %v3746 = vrot.slane %v3744, 1
      %v3747 = vor.u32 %v3742, %v3746
      %v3749 = vshll.u32 %v3715, 16
      %v3751 = vrot.slane %v3749, 1
      %v3752 = vsel %vm658, %v3747, %v3751
      %v3754 = vshrl.u32 %v3712, 16
      %v3756 = vshll.u32 %v3712, 16
      %v3758 = vrot.slane %v3756, 1
      %v3759 = vor.u32 %v3754, %v3758
      %v3761 = vshll.u32 %v3716, 16
      %v3763 = vrot.slane %v3761, 1
      %v3764 = vsel %vm658, %v3759, %v3763
      %v3897 = vunpack.c.l.b16 %v3563
      %v3898 = vunpack.c.h.b16 %v3563
      %v3899 = vunpack.c.l.b16 %v3564
      %v3900 = vunpack.c.h.b16 %v3564
      %v3901 = vunpack.c.l.b16 %v3565
      %v3902 = vunpack.c.h.b16 %v3565
      %v3903 = vunpack.c.l.b16 %v3566
      %v3904 = vunpack.c.h.b16 %v3566
      %v3905 = vunpack.c.l.b16 %v3567
      %v3906 = vunpack.c.h.b16 %v3567
      %v3907 = vunpack.c.l.b16 %v3568
      %v3908 = vunpack.c.h.b16 %v3568
      %v3909 = vunpack.c.l.b16 %v3569
      %v3910 = vunpack.c.h.b16 %v3569
      %v3911 = vunpack.c.l.b16 %v3570
      %v3912 = vunpack.c.h.b16 %v3570
      %v3913 = vunpack.c.l.b16 %v3571
      %v3914 = vunpack.c.h.b16 %v3571
      %v3915 = vunpack.c.l.b16 %v3572
      %v3916 = vunpack.c.h.b16 %v3572
      %v3917 = vunpack.c.l.b16 %v3573
      %v3918 = vunpack.c.h.b16 %v3573
      %v3919 = vunpack.c.l.b16 %v3574
      %v3920 = vunpack.c.h.b16 %v3574
      %v3921 = vunpack.c.l.b16 %v3575
      %v3922 = vunpack.c.h.b16 %v3575
      %v3923 = vunpack.c.l.b16 %v3576
      %v3924 = vunpack.c.h.b16 %v3576
      %v3925 = vunpack.c.l.b16 %v3577
      %v3926 = vunpack.c.h.b16 %v3577
      %v3927 = vunpack.c.l.b16 %v3578
      %v3928 = vunpack.c.h.b16 %v3578
      %v3929 = vunpack.c.l.b16 %v3579
      %v3930 = vunpack.c.h.b16 %v3579
      %v3931 = vunpack.c.l.b16 %v3580
      %v3932 = vunpack.c.h.b16 %v3580
      %v3933 = vunpack.c.l.b16 %v3581
      %v3934 = vunpack.c.h.b16 %v3581
      %v3935 = vunpack.c.l.b16 %v3582
      %v3936 = vunpack.c.h.b16 %v3582
      %v3937 = vunpack.c.l.b16 %v3583
      %v3938 = vunpack.c.h.b16 %v3583
      %v3939 = vunpack.c.l.b16 %v3584
      %v3940 = vunpack.c.h.b16 %v3584
      %v3941 = vunpack.c.l.b16 %v3585
      %v3942 = vunpack.c.h.b16 %v3585
      %v3943 = vunpack.c.l.b16 %v3586
      %v3944 = vunpack.c.h.b16 %v3586
      %v3945 = vunpack.c.l.b16 %v3587
      %v3946 = vunpack.c.h.b16 %v3587
      %v3947 = vunpack.c.l.b16 %v3588
      %v3948 = vunpack.c.h.b16 %v3588
      %v3949 = vunpack.c.l.b16 %v3589
      %v3950 = vunpack.c.h.b16 %v3589
      %v3951 = vunpack.c.l.b16 %v3590
      %v3952 = vunpack.c.h.b16 %v3590
      %v3953 = vunpack.c.l.b16 %v3591
      %v3954 = vunpack.c.h.b16 %v3591
      %v3955 = vunpack.c.l.b16 %v3592
      %v3956 = vunpack.c.h.b16 %v3592
      %v3957 = vunpack.c.l.b16 %v3593
      %v3958 = vunpack.c.h.b16 %v3593
      %v3959 = vunpack.c.l.b16 %v3594
      %v3960 = vunpack.c.h.b16 %v3594
      %v3961 = vunpack.c.l.b16 %v3595
      %v3962 = vunpack.c.h.b16 %v3595
      %v3963 = vunpack.c.l.b16 %v3596
      %v3964 = vunpack.c.h.b16 %v3596
      %v3965 = vunpack.c.l.b16 %v3597
      %v3966 = vunpack.c.h.b16 %v3597
      %v3967 = vunpack.c.l.b16 %v3598
      %v3968 = vunpack.c.h.b16 %v3598
      %v3969 = vunpack.c.l.b16 %v3599
      %v3970 = vunpack.c.h.b16 %v3599
      %v3971 = vunpack.c.l.b16 %v3600
      %v3972 = vunpack.c.h.b16 %v3600
      %v3973 = vunpack.c.l.b16 %v3601
      %v3974 = vunpack.c.h.b16 %v3601
      %v3975 = vunpack.c.l.b16 %v3602
      %v3976 = vunpack.c.h.b16 %v3602
      %v3977 = vunpack.c.l.b16 %v3603
      %v3978 = vunpack.c.h.b16 %v3603
      %v3979 = vunpack.c.l.b16 %v3604
      %v3980 = vunpack.c.h.b16 %v3604
      %v3981 = vunpack.c.l.b16 %v3605
      %v3982 = vunpack.c.h.b16 %v3605
      %v3983 = vunpack.c.l.b16 %v3606
      %v3984 = vunpack.c.h.b16 %v3606
      %v3985 = vunpack.c.l.b16 %v3607
      %v3986 = vunpack.c.h.b16 %v3607
      %v3987 = vunpack.c.l.b16 %v3608
      %v3988 = vunpack.c.h.b16 %v3608
      %v3989 = vunpack.c.l.b16 %v3609
      %v3990 = vunpack.c.h.b16 %v3609
      %v3991 = vunpack.c.l.b16 %v3610
      %v3992 = vunpack.c.h.b16 %v3610
      %v3993 = vunpack.c.l.b16 %v3611
      %v3994 = vunpack.c.h.b16 %v3611
      %v3995 = vunpack.c.l.b16 %v3612
      %v3996 = vunpack.c.h.b16 %v3612
      %v3997 = vunpack.c.l.b16 %v3613
      %v3998 = vunpack.c.h.b16 %v3613
      %v3999 = vunpack.c.l.b16 %v3614
      %v4000 = vunpack.c.h.b16 %v3614
      %v4001 = vunpack.c.l.b16 %v3615
      %v4002 = vunpack.c.h.b16 %v3615
      %v4003 = vunpack.c.l.b16 %v3616
      %v4004 = vunpack.c.h.b16 %v3616
      %v4005 = vunpack.c.l.b16 %v3617
      %v4006 = vunpack.c.h.b16 %v3617
      %v4007 = vunpack.c.l.b16 %v3618
      %v4008 = vunpack.c.h.b16 %v3618
      %v4009 = vunpack.c.l.b16 %v3619
      %v4010 = vunpack.c.h.b16 %v3619
      %v4011 = vunpack.c.l.b16 %v3620
      %v4012 = vunpack.c.h.b16 %v3620
      %v4013 = vunpack.c.l.b16 %v3621
      %v4014 = vunpack.c.h.b16 %v3621
      %v4015 = vunpack.c.l.b16 %v3622
      %v4016 = vunpack.c.h.b16 %v3622
      %v4017 = vunpack.c.l.b16 %v3623
      %v4018 = vunpack.c.h.b16 %v3623
      %v4019 = vunpack.c.l.b16 %v3624
      %v4020 = vunpack.c.h.b16 %v3624
      %v4021 = vunpack.c.l.b16 %v3625
      %v4022 = vunpack.c.h.b16 %v3625
      %v4023 = vunpack.c.l.b16 %v3626
      %v4024 = vunpack.c.h.b16 %v3626
      %v4025 = vunpack.c.l.b16 %v3627
      %v4026 = vunpack.c.h.b16 %v3627
      %v4027 = vunpack.c.l.b16 %v3628
      %v4028 = vunpack.c.h.b16 %v3628
      %v4029 = vunpack.c.l.b16 %v3629
      %v4030 = vunpack.c.h.b16 %v3629
      %v4031 = vunpack.c.l.b16 %v3630
      %v4032 = vunpack.c.h.b16 %v3630
      %v4033 = vunpack.c.l.b16 %v3631
      %v4034 = vunpack.c.h.b16 %v3631
      %v4035 = vunpack.c.l.b16 %v3632
      %v4036 = vunpack.c.h.b16 %v3632
      %v4037 = vunpack.c.l.b16 %v3633
      %v4038 = vunpack.c.h.b16 %v3633
      %v4039 = vunpack.c.l.b16 %v3634
      %v4040 = vunpack.c.h.b16 %v3634
      %v4041 = vunpack.c.l.b16 %v3635
      %v4042 = vunpack.c.h.b16 %v3635
      %v4043 = vunpack.c.l.b16 %v3636
      %v4044 = vunpack.c.h.b16 %v3636
      %v4045 = vunpack.c.l.b16 %v3637
      %v4046 = vunpack.c.h.b16 %v3637
      %v4047 = vunpack.c.l.b16 %v3638
      %v4048 = vunpack.c.h.b16 %v3638
      %v4049 = vunpack.c.l.b16 %v3639
      %v4050 = vunpack.c.h.b16 %v3639
      %v4051 = vunpack.c.l.b16 %v3640
      %v4052 = vunpack.c.h.b16 %v3640
      %v4053 = vunpack.c.l.b16 %v3641
      %v4054 = vunpack.c.h.b16 %v3641
      %v4055 = vunpack.c.l.b16 %v3642
      %v4056 = vunpack.c.h.b16 %v3642
      %v4057 = vunpack.c.l.b16 %v3643
      %v4058 = vunpack.c.h.b16 %v3643
      %v4059 = vunpack.c.l.b16 %v3644
      %v4060 = vunpack.c.h.b16 %v3644
      %v4061 = vunpack.c.l.b16 %v3645
      %v4062 = vunpack.c.h.b16 %v3645
      %v4063 = vunpack.c.l.b16 %v3646
      %v4064 = vunpack.c.h.b16 %v3646
      %v4065 = vunpack.c.l.b16 %v3647
      %v4066 = vunpack.c.h.b16 %v3647
      %v4067 = vunpack.c.l.b16 %v3648
      %v4068 = vunpack.c.h.b16 %v3648
      %v4069 = vunpack.c.l.b16 %v3649
      %v4070 = vunpack.c.h.b16 %v3649
      %v4071 = vunpack.c.l.b16 %v3650
      %v4072 = vunpack.c.h.b16 %v3650
      %v4073 = vunpack.c.l.b16 %v3651
      %v4074 = vunpack.c.h.b16 %v3651
      %v4075 = vunpack.c.l.b16 %v3652
      %v4076 = vunpack.c.h.b16 %v3652
      %v4077 = vunpack.c.l.b16 %v3653
      %v4078 = vunpack.c.h.b16 %v3653
      %v4079 = vunpack.c.l.b16 %v3654
      %v4080 = vunpack.c.h.b16 %v3654
      %v4081 = vunpack.c.l.b16 %v3655
      %v4082 = vunpack.c.h.b16 %v3655
      %v4083 = vunpack.c.l.b16 %v3656
      %v4084 = vunpack.c.h.b16 %v3656
      %v4085 = vunpack.c.l.b16 %v3657
      %v4086 = vunpack.c.h.b16 %v3657
      %v4087 = vunpack.c.l.b16 %v3658
      %v4088 = vunpack.c.h.b16 %v3658
      %v4089 = vunpack.c.l.b16 %v3659
      %v4090 = vunpack.c.h.b16 %v3659
      %v4091 = vunpack.c.l.b16 %v3660
      %v4092 = vunpack.c.h.b16 %v3660
      %v4093 = vunpack.c.l.b16 %v3661
      %v4094 = vunpack.c.h.b16 %v3661
      %v4095 = vunpack.c.l.b16 %v3662
      %v4096 = vunpack.c.h.b16 %v3662
      %v4097 = vunpack.c.l.b16 %v3663
      %v4098 = vunpack.c.h.b16 %v3663
      %v4099 = vunpack.c.l.b16 %v3664
      %v4100 = vunpack.c.h.b16 %v3664
      %v4101 = vunpack.c.l.b16 %v3665
      %v4102 = vunpack.c.h.b16 %v3665
      %v4103 = vunpack.c.l.b16 %v3666
      %v4104 = vunpack.c.h.b16 %v3666
      %v4105 = vunpack.c.l.b16 %v3667
      %v4106 = vunpack.c.h.b16 %v3667
      %v4107 = vunpack.c.l.b16 %v3668
      %v4108 = vunpack.c.h.b16 %v3668
      %v4109 = vunpack.c.l.b16 %v3669
      %v4110 = vunpack.c.h.b16 %v3669
      %v4111 = vunpack.c.l.b16 %v3670
      %v4112 = vunpack.c.h.b16 %v3670
      %v4113 = vunpack.c.l.b16 %v3671
      %v4114 = vunpack.c.h.b16 %v3671
      %v4115 = vunpack.c.l.b16 %v3672
      %v4116 = vunpack.c.h.b16 %v3672
      %v4117 = vunpack.c.l.b16 %v3673
      %v4118 = vunpack.c.h.b16 %v3673
      %v4119 = vunpack.c.l.b16 %v3674
      %v4120 = vunpack.c.h.b16 %v3674
      %v4121 = vunpack.c.l.b16 %v3675
      %v4122 = vunpack.c.h.b16 %v3675
      %v4123 = vunpack.c.l.b16 %v3676
      %v4124 = vunpack.c.h.b16 %v3676
      %v4125 = vunpack.c.l.b16 %v3677
      %v4126 = vunpack.c.h.b16 %v3677
      %v4127 = vunpack.c.l.b16 %v3678
      %v4128 = vunpack.c.h.b16 %v3678
      %v4129 = vunpack.c.l.b16 %v3679
      %v4130 = vunpack.c.h.b16 %v3679
      %v4131 = vunpack.c.l.b16 %v3680
      %v4132 = vunpack.c.h.b16 %v3680
      %v4133 = vunpack.c.l.b16 %v3681
      %v4134 = vunpack.c.h.b16 %v3681
      %v4135 = vunpack.c.l.b16 %v3682
      %v4136 = vunpack.c.h.b16 %v3682
      %v4137 = vunpack.c.l.b16 %v3683
      %v4138 = vunpack.c.h.b16 %v3683
      %v4139 = vunpack.c.l.b16 %v3684
      %v4140 = vunpack.c.h.b16 %v3684
      %v4141 = vunpack.c.l.b16 %v3685
      %v4142 = vunpack.c.h.b16 %v3685
      %v4143 = vunpack.c.l.b16 %v3686
      %v4144 = vunpack.c.h.b16 %v3686
      %v4145 = vunpack.c.l.b16 %v3687
      %v4146 = vunpack.c.h.b16 %v3687
      %v4147 = vunpack.c.l.b16 %v3688
      %v4148 = vunpack.c.h.b16 %v3688
      %v4149 = vunpack.c.l.b16 %v3689
      %v4150 = vunpack.c.h.b16 %v3689
      %v4151 = vunpack.c.l.b16 %v3690
      %v4152 = vunpack.c.h.b16 %v3690
      %v4153 = vpack.c.b16 %v3901, %v3897
      %v4154 = vpack.c.b16 %v3902, %v3898
      %v4155 = vpack.c.b16 %v3903, %v3899
      %v4156 = vpack.c.b16 %v3904, %v3900
      %v4157 = vpack.c.b16 %v3909, %v3905
      %v4158 = vpack.c.b16 %v3910, %v3906
      %v4159 = vpack.c.b16 %v3911, %v3907
      %v4160 = vpack.c.b16 %v3912, %v3908
      %v4161 = vpack.c.b16 %v3917, %v3913
      %v4162 = vpack.c.b16 %v3918, %v3914
      %v4163 = vpack.c.b16 %v3919, %v3915
      %v4164 = vpack.c.b16 %v3920, %v3916
      %v4165 = vpack.c.b16 %v3925, %v3921
      %v4166 = vpack.c.b16 %v3926, %v3922
      %v4167 = vpack.c.b16 %v3927, %v3923
      %v4168 = vpack.c.b16 %v3928, %v3924
      %v4169 = vpack.c.b16 %v3933, %v3929
      %v4170 = vpack.c.b16 %v3934, %v3930
      %v4171 = vpack.c.b16 %v3935, %v3931
      %v4172 = vpack.c.b16 %v3936, %v3932
      %v4173 = vpack.c.b16 %v3941, %v3937
      %v4174 = vpack.c.b16 %v3942, %v3938
      %v4175 = vpack.c.b16 %v3943, %v3939
      %v4176 = vpack.c.b16 %v3944, %v3940
      %v4177 = vpack.c.b16 %v3949, %v3945
      %v4178 = vpack.c.b16 %v3950, %v3946
      %v4179 = vpack.c.b16 %v3951, %v3947
      %v4180 = vpack.c.b16 %v3952, %v3948
      %v4181 = vpack.c.b16 %v3957, %v3953
      %v4182 = vpack.c.b16 %v3958, %v3954
      %v4183 = vpack.c.b16 %v3959, %v3955
      %v4184 = vpack.c.b16 %v3960, %v3956
      %v4185 = vpack.c.b16 %v3965, %v3961
      %v4186 = vpack.c.b16 %v3966, %v3962
      %v4187 = vpack.c.b16 %v3967, %v3963
      %v4188 = vpack.c.b16 %v3968, %v3964
      %v4189 = vpack.c.b16 %v3973, %v3969
      %v4190 = vpack.c.b16 %v3974, %v3970
      %v4191 = vpack.c.b16 %v3975, %v3971
      %v4192 = vpack.c.b16 %v3976, %v3972
      %v4193 = vpack.c.b16 %v3981, %v3977
      %v4194 = vpack.c.b16 %v3982, %v3978
      %v4195 = vpack.c.b16 %v3983, %v3979
      %v4196 = vpack.c.b16 %v3984, %v3980
      %v4197 = vpack.c.b16 %v3989, %v3985
      %v4198 = vpack.c.b16 %v3990, %v3986
      %v4199 = vpack.c.b16 %v3991, %v3987
      %v4200 = vpack.c.b16 %v3992, %v3988
      %v4201 = vpack.c.b16 %v3997, %v3993
      %v4202 = vpack.c.b16 %v3998, %v3994
      %v4203 = vpack.c.b16 %v3999, %v3995
      %v4204 = vpack.c.b16 %v4000, %v3996
      %v4205 = vpack.c.b16 %v4005, %v4001
      %v4206 = vpack.c.b16 %v4006, %v4002
      %v4207 = vpack.c.b16 %v4007, %v4003
      %v4208 = vpack.c.b16 %v4008, %v4004
      %v4209 = vpack.c.b16 %v4013, %v4009
      %v4210 = vpack.c.b16 %v4014, %v4010
      %v4211 = vpack.c.b16 %v4015, %v4011
      %v4212 = vpack.c.b16 %v4016, %v4012
      %v4213 = vpack.c.b16 %v4021, %v4017
      %v4214 = vpack.c.b16 %v4022, %v4018
      %v4215 = vpack.c.b16 %v4023, %v4019
      %v4216 = vpack.c.b16 %v4024, %v4020
      %v4217 = vpack.c.b16 %v4029, %v4025
      %v4218 = vpack.c.b16 %v4030, %v4026
      %v4219 = vpack.c.b16 %v4031, %v4027
      %v4220 = vpack.c.b16 %v4032, %v4028
      %v4221 = vpack.c.b16 %v4037, %v4033
      %v4222 = vpack.c.b16 %v4038, %v4034
      %v4223 = vpack.c.b16 %v4039, %v4035
      %v4224 = vpack.c.b16 %v4040, %v4036
      %v4225 = vpack.c.b16 %v4045, %v4041
      %v4226 = vpack.c.b16 %v4046, %v4042
      %v4227 = vpack.c.b16 %v4047, %v4043
      %v4228 = vpack.c.b16 %v4048, %v4044
      %v4229 = vpack.c.b16 %v4053, %v4049
      %v4230 = vpack.c.b16 %v4054, %v4050
      %v4231 = vpack.c.b16 %v4055, %v4051
      %v4232 = vpack.c.b16 %v4056, %v4052
      %v4233 = vpack.c.b16 %v4061, %v4057
      %v4234 = vpack.c.b16 %v4062, %v4058
      %v4235 = vpack.c.b16 %v4063, %v4059
      %v4236 = vpack.c.b16 %v4064, %v4060
      %v4237 = vpack.c.b16 %v4069, %v4065
      %v4238 = vpack.c.b16 %v4070, %v4066
      %v4239 = vpack.c.b16 %v4071, %v4067
      %v4240 = vpack.c.b16 %v4072, %v4068
      %v4241 = vpack.c.b16 %v4077, %v4073
      %v4242 = vpack.c.b16 %v4078, %v4074
      %v4243 = vpack.c.b16 %v4079, %v4075
      %v4244 = vpack.c.b16 %v4080, %v4076
      %v4245 = vpack.c.b16 %v4085, %v4081
      %v4246 = vpack.c.b16 %v4086, %v4082
      %v4247 = vpack.c.b16 %v4087, %v4083
      %v4248 = vpack.c.b16 %v4088, %v4084
      %v4249 = vpack.c.b16 %v4093, %v4089
      %v4250 = vpack.c.b16 %v4094, %v4090
      %v4251 = vpack.c.b16 %v4095, %v4091
      %v4252 = vpack.c.b16 %v4096, %v4092
      %v4253 = vpack.c.b16 %v4101, %v4097
      %v4254 = vpack.c.b16 %v4102, %v4098
      %v4255 = vpack.c.b16 %v4103, %v4099
      %v4256 = vpack.c.b16 %v4104, %v4100
      %v4257 = vpack.c.b16 %v4109, %v4105
      %v4258 = vpack.c.b16 %v4110, %v4106
      %v4259 = vpack.c.b16 %v4111, %v4107
      %v4260 = vpack.c.b16 %v4112, %v4108
      %v4261 = vpack.c.b16 %v4117, %v4113
      %v4262 = vpack.c.b16 %v4118, %v4114
      %v4263 = vpack.c.b16 %v4119, %v4115
      %v4264 = vpack.c.b16 %v4120, %v4116
      %v4265 = vpack.c.b16 %v4125, %v4121
      %v4266 = vpack.c.b16 %v4126, %v4122
      %v4267 = vpack.c.b16 %v4127, %v4123
      %v4268 = vpack.c.b16 %v4128, %v4124
      %v4269 = vpack.c.b16 %v4133, %v4129
      %v4270 = vpack.c.b16 %v4134, %v4130
      %v4271 = vpack.c.b16 %v4135, %v4131
      %v4272 = vpack.c.b16 %v4136, %v4132
      %v4273 = vpack.c.b16 %v4141, %v4137
      %v4274 = vpack.c.b16 %v4142, %v4138
      %v4275 = vpack.c.b16 %v4143, %v4139
      %v4276 = vpack.c.b16 %v4144, %v4140
      %v4277 = vpack.c.b16 %v4149, %v4145
      %v4278 = vpack.c.b16 %v4150, %v4146
      %v4279 = vpack.c.b16 %v4151, %v4147
      %v4280 = vpack.c.b16 %v4152, %v4148
      %4409 = vmatprep.subr.bf16.mxu0 %v4154
      %4410 = vmatpush1.bf16.msra.mxu0 %v4153
      %4411 = vmatprep.subr.bf16.mxu0 %v4158
      %4412 = vmatpush1.bf16.msra.mxu0 %v4157
      %4413 = vmatprep.subr.bf16.mxu0 %v4162
      %4414 = vmatpush1.bf16.msra.mxu0 %v4161
      %4415 = vmatprep.subr.bf16.mxu0 %v4166
      %4416 = vmatpush1.bf16.msra.mxu0 %v4165
      %4417 = vmatprep.subr.bf16.mxu0 %v4170
      %4418 = vmatpush1.bf16.msra.mxu0 %v4169
      %4419 = vmatprep.subr.bf16.mxu0 %v4174
      %4420 = vmatpush1.bf16.msra.mxu0 %v4173
      %4421 = vmatprep.subr.bf16.mxu0 %v4178
      %4422 = vmatpush1.bf16.msra.mxu0 %v4177
      %4423 = vmatprep.subr.bf16.mxu0 %v4182
      %4424 = vmatpush1.bf16.msra.mxu0 %v4181
      %4425 = vmatprep.subr.bf16.mxu0 %v4186
      %4426 = vmatpush1.bf16.msra.mxu0 %v4185
      %4427 = vmatprep.subr.bf16.mxu0 %v4190
      %4428 = vmatpush1.bf16.msra.mxu0 %v4189
      %4429 = vmatprep.subr.bf16.mxu0 %v4194
      %4430 = vmatpush1.bf16.msra.mxu0 %v4193
      %4431 = vmatprep.subr.bf16.mxu0 %v4198
      %4432 = vmatpush1.bf16.msra.mxu0 %v4197
      %4433 = vmatprep.subr.bf16.mxu0 %v4202
      %4434 = vmatpush1.bf16.msra.mxu0 %v4201
      %4435 = vmatprep.subr.bf16.mxu0 %v4206
      %4436 = vmatpush1.bf16.msra.mxu0 %v4205
      %4437 = vmatprep.subr.bf16.mxu0 %v4210
      %4438 = vmatpush1.bf16.msra.mxu0 %v4209
      %4439 = vmatprep.subr.bf16.mxu0 %v4214
      %4440 = vmatpush1.bf16.msra.mxu0 %v4213
      %4441 = vmatprep.mubr.bf16.mxu0 %v3740
      %4442 = vmatmul.mubr.bf16.gmra.mrb[0].mxu0 %v3728
      %v4443 = vpop.f32.mrb[0].mxu0
      %v4444 = vadd.f32 0.0, %v4443
      %v4445 = vpop.f32.mrb[0].mxu0
      %v4446 = vadd.f32 0.0, %v4445
      %v4447 = vpop.f32.mrb[0].mxu0
      %v4448 = vadd.f32 0.0, %v4447
      %v4449 = vpop.f32.mrb[0].mxu0
      %v4450 = vadd.f32 0.0, %v4449
      %4451 = vdwg.mxu0
      %4452 = vmatprep.subr.bf16.mxu0 %v4218
      %4453 = vmatpush1.bf16.msra.mxu0 %v4217
      %4454 = vmatprep.subr.bf16.mxu0 %v4222
      %4455 = vmatpush1.bf16.msra.mxu0 %v4221
      %4456 = vmatprep.subr.bf16.mxu0 %v4226
      %4457 = vmatpush1.bf16.msra.mxu0 %v4225
      %4458 = vmatprep.subr.bf16.mxu0 %v4230
      %4459 = vmatpush1.bf16.msra.mxu0 %v4229
      %4460 = vmatprep.subr.bf16.mxu0 %v4234
      %4461 = vmatpush1.bf16.msra.mxu0 %v4233
      %4462 = vmatprep.subr.bf16.mxu0 %v4238
      %4463 = vmatpush1.bf16.msra.mxu0 %v4237
      %4464 = vmatprep.subr.bf16.mxu0 %v4242
      %4465 = vmatpush1.bf16.msra.mxu0 %v4241
      %4466 = vmatprep.subr.bf16.mxu0 %v4246
      %4467 = vmatpush1.bf16.msra.mxu0 %v4245
      %4468 = vmatprep.subr.bf16.mxu0 %v4250
      %4469 = vmatpush1.bf16.msra.mxu0 %v4249
      %4470 = vmatprep.subr.bf16.mxu0 %v4254
      %4471 = vmatpush1.bf16.msra.mxu0 %v4253
      %4472 = vmatprep.subr.bf16.mxu0 %v4258
      %4473 = vmatpush1.bf16.msra.mxu0 %v4257
      %4474 = vmatprep.subr.bf16.mxu0 %v4262
      %4475 = vmatpush1.bf16.msra.mxu0 %v4261
      %4476 = vmatprep.subr.bf16.mxu0 %v4266
      %4477 = vmatpush1.bf16.msra.mxu0 %v4265
      %4478 = vmatprep.subr.bf16.mxu0 %v4270
      %4479 = vmatpush1.bf16.msra.mxu0 %v4269
      %4480 = vmatprep.subr.bf16.mxu0 %v4274
      %4481 = vmatpush1.bf16.msra.mxu0 %v4273
      %4482 = vmatprep.subr.bf16.mxu0 %v4278
      %4483 = vmatpush1.bf16.msra.mxu0 %v4277
      %4484 = vmatprep.mubr.bf16.mxu0 %v3764
      %4485 = vmatmul.mubr.bf16.gmra.mrb[0].mxu0 %v3752
      %v4486 = vpop.f32.mrb[0].mxu0
      %v4487 = vadd.f32 %v4444, %v4486
      %v4488 = vpop.f32.mrb[0].mxu0
      %v4489 = vadd.f32 %v4446, %v4488
      %v4490 = vpop.f32.mrb[0].mxu0
      %v4491 = vadd.f32 %v4448, %v4490
      %v4492 = vpop.f32.mrb[0].mxu0
      %v4493 = vadd.f32 %v4450, %v4492
      %4494 = vdwg.mxu0
      %4495 = vmatprep.subr.bf16.mxu0 %v4156
      %4496 = vmatpush1.bf16.msra.mxu0 %v4155
      %4497 = vmatprep.subr.bf16.mxu0 %v4160
      %4498 = vmatpush1.bf16.msra.mxu0 %v4159
      %4499 = vmatprep.subr.bf16.mxu0 %v4164
      %4500 = vmatpush1.bf16.msra.mxu0 %v4163
      %4501 = vmatprep.subr.bf16.mxu0 %v4168
      %4502 = vmatpush1.bf16.msra.mxu0 %v4167
      %4503 = vmatprep.subr.bf16.mxu0 %v4172
      %4504 = vmatpush1.bf16.msra.mxu0 %v4171
      %4505 = vmatprep.subr.bf16.mxu0 %v4176
      %4506 = vmatpush1.bf16.msra.mxu0 %v4175
      %4507 = vmatprep.subr.bf16.mxu0 %v4180
      %4508 = vmatpush1.bf16.msra.mxu0 %v4179
      %4509 = vmatprep.subr.bf16.mxu0 %v4184
      %4510 = vmatpush1.bf16.msra.mxu0 %v4183
      %4511 = vmatprep.subr.bf16.mxu0 %v4188
      %4512 = vmatpush1.bf16.msra.mxu0 %v4187
      %4513 = vmatprep.subr.bf16.mxu0 %v4192
      %4514 = vmatpush1.bf16.msra.mxu0 %v4191
      %4515 = vmatprep.subr.bf16.mxu0 %v4196
      %4516 = vmatpush1.bf16.msra.mxu0 %v4195
      %4517 = vmatprep.subr.bf16.mxu0 %v4200
      %4518 = vmatpush1.bf16.msra.mxu0 %v4199
      %4519 = vmatprep.subr.bf16.mxu0 %v4204
      %4520 = vmatpush1.bf16.msra.mxu0 %v4203
      %4521 = vmatprep.subr.bf16.mxu0 %v4208
      %4522 = vmatpush1.bf16.msra.mxu0 %v4207
      %4523 = vmatprep.subr.bf16.mxu0 %v4212
      %4524 = vmatpush1.bf16.msra.mxu0 %v4211
      %4525 = vmatprep.subr.bf16.mxu0 %v4216
      %4526 = vmatpush1.bf16.msra.mxu0 %v4215
      %4527 = vmatprep.mubr.bf16.mxu0 %v3740
      %4528 = vmatmul.mubr.bf16.gmra.mrb[0].mxu0 %v3728
      %v4529 = vpop.f32.mrb[0].mxu0
      %v4530 = vadd.f32 0.0, %v4529
      %v4531 = vpop.f32.mrb[0].mxu0
      %v4532 = vadd.f32 0.0, %v4531
      %v4533 = vpop.f32.mrb[0].mxu0
      %v4534 = vadd.f32 0.0, %v4533
      %v4535 = vpop.f32.mrb[0].mxu0
      %v4536 = vadd.f32 0.0, %v4535
      %4537 = vdwg.mxu0
      %4538 = vmatprep.subr.bf16.mxu0 %v4220
      %4539 = vmatpush1.bf16.msra.mxu0 %v4219
      %4540 = vmatprep.subr.bf16.mxu0 %v4224
      %4541 = vmatpush1.bf16.msra.mxu0 %v4223
      %4542 = vmatprep.subr.bf16.mxu0 %v4228
      %4543 = vmatpush1.bf16.msra.mxu0 %v4227
      %4544 = vmatprep.subr.bf16.mxu0 %v4232
      %4545 = vmatpush1.bf16.msra.mxu0 %v4231
      %4546 = vmatprep.subr.bf16.mxu0 %v4236
      %4547 = vmatpush1.bf16.msra.mxu0 %v4235
      %4548 = vmatprep.subr.bf16.mxu0 %v4240
      %4549 = vmatpush1.bf16.msra.mxu0 %v4239
      %4550 = vmatprep.subr.bf16.mxu0 %v4244
      %4551 = vmatpush1.bf16.msra.mxu0 %v4243
      %4552 = vmatprep.subr.bf16.mxu0 %v4248
      %4553 = vmatpush1.bf16.msra.mxu0 %v4247
      %4554 = vmatprep.subr.bf16.mxu0 %v4252
      %4555 = vmatpush1.bf16.msra.mxu0 %v4251
      %4556 = vmatprep.subr.bf16.mxu0 %v4256
      %4557 = vmatpush1.bf16.msra.mxu0 %v4255
      %4558 = vmatprep.subr.bf16.mxu0 %v4260
      %4559 = vmatpush1.bf16.msra.mxu0 %v4259
      %4560 = vmatprep.subr.bf16.mxu0 %v4264
      %4561 = vmatpush1.bf16.msra.mxu0 %v4263
      %4562 = vmatprep.subr.bf16.mxu0 %v4268
      %4563 = vmatpush1.bf16.msra.mxu0 %v4267
      %4564 = vmatprep.subr.bf16.mxu0 %v4272
      %4565 = vmatpush1.bf16.msra.mxu0 %v4271
      %4566 = vmatprep.subr.bf16.mxu0 %v4276
      %4567 = vmatpush1.bf16.msra.mxu0 %v4275
      %4568 = vmatprep.subr.bf16.mxu0 %v4280
      %4569 = vmatpush1.bf16.msra.mxu0 %v4279
      %4570 = vmatprep.mubr.bf16.mxu0 %v3764
      %4571 = vmatmul.mubr.bf16.gmra.mrb[0].mxu0 %v3752
      %v4572 = vpop.f32.mrb[0].mxu0
      %v4573 = vadd.f32 %v4530, %v4572
      %v4574 = vpop.f32.mrb[0].mxu0
      %v4575 = vadd.f32 %v4532, %v4574
      %v4576 = vpop.f32.mrb[0].mxu0
      %v4577 = vadd.f32 %v4534, %v4576
      %v4578 = vpop.f32.mrb[0].mxu0
      %v4579 = vadd.f32 %v4536, %v4578
      %4580 = vdwg.mxu0
      %v4713 = vunpack.c.l.b16 %v3432
      %v4714 = vunpack.c.h.b16 %v3432
      %v4715 = vunpack.c.l.b16 %v3433
      %v4716 = vunpack.c.h.b16 %v3433
      %v4717 = vunpack.c.l.b16 %v3434
      %v4718 = vunpack.c.h.b16 %v3434
      %v4719 = vunpack.c.l.b16 %v3435
      %v4720 = vunpack.c.h.b16 %v3435
      %v4721 = vunpack.c.l.b16 %v3436
      %v4722 = vunpack.c.h.b16 %v3436
      %v4723 = vunpack.c.l.b16 %v3437
      %v4724 = vunpack.c.h.b16 %v3437
      %v4725 = vunpack.c.l.b16 %v3438
      %v4726 = vunpack.c.h.b16 %v3438
      %v4727 = vunpack.c.l.b16 %v3439
      %v4728 = vunpack.c.h.b16 %v3439
      %v4729 = vunpack.c.l.b16 %v3440
      %v4730 = vunpack.c.h.b16 %v3440
      %v4731 = vunpack.c.l.b16 %v3441
      %v4732 = vunpack.c.h.b16 %v3441
      %v4733 = vunpack.c.l.b16 %v3442
      %v4734 = vunpack.c.h.b16 %v3442
      %v4735 = vunpack.c.l.b16 %v3443
      %v4736 = vunpack.c.h.b16 %v3443
      %v4737 = vunpack.c.l.b16 %v3444
      %v4738 = vunpack.c.h.b16 %v3444
      %v4739 = vunpack.c.l.b16 %v3445
      %v4740 = vunpack.c.h.b16 %v3445
      %v4741 = vunpack.c.l.b16 %v3446
      %v4742 = vunpack.c.h.b16 %v3446
      %v4743 = vunpack.c.l.b16 %v3447
      %v4744 = vunpack.c.h.b16 %v3447
      %v4745 = vunpack.c.l.b16 %v3448
      %v4746 = vunpack.c.h.b16 %v3448
      %v4747 = vunpack.c.l.b16 %v3449
      %v4748 = vunpack.c.h.b16 %v3449
      %v4749 = vunpack.c.l.b16 %v3450
      %v4750 = vunpack.c.h.b16 %v3450
      %v4751 = vunpack.c.l.b16 %v3451
      %v4752 = vunpack.c.h.b16 %v3451
      %v4753 = vunpack.c.l.b16 %v3452
      %v4754 = vunpack.c.h.b16 %v3452
      %v4755 = vunpack.c.l.b16 %v3453
      %v4756 = vunpack.c.h.b16 %v3453
      %v4757 = vunpack.c.l.b16 %v3454
      %v4758 = vunpack.c.h.b16 %v3454
      %v4759 = vunpack.c.l.b16 %v3455
      %v4760 = vunpack.c.h.b16 %v3455
      %v4761 = vunpack.c.l.b16 %v3456
      %v4762 = vunpack.c.h.b16 %v3456
      %v4763 = vunpack.c.l.b16 %v3457
      %v4764 = vunpack.c.h.b16 %v3457
      %v4765 = vunpack.c.l.b16 %v3458
      %v4766 = vunpack.c.h.b16 %v3458
      %v4767 = vunpack.c.l.b16 %v3459
      %v4768 = vunpack.c.h.b16 %v3459
      %v4769 = vunpack.c.l.b16 %v3460
      %v4770 = vunpack.c.h.b16 %v3460
      %v4771 = vunpack.c.l.b16 %v3461
      %v4772 = vunpack.c.h.b16 %v3461
      %v4773 = vunpack.c.l.b16 %v3462
      %v4774 = vunpack.c.h.b16 %v3462
      %v4775 = vunpack.c.l.b16 %v3463
      %v4776 = vunpack.c.h.b16 %v3463
      %v4777 = vunpack.c.l.b16 %v3464
      %v4778 = vunpack.c.h.b16 %v3464
      %v4779 = vunpack.c.l.b16 %v3465
      %v4780 = vunpack.c.h.b16 %v3465
      %v4781 = vunpack.c.l.b16 %v3466
      %v4782 = vunpack.c.h.b16 %v3466
      %v4783 = vunpack.c.l.b16 %v3467
      %v4784 = vunpack.c.h.b16 %v3467
      %v4785 = vunpack.c.l.b16 %v3468
      %v4786 = vunpack.c.h.b16 %v3468
      %v4787 = vunpack.c.l.b16 %v3469
      %v4788 = vunpack.c.h.b16 %v3469
      %v4789 = vunpack.c.l.b16 %v3470
      %v4790 = vunpack.c.h.b16 %v3470
      %v4791 = vunpack.c.l.b16 %v3471
      %v4792 = vunpack.c.h.b16 %v3471
      %v4793 = vunpack.c.l.b16 %v3472
      %v4794 = vunpack.c.h.b16 %v3472
      %v4795 = vunpack.c.l.b16 %v3473
      %v4796 = vunpack.c.h.b16 %v3473
      %v4797 = vunpack.c.l.b16 %v3474
      %v4798 = vunpack.c.h.b16 %v3474
      %v4799 = vunpack.c.l.b16 %v3475
      %v4800 = vunpack.c.h.b16 %v3475
      %v4801 = vunpack.c.l.b16 %v3476
      %v4802 = vunpack.c.h.b16 %v3476
      %v4803 = vunpack.c.l.b16 %v3477
      %v4804 = vunpack.c.h.b16 %v3477
      %v4805 = vunpack.c.l.b16 %v3478
      %v4806 = vunpack.c.h.b16 %v3478
      %v4807 = vunpack.c.l.b16 %v3479
      %v4808 = vunpack.c.h.b16 %v3479
      %v4809 = vunpack.c.l.b16 %v3480
      %v4810 = vunpack.c.h.b16 %v3480
      %v4811 = vunpack.c.l.b16 %v3481
      %v4812 = vunpack.c.h.b16 %v3481
      %v4813 = vunpack.c.l.b16 %v3482
      %v4814 = vunpack.c.h.b16 %v3482
      %v4815 = vunpack.c.l.b16 %v3483
      %v4816 = vunpack.c.h.b16 %v3483
      %v4817 = vunpack.c.l.b16 %v3484
      %v4818 = vunpack.c.h.b16 %v3484
      %v4819 = vunpack.c.l.b16 %v3485
      %v4820 = vunpack.c.h.b16 %v3485
      %v4821 = vunpack.c.l.b16 %v3486
      %v4822 = vunpack.c.h.b16 %v3486
      %v4823 = vunpack.c.l.b16 %v3487
      %v4824 = vunpack.c.h.b16 %v3487
      %v4825 = vunpack.c.l.b16 %v3488
      %v4826 = vunpack.c.h.b16 %v3488
      %v4827 = vunpack.c.l.b16 %v3489
      %v4828 = vunpack.c.h.b16 %v3489
      %v4829 = vunpack.c.l.b16 %v3490
      %v4830 = vunpack.c.h.b16 %v3490
      %v4831 = vunpack.c.l.b16 %v3491
      %v4832 = vunpack.c.h.b16 %v3491
      %v4833 = vunpack.c.l.b16 %v3492
      %v4834 = vunpack.c.h.b16 %v3492
      %v4835 = vunpack.c.l.b16 %v3493
      %v4836 = vunpack.c.h.b16 %v3493
      %v4837 = vunpack.c.l.b16 %v3494
      %v4838 = vunpack.c.h.b16 %v3494
      %v4839 = vunpack.c.l.b16 %v3495
      %v4840 = vunpack.c.h.b16 %v3495
      %v4841 = vunpack.c.l.b16 %v3496
      %v4842 = vunpack.c.h.b16 %v3496
      %v4843 = vunpack.c.l.b16 %v3497
      %v4844 = vunpack.c.h.b16 %v3497
      %v4845 = vunpack.c.l.b16 %v3498
      %v4846 = vunpack.c.h.b16 %v3498
      %v4847 = vunpack.c.l.b16 %v3499
      %v4848 = vunpack.c.h.b16 %v3499
      %v4849 = vunpack.c.l.b16 %v3500
      %v4850 = vunpack.c.h.b16 %v3500
      %v4851 = vunpack.c.l.b16 %v3501
      %v4852 = vunpack.c.h.b16 %v3501
      %v4853 = vunpack.c.l.b16 %v3502
      %v4854 = vunpack.c.h.b16 %v3502
      %v4855 = vunpack.c.l.b16 %v3503
      %v4856 = vunpack.c.h.b16 %v3503
      %v4857 = vunpack.c.l.b16 %v3504
      %v4858 = vunpack.c.h.b16 %v3504
      %v4859 = vunpack.c.l.b16 %v3505
      %v4860 = vunpack.c.h.b16 %v3505
      %v4861 = vunpack.c.l.b16 %v3506
      %v4862 = vunpack.c.h.b16 %v3506
      %v4863 = vunpack.c.l.b16 %v3507
      %v4864 = vunpack.c.h.b16 %v3507
      %v4865 = vunpack.c.l.b16 %v3508
      %v4866 = vunpack.c.h.b16 %v3508
      %v4867 = vunpack.c.l.b16 %v3509
      %v4868 = vunpack.c.h.b16 %v3509
      %v4869 = vunpack.c.l.b16 %v3510
      %v4870 = vunpack.c.h.b16 %v3510
      %v4871 = vunpack.c.l.b16 %v3511
      %v4872 = vunpack.c.h.b16 %v3511
      %v4873 = vunpack.c.l.b16 %v3512
      %v4874 = vunpack.c.h.b16 %v3512
      %v4875 = vunpack.c.l.b16 %v3513
      %v4876 = vunpack.c.h.b16 %v3513
      %v4877 = vunpack.c.l.b16 %v3514
      %v4878 = vunpack.c.h.b16 %v3514
      %v4879 = vunpack.c.l.b16 %v3515
      %v4880 = vunpack.c.h.b16 %v3515
      %v4881 = vunpack.c.l.b16 %v3516
      %v4882 = vunpack.c.h.b16 %v3516
      %v4883 = vunpack.c.l.b16 %v3517
      %v4884 = vunpack.c.h.b16 %v3517
      %v4885 = vunpack.c.l.b16 %v3518
      %v4886 = vunpack.c.h.b16 %v3518
      %v4887 = vunpack.c.l.b16 %v3519
      %v4888 = vunpack.c.h.b16 %v3519
      %v4889 = vunpack.c.l.b16 %v3520
      %v4890 = vunpack.c.h.b16 %v3520
      %v4891 = vunpack.c.l.b16 %v3521
      %v4892 = vunpack.c.h.b16 %v3521
      %v4893 = vunpack.c.l.b16 %v3522
      %v4894 = vunpack.c.h.b16 %v3522
      %v4895 = vunpack.c.l.b16 %v3523
      %v4896 = vunpack.c.h.b16 %v3523
      %v4897 = vunpack.c.l.b16 %v3524
      %v4898 = vunpack.c.h.b16 %v3524
      %v4899 = vunpack.c.l.b16 %v3525
      %v4900 = vunpack.c.h.b16 %v3525
      %v4901 = vunpack.c.l.b16 %v3526
      %v4902 = vunpack.c.h.b16 %v3526
      %v4903 = vunpack.c.l.b16 %v3527
      %v4904 = vunpack.c.h.b16 %v3527
      %v4905 = vunpack.c.l.b16 %v3528
      %v4906 = vunpack.c.h.b16 %v3528
      %v4907 = vunpack.c.l.b16 %v3529
      %v4908 = vunpack.c.h.b16 %v3529
      %v4909 = vunpack.c.l.b16 %v3530
      %v4910 = vunpack.c.h.b16 %v3530
      %v4911 = vunpack.c.l.b16 %v3531
      %v4912 = vunpack.c.h.b16 %v3531
      %v4913 = vunpack.c.l.b16 %v3532
      %v4914 = vunpack.c.h.b16 %v3532
      %v4915 = vunpack.c.l.b16 %v3533
      %v4916 = vunpack.c.h.b16 %v3533
      %v4917 = vunpack.c.l.b16 %v3534
      %v4918 = vunpack.c.h.b16 %v3534
      %v4919 = vunpack.c.l.b16 %v3535
      %v4920 = vunpack.c.h.b16 %v3535
      %v4921 = vunpack.c.l.b16 %v3536
      %v4922 = vunpack.c.h.b16 %v3536
      %v4923 = vunpack.c.l.b16 %v3537
      %v4924 = vunpack.c.h.b16 %v3537
      %v4925 = vunpack.c.l.b16 %v3538
      %v4926 = vunpack.c.h.b16 %v3538
      %v4927 = vunpack.c.l.b16 %v3539
      %v4928 = vunpack.c.h.b16 %v3539
      %v4929 = vunpack.c.l.b16 %v3540
      %v4930 = vunpack.c.h.b16 %v3540
      %v4931 = vunpack.c.l.b16 %v3541
      %v4932 = vunpack.c.h.b16 %v3541
      %v4933 = vunpack.c.l.b16 %v3542
      %v4934 = vunpack.c.h.b16 %v3542
      %v4935 = vunpack.c.l.b16 %v3543
      %v4936 = vunpack.c.h.b16 %v3543
      %v4937 = vunpack.c.l.b16 %v3544
      %v4938 = vunpack.c.h.b16 %v3544
      %v4939 = vunpack.c.l.b16 %v3545
      %v4940 = vunpack.c.h.b16 %v3545
      %v4941 = vunpack.c.l.b16 %v3546
      %v4942 = vunpack.c.h.b16 %v3546
      %v4943 = vunpack.c.l.b16 %v3547
      %v4944 = vunpack.c.h.b16 %v3547
      %v4945 = vunpack.c.l.b16 %v3548
      %v4946 = vunpack.c.h.b16 %v3548
      %v4947 = vunpack.c.l.b16 %v3549
      %v4948 = vunpack.c.h.b16 %v3549
      %v4949 = vunpack.c.l.b16 %v3550
      %v4950 = vunpack.c.h.b16 %v3550
      %v4951 = vunpack.c.l.b16 %v3551
      %v4952 = vunpack.c.h.b16 %v3551
      %v4953 = vunpack.c.l.b16 %v3552
      %v4954 = vunpack.c.h.b16 %v3552
      %v4955 = vunpack.c.l.b16 %v3553
      %v4956 = vunpack.c.h.b16 %v3553
      %v4957 = vunpack.c.l.b16 %v3554
      %v4958 = vunpack.c.h.b16 %v3554
      %v4959 = vunpack.c.l.b16 %v3555
      %v4960 = vunpack.c.h.b16 %v3555
      %v4961 = vunpack.c.l.b16 %v3556
      %v4962 = vunpack.c.h.b16 %v3556
      %v4963 = vunpack.c.l.b16 %v3557
      %v4964 = vunpack.c.h.b16 %v3557
      %v4965 = vunpack.c.l.b16 %v3558
      %v4966 = vunpack.c.h.b16 %v3558
      %v4967 = vunpack.c.l.b16 %v3559
      %v4968 = vunpack.c.h.b16 %v3559
      %v4969 = vpack.c.b16 %v4717, %v4713
      %v4970 = vpack.c.b16 %v4718, %v4714
      %v4971 = vpack.c.b16 %v4719, %v4715
      %v4972 = vpack.c.b16 %v4720, %v4716
      %v4973 = vpack.c.b16 %v4725, %v4721
      %v4974 = vpack.c.b16 %v4726, %v4722
      %v4975 = vpack.c.b16 %v4727, %v4723
      %v4976 = vpack.c.b16 %v4728, %v4724
      %v4977 = vpack.c.b16 %v4733, %v4729
      %v4978 = vpack.c.b16 %v4734, %v4730
      %v4979 = vpack.c.b16 %v4735, %v4731
      %v4980 = vpack.c.b16 %v4736, %v4732
      %v4981 = vpack.c.b16 %v4741, %v4737
      %v4982 = vpack.c.b16 %v4742, %v4738
      %v4983 = vpack.c.b16 %v4743, %v4739
      %v4984 = vpack.c.b16 %v4744, %v4740
      %v4985 = vpack.c.b16 %v4749, %v4745
      %v4986 = vpack.c.b16 %v4750, %v4746
      %v4987 = vpack.c.b16 %v4751, %v4747
      %v4988 = vpack.c.b16 %v4752, %v4748
      %v4989 = vpack.c.b16 %v4757, %v4753
      %v4990 = vpack.c.b16 %v4758, %v4754
      %v4991 = vpack.c.b16 %v4759, %v4755
      %v4992 = vpack.c.b16 %v4760, %v4756
      %v4993 = vpack.c.b16 %v4765, %v4761
      %v4994 = vpack.c.b16 %v4766, %v4762
      %v4995 = vpack.c.b16 %v4767, %v4763
      %v4996 = vpack.c.b16 %v4768, %v4764
      %v4997 = vpack.c.b16 %v4773, %v4769
      %v4998 = vpack.c.b16 %v4774, %v4770
      %v4999 = vpack.c.b16 %v4775, %v4771
      %v5000 = vpack.c.b16 %v4776, %v4772
      %v5001 = vpack.c.b16 %v4781, %v4777
      %v5002 = vpack.c.b16 %v4782, %v4778
      %v5003 = vpack.c.b16 %v4783, %v4779
      %v5004 = vpack.c.b16 %v4784, %v4780
      %v5005 = vpack.c.b16 %v4789, %v4785
      %v5006 = vpack.c.b16 %v4790, %v4786
      %v5007 = vpack.c.b16 %v4791, %v4787
      %v5008 = vpack.c.b16 %v4792, %v4788
      %v5009 = vpack.c.b16 %v4797, %v4793
      %v5010 = vpack.c.b16 %v4798, %v4794
      %v5011 = vpack.c.b16 %v4799, %v4795
      %v5012 = vpack.c.b16 %v4800, %v4796
      %v5013 = vpack.c.b16 %v4805, %v4801
      %v5014 = vpack.c.b16 %v4806, %v4802
      %v5015 = vpack.c.b16 %v4807, %v4803
      %v5016 = vpack.c.b16 %v4808, %v4804
      %v5017 = vpack.c.b16 %v4813, %v4809
      %v5018 = vpack.c.b16 %v4814, %v4810
      %v5019 = vpack.c.b16 %v4815, %v4811
      %v5020 = vpack.c.b16 %v4816, %v4812
      %v5021 = vpack.c.b16 %v4821, %v4817
      %v5022 = vpack.c.b16 %v4822, %v4818
      %v5023 = vpack.c.b16 %v4823, %v4819
      %v5024 = vpack.c.b16 %v4824, %v4820
      %v5025 = vpack.c.b16 %v4829, %v4825
      %v5026 = vpack.c.b16 %v4830, %v4826
      %v5027 = vpack.c.b16 %v4831, %v4827
      %v5028 = vpack.c.b16 %v4832, %v4828
      %v5029 = vpack.c.b16 %v4837, %v4833
      %v5030 = vpack.c.b16 %v4838, %v4834
      %v5031 = vpack.c.b16 %v4839, %v4835
      %v5032 = vpack.c.b16 %v4840, %v4836
      %v5033 = vpack.c.b16 %v4845, %v4841
      %v5034 = vpack.c.b16 %v4846, %v4842
      %v5035 = vpack.c.b16 %v4847, %v4843
      %v5036 = vpack.c.b16 %v4848, %v4844
      %v5037 = vpack.c.b16 %v4853, %v4849
      %v5038 = vpack.c.b16 %v4854, %v4850
      %v5039 = vpack.c.b16 %v4855, %v4851
      %v5040 = vpack.c.b16 %v4856, %v4852
      %v5041 = vpack.c.b16 %v4861, %v4857
      %v5042 = vpack.c.b16 %v4862, %v4858
      %v5043 = vpack.c.b16 %v4863, %v4859
      %v5044 = vpack.c.b16 %v4864, %v4860
      %v5045 = vpack.c.b16 %v4869, %v4865
      %v5046 = vpack.c.b16 %v4870, %v4866
      %v5047 = vpack.c.b16 %v4871, %v4867
      %v5048 = vpack.c.b16 %v4872, %v4868
      %v5049 = vpack.c.b16 %v4877, %v4873
      %v5050 = vpack.c.b16 %v4878, %v4874
      %v5051 = vpack.c.b16 %v4879, %v4875
      %v5052 = vpack.c.b16 %v4880, %v4876
      %v5053 = vpack.c.b16 %v4885, %v4881
      %v5054 = vpack.c.b16 %v4886, %v4882
      %v5055 = vpack.c.b16 %v4887, %v4883
      %v5056 = vpack.c.b16 %v4888, %v4884
      %v5057 = vpack.c.b16 %v4893, %v4889
      %v5058 = vpack.c.b16 %v4894, %v4890
      %v5059 = vpack.c.b16 %v4895, %v4891
      %v5060 = vpack.c.b16 %v4896, %v4892
      %v5061 = vpack.c.b16 %v4901, %v4897
      %v5062 = vpack.c.b16 %v4902, %v4898
      %v5063 = vpack.c.b16 %v4903, %v4899
      %v5064 = vpack.c.b16 %v4904, %v4900
      %v5065 = vpack.c.b16 %v4909, %v4905
      %v5066 = vpack.c.b16 %v4910, %v4906
      %v5067 = vpack.c.b16 %v4911, %v4907
      %v5068 = vpack.c.b16 %v4912, %v4908
      %v5069 = vpack.c.b16 %v4917, %v4913
      %v5070 = vpack.c.b16 %v4918, %v4914
      %v5071 = vpack.c.b16 %v4919, %v4915
      %v5072 = vpack.c.b16 %v4920, %v4916
      %v5073 = vpack.c.b16 %v4925, %v4921
      %v5074 = vpack.c.b16 %v4926, %v4922
      %v5075 = vpack.c.b16 %v4927, %v4923
      %v5076 = vpack.c.b16 %v4928, %v4924
      %v5077 = vpack.c.b16 %v4933, %v4929
      %v5078 = vpack.c.b16 %v4934, %v4930
      %v5079 = vpack.c.b16 %v4935, %v4931
      %v5080 = vpack.c.b16 %v4936, %v4932
      %v5081 = vpack.c.b16 %v4941, %v4937
      %v5082 = vpack.c.b16 %v4942, %v4938
      %v5083 = vpack.c.b16 %v4943, %v4939
      %v5084 = vpack.c.b16 %v4944, %v4940
      %v5085 = vpack.c.b16 %v4949, %v4945
      %v5086 = vpack.c.b16 %v4950, %v4946
      %v5087 = vpack.c.b16 %v4951, %v4947
      %v5088 = vpack.c.b16 %v4952, %v4948
      %v5089 = vpack.c.b16 %v4957, %v4953
      %v5090 = vpack.c.b16 %v4958, %v4954
      %v5091 = vpack.c.b16 %v4959, %v4955
      %v5092 = vpack.c.b16 %v4960, %v4956
      %v5093 = vpack.c.b16 %v4965, %v4961
      %v5094 = vpack.c.b16 %v4966, %v4962
      %v5095 = vpack.c.b16 %v4967, %v4963
      %v5096 = vpack.c.b16 %v4968, %v4964
      %5225 = vmatprep.subr.bf16.mxu0 %v4970
      %5226 = vmatpush1.bf16.msra.mxu0 %v4969
      %5227 = vmatprep.subr.bf16.mxu0 %v4974
      %5228 = vmatpush1.bf16.msra.mxu0 %v4973
      %5229 = vmatprep.subr.bf16.mxu0 %v4978
      %5230 = vmatpush1.bf16.msra.mxu0 %v4977
      %5231 = vmatprep.subr.bf16.mxu0 %v4982
      %5232 = vmatpush1.bf16.msra.mxu0 %v4981
      %5233 = vmatprep.subr.bf16.mxu0 %v4986
      %5234 = vmatpush1.bf16.msra.mxu0 %v4985
      %5235 = vmatprep.subr.bf16.mxu0 %v4990
      %5236 = vmatpush1.bf16.msra.mxu0 %v4989
      %5237 = vmatprep.subr.bf16.mxu0 %v4994
      %5238 = vmatpush1.bf16.msra.mxu0 %v4993
      %5239 = vmatprep.subr.bf16.mxu0 %v4998
      %5240 = vmatpush1.bf16.msra.mxu0 %v4997
      %5241 = vmatprep.subr.bf16.mxu0 %v5002
      %5242 = vmatpush1.bf16.msra.mxu0 %v5001
      %5243 = vmatprep.subr.bf16.mxu0 %v5006
      %5244 = vmatpush1.bf16.msra.mxu0 %v5005
      %5245 = vmatprep.subr.bf16.mxu0 %v5010
      %5246 = vmatpush1.bf16.msra.mxu0 %v5009
      %5247 = vmatprep.subr.bf16.mxu0 %v5014
      %5248 = vmatpush1.bf16.msra.mxu0 %v5013
      %5249 = vmatprep.subr.bf16.mxu0 %v5018
      %5250 = vmatpush1.bf16.msra.mxu0 %v5017
      %5251 = vmatprep.subr.bf16.mxu0 %v5022
      %5252 = vmatpush1.bf16.msra.mxu0 %v5021
      %5253 = vmatprep.subr.bf16.mxu0 %v5026
      %5254 = vmatpush1.bf16.msra.mxu0 %v5025
      %5255 = vmatprep.subr.bf16.mxu0 %v5030
      %5256 = vmatpush1.bf16.msra.mxu0 %v5029
      %5257 = vmatprep.mubr.bf16.mxu0 %v3710
      %5258 = vmatmul.mubr.bf16.gmra.mrb[0].mxu0 %v3709
      %v5259 = vpop.f32.mrb[0].mxu0
      %v5260 = vadd.f32 %v4487, %v5259
      %v5261 = vpop.f32.mrb[0].mxu0
      %v5262 = vadd.f32 %v4489, %v5261
      %v5263 = vpop.f32.mrb[0].mxu0
      %v5264 = vadd.f32 %v4491, %v5263
      %v5265 = vpop.f32.mrb[0].mxu0
      %v5266 = vadd.f32 %v4493, %v5265
      %5267 = vdwg.mxu0
      %5268 = vmatprep.subr.bf16.mxu0 %v5034
      %5269 = vmatpush1.bf16.msra.mxu0 %v5033
      %5270 = vmatprep.subr.bf16.mxu0 %v5038
      %5271 = vmatpush1.bf16.msra.mxu0 %v5037
      %5272 = vmatprep.subr.bf16.mxu0 %v5042
      %5273 = vmatpush1.bf16.msra.mxu0 %v5041
      %5274 = vmatprep.subr.bf16.mxu0 %v5046
      %5275 = vmatpush1.bf16.msra.mxu0 %v5045
      %5276 = vmatprep.subr.bf16.mxu0 %v5050
      %5277 = vmatpush1.bf16.msra.mxu0 %v5049
      %5278 = vmatprep.subr.bf16.mxu0 %v5054
      %5279 = vmatpush1.bf16.msra.mxu0 %v5053
      %5280 = vmatprep.subr.bf16.mxu0 %v5058
      %5281 = vmatpush1.bf16.msra.mxu0 %v5057
      %5282 = vmatprep.subr.bf16.mxu0 %v5062
      %5283 = vmatpush1.bf16.msra.mxu0 %v5061
      %5284 = vmatprep.subr.bf16.mxu0 %v5066
      %5285 = vmatpush1.bf16.msra.mxu0 %v5065
      %5286 = vmatprep.subr.bf16.mxu0 %v5070
      %5287 = vmatpush1.bf16.msra.mxu0 %v5069
      %5288 = vmatprep.subr.bf16.mxu0 %v5074
      %5289 = vmatpush1.bf16.msra.mxu0 %v5073
      %5290 = vmatprep.subr.bf16.mxu0 %v5078
      %5291 = vmatpush1.bf16.msra.mxu0 %v5077
      %5292 = vmatprep.subr.bf16.mxu0 %v5082
      %5293 = vmatpush1.bf16.msra.mxu0 %v5081
      %5294 = vmatprep.subr.bf16.mxu0 %v5086
      %5295 = vmatpush1.bf16.msra.mxu0 %v5085
      %5296 = vmatprep.subr.bf16.mxu0 %v5090
      %5297 = vmatpush1.bf16.msra.mxu0 %v5089
      %5298 = vmatprep.subr.bf16.mxu0 %v5094
      %5299 = vmatpush1.bf16.msra.mxu0 %v5093
      %5300 = vmatprep.mubr.bf16.mxu0 %v3712
      %5301 = vmatmul.mubr.bf16.gmra.mrb[0].mxu0 %v3711
      %v5302 = vpop.f32.mrb[0].mxu0
      %v5303 = vadd.f32 %v5260, %v5302
      %v5304 = vpop.f32.mrb[0].mxu0
      %v5305 = vadd.f32 %v5262, %v5304
      %v5306 = vpop.f32.mrb[0].mxu0
      %v5307 = vadd.f32 %v5264, %v5306
      %v5308 = vpop.f32.mrb[0].mxu0
      %v5309 = vadd.f32 %v5266, %v5308
      %5310 = vdwg.mxu0
      %5311 = vmatprep.subr.bf16.mxu0 %v4972
      %5312 = vmatpush1.bf16.msra.mxu0 %v4971
      %5313 = vmatprep.subr.bf16.mxu0 %v4976
      %5314 = vmatpush1.bf16.msra.mxu0 %v4975
      %5315 = vmatprep.subr.bf16.mxu0 %v4980
      %5316 = vmatpush1.bf16.msra.mxu0 %v4979
      %5317 = vmatprep.subr.bf16.mxu0 %v4984
      %5318 = vmatpush1.bf16.msra.mxu0 %v4983
      %5319 = vmatprep.subr.bf16.mxu0 %v4988
      %5320 = vmatpush1.bf16.msra.mxu0 %v4987
      %5321 = vmatprep.subr.bf16.mxu0 %v4992
      %5322 = vmatpush1.bf16.msra.mxu0 %v4991
      %5323 = vmatprep.subr.bf16.mxu0 %v4996
      %5324 = vmatpush1.bf16.msra.mxu0 %v4995
      %5325 = vmatprep.subr.bf16.mxu0 %v5000
      %5326 = vmatpush1.bf16.msra.mxu0 %v4999
      %5327 = vmatprep.subr.bf16.mxu0 %v5004
      %5328 = vmatpush1.bf16.msra.mxu0 %v5003
      %5329 = vmatprep.subr.bf16.mxu0 %v5008
      %5330 = vmatpush1.bf16.msra.mxu0 %v5007
      %5331 = vmatprep.subr.bf16.mxu0 %v5012
      %5332 = vmatpush1.bf16.msra.mxu0 %v5011
      %5333 = vmatprep.subr.bf16.mxu0 %v5016
      %5334 = vmatpush1.bf16.msra.mxu0 %v5015
      %5335 = vmatprep.subr.bf16.mxu0 %v5020
      %5336 = vmatpush1.bf16.msra.mxu0 %v5019
      %5337 = vmatprep.subr.bf16.mxu0 %v5024
      %5338 = vmatpush1.bf16.msra.mxu0 %v5023
      %5339 = vmatprep.subr.bf16.mxu0 %v5028
      %5340 = vmatpush1.bf16.msra.mxu0 %v5027
      %5341 = vmatprep.subr.bf16.mxu0 %v5032
      %5342 = vmatpush1.bf16.msra.mxu0 %v5031
      %5343 = vmatprep.mubr.bf16.mxu0 %v3710
      %5344 = vmatmul.mubr.bf16.gmra.mrb[0].mxu0 %v3709
      %v5345 = vpop.f32.mrb[0].mxu0
      %v5346 = vadd.f32 %v4573, %v5345
      %v5347 = vpop.f32.mrb[0].mxu0
      %v5348 = vadd.f32 %v4575, %v5347
      %v5349 = vpop.f32.mrb[0].mxu0
      %v5350 = vadd.f32 %v4577, %v5349
      %v5351 = vpop.f32.mrb[0].mxu0
      %v5352 = vadd.f32 %v4579, %v5351
      %5353 = vdwg.mxu0
      %5354 = vmatprep.subr.bf16.mxu0 %v5036
      %5355 = vmatpush1.bf16.msra.mxu0 %v5035
      %5356 = vmatprep.subr.bf16.mxu0 %v5040
      %5357 = vmatpush1.bf16.msra.mxu0 %v5039
      %5358 = vmatprep.subr.bf16.mxu0 %v5044
      %5359 = vmatpush1.bf16.msra.mxu0 %v5043
      %5360 = vmatprep.subr.bf16.mxu0 %v5048
      %5361 = vmatpush1.bf16.msra.mxu0 %v5047
      %5362 = vmatprep.subr.bf16.mxu0 %v5052
      %5363 = vmatpush1.bf16.msra.mxu0 %v5051
      %5364 = vmatprep.subr.bf16.mxu0 %v5056
      %5365 = vmatpush1.bf16.msra.mxu0 %v5055
      %5366 = vmatprep.subr.bf16.mxu0 %v5060
      %5367 = vmatpush1.bf16.msra.mxu0 %v5059
      %5368 = vmatprep.subr.bf16.mxu0 %v5064
      %5369 = vmatpush1.bf16.msra.mxu0 %v5063
      %5370 = vmatprep.subr.bf16.mxu0 %v5068
      %5371 = vmatpush1.bf16.msra.mxu0 %v5067
      %5372 = vmatprep.subr.bf16.mxu0 %v5072
      %5373 = vmatpush1.bf16.msra.mxu0 %v5071
      %5374 = vmatprep.subr.bf16.mxu0 %v5076
      %5375 = vmatpush1.bf16.msra.mxu0 %v5075
      %5376 = vmatprep.subr.bf16.mxu0 %v5080
      %5377 = vmatpush1.bf16.msra.mxu0 %v5079
      %5378 = vmatprep.subr.bf16.mxu0 %v5084
      %5379 = vmatpush1.bf16.msra.mxu0 %v5083
      %5380 = vmatprep.subr.bf16.mxu0 %v5088
      %5381 = vmatpush1.bf16.msra.mxu0 %v5087
      %5382 = vmatprep.subr.bf16.mxu0 %v5092
      %5383 = vmatpush1.bf16.msra.mxu0 %v5091
      %5384 = vmatprep.subr.bf16.mxu0 %v5096
      %5385 = vmatpush1.bf16.msra.mxu0 %v5095
      %5386 = vmatprep.mubr.bf16.mxu0 %v3712
      %5387 = vmatmul.mubr.bf16.gmra.mrb[0].mxu0 %v3711
      %v5388 = vpop.f32.mrb[0].mxu0
      %v5389 = vadd.f32 %v5346, %v5388
      %v5390 = vpop.f32.mrb[0].mxu0
      %v5391 = vadd.f32 %v5348, %v5390
      %v5392 = vpop.f32.mrb[0].mxu0
      %v5393 = vadd.f32 %v5350, %v5392
      %v5394 = vpop.f32.mrb[0].mxu0
      %v5395 = vadd.f32 %v5352, %v5394
      %5396 = vdwg.mxu0
      %v5397 = vld [vmem:[#allocation2] sm:$0xee]
      %v5398 = vld [vmem:[#allocation2 + $0x8] sm:$0xee]
      %s5399 = scalar_lea.vmem %s3, 2048
      %v5400 = vld [vmem:[%s5399] sm:$0xff]
      %v5401 = vld [vmem:[%s5399 + $0x8] sm:$0xff]
      %v5402 = vld [vmem:[%s5399 + $0x10] sm:$0xff]
      %v5403 = vld [vmem:[%s5399 + $0x18] sm:$0xff]
      %v5404 = vld [vmem:[%s5399 + $0x20] sm:$0xff]
      %v5405 = vld [vmem:[%s5399 + $0x28] sm:$0xff]
      %v5406 = vld [vmem:[%s5399 + $0x30] sm:$0xff]
      %v5407 = vld [vmem:[%s5399 + $0x38] sm:$0xff]
      %v5408 = vld [vmem:[%s5399 + $0x40] sm:$0xff]
      %v5409 = vld [vmem:[%s5399 + $0x48] sm:$0xff]
      %v5410 = vld [vmem:[%s5399 + $0x50] sm:$0xff]
      %v5411 = vld [vmem:[%s5399 + $0x58] sm:$0xff]
      %v5412 = vld [vmem:[%s5399 + $0x60] sm:$0xff]
      %v5413 = vld [vmem:[%s5399 + $0x68] sm:$0xff]
      %v5414 = vld [vmem:[%s5399 + $0x70] sm:$0xff]
      %v5415 = vld [vmem:[%s5399 + $0x78] sm:$0xff]
      %v5416 = vld [vmem:[%s5399 + $0x80] sm:$0xff]
      %v5417 = vld [vmem:[%s5399 + $0x88] sm:$0xff]
      %v5418 = vld [vmem:[%s5399 + $0x90] sm:$0xff]
      %v5419 = vld [vmem:[%s5399 + $0x98] sm:$0xff]
      %v5420 = vld [vmem:[%s5399 + $0xa0] sm:$0xff]
      %v5421 = vld [vmem:[%s5399 + $0xa8] sm:$0xff]
      %v5422 = vld [vmem:[%s5399 + $0xb0] sm:$0xff]
      %v5423 = vld [vmem:[%s5399 + $0xb8] sm:$0xff]
      %v5424 = vld [vmem:[%s5399 + $0xc0] sm:$0xff]
      %v5425 = vld [vmem:[%s5399 + $0xc8] sm:$0xff]
      %v5426 = vld [vmem:[%s5399 + $0xd0] sm:$0xff]
      %v5427 = vld [vmem:[%s5399 + $0xd8] sm:$0xff]
      %v5428 = vld [vmem:[%s5399 + $0xe0] sm:$0xff]
      %v5429 = vld [vmem:[%s5399 + $0xe8] sm:$0xff]
      %v5430 = vld [vmem:[%s5399 + $0xf0] sm:$0xff]
      %v5431 = vld [vmem:[%s5399 + $0xf8] sm:$0xff]
      %v5432 = vld [vmem:[%s5399 + $0x100] sm:$0xff]
      %v5433 = vld [vmem:[%s5399 + $0x108] sm:$0xff]
      %v5434 = vld [vmem:[%s5399 + $0x110] sm:$0xff]
      %v5435 = vld [vmem:[%s5399 + $0x118] sm:$0xff]
      %v5436 = vld [vmem:[%s5399 + $0x120] sm:$0xff]
      %v5437 = vld [vmem:[%s5399 + $0x128] sm:$0xff]
      %v5438 = vld [vmem:[%s5399 + $0x130] sm:$0xff]
      %v5439 = vld [vmem:[%s5399 + $0x138] sm:$0xff]
      %v5440 = vld [vmem:[%s5399 + $0x140] sm:$0xff]
      %v5441 = vld [vmem:[%s5399 + $0x148] sm:$0xff]
      %v5442 = vld [vmem:[%s5399 + $0x150] sm:$0xff]
      %v5443 = vld [vmem:[%s5399 + $0x158] sm:$0xff]
      %v5444 = vld [vmem:[%s5399 + $0x160] sm:$0xff]
      %v5445 = vld [vmem:[%s5399 + $0x168] sm:$0xff]
      %v5446 = vld [vmem:[%s5399 + $0x170] sm:$0xff]
      %v5447 = vld [vmem:[%s5399 + $0x178] sm:$0xff]
      %v5448 = vld [vmem:[%s5399 + $0x180] sm:$0xff]
      %v5449 = vld [vmem:[%s5399 + $0x188] sm:$0xff]
      %v5450 = vld [vmem:[%s5399 + $0x190] sm:$0xff]
      %v5451 = vld [vmem:[%s5399 + $0x198] sm:$0xff]
      %v5452 = vld [vmem:[%s5399 + $0x1a0] sm:$0xff]
      %v5453 = vld [vmem:[%s5399 + $0x1a8] sm:$0xff]
      %v5454 = vld [vmem:[%s5399 + $0x1b0] sm:$0xff]
      %v5455 = vld [vmem:[%s5399 + $0x1b8] sm:$0xff]
      %v5456 = vld [vmem:[%s5399 + $0x1c0] sm:$0xff]
      %v5457 = vld [vmem:[%s5399 + $0x1c8] sm:$0xff]
      %v5458 = vld [vmem:[%s5399 + $0x1d0] sm:$0xff]
      %v5459 = vld [vmem:[%s5399 + $0x1d8] sm:$0xff]
      %v5460 = vld [vmem:[%s5399 + $0x1e0] sm:$0xff]
      %v5461 = vld [vmem:[%s5399 + $0x1e8] sm:$0xff]
      %v5462 = vld [vmem:[%s5399 + $0x1f0] sm:$0xff]
      %v5463 = vld [vmem:[%s5399 + $0x1f8] sm:$0xff]
      %v5464 = vld [vmem:[%s5399 + $0x200] sm:$0xff]
      %v5465 = vld [vmem:[%s5399 + $0x208] sm:$0xff]
      %v5466 = vld [vmem:[%s5399 + $0x210] sm:$0xff]
      %v5467 = vld [vmem:[%s5399 + $0x218] sm:$0xff]
      %v5468 = vld [vmem:[%s5399 + $0x220] sm:$0xff]
      %v5469 = vld [vmem:[%s5399 + $0x228] sm:$0xff]
      %v5470 = vld [vmem:[%s5399 + $0x230] sm:$0xff]
      %v5471 = vld [vmem:[%s5399 + $0x238] sm:$0xff]
      %v5472 = vld [vmem:[%s5399 + $0x240] sm:$0xff]
      %v5473 = vld [vmem:[%s5399 + $0x248] sm:$0xff]
      %v5474 = vld [vmem:[%s5399 + $0x250] sm:$0xff]
      %v5475 = vld [vmem:[%s5399 + $0x258] sm:$0xff]
      %v5476 = vld [vmem:[%s5399 + $0x260] sm:$0xff]
      %v5477 = vld [vmem:[%s5399 + $0x268] sm:$0xff]
      %v5478 = vld [vmem:[%s5399 + $0x270] sm:$0xff]
      %v5479 = vld [vmem:[%s5399 + $0x278] sm:$0xff]
      %v5480 = vld [vmem:[%s5399 + $0x280] sm:$0xff]
      %v5481 = vld [vmem:[%s5399 + $0x288] sm:$0xff]
      %v5482 = vld [vmem:[%s5399 + $0x290] sm:$0xff]
      %v5483 = vld [vmem:[%s5399 + $0x298] sm:$0xff]
      %v5484 = vld [vmem:[%s5399 + $0x2a0] sm:$0xff]
      %v5485 = vld [vmem:[%s5399 + $0x2a8] sm:$0xff]
      %v5486 = vld [vmem:[%s5399 + $0x2b0] sm:$0xff]
      %v5487 = vld [vmem:[%s5399 + $0x2b8] sm:$0xff]
      %v5488 = vld [vmem:[%s5399 + $0x2c0] sm:$0xff]
      %v5489 = vld [vmem:[%s5399 + $0x2c8] sm:$0xff]
      %v5490 = vld [vmem:[%s5399 + $0x2d0] sm:$0xff]
      %v5491 = vld [vmem:[%s5399 + $0x2d8] sm:$0xff]
      %v5492 = vld [vmem:[%s5399 + $0x2e0] sm:$0xff]
      %v5493 = vld [vmem:[%s5399 + $0x2e8] sm:$0xff]
      %v5494 = vld [vmem:[%s5399 + $0x2f0] sm:$0xff]
      %v5495 = vld [vmem:[%s5399 + $0x2f8] sm:$0xff]
      %v5496 = vld [vmem:[%s5399 + $0x300] sm:$0xff]
      %v5497 = vld [vmem:[%s5399 + $0x308] sm:$0xff]
      %v5498 = vld [vmem:[%s5399 + $0x310] sm:$0xff]
      %v5499 = vld [vmem:[%s5399 + $0x318] sm:$0xff]
      %v5500 = vld [vmem:[%s5399 + $0x320] sm:$0xff]
      %v5501 = vld [vmem:[%s5399 + $0x328] sm:$0xff]
      %v5502 = vld [vmem:[%s5399 + $0x330] sm:$0xff]
      %v5503 = vld [vmem:[%s5399 + $0x338] sm:$0xff]
      %v5504 = vld [vmem:[%s5399 + $0x340] sm:$0xff]
      %v5505 = vld [vmem:[%s5399 + $0x348] sm:$0xff]
      %v5506 = vld [vmem:[%s5399 + $0x350] sm:$0xff]
      %v5507 = vld [vmem:[%s5399 + $0x358] sm:$0xff]
      %v5508 = vld [vmem:[%s5399 + $0x360] sm:$0xff]
      %v5509 = vld [vmem:[%s5399 + $0x368] sm:$0xff]
      %v5510 = vld [vmem:[%s5399 + $0x370] sm:$0xff]
      %v5511 = vld [vmem:[%s5399 + $0x378] sm:$0xff]
      %v5512 = vld [vmem:[%s5399 + $0x380] sm:$0xff]
      %v5513 = vld [vmem:[%s5399 + $0x388] sm:$0xff]
      %v5514 = vld [vmem:[%s5399 + $0x390] sm:$0xff]
      %v5515 = vld [vmem:[%s5399 + $0x398] sm:$0xff]
      %v5516 = vld [vmem:[%s5399 + $0x3a0] sm:$0xff]
      %v5517 = vld [vmem:[%s5399 + $0x3a8] sm:$0xff]
      %v5518 = vld [vmem:[%s5399 + $0x3b0] sm:$0xff]
      %v5519 = vld [vmem:[%s5399 + $0x3b8] sm:$0xff]
      %v5520 = vld [vmem:[%s5399 + $0x3c0] sm:$0xff]
      %v5521 = vld [vmem:[%s5399 + $0x3c8] sm:$0xff]
      %v5522 = vld [vmem:[%s5399 + $0x3d0] sm:$0xff]
      %v5523 = vld [vmem:[%s5399 + $0x3d8] sm:$0xff]
      %v5524 = vld [vmem:[%s5399 + $0x3e0] sm:$0xff]
      %v5525 = vld [vmem:[%s5399 + $0x3e8] sm:$0xff]
      %v5526 = vld [vmem:[%s5399 + $0x3f0] sm:$0xff]
      %v5527 = vld [vmem:[%s5399 + $0x3f8] sm:$0xff]
      %v5530 = vunpack.c.l.b16 %v5397
      %v5531 = vunpack.c.h.b16 %v5397
      %v5532 = vunpack.c.l.b16 %v5398
      %v5533 = vunpack.c.h.b16 %v5398
      %v5534 = vpack.c.b16 %v3701, %v5530
      %v5535 = vpack.c.b16 %v3702, %v5531
      %v5536 = vpack.c.b16 %v3703, %v5532
      %v5537 = vpack.c.b16 %v3704, %v5533
      %v5538 = vrot.slane %v5534, 1
      %v5539 = vrot.slane %v3713, 1
      %v5540 = vsel %vm2480, %v5538, %v5539
      %v5541 = vrot.slane %v5535, 1
      %v5542 = vrot.slane %v3714, 1
      %v5543 = vsel %vm2480, %v5541, %v5542
      %v5544 = vrot.slane %v5536, 1
      %v5545 = vrot.slane %v3715, 1
      %v5546 = vsel %vm2480, %v5544, %v5545
      %v5547 = vrot.slane %v5537, 1
      %v5548 = vrot.slane %v3716, 1
      %v5549 = vsel %vm2480, %v5547, %v5548
      %v5682 = vunpack.c.l.b16 %v5400
      %v5683 = vunpack.c.h.b16 %v5400
      %v5684 = vunpack.c.l.b16 %v5401
      %v5685 = vunpack.c.h.b16 %v5401
      %v5686 = vunpack.c.l.b16 %v5402
      %v5687 = vunpack.c.h.b16 %v5402
      %v5688 = vunpack.c.l.b16 %v5403
      %v5689 = vunpack.c.h.b16 %v5403
      %v5690 = vunpack.c.l.b16 %v5404
      %v5691 = vunpack.c.h.b16 %v5404
      %v5692 = vunpack.c.l.b16 %v5405
      %v5693 = vunpack.c.h.b16 %v5405
      %v5694 = vunpack.c.l.b16 %v5406
      %v5695 = vunpack.c.h.b16 %v5406
      %v5696 = vunpack.c.l.b16 %v5407
      %v5697 = vunpack.c.h.b16 %v5407
      %v5698 = vunpack.c.l.b16 %v5408
      %v5699 = vunpack.c.h.b16 %v5408
      %v5700 = vunpack.c.l.b16 %v5409
      %v5701 = vunpack.c.h.b16 %v5409
      %v5702 = vunpack.c.l.b16 %v5410
      %v5703 = vunpack.c.h.b16 %v5410
      %v5704 = vunpack.c.l.b16 %v5411
      %v5705 = vunpack.c.h.b16 %v5411
      %v5706 = vunpack.c.l.b16 %v5412
      %v5707 = vunpack.c.h.b16 %v5412
      %v5708 = vunpack.c.l.b16 %v5413
      %v5709 = vunpack.c.h.b16 %v5413
      %v5710 = vunpack.c.l.b16 %v5414
      %v5711 = vunpack.c.h.b16 %v5414
      %v5712 = vunpack.c.l.b16 %v5415
      %v5713 = vunpack.c.h.b16 %v5415
      %v5714 = vunpack.c.l.b16 %v5416
      %v5715 = vunpack.c.h.b16 %v5416
      %v5716 = vunpack.c.l.b16 %v5417
      %v5717 = vunpack.c.h.b16 %v5417
      %v5718 = vunpack.c.l.b16 %v5418
      %v5719 = vunpack.c.h.b16 %v5418
      %v5720 = vunpack.c.l.b16 %v5419
      %v5721 = vunpack.c.h.b16 %v5419
      %v5722 = vunpack.c.l.b16 %v5420
      %v5723 = vunpack.c.h.b16 %v5420
      %v5724 = vunpack.c.l.b16 %v5421
      %v5725 = vunpack.c.h.b16 %v5421
      %v5726 = vunpack.c.l.b16 %v5422
      %v5727 = vunpack.c.h.b16 %v5422
      %v5728 = vunpack.c.l.b16 %v5423
      %v5729 = vunpack.c.h.b16 %v5423
      %v5730 = vunpack.c.l.b16 %v5424
      %v5731 = vunpack.c.h.b16 %v5424
      %v5732 = vunpack.c.l.b16 %v5425
      %v5733 = vunpack.c.h.b16 %v5425
      %v5734 = vunpack.c.l.b16 %v5426
      %v5735 = vunpack.c.h.b16 %v5426
      %v5736 = vunpack.c.l.b16 %v5427
      %v5737 = vunpack.c.h.b16 %v5427
      %v5738 = vunpack.c.l.b16 %v5428
      %v5739 = vunpack.c.h.b16 %v5428
      %v5740 = vunpack.c.l.b16 %v5429
      %v5741 = vunpack.c.h.b16 %v5429
      %v5742 = vunpack.c.l.b16 %v5430
      %v5743 = vunpack.c.h.b16 %v5430
      %v5744 = vunpack.c.l.b16 %v5431
      %v5745 = vunpack.c.h.b16 %v5431
      %v5746 = vunpack.c.l.b16 %v5432
      %v5747 = vunpack.c.h.b16 %v5432
      %v5748 = vunpack.c.l.b16 %v5433
      %v5749 = vunpack.c.h.b16 %v5433
      %v5750 = vunpack.c.l.b16 %v5434
      %v5751 = vunpack.c.h.b16 %v5434
      %v5752 = vunpack.c.l.b16 %v5435
      %v5753 = vunpack.c.h.b16 %v5435
      %v5754 = vunpack.c.l.b16 %v5436
      %v5755 = vunpack.c.h.b16 %v5436
      %v5756 = vunpack.c.l.b16 %v5437
      %v5757 = vunpack.c.h.b16 %v5437
      %v5758 = vunpack.c.l.b16 %v5438
      %v5759 = vunpack.c.h.b16 %v5438
      %v5760 = vunpack.c.l.b16 %v5439
      %v5761 = vunpack.c.h.b16 %v5439
      %v5762 = vunpack.c.l.b16 %v5440
      %v5763 = vunpack.c.h.b16 %v5440
      %v5764 = vunpack.c.l.b16 %v5441
      %v5765 = vunpack.c.h.b16 %v5441
      %v5766 = vunpack.c.l.b16 %v5442
      %v5767 = vunpack.c.h.b16 %v5442
      %v5768 = vunpack.c.l.b16 %v5443
      %v5769 = vunpack.c.h.b16 %v5443
      %v5770 = vunpack.c.l.b16 %v5444
      %v5771 = vunpack.c.h.b16 %v5444
      %v5772 = vunpack.c.l.b16 %v5445
      %v5773 = vunpack.c.h.b16 %v5445
      %v5774 = vunpack.c.l.b16 %v5446
      %v5775 = vunpack.c.h.b16 %v5446
      %v5776 = vunpack.c.l.b16 %v5447
      %v5777 = vunpack.c.h.b16 %v5447
      %v5778 = vunpack.c.l.b16 %v5448
      %v5779 = vunpack.c.h.b16 %v5448
      %v5780 = vunpack.c.l.b16 %v5449
      %v5781 = vunpack.c.h.b16 %v5449
      %v5782 = vunpack.c.l.b16 %v5450
      %v5783 = vunpack.c.h.b16 %v5450
      %v5784 = vunpack.c.l.b16 %v5451
      %v5785 = vunpack.c.h.b16 %v5451
      %v5786 = vunpack.c.l.b16 %v5452
      %v5787 = vunpack.c.h.b16 %v5452
      %v5788 = vunpack.c.l.b16 %v5453
      %v5789 = vunpack.c.h.b16 %v5453
      %v5790 = vunpack.c.l.b16 %v5454
      %v5791 = vunpack.c.h.b16 %v5454
      %v5792 = vunpack.c.l.b16 %v5455
      %v5793 = vunpack.c.h.b16 %v5455
      %v5794 = vunpack.c.l.b16 %v5456
      %v5795 = vunpack.c.h.b16 %v5456
      %v5796 = vunpack.c.l.b16 %v5457
      %v5797 = vunpack.c.h.b16 %v5457
      %v5798 = vunpack.c.l.b16 %v5458
      %v5799 = vunpack.c.h.b16 %v5458
      %v5800 = vunpack.c.l.b16 %v5459
      %v5801 = vunpack.c.h.b16 %v5459
      %v5802 = vunpack.c.l.b16 %v5460
      %v5803 = vunpack.c.h.b16 %v5460
      %v5804 = vunpack.c.l.b16 %v5461
      %v5805 = vunpack.c.h.b16 %v5461
      %v5806 = vunpack.c.l.b16 %v5462
      %v5807 = vunpack.c.h.b16 %v5462
      %v5808 = vunpack.c.l.b16 %v5463
      %v5809 = vunpack.c.h.b16 %v5463
      %v5810 = vunpack.c.l.b16 %v5464
      %v5811 = vunpack.c.h.b16 %v5464
      %v5812 = vunpack.c.l.b16 %v5465
      %v5813 = vunpack.c.h.b16 %v5465
      %v5814 = vunpack.c.l.b16 %v5466
      %v5815 = vunpack.c.h.b16 %v5466
      %v5816 = vunpack.c.l.b16 %v5467
      %v5817 = vunpack.c.h.b16 %v5467
      %v5818 = vunpack.c.l.b16 %v5468
      %v5819 = vunpack.c.h.b16 %v5468
      %v5820 = vunpack.c.l.b16 %v5469
      %v5821 = vunpack.c.h.b16 %v5469
      %v5822 = vunpack.c.l.b16 %v5470
      %v5823 = vunpack.c.h.b16 %v5470
      %v5824 = vunpack.c.l.b16 %v5471
      %v5825 = vunpack.c.h.b16 %v5471
      %v5826 = vunpack.c.l.b16 %v5472
      %v5827 = vunpack.c.h.b16 %v5472
      %v5828 = vunpack.c.l.b16 %v5473
      %v5829 = vunpack.c.h.b16 %v5473
      %v5830 = vunpack.c.l.b16 %v5474
      %v5831 = vunpack.c.h.b16 %v5474
      %v5832 = vunpack.c.l.b16 %v5475
      %v5833 = vunpack.c.h.b16 %v5475
      %v5834 = vunpack.c.l.b16 %v5476
      %v5835 = vunpack.c.h.b16 %v5476
      %v5836 = vunpack.c.l.b16 %v5477
      %v5837 = vunpack.c.h.b16 %v5477
      %v5838 = vunpack.c.l.b16 %v5478
      %v5839 = vunpack.c.h.b16 %v5478
      %v5840 = vunpack.c.l.b16 %v5479
      %v5841 = vunpack.c.h.b16 %v5479
      %v5842 = vunpack.c.l.b16 %v5480
      %v5843 = vunpack.c.h.b16 %v5480
      %v5844 = vunpack.c.l.b16 %v5481
      %v5845 = vunpack.c.h.b16 %v5481
      %v5846 = vunpack.c.l.b16 %v5482
      %v5847 = vunpack.c.h.b16 %v5482
      %v5848 = vunpack.c.l.b16 %v5483
      %v5849 = vunpack.c.h.b16 %v5483
      %v5850 = vunpack.c.l.b16 %v5484
      %v5851 = vunpack.c.h.b16 %v5484
      %v5852 = vunpack.c.l.b16 %v5485
      %v5853 = vunpack.c.h.b16 %v5485
      %v5854 = vunpack.c.l.b16 %v5486
      %v5855 = vunpack.c.h.b16 %v5486
      %v5856 = vunpack.c.l.b16 %v5487
      %v5857 = vunpack.c.h.b16 %v5487
      %v5858 = vunpack.c.l.b16 %v5488
      %v5859 = vunpack.c.h.b16 %v5488
      %v5860 = vunpack.c.l.b16 %v5489
      %v5861 = vunpack.c.h.b16 %v5489
      %v5862 = vunpack.c.l.b16 %v5490
      %v5863 = vunpack.c.h.b16 %v5490
      %v5864 = vunpack.c.l.b16 %v5491
      %v5865 = vunpack.c.h.b16 %v5491
      %v5866 = vunpack.c.l.b16 %v5492
      %v5867 = vunpack.c.h.b16 %v5492
      %v5868 = vunpack.c.l.b16 %v5493
      %v5869 = vunpack.c.h.b16 %v5493
      %v5870 = vunpack.c.l.b16 %v5494
      %v5871 = vunpack.c.h.b16 %v5494
      %v5872 = vunpack.c.l.b16 %v5495
      %v5873 = vunpack.c.h.b16 %v5495
      %v5874 = vunpack.c.l.b16 %v5496
      %v5875 = vunpack.c.h.b16 %v5496
      %v5876 = vunpack.c.l.b16 %v5497
      %v5877 = vunpack.c.h.b16 %v5497
      %v5878 = vunpack.c.l.b16 %v5498
      %v5879 = vunpack.c.h.b16 %v5498
      %v5880 = vunpack.c.l.b16 %v5499
      %v5881 = vunpack.c.h.b16 %v5499
      %v5882 = vunpack.c.l.b16 %v5500
      %v5883 = vunpack.c.h.b16 %v5500
      %v5884 = vunpack.c.l.b16 %v5501
      %v5885 = vunpack.c.h.b16 %v5501
      %v5886 = vunpack.c.l.b16 %v5502
      %v5887 = vunpack.c.h.b16 %v5502
      %v5888 = vunpack.c.l.b16 %v5503
      %v5889 = vunpack.c.h.b16 %v5503
      %v5890 = vunpack.c.l.b16 %v5504
      %v5891 = vunpack.c.h.b16 %v5504
      %v5892 = vunpack.c.l.b16 %v5505
      %v5893 = vunpack.c.h.b16 %v5505
      %v5894 = vunpack.c.l.b16 %v5506
      %v5895 = vunpack.c.h.b16 %v5506
      %v5896 = vunpack.c.l.b16 %v5507
      %v5897 = vunpack.c.h.b16 %v5507
      %v5898 = vunpack.c.l.b16 %v5508
      %v5899 = vunpack.c.h.b16 %v5508
      %v5900 = vunpack.c.l.b16 %v5509
      %v5901 = vunpack.c.h.b16 %v5509
      %v5902 = vunpack.c.l.b16 %v5510
      %v5903 = vunpack.c.h.b16 %v5510
      %v5904 = vunpack.c.l.b16 %v5511
      %v5905 = vunpack.c.h.b16 %v5511
      %v5906 = vunpack.c.l.b16 %v5512
      %v5907 = vunpack.c.h.b16 %v5512
      %v5908 = vunpack.c.l.b16 %v5513
      %v5909 = vunpack.c.h.b16 %v5513
      %v5910 = vunpack.c.l.b16 %v5514
      %v5911 = vunpack.c.h.b16 %v5514
      %v5912 = vunpack.c.l.b16 %v5515
      %v5913 = vunpack.c.h.b16 %v5515
      %v5914 = vunpack.c.l.b16 %v5516
      %v5915 = vunpack.c.h.b16 %v5516
      %v5916 = vunpack.c.l.b16 %v5517
      %v5917 = vunpack.c.h.b16 %v5517
      %v5918 = vunpack.c.l.b16 %v5518
      %v5919 = vunpack.c.h.b16 %v5518
      %v5920 = vunpack.c.l.b16 %v5519
      %v5921 = vunpack.c.h.b16 %v5519
      %v5922 = vunpack.c.l.b16 %v5520
      %v5923 = vunpack.c.h.b16 %v5520
      %v5924 = vunpack.c.l.b16 %v5521
      %v5925 = vunpack.c.h.b16 %v5521
      %v5926 = vunpack.c.l.b16 %v5522
      %v5927 = vunpack.c.h.b16 %v5522
      %v5928 = vunpack.c.l.b16 %v5523
      %v5929 = vunpack.c.h.b16 %v5523
      %v5930 = vunpack.c.l.b16 %v5524
      %v5931 = vunpack.c.h.b16 %v5524
      %v5932 = vunpack.c.l.b16 %v5525
      %v5933 = vunpack.c.h.b16 %v5525
      %v5934 = vunpack.c.l.b16 %v5526
      %v5935 = vunpack.c.h.b16 %v5526
      %v5936 = vunpack.c.l.b16 %v5527
      %v5937 = vunpack.c.h.b16 %v5527
      %v5938 = vpack.c.b16 %v5686, %v5682
      %v5939 = vpack.c.b16 %v5687, %v5683
      %v5940 = vpack.c.b16 %v5688, %v5684
      %v5941 = vpack.c.b16 %v5689, %v5685
      %v5942 = vpack.c.b16 %v5694, %v5690
      %v5943 = vpack.c.b16 %v5695, %v5691
      %v5944 = vpack.c.b16 %v5696, %v5692
      %v5945 = vpack.c.b16 %v5697, %v5693
      %v5946 = vpack.c.b16 %v5702, %v5698
      %v5947 = vpack.c.b16 %v5703, %v5699
      %v5948 = vpack.c.b16 %v5704, %v5700
      %v5949 = vpack.c.b16 %v5705, %v5701
      %v5950 = vpack.c.b16 %v5710, %v5706
      %v5951 = vpack.c.b16 %v5711, %v5707
      %v5952 = vpack.c.b16 %v5712, %v5708
      %v5953 = vpack.c.b16 %v5713, %v5709
      %v5954 = vpack.c.b16 %v5718, %v5714
      %v5955 = vpack.c.b16 %v5719, %v5715
      %v5956 = vpack.c.b16 %v5720, %v5716
      %v5957 = vpack.c.b16 %v5721, %v5717
      %v5958 = vpack.c.b16 %v5726, %v5722
      %v5959 = vpack.c.b16 %v5727, %v5723
      %v5960 = vpack.c.b16 %v5728, %v5724
      %v5961 = vpack.c.b16 %v5729, %v5725
      %v5962 = vpack.c.b16 %v5734, %v5730
      %v5963 = vpack.c.b16 %v5735, %v5731
      %v5964 = vpack.c.b16 %v5736, %v5732
      %v5965 = vpack.c.b16 %v5737, %v5733
      %v5966 = vpack.c.b16 %v5742, %v5738
      %v5967 = vpack.c.b16 %v5743, %v5739
      %v5968 = vpack.c.b16 %v5744, %v5740
      %v5969 = vpack.c.b16 %v5745, %v5741
      %v5970 = vpack.c.b16 %v5750, %v5746
      %v5971 = vpack.c.b16 %v5751, %v5747
      %v5972 = vpack.c.b16 %v5752, %v5748
      %v5973 = vpack.c.b16 %v5753, %v5749
      %v5974 = vpack.c.b16 %v5758, %v5754
      %v5975 = vpack.c.b16 %v5759, %v5755
      %v5976 = vpack.c.b16 %v5760, %v5756
      %v5977 = vpack.c.b16 %v5761, %v5757
      %v5978 = vpack.c.b16 %v5766, %v5762
      %v5979 = vpack.c.b16 %v5767, %v5763
      %v5980 = vpack.c.b16 %v5768, %v5764
      %v5981 = vpack.c.b16 %v5769, %v5765
      %v5982 = vpack.c.b16 %v5774, %v5770
      %v5983 = vpack.c.b16 %v5775, %v5771
      %v5984 = vpack.c.b16 %v5776, %v5772
      %v5985 = vpack.c.b16 %v5777, %v5773
      %v5986 = vpack.c.b16 %v5782, %v5778
      %v5987 = vpack.c.b16 %v5783, %v5779
      %v5988 = vpack.c.b16 %v5784, %v5780
      %v5989 = vpack.c.b16 %v5785, %v5781
      %v5990 = vpack.c.b16 %v5790, %v5786
      %v5991 = vpack.c.b16 %v5791, %v5787
      %v5992 = vpack.c.b16 %v5792, %v5788
      %v5993 = vpack.c.b16 %v5793, %v5789
      %v5994 = vpack.c.b16 %v5798, %v5794
      %v5995 = vpack.c.b16 %v5799, %v5795
      %v5996 = vpack.c.b16 %v5800, %v5796
      %v5997 = vpack.c.b16 %v5801, %v5797
      %v5998 = vpack.c.b16 %v5806, %v5802
      %v5999 = vpack.c.b16 %v5807, %v5803
      %v6000 = vpack.c.b16 %v5808, %v5804
      %v6001 = vpack.c.b16 %v5809, %v5805
      %v6002 = vpack.c.b16 %v5814, %v5810
      %v6003 = vpack.c.b16 %v5815, %v5811
      %v6004 = vpack.c.b16 %v5816, %v5812
      %v6005 = vpack.c.b16 %v5817, %v5813
      %v6006 = vpack.c.b16 %v5822, %v5818
      %v6007 = vpack.c.b16 %v5823, %v5819
      %v6008 = vpack.c.b16 %v5824, %v5820
      %v6009 = vpack.c.b16 %v5825, %v5821
      %v6010 = vpack.c.b16 %v5830, %v5826
      %v6011 = vpack.c.b16 %v5831, %v5827
      %v6012 = vpack.c.b16 %v5832, %v5828
      %v6013 = vpack.c.b16 %v5833, %v5829
      %v6014 = vpack.c.b16 %v5838, %v5834
      %v6015 = vpack.c.b16 %v5839, %v5835
      %v6016 = vpack.c.b16 %v5840, %v5836
      %v6017 = vpack.c.b16 %v5841, %v5837
      %v6018 = vpack.c.b16 %v5846, %v5842
      %v6019 = vpack.c.b16 %v5847, %v5843
      %v6020 = vpack.c.b16 %v5848, %v5844
      %v6021 = vpack.c.b16 %v5849, %v5845
      %v6022 = vpack.c.b16 %v5854, %v5850
      %v6023 = vpack.c.b16 %v5855, %v5851
      %v6024 = vpack.c.b16 %v5856, %v5852
      %v6025 = vpack.c.b16 %v5857, %v5853
      %v6026 = vpack.c.b16 %v5862, %v5858
      %v6027 = vpack.c.b16 %v5863, %v5859
      %v6028 = vpack.c.b16 %v5864, %v5860
      %v6029 = vpack.c.b16 %v5865, %v5861
      %v6030 = vpack.c.b16 %v5870, %v5866
      %v6031 = vpack.c.b16 %v5871, %v5867
      %v6032 = vpack.c.b16 %v5872, %v5868
      %v6033 = vpack.c.b16 %v5873, %v5869
      %v6034 = vpack.c.b16 %v5878, %v5874
      %v6035 = vpack.c.b16 %v5879, %v5875
      %v6036 = vpack.c.b16 %v5880, %v5876
      %v6037 = vpack.c.b16 %v5881, %v5877
      %v6038 = vpack.c.b16 %v5886, %v5882
      %v6039 = vpack.c.b16 %v5887, %v5883
      %v6040 = vpack.c.b16 %v5888, %v5884
      %v6041 = vpack.c.b16 %v5889, %v5885
      %v6042 = vpack.c.b16 %v5894, %v5890
      %v6043 = vpack.c.b16 %v5895, %v5891
      %v6044 = vpack.c.b16 %v5896, %v5892
      %v6045 = vpack.c.b16 %v5897, %v5893
      %v6046 = vpack.c.b16 %v5902, %v5898
      %v6047 = vpack.c.b16 %v5903, %v5899
      %v6048 = vpack.c.b16 %v5904, %v5900
      %v6049 = vpack.c.b16 %v5905, %v5901
      %v6050 = vpack.c.b16 %v5910, %v5906
      %v6051 = vpack.c.b16 %v5911, %v5907
      %v6052 = vpack.c.b16 %v5912, %v5908
      %v6053 = vpack.c.b16 %v5913, %v5909
      %v6054 = vpack.c.b16 %v5918, %v5914
      %v6055 = vpack.c.b16 %v5919, %v5915
      %v6056 = vpack.c.b16 %v5920, %v5916
      %v6057 = vpack.c.b16 %v5921, %v5917
      %v6058 = vpack.c.b16 %v5926, %v5922
      %v6059 = vpack.c.b16 %v5927, %v5923
      %v6060 = vpack.c.b16 %v5928, %v5924
      %v6061 = vpack.c.b16 %v5929, %v5925
      %v6062 = vpack.c.b16 %v5934, %v5930
      %v6063 = vpack.c.b16 %v5935, %v5931
      %v6064 = vpack.c.b16 %v5936, %v5932
      %v6065 = vpack.c.b16 %v5937, %v5933
      %6194 = vmatprep.subr.bf16.mxu0 %v5939
      %6195 = vmatpush1.bf16.msra.mxu0 %v5938
      %6196 = vmatprep.subr.bf16.mxu0 %v5943
      %6197 = vmatpush1.bf16.msra.mxu0 %v5942
      %6198 = vmatprep.subr.bf16.mxu0 %v5947
      %6199 = vmatpush1.bf16.msra.mxu0 %v5946
      %6200 = vmatprep.subr.bf16.mxu0 %v5951
      %6201 = vmatpush1.bf16.msra.mxu0 %v5950
      %6202 = vmatprep.subr.bf16.mxu0 %v5955
      %6203 = vmatpush1.bf16.msra.mxu0 %v5954
      %6204 = vmatprep.subr.bf16.mxu0 %v5959
      %6205 = vmatpush1.bf16.msra.mxu0 %v5958
      %6206 = vmatprep.subr.bf16.mxu0 %v5963
      %6207 = vmatpush1.bf16.msra.mxu0 %v5962
      %6208 = vmatprep.subr.bf16.mxu0 %v5967
      %6209 = vmatpush1.bf16.msra.mxu0 %v5966
      %6210 = vmatprep.subr.bf16.mxu0 %v5971
      %6211 = vmatpush1.bf16.msra.mxu0 %v5970
      %6212 = vmatprep.subr.bf16.mxu0 %v5975
      %6213 = vmatpush1.bf16.msra.mxu0 %v5974
      %6214 = vmatprep.subr.bf16.mxu0 %v5979
      %6215 = vmatpush1.bf16.msra.mxu0 %v5978
      %6216 = vmatprep.subr.bf16.mxu0 %v5983
      %6217 = vmatpush1.bf16.msra.mxu0 %v5982
      %6218 = vmatprep.subr.bf16.mxu0 %v5987
      %6219 = vmatpush1.bf16.msra.mxu0 %v5986
      %6220 = vmatprep.subr.bf16.mxu0 %v5991
      %6221 = vmatpush1.bf16.msra.mxu0 %v5990
      %6222 = vmatprep.subr.bf16.mxu0 %v5995
      %6223 = vmatpush1.bf16.msra.mxu0 %v5994
      %6224 = vmatprep.subr.bf16.mxu0 %v5999
      %6225 = vmatpush1.bf16.msra.mxu0 %v5998
      %6226 = vmatprep.mubr.bf16.mxu0 %v5543
      %6227 = vmatmul.mubr.bf16.gmra.mrb[0].mxu0 %v5540
      %v6228 = vpop.f32.mrb[0].mxu0
      %v6229 = vadd.f32 0.0, %v6228
      %v6230 = vpop.f32.mrb[0].mxu0
      %v6231 = vadd.f32 0.0, %v6230
      %v6232 = vpop.f32.mrb[0].mxu0
      %v6233 = vadd.f32 0.0, %v6232
      %v6234 = vpop.f32.mrb[0].mxu0
      %v6235 = vadd.f32 0.0, %v6234
      %6236 = vdwg.mxu0
      %6237 = vmatprep.subr.bf16.mxu0 %v6003
      %6238 = vmatpush1.bf16.msra.mxu0 %v6002
      %6239 = vmatprep.subr.bf16.mxu0 %v6007
      %6240 = vmatpush1.bf16.msra.mxu0 %v6006
      %6241 = vmatprep.subr.bf16.mxu0 %v6011
      %6242 = vmatpush1.bf16.msra.mxu0 %v6010
      %6243 = vmatprep.subr.bf16.mxu0 %v6015
      %6244 = vmatpush1.bf16.msra.mxu0 %v6014
      %6245 = vmatprep.subr.bf16.mxu0 %v6019
      %6246 = vmatpush1.bf16.msra.mxu0 %v6018
      %6247 = vmatprep.subr.bf16.mxu0 %v6023
      %6248 = vmatpush1.bf16.msra.mxu0 %v6022
      %6249 = vmatprep.subr.bf16.mxu0 %v6027
      %6250 = vmatpush1.bf16.msra.mxu0 %v6026
      %6251 = vmatprep.subr.bf16.mxu0 %v6031
      %6252 = vmatpush1.bf16.msra.mxu0 %v6030
      %6253 = vmatprep.subr.bf16.mxu0 %v6035
      %6254 = vmatpush1.bf16.msra.mxu0 %v6034
      %6255 = vmatprep.subr.bf16.mxu0 %v6039
      %6256 = vmatpush1.bf16.msra.mxu0 %v6038
      %6257 = vmatprep.subr.bf16.mxu0 %v6043
      %6258 = vmatpush1.bf16.msra.mxu0 %v6042
      %6259 = vmatprep.subr.bf16.mxu0 %v6047
      %6260 = vmatpush1.bf16.msra.mxu0 %v6046
      %6261 = vmatprep.subr.bf16.mxu0 %v6051
      %6262 = vmatpush1.bf16.msra.mxu0 %v6050
      %6263 = vmatprep.subr.bf16.mxu0 %v6055
      %6264 = vmatpush1.bf16.msra.mxu0 %v6054
      %6265 = vmatprep.subr.bf16.mxu0 %v6059
      %6266 = vmatpush1.bf16.msra.mxu0 %v6058
      %6267 = vmatprep.subr.bf16.mxu0 %v6063
      %6268 = vmatpush1.bf16.msra.mxu0 %v6062
      %6269 = vmatprep.mubr.bf16.mxu0 %v5549
      %6270 = vmatmul.mubr.bf16.gmra.mrb[0].mxu0 %v5546
      %v6271 = vpop.f32.mrb[0].mxu0
      %v6272 = vadd.f32 %v6229, %v6271
      %v6273 = vpop.f32.mrb[0].mxu0
      %v6274 = vadd.f32 %v6231, %v6273
      %v6275 = vpop.f32.mrb[0].mxu0
      %v6276 = vadd.f32 %v6233, %v6275
      %v6277 = vpop.f32.mrb[0].mxu0
      %v6278 = vadd.f32 %v6235, %v6277
      %6279 = vdwg.mxu0
      %6280 = vmatprep.subr.bf16.mxu0 %v5941
      %6281 = vmatpush1.bf16.msra.mxu0 %v5940
      %6282 = vmatprep.subr.bf16.mxu0 %v5945
      %6283 = vmatpush1.bf16.msra.mxu0 %v5944
      %6284 = vmatprep.subr.bf16.mxu0 %v5949
      %6285 = vmatpush1.bf16.msra.mxu0 %v5948
      %6286 = vmatprep.subr.bf16.mxu0 %v5953
      %6287 = vmatpush1.bf16.msra.mxu0 %v5952
      %6288 = vmatprep.subr.bf16.mxu0 %v5957
      %6289 = vmatpush1.bf16.msra.mxu0 %v5956
      %6290 = vmatprep.subr.bf16.mxu0 %v5961
      %6291 = vmatpush1.bf16.msra.mxu0 %v5960
      %6292 = vmatprep.subr.bf16.mxu0 %v5965
      %6293 = vmatpush1.bf16.msra.mxu0 %v5964
      %6294 = vmatprep.subr.bf16.mxu0 %v5969
      %6295 = vmatpush1.bf16.msra.mxu0 %v5968
      %6296 = vmatprep.subr.bf16.mxu0 %v5973
      %6297 = vmatpush1.bf16.msra.mxu0 %v5972
      %6298 = vmatprep.subr.bf16.mxu0 %v5977
      %6299 = vmatpush1.bf16.msra.mxu0 %v5976
      %6300 = vmatprep.subr.bf16.mxu0 %v5981
      %6301 = vmatpush1.bf16.msra.mxu0 %v5980
      %6302 = vmatprep.subr.bf16.mxu0 %v5985
      %6303 = vmatpush1.bf16.msra.mxu0 %v5984
      %6304 = vmatprep.subr.bf16.mxu0 %v5989
      %6305 = vmatpush1.bf16.msra.mxu0 %v5988
      %6306 = vmatprep.subr.bf16.mxu0 %v5993
      %6307 = vmatpush1.bf16.msra.mxu0 %v5992
      %6308 = vmatprep.subr.bf16.mxu0 %v5997
      %6309 = vmatpush1.bf16.msra.mxu0 %v5996
      %6310 = vmatprep.subr.bf16.mxu0 %v6001
      %6311 = vmatpush1.bf16.msra.mxu0 %v6000
      %6312 = vmatprep.mubr.bf16.mxu0 %v5543
      %6313 = vmatmul.mubr.bf16.gmra.mrb[0].mxu0 %v5540
      %v6314 = vpop.f32.mrb[0].mxu0
      %v6315 = vadd.f32 0.0, %v6314
      %v6316 = vpop.f32.mrb[0].mxu0
      %v6317 = vadd.f32 0.0, %v6316
      %v6318 = vpop.f32.mrb[0].mxu0
      %v6319 = vadd.f32 0.0, %v6318
      %v6320 = vpop.f32.mrb[0].mxu0
      %v6321 = vadd.f32 0.0, %v6320
      %6322 = vdwg.mxu0
      %6323 = vmatprep.subr.bf16.mxu0 %v6005
      %6324 = vmatpush1.bf16.msra.mxu0 %v6004
      %6325 = vmatprep.subr.bf16.mxu0 %v6009
      %6326 = vmatpush1.bf16.msra.mxu0 %v6008
      %6327 = vmatprep.subr.bf16.mxu0 %v6013
      %6328 = vmatpush1.bf16.msra.mxu0 %v6012
      %6329 = vmatprep.subr.bf16.mxu0 %v6017
      %6330 = vmatpush1.bf16.msra.mxu0 %v6016
      %6331 = vmatprep.subr.bf16.mxu0 %v6021
      %6332 = vmatpush1.bf16.msra.mxu0 %v6020
      %6333 = vmatprep.subr.bf16.mxu0 %v6025
      %6334 = vmatpush1.bf16.msra.mxu0 %v6024
      %6335 = vmatprep.subr.bf16.mxu0 %v6029
      %6336 = vmatpush1.bf16.msra.mxu0 %v6028
      %6337 = vmatprep.subr.bf16.mxu0 %v6033
      %6338 = vmatpush1.bf16.msra.mxu0 %v6032
      %6339 = vmatprep.subr.bf16.mxu0 %v6037
      %6340 = vmatpush1.bf16.msra.mxu0 %v6036
      %6341 = vmatprep.subr.bf16.mxu0 %v6041
      %6342 = vmatpush1.bf16.msra.mxu0 %v6040
      %6343 = vmatprep.subr.bf16.mxu0 %v6045
      %6344 = vmatpush1.bf16.msra.mxu0 %v6044
      %6345 = vmatprep.subr.bf16.mxu0 %v6049
      %6346 = vmatpush1.bf16.msra.mxu0 %v6048
      %6347 = vmatprep.subr.bf16.mxu0 %v6053
      %6348 = vmatpush1.bf16.msra.mxu0 %v6052
      %6349 = vmatprep.subr.bf16.mxu0 %v6057
      %6350 = vmatpush1.bf16.msra.mxu0 %v6056
      %6351 = vmatprep.subr.bf16.mxu0 %v6061
      %6352 = vmatpush1.bf16.msra.mxu0 %v6060
      %6353 = vmatprep.subr.bf16.mxu0 %v6065
      %6354 = vmatpush1.bf16.msra.mxu0 %v6064
      %6355 = vmatprep.mubr.bf16.mxu0 %v5549
      %6356 = vmatmul.mubr.bf16.gmra.mrb[0].mxu0 %v5546
      %v6357 = vpop.f32.mrb[0].mxu0
      %v6358 = vadd.f32 %v6315, %v6357
      %v6359 = vpop.f32.mrb[0].mxu0
      %v6360 = vadd.f32 %v6317, %v6359
      %v6361 = vpop.f32.mrb[0].mxu0
      %v6362 = vadd.f32 %v6319, %v6361
      %v6363 = vpop.f32.mrb[0].mxu0
      %v6364 = vadd.f32 %v6321, %v6363
      %6365 = vdwg.mxu0
      %v6366 = vadd.f32 %v5303, %v6272
      %v6367 = vadd.f32 %v5305, %v6274
      %v6368 = vadd.f32 %v5389, %v6358
      %v6369 = vadd.f32 %v5391, %v6360
      %v6370 = vadd.f32 %v5307, %v6276
      %v6371 = vadd.f32 %v5309, %v6278
      %v6372 = vadd.f32 %v5393, %v6362
      %v6373 = vadd.f32 %v5395, %v6364
      %v6374 = vld [vmem:[%s4] sm:$0xf]
      %v6376 = vlaneseq
      %v6377 = vshrl.u32 %v6376, 7
      %v6378 = vsub.s32 0, %v6377
      %v6379 = vrot.slane %v6374, %v6378
      %v6380 = vlaneseq
      %v6381 = vshrl.u32 %v6380, 7
      %v6382 = vsub.s32 1, %v6381
      %v6383 = vrot.slane %v6374, %v6382
      %v6384 = vlaneseq
      %v6385 = vshrl.u32 %v6384, 7
      %v6386 = vsub.s32 2, %v6385
      %v6387 = vrot.slane %v6374, %v6386
      %v6388 = vlaneseq
      %v6389 = vshrl.u32 %v6388, 7
      %v6390 = vsub.s32 3, %v6389
      %v6391 = vrot.slane %v6374, %v6390
      %v6396 = vadd.f32 %v6366, %v6379
      %v6397 = vadd.f32 %v6367, %v6383
      %v6398 = vadd.f32 %v6368, %v6387
      %v6399 = vadd.f32 %v6369, %v6391
      %v6400 = vadd.f32 %v6370, %v6379
      %v6401 = vadd.f32 %v6371, %v6383
      %v6402 = vadd.f32 %v6372, %v6387
      %v6403 = vadd.f32 %v6373, %v6391
      %v6404 = vunpack.c.l.bf16 %v304
      %v6405 = vunpack.c.h.bf16 %v304
      %v6406 = vunpack.c.l.bf16 %v305
      %v6407 = vunpack.c.h.bf16 %v305
      %v6408 = vunpack.c.l.bf16 %v306
      %v6409 = vunpack.c.h.bf16 %v306
      %v6410 = vunpack.c.l.bf16 %v307
      %v6411 = vunpack.c.h.bf16 %v307
      %v6412 = vadd.f32 %v6396, %v6404
      %v6413 = vadd.f32 %v6397, %v6405
      %v6414 = vadd.f32 %v6398, %v6406
      %v6415 = vadd.f32 %v6399, %v6407
      %v6416 = vadd.f32 %v6400, %v6408
      %v6417 = vadd.f32 %v6401, %v6409
      %v6418 = vadd.f32 %v6402, %v6410
      %v6419 = vadd.f32 %v6403, %v6411
      %v6420 = vpack.c.bf16 %v6416, %v6412
      %v6421 = vpack.c.bf16 %v6417, %v6413
      %v6422 = vpack.c.bf16 %v6418, %v6414
      %v6423 = vpack.c.bf16 %v6419, %v6415
      %v6428 = vunpack.c.l.b16 %v6420
      %v6429 = vunpack.c.l.b16 %v6421
      %v6430 = vunpack.c.l.b16 %v6422
      %v6431 = vunpack.c.l.b16 %v6423
      %v6432 = vunpack.c.h.b16 %v6420
      %v6433 = vunpack.c.h.b16 %v6421
      %v6434 = vunpack.c.h.b16 %v6422
      %v6435 = vunpack.c.h.b16 %v6423
      %v6436 = vpack.c.b16 %v6429, %v6428
      %v6437 = vpack.c.b16 %v6431, %v6430
      %v6438 = vpack.c.b16 %v6433, %v6432
      %v6439 = vpack.c.b16 %v6435, %v6434
      %v6441 = vshrl.u32 %v6436, 16
      %v6443 = vrot.slane %v6441, 7
      %v6444 = vshll.u32 %v6436, 16
      %v6446 = vor.u32 %v6443, %v6444
      %v6448 = vshrl.u32 %v6437, 16
      %v6450 = vrot.slane %v6448, 7
      %v6451 = vshll.u32 %v6437, 16
      %v6453 = vor.u32 %v6450, %v6451
      %v6454 = vrot.slane %v6443, 4
      %v6456 = vshrl.u32 %v6438, 16
      %v6458 = vrot.slane %v6456, 7
      %v6459 = vshll.u32 %v6438, 16
      %v6461 = vor.u32 %v6458, %v6459
      %v6462 = vsel %vm309, %v6454, %v6461
      %v6463 = vrot.slane %v6450, 4
      %v6465 = vshrl.u32 %v6439, 16
      %v6467 = vrot.slane %v6465, 7
      %v6468 = vshll.u32 %v6439, 16
      %v6470 = vor.u32 %v6467, %v6468
      %v6471 = vsel %vm309, %v6463, %v6470
      %v6472 = vrot.slane %v6458, 4
      %v6473 = vrot.slane %v6467, 4
      %v6480 = vsel %vm354, %v6446, %v3428
      %6481 = vst [vmem:[#allocation2] sm:$0xff] %v6480
      %v6482 = vld [vmem:[#allocation2 + $0x8] sm:$0xff]
      %v6483 = vsel %vm354, %v6453, %v6482
      %6484 = vst [vmem:[#allocation2 + $0x8] sm:$0xff] %v6483
      %6485 = vst [vmem:[#allocation2 + $0x10] sm:$0xff] %v6462
      %6486 = vst [vmem:[#allocation2 + $0x18] sm:$0xff] %v6471
      %v6487 = vld [vmem:[#allocation2 + $0x20] sm:$0x11]
      %v6488 = vsel %vm286, %v6472, %v6487
      %6489 = vst [vmem:[#allocation2 + $0x20] sm:$0x11] %v6488
      %v6490 = vld [vmem:[#allocation2 + $0x28] sm:$0x11]
      %v6491 = vsel %vm286, %v6473, %v6490
      %6492 = vst [vmem:[#allocation2 + $0x28] sm:$0x11] %v6491
      %v6493 = vld [vmem:[#allocation2] sm:$0xff]
      %v6494 = vld [vmem:[#allocation2 + $0x8] sm:$0xff]
      %v6495 = vld [vmem:[#allocation2 + $0x10] sm:$0xff]
      %v6496 = vld [vmem:[#allocation2 + $0x18] sm:$0xff]
      %v6497 = vld [vmem:[%s5] sm:$0xff]
      %v6498 = vld [vmem:[%s5 + $0x8] sm:$0xff]
      %v6499 = vld [vmem:[%s5 + $0x10] sm:$0xff]
      %v6500 = vld [vmem:[%s5 + $0x18] sm:$0xff]
      %v6501 = vld [vmem:[%s5 + $0x20] sm:$0xff]
      %v6502 = vld [vmem:[%s5 + $0x28] sm:$0xff]
      %v6503 = vld [vmem:[%s5 + $0x30] sm:$0xff]
      %v6504 = vld [vmem:[%s5 + $0x38] sm:$0xff]
      %v6505 = vld [vmem:[%s5 + $0x40] sm:$0xff]
      %v6506 = vld [vmem:[%s5 + $0x48] sm:$0xff]
      %v6507 = vld [vmem:[%s5 + $0x50] sm:$0xff]
      %v6508 = vld [vmem:[%s5 + $0x58] sm:$0xff]
      %v6509 = vld [vmem:[%s5 + $0x60] sm:$0xff]
      %v6510 = vld [vmem:[%s5 + $0x68] sm:$0xff]
      %v6511 = vld [vmem:[%s5 + $0x70] sm:$0xff]
      %v6512 = vld [vmem:[%s5 + $0x78] sm:$0xff]
      %v6513 = vld [vmem:[%s5 + $0x80] sm:$0xff]
      %v6514 = vld [vmem:[%s5 + $0x88] sm:$0xff]
      %v6515 = vld [vmem:[%s5 + $0x90] sm:$0xff]
      %v6516 = vld [vmem:[%s5 + $0x98] sm:$0xff]
      %v6517 = vld [vmem:[%s5 + $0xa0] sm:$0xff]
      %v6518 = vld [vmem:[%s5 + $0xa8] sm:$0xff]
      %v6519 = vld [vmem:[%s5 + $0xb0] sm:$0xff]
      %v6520 = vld [vmem:[%s5 + $0xb8] sm:$0xff]
      %v6521 = vld [vmem:[%s5 + $0xc0] sm:$0xff]
      %v6522 = vld [vmem:[%s5 + $0xc8] sm:$0xff]
      %v6523 = vld [vmem:[%s5 + $0xd0] sm:$0xff]
      %v6524 = vld [vmem:[%s5 + $0xd8] sm:$0xff]
      %v6525 = vld [vmem:[%s5 + $0xe0] sm:$0xff]
      %v6526 = vld [vmem:[%s5 + $0xe8] sm:$0xff]
      %v6527 = vld [vmem:[%s5 + $0xf0] sm:$0xff]
      %v6528 = vld [vmem:[%s5 + $0xf8] sm:$0xff]
      %v6529 = vld [vmem:[%s5 + $0x100] sm:$0xff]
      %v6530 = vld [vmem:[%s5 + $0x108] sm:$0xff]
      %v6531 = vld [vmem:[%s5 + $0x110] sm:$0xff]
      %v6532 = vld [vmem:[%s5 + $0x118] sm:$0xff]
      %v6533 = vld [vmem:[%s5 + $0x120] sm:$0xff]
      %v6534 = vld [vmem:[%s5 + $0x128] sm:$0xff]
      %v6535 = vld [vmem:[%s5 + $0x130] sm:$0xff]
      %v6536 = vld [vmem:[%s5 + $0x138] sm:$0xff]
      %v6537 = vld [vmem:[%s5 + $0x140] sm:$0xff]
      %v6538 = vld [vmem:[%s5 + $0x148] sm:$0xff]
      %v6539 = vld [vmem:[%s5 + $0x150] sm:$0xff]
      %v6540 = vld [vmem:[%s5 + $0x158] sm:$0xff]
      %v6541 = vld [vmem:[%s5 + $0x160] sm:$0xff]
      %v6542 = vld [vmem:[%s5 + $0x168] sm:$0xff]
      %v6543 = vld [vmem:[%s5 + $0x170] sm:$0xff]
      %v6544 = vld [vmem:[%s5 + $0x178] sm:$0xff]
      %v6545 = vld [vmem:[%s5 + $0x180] sm:$0xff]
      %v6546 = vld [vmem:[%s5 + $0x188] sm:$0xff]
      %v6547 = vld [vmem:[%s5 + $0x190] sm:$0xff]
      %v6548 = vld [vmem:[%s5 + $0x198] sm:$0xff]
      %v6549 = vld [vmem:[%s5 + $0x1a0] sm:$0xff]
      %v6550 = vld [vmem:[%s5 + $0x1a8] sm:$0xff]
      %v6551 = vld [vmem:[%s5 + $0x1b0] sm:$0xff]
      %v6552 = vld [vmem:[%s5 + $0x1b8] sm:$0xff]
      %v6553 = vld [vmem:[%s5 + $0x1c0] sm:$0xff]
      %v6554 = vld [vmem:[%s5 + $0x1c8] sm:$0xff]
      %v6555 = vld [vmem:[%s5 + $0x1d0] sm:$0xff]
      %v6556 = vld [vmem:[%s5 + $0x1d8] sm:$0xff]
      %v6557 = vld [vmem:[%s5 + $0x1e0] sm:$0xff]
      %v6558 = vld [vmem:[%s5 + $0x1e8] sm:$0xff]
      %v6559 = vld [vmem:[%s5 + $0x1f0] sm:$0xff]
      %v6560 = vld [vmem:[%s5 + $0x1f8] sm:$0xff]
      %v6561 = vld [vmem:[%s5 + $0x200] sm:$0xff]
      %v6562 = vld [vmem:[%s5 + $0x208] sm:$0xff]
      %v6563 = vld [vmem:[%s5 + $0x210] sm:$0xff]
      %v6564 = vld [vmem:[%s5 + $0x218] sm:$0xff]
      %v6565 = vld [vmem:[%s5 + $0x220] sm:$0xff]
      %v6566 = vld [vmem:[%s5 + $0x228] sm:$0xff]
      %v6567 = vld [vmem:[%s5 + $0x230] sm:$0xff]
      %v6568 = vld [vmem:[%s5 + $0x238] sm:$0xff]
      %v6569 = vld [vmem:[%s5 + $0x240] sm:$0xff]
      %v6570 = vld [vmem:[%s5 + $0x248] sm:$0xff]
      %v6571 = vld [vmem:[%s5 + $0x250] sm:$0xff]
      %v6572 = vld [vmem:[%s5 + $0x258] sm:$0xff]
      %v6573 = vld [vmem:[%s5 + $0x260] sm:$0xff]
      %v6574 = vld [vmem:[%s5 + $0x268] sm:$0xff]
      %v6575 = vld [vmem:[%s5 + $0x270] sm:$0xff]
      %v6576 = vld [vmem:[%s5 + $0x278] sm:$0xff]
      %v6577 = vld [vmem:[%s5 + $0x280] sm:$0xff]
      %v6578 = vld [vmem:[%s5 + $0x288] sm:$0xff]
      %v6579 = vld [vmem:[%s5 + $0x290] sm:$0xff]
      %v6580 = vld [vmem:[%s5 + $0x298] sm:$0xff]
      %v6581 = vld [vmem:[%s5 + $0x2a0] sm:$0xff]
      %v6582 = vld [vmem:[%s5 + $0x2a8] sm:$0xff]
      %v6583 = vld [vmem:[%s5 + $0x2b0] sm:$0xff]
      %v6584 = vld [vmem:[%s5 + $0x2b8] sm:$0xff]
      %v6585 = vld [vmem:[%s5 + $0x2c0] sm:$0xff]
      %v6586 = vld [vmem:[%s5 + $0x2c8] sm:$0xff]
      %v6587 = vld [vmem:[%s5 + $0x2d0] sm:$0xff]
      %v6588 = vld [vmem:[%s5 + $0x2d8] sm:$0xff]
      %v6589 = vld [vmem:[%s5 + $0x2e0] sm:$0xff]
      %v6590 = vld [vmem:[%s5 + $0x2e8] sm:$0xff]
      %v6591 = vld [vmem:[%s5 + $0x2f0] sm:$0xff]
      %v6592 = vld [vmem:[%s5 + $0x2f8] sm:$0xff]
      %v6593 = vld [vmem:[%s5 + $0x300] sm:$0xff]
      %v6594 = vld [vmem:[%s5 + $0x308] sm:$0xff]
      %v6595 = vld [vmem:[%s5 + $0x310] sm:$0xff]
      %v6596 = vld [vmem:[%s5 + $0x318] sm:$0xff]
      %v6597 = vld [vmem:[%s5 + $0x320] sm:$0xff]
      %v6598 = vld [vmem:[%s5 + $0x328] sm:$0xff]
      %v6599 = vld [vmem:[%s5 + $0x330] sm:$0xff]
      %v6600 = vld [vmem:[%s5 + $0x338] sm:$0xff]
      %v6601 = vld [vmem:[%s5 + $0x340] sm:$0xff]
      %v6602 = vld [vmem:[%s5 + $0x348] sm:$0xff]
      %v6603 = vld [vmem:[%s5 + $0x350] sm:$0xff]
      %v6604 = vld [vmem:[%s5 + $0x358] sm:$0xff]
      %v6605 = vld [vmem:[%s5 + $0x360] sm:$0xff]
      %v6606 = vld [vmem:[%s5 + $0x368] sm:$0xff]
      %v6607 = vld [vmem:[%s5 + $0x370] sm:$0xff]
      %v6608 = vld [vmem:[%s5 + $0x378] sm:$0xff]
      %v6609 = vld [vmem:[%s5 + $0x380] sm:$0xff]
      %v6610 = vld [vmem:[%s5 + $0x388] sm:$0xff]
      %v6611 = vld [vmem:[%s5 + $0x390] sm:$0xff]
      %v6612 = vld [vmem:[%s5 + $0x398] sm:$0xff]
      %v6613 = vld [vmem:[%s5 + $0x3a0] sm:$0xff]
      %v6614 = vld [vmem:[%s5 + $0x3a8] sm:$0xff]
      %v6615 = vld [vmem:[%s5 + $0x3b0] sm:$0xff]
      %v6616 = vld [vmem:[%s5 + $0x3b8] sm:$0xff]
      %v6617 = vld [vmem:[%s5 + $0x3c0] sm:$0xff]
      %v6618 = vld [vmem:[%s5 + $0x3c8] sm:$0xff]
      %v6619 = vld [vmem:[%s5 + $0x3d0] sm:$0xff]
      %v6620 = vld [vmem:[%s5 + $0x3d8] sm:$0xff]
      %v6621 = vld [vmem:[%s5 + $0x3e0] sm:$0xff]
      %v6622 = vld [vmem:[%s5 + $0x3e8] sm:$0xff]
      %v6623 = vld [vmem:[%s5 + $0x3f0] sm:$0xff]
      %v6624 = vld [vmem:[%s5 + $0x3f8] sm:$0xff]
      %v6625 = vld [vmem:[#allocation2 + $0x20] sm:$0x11]
      %v6626 = vld [vmem:[#allocation2 + $0x28] sm:$0x11]
      %s6627 = scalar_lea.vmem %s5, 1024
      %v6628 = vld [vmem:[%s6627] sm:$0xff]
      %v6629 = vld [vmem:[%s6627 + $0x8] sm:$0xff]
      %v6630 = vld [vmem:[%s6627 + $0x10] sm:$0xff]
      %v6631 = vld [vmem:[%s6627 + $0x18] sm:$0xff]
      %v6632 = vld [vmem:[%s6627 + $0x20] sm:$0xff]
      %v6633 = vld [vmem:[%s6627 + $0x28] sm:$0xff]
      %v6634 = vld [vmem:[%s6627 + $0x30] sm:$0xff]
      %v6635 = vld [vmem:[%s6627 + $0x38] sm:$0xff]
      %v6636 = vld [vmem:[%s6627 + $0x40] sm:$0xff]
      %v6637 = vld [vmem:[%s6627 + $0x48] sm:$0xff]
      %v6638 = vld [vmem:[%s6627 + $0x50] sm:$0xff]
      %v6639 = vld [vmem:[%s6627 + $0x58] sm:$0xff]
      %v6640 = vld [vmem:[%s6627 + $0x60] sm:$0xff]
      %v6641 = vld [vmem:[%s6627 + $0x68] sm:$0xff]
      %v6642 = vld [vmem:[%s6627 + $0x70] sm:$0xff]
      %v6643 = vld [vmem:[%s6627 + $0x78] sm:$0xff]
      %v6644 = vld [vmem:[%s6627 + $0x80] sm:$0xff]
      %v6645 = vld [vmem:[%s6627 + $0x88] sm:$0xff]
      %v6646 = vld [vmem:[%s6627 + $0x90] sm:$0xff]
      %v6647 = vld [vmem:[%s6627 + $0x98] sm:$0xff]
      %v6648 = vld [vmem:[%s6627 + $0xa0] sm:$0xff]
      %v6649 = vld [vmem:[%s6627 + $0xa8] sm:$0xff]
      %v6650 = vld [vmem:[%s6627 + $0xb0] sm:$0xff]
      %v6651 = vld [vmem:[%s6627 + $0xb8] sm:$0xff]
      %v6652 = vld [vmem:[%s6627 + $0xc0] sm:$0xff]
      %v6653 = vld [vmem:[%s6627 + $0xc8] sm:$0xff]
      %v6654 = vld [vmem:[%s6627 + $0xd0] sm:$0xff]
      %v6655 = vld [vmem:[%s6627 + $0xd8] sm:$0xff]
      %v6656 = vld [vmem:[%s6627 + $0xe0] sm:$0xff]
      %v6657 = vld [vmem:[%s6627 + $0xe8] sm:$0xff]
      %v6658 = vld [vmem:[%s6627 + $0xf0] sm:$0xff]
      %v6659 = vld [vmem:[%s6627 + $0xf8] sm:$0xff]
      %v6660 = vld [vmem:[%s6627 + $0x100] sm:$0xff]
      %v6661 = vld [vmem:[%s6627 + $0x108] sm:$0xff]
      %v6662 = vld [vmem:[%s6627 + $0x110] sm:$0xff]
      %v6663 = vld [vmem:[%s6627 + $0x118] sm:$0xff]
      %v6664 = vld [vmem:[%s6627 + $0x120] sm:$0xff]
      %v6665 = vld [vmem:[%s6627 + $0x128] sm:$0xff]
      %v6666 = vld [vmem:[%s6627 + $0x130] sm:$0xff]
      %v6667 = vld [vmem:[%s6627 + $0x138] sm:$0xff]
      %v6668 = vld [vmem:[%s6627 + $0x140] sm:$0xff]
      %v6669 = vld [vmem:[%s6627 + $0x148] sm:$0xff]
      %v6670 = vld [vmem:[%s6627 + $0x150] sm:$0xff]
      %v6671 = vld [vmem:[%s6627 + $0x158] sm:$0xff]
      %v6672 = vld [vmem:[%s6627 + $0x160] sm:$0xff]
      %v6673 = vld [vmem:[%s6627 + $0x168] sm:$0xff]
      %v6674 = vld [vmem:[%s6627 + $0x170] sm:$0xff]
      %v6675 = vld [vmem:[%s6627 + $0x178] sm:$0xff]
      %v6676 = vld [vmem:[%s6627 + $0x180] sm:$0xff]
      %v6677 = vld [vmem:[%s6627 + $0x188] sm:$0xff]
      %v6678 = vld [vmem:[%s6627 + $0x190] sm:$0xff]
      %v6679 = vld [vmem:[%s6627 + $0x198] sm:$0xff]
      %v6680 = vld [vmem:[%s6627 + $0x1a0] sm:$0xff]
      %v6681 = vld [vmem:[%s6627 + $0x1a8] sm:$0xff]
      %v6682 = vld [vmem:[%s6627 + $0x1b0] sm:$0xff]
      %v6683 = vld [vmem:[%s6627 + $0x1b8] sm:$0xff]
      %v6684 = vld [vmem:[%s6627 + $0x1c0] sm:$0xff]
      %v6685 = vld [vmem:[%s6627 + $0x1c8] sm:$0xff]
      %v6686 = vld [vmem:[%s6627 + $0x1d0] sm:$0xff]
      %v6687 = vld [vmem:[%s6627 + $0x1d8] sm:$0xff]
      %v6688 = vld [vmem:[%s6627 + $0x1e0] sm:$0xff]
      %v6689 = vld [vmem:[%s6627 + $0x1e8] sm:$0xff]
      %v6690 = vld [vmem:[%s6627 + $0x1f0] sm:$0xff]
      %v6691 = vld [vmem:[%s6627 + $0x1f8] sm:$0xff]
      %v6692 = vld [vmem:[%s6627 + $0x200] sm:$0xff]
      %v6693 = vld [vmem:[%s6627 + $0x208] sm:$0xff]
      %v6694 = vld [vmem:[%s6627 + $0x210] sm:$0xff]
      %v6695 = vld [vmem:[%s6627 + $0x218] sm:$0xff]
      %v6696 = vld [vmem:[%s6627 + $0x220] sm:$0xff]
      %v6697 = vld [vmem:[%s6627 + $0x228] sm:$0xff]
      %v6698 = vld [vmem:[%s6627 + $0x230] sm:$0xff]
      %v6699 = vld [vmem:[%s6627 + $0x238] sm:$0xff]
      %v6700 = vld [vmem:[%s6627 + $0x240] sm:$0xff]
      %v6701 = vld [vmem:[%s6627 + $0x248] sm:$0xff]
      %v6702 = vld [vmem:[%s6627 + $0x250] sm:$0xff]
      %v6703 = vld [vmem:[%s6627 + $0x258] sm:$0xff]
      %v6704 = vld [vmem:[%s6627 + $0x260] sm:$0xff]
      %v6705 = vld [vmem:[%s6627 + $0x268] sm:$0xff]
      %v6706 = vld [vmem:[%s6627 + $0x270] sm:$0xff]
      %v6707 = vld [vmem:[%s6627 + $0x278] sm:$0xff]
      %v6708 = vld [vmem:[%s6627 + $0x280] sm:$0xff]
      %v6709 = vld [vmem:[%s6627 + $0x288] sm:$0xff]
      %v6710 = vld [vmem:[%s6627 + $0x290] sm:$0xff]
      %v6711 = vld [vmem:[%s6627 + $0x298] sm:$0xff]
      %v6712 = vld [vmem:[%s6627 + $0x2a0] sm:$0xff]
      %v6713 = vld [vmem:[%s6627 + $0x2a8] sm:$0xff]
      %v6714 = vld [vmem:[%s6627 + $0x2b0] sm:$0xff]
      %v6715 = vld [vmem:[%s6627 + $0x2b8] sm:$0xff]
      %v6716 = vld [vmem:[%s6627 + $0x2c0] sm:$0xff]
      %v6717 = vld [vmem:[%s6627 + $0x2c8] sm:$0xff]
      %v6718 = vld [vmem:[%s6627 + $0x2d0] sm:$0xff]
      %v6719 = vld [vmem:[%s6627 + $0x2d8] sm:$0xff]
      %v6720 = vld [vmem:[%s6627 + $0x2e0] sm:$0xff]
      %v6721 = vld [vmem:[%s6627 + $0x2e8] sm:$0xff]
      %v6722 = vld [vmem:[%s6627 + $0x2f0] sm:$0xff]
      %v6723 = vld [vmem:[%s6627 + $0x2f8] sm:$0xff]
      %v6724 = vld [vmem:[%s6627 + $0x300] sm:$0xff]
      %v6725 = vld [vmem:[%s6627 + $0x308] sm:$0xff]
      %v6726 = vld [vmem:[%s6627 + $0x310] sm:$0xff]
      %v6727 = vld [vmem:[%s6627 + $0x318] sm:$0xff]
      %v6728 = vld [vmem:[%s6627 + $0x320] sm:$0xff]
      %v6729 = vld [vmem:[%s6627 + $0x328] sm:$0xff]
      %v6730 = vld [vmem:[%s6627 + $0x330] sm:$0xff]
      %v6731 = vld [vmem:[%s6627 + $0x338] sm:$0xff]
      %v6732 = vld [vmem:[%s6627 + $0x340] sm:$0xff]
      %v6733 = vld [vmem:[%s6627 + $0x348] sm:$0xff]
      %v6734 = vld [vmem:[%s6627 + $0x350] sm:$0xff]
      %v6735 = vld [vmem:[%s6627 + $0x358] sm:$0xff]
      %v6736 = vld [vmem:[%s6627 + $0x360] sm:$0xff]
      %v6737 = vld [vmem:[%s6627 + $0x368] sm:$0xff]
      %v6738 = vld [vmem:[%s6627 + $0x370] sm:$0xff]
      %v6739 = vld [vmem:[%s6627 + $0x378] sm:$0xff]
      %v6740 = vld [vmem:[%s6627 + $0x380] sm:$0xff]
      %v6741 = vld [vmem:[%s6627 + $0x388] sm:$0xff]
      %v6742 = vld [vmem:[%s6627 + $0x390] sm:$0xff]
      %v6743 = vld [vmem:[%s6627 + $0x398] sm:$0xff]
      %v6744 = vld [vmem:[%s6627 + $0x3a0] sm:$0xff]
      %v6745 = vld [vmem:[%s6627 + $0x3a8] sm:$0xff]
      %v6746 = vld [vmem:[%s6627 + $0x3b0] sm:$0xff]
      %v6747 = vld [vmem:[%s6627 + $0x3b8] sm:$0xff]
      %v6748 = vld [vmem:[%s6627 + $0x3c0] sm:$0xff]
      %v6749 = vld [vmem:[%s6627 + $0x3c8] sm:$0xff]
      %v6750 = vld [vmem:[%s6627 + $0x3d0] sm:$0xff]
      %v6751 = vld [vmem:[%s6627 + $0x3d8] sm:$0xff]
      %v6752 = vld [vmem:[%s6627 + $0x3e0] sm:$0xff]
      %v6753 = vld [vmem:[%s6627 + $0x3e8] sm:$0xff]
      %v6754 = vld [vmem:[%s6627 + $0x3f0] sm:$0xff]
      %v6755 = vld [vmem:[%s6627 + $0x3f8] sm:$0xff]
      %v6762 = vunpack.c.l.b16 %v6493
      %v6763 = vunpack.c.h.b16 %v6493
      %v6764 = vunpack.c.l.b16 %v6494
      %v6765 = vunpack.c.h.b16 %v6494
      %v6766 = vunpack.c.l.b16 %v6495
      %v6767 = vunpack.c.h.b16 %v6495
      %v6768 = vunpack.c.l.b16 %v6496
      %v6769 = vunpack.c.h.b16 %v6496
      %v6770 = vunpack.c.l.b16 %v6625
      %v6771 = vunpack.c.h.b16 %v6625
      %v6772 = vunpack.c.l.b16 %v6626
      %v6773 = vunpack.c.h.b16 %v6626
      %v6774 = vpack.c.b16 %v6766, %v6762
      %v6775 = vpack.c.b16 %v6767, %v6763
      %v6776 = vpack.c.b16 %v6768, %v6764
      %v6777 = vpack.c.b16 %v6769, %v6765
      %v6778 = vpack.c.b16 %v6770, %v6770
      %v6779 = vpack.c.b16 %v6771, %v6771
      %v6780 = vpack.c.b16 %v6772, %v6772
      %v6781 = vpack.c.b16 %v6773, %v6773
      %v6783 = vshrl.u32 %v6774, 16
      %v6785 = vshll.u32 %v6774, 16
      %v6787 = vrot.slane %v6785, 1
      %v6788 = vor.u32 %v6783, %v6787
      %v6790 = vshll.u32 %v6778, 16
      %v6792 = vrot.slane %v6790, 1
      %v6793 = vsel %vm658, %v6788, %v6792
      %v6795 = vshrl.u32 %v6775, 16
      %v6797 = vshll.u32 %v6775, 16
      %v6799 = vrot.slane %v6797, 1
      %v6800 = vor.u32 %v6795, %v6799
      %v6802 = vshll.u32 %v6779, 16
      %v6804 = vrot.slane %v6802, 1
      %v6805 = vsel %vm658, %v6800, %v6804
      %v6807 = vshrl.u32 %v6776, 16
      %v6809 = vshll.u32 %v6776, 16
      %v6811 = vrot.slane %v6809, 1
      %v6812 = vor.u32 %v6807, %v6811
      %v6814 = vshll.u32 %v6780, 16
      %v6816 = vrot.slane %v6814, 1
      %v6817 = vsel %vm658, %v6812, %v6816
      %v6819 = vshrl.u32 %v6777, 16
      %v6821 = vshll.u32 %v6777, 16
      %v6823 = vrot.slane %v6821, 1
      %v6824 = vor.u32 %v6819, %v6823
      %v6826 = vshll.u32 %v6781, 16
      %v6828 = vrot.slane %v6826, 1
      %v6829 = vsel %vm658, %v6824, %v6828
      %v6962 = vunpack.c.l.b16 %v6628
      %v6963 = vunpack.c.h.b16 %v6628
      %v6964 = vunpack.c.l.b16 %v6629
      %v6965 = vunpack.c.h.b16 %v6629
      %v6966 = vunpack.c.l.b16 %v6630
      %v6967 = vunpack.c.h.b16 %v6630
      %v6968 = vunpack.c.l.b16 %v6631
      %v6969 = vunpack.c.h.b16 %v6631
      %v6970 = vunpack.c.l.b16 %v6632
      %v6971 = vunpack.c.h.b16 %v6632
      %v6972 = vunpack.c.l.b16 %v6633
      %v6973 = vunpack.c.h.b16 %v6633
      %v6974 = vunpack.c.l.b16 %v6634
      %v6975 = vunpack.c.h.b16 %v6634
      %v6976 = vunpack.c.l.b16 %v6635
      %v6977 = vunpack.c.h.b16 %v6635
      %v6978 = vunpack.c.l.b16 %v6636
      %v6979 = vunpack.c.h.b16 %v6636
      %v6980 = vunpack.c.l.b16 %v6637
      %v6981 = vunpack.c.h.b16 %v6637
      %v6982 = vunpack.c.l.b16 %v6638
      %v6983 = vunpack.c.h.b16 %v6638
      %v6984 = vunpack.c.l.b16 %v6639
      %v6985 = vunpack.c.h.b16 %v6639
      %v6986 = vunpack.c.l.b16 %v6640
      %v6987 = vunpack.c.h.b16 %v6640
      %v6988 = vunpack.c.l.b16 %v6641
      %v6989 = vunpack.c.h.b16 %v6641
      %v6990 = vunpack.c.l.b16 %v6642
      %v6991 = vunpack.c.h.b16 %v6642
      %v6992 = vunpack.c.l.b16 %v6643
      %v6993 = vunpack.c.h.b16 %v6643
      %v6994 = vunpack.c.l.b16 %v6644
      %v6995 = vunpack.c.h.b16 %v6644
      %v6996 = vunpack.c.l.b16 %v6645
      %v6997 = vunpack.c.h.b16 %v6645
      %v6998 = vunpack.c.l.b16 %v6646
      %v6999 = vunpack.c.h.b16 %v6646
      %v7000 = vunpack.c.l.b16 %v6647
      %v7001 = vunpack.c.h.b16 %v6647
      %v7002 = vunpack.c.l.b16 %v6648
      %v7003 = vunpack.c.h.b16 %v6648
      %v7004 = vunpack.c.l.b16 %v6649
      %v7005 = vunpack.c.h.b16 %v6649
      %v7006 = vunpack.c.l.b16 %v6650
      %v7007 = vunpack.c.h.b16 %v6650
      %v7008 = vunpack.c.l.b16 %v6651
      %v7009 = vunpack.c.h.b16 %v6651
      %v7010 = vunpack.c.l.b16 %v6652
      %v7011 = vunpack.c.h.b16 %v6652
      %v7012 = vunpack.c.l.b16 %v6653
      %v7013 = vunpack.c.h.b16 %v6653
      %v7014 = vunpack.c.l.b16 %v6654
      %v7015 = vunpack.c.h.b16 %v6654
      %v7016 = vunpack.c.l.b16 %v6655
      %v7017 = vunpack.c.h.b16 %v6655
      %v7018 = vunpack.c.l.b16 %v6656
      %v7019 = vunpack.c.h.b16 %v6656
      %v7020 = vunpack.c.l.b16 %v6657
      %v7021 = vunpack.c.h.b16 %v6657
      %v7022 = vunpack.c.l.b16 %v6658
      %v7023 = vunpack.c.h.b16 %v6658
      %v7024 = vunpack.c.l.b16 %v6659
      %v7025 = vunpack.c.h.b16 %v6659
      %v7026 = vunpack.c.l.b16 %v6660
      %v7027 = vunpack.c.h.b16 %v6660
      %v7028 = vunpack.c.l.b16 %v6661
      %v7029 = vunpack.c.h.b16 %v6661
      %v7030 = vunpack.c.l.b16 %v6662
      %v7031 = vunpack.c.h.b16 %v6662
      %v7032 = vunpack.c.l.b16 %v6663
      %v7033 = vunpack.c.h.b16 %v6663
      %v7034 = vunpack.c.l.b16 %v6664
      %v7035 = vunpack.c.h.b16 %v6664
      %v7036 = vunpack.c.l.b16 %v6665
      %v7037 = vunpack.c.h.b16 %v6665
      %v7038 = vunpack.c.l.b16 %v6666
      %v7039 = vunpack.c.h.b16 %v6666
      %v7040 = vunpack.c.l.b16 %v6667
      %v7041 = vunpack.c.h.b16 %v6667
      %v7042 = vunpack.c.l.b16 %v6668
      %v7043 = vunpack.c.h.b16 %v6668
      %v7044 = vunpack.c.l.b16 %v6669
      %v7045 = vunpack.c.h.b16 %v6669
      %v7046 = vunpack.c.l.b16 %v6670
      %v7047 = vunpack.c.h.b16 %v6670
      %v7048 = vunpack.c.l.b16 %v6671
      %v7049 = vunpack.c.h.b16 %v6671
      %v7050 = vunpack.c.l.b16 %v6672
      %v7051 = vunpack.c.h.b16 %v6672
      %v7052 = vunpack.c.l.b16 %v6673
      %v7053 = vunpack.c.h.b16 %v6673
      %v7054 = vunpack.c.l.b16 %v6674
      %v7055 = vunpack.c.h.b16 %v6674
      %v7056 = vunpack.c.l.b16 %v6675
      %v7057 = vunpack.c.h.b16 %v6675
      %v7058 = vunpack.c.l.b16 %v6676
      %v7059 = vunpack.c.h.b16 %v6676
      %v7060 = vunpack.c.l.b16 %v6677
      %v7061 = vunpack.c.h.b16 %v6677
      %v7062 = vunpack.c.l.b16 %v6678
      %v7063 = vunpack.c.h.b16 %v6678
      %v7064 = vunpack.c.l.b16 %v6679
      %v7065 = vunpack.c.h.b16 %v6679
      %v7066 = vunpack.c.l.b16 %v6680
      %v7067 = vunpack.c.h.b16 %v6680
      %v7068 = vunpack.c.l.b16 %v6681
      %v7069 = vunpack.c.h.b16 %v6681
      %v7070 = vunpack.c.l.b16 %v6682
      %v7071 = vunpack.c.h.b16 %v6682
      %v7072 = vunpack.c.l.b16 %v6683
      %v7073 = vunpack.c.h.b16 %v6683
      %v7074 = vunpack.c.l.b16 %v6684
      %v7075 = vunpack.c.h.b16 %v6684
      %v7076 = vunpack.c.l.b16 %v6685
      %v7077 = vunpack.c.h.b16 %v6685
      %v7078 = vunpack.c.l.b16 %v6686
      %v7079 = vunpack.c.h.b16 %v6686
      %v7080 = vunpack.c.l.b16 %v6687
      %v7081 = vunpack.c.h.b16 %v6687
      %v7082 = vunpack.c.l.b16 %v6688
      %v7083 = vunpack.c.h.b16 %v6688
      %v7084 = vunpack.c.l.b16 %v6689
      %v7085 = vunpack.c.h.b16 %v6689
      %v7086 = vunpack.c.l.b16 %v6690
      %v7087 = vunpack.c.h.b16 %v6690
      %v7088 = vunpack.c.l.b16 %v6691
      %v7089 = vunpack.c.h.b16 %v6691
      %v7090 = vunpack.c.l.b16 %v6692
      %v7091 = vunpack.c.h.b16 %v6692
      %v7092 = vunpack.c.l.b16 %v6693
      %v7093 = vunpack.c.h.b16 %v6693
      %v7094 = vunpack.c.l.b16 %v6694
      %v7095 = vunpack.c.h.b16 %v6694
      %v7096 = vunpack.c.l.b16 %v6695
      %v7097 = vunpack.c.h.b16 %v6695
      %v7098 = vunpack.c.l.b16 %v6696
      %v7099 = vunpack.c.h.b16 %v6696
      %v7100 = vunpack.c.l.b16 %v6697
      %v7101 = vunpack.c.h.b16 %v6697
      %v7102 = vunpack.c.l.b16 %v6698
      %v7103 = vunpack.c.h.b16 %v6698
      %v7104 = vunpack.c.l.b16 %v6699
      %v7105 = vunpack.c.h.b16 %v6699
      %v7106 = vunpack.c.l.b16 %v6700
      %v7107 = vunpack.c.h.b16 %v6700
      %v7108 = vunpack.c.l.b16 %v6701
      %v7109 = vunpack.c.h.b16 %v6701
      %v7110 = vunpack.c.l.b16 %v6702
      %v7111 = vunpack.c.h.b16 %v6702
      %v7112 = vunpack.c.l.b16 %v6703
      %v7113 = vunpack.c.h.b16 %v6703
      %v7114 = vunpack.c.l.b16 %v6704
      %v7115 = vunpack.c.h.b16 %v6704
      %v7116 = vunpack.c.l.b16 %v6705
      %v7117 = vunpack.c.h.b16 %v6705
      %v7118 = vunpack.c.l.b16 %v6706
      %v7119 = vunpack.c.h.b16 %v6706
      %v7120 = vunpack.c.l.b16 %v6707
      %v7121 = vunpack.c.h.b16 %v6707
      %v7122 = vunpack.c.l.b16 %v6708
      %v7123 = vunpack.c.h.b16 %v6708
      %v7124 = vunpack.c.l.b16 %v6709
      %v7125 = vunpack.c.h.b16 %v6709
      %v7126 = vunpack.c.l.b16 %v6710
      %v7127 = vunpack.c.h.b16 %v6710
      %v7128 = vunpack.c.l.b16 %v6711
      %v7129 = vunpack.c.h.b16 %v6711
      %v7130 = vunpack.c.l.b16 %v6712
      %v7131 = vunpack.c.h.b16 %v6712
      %v7132 = vunpack.c.l.b16 %v6713
      %v7133 = vunpack.c.h.b16 %v6713
      %v7134 = vunpack.c.l.b16 %v6714
      %v7135 = vunpack.c.h.b16 %v6714
      %v7136 = vunpack.c.l.b16 %v6715
      %v7137 = vunpack.c.h.b16 %v6715
      %v7138 = vunpack.c.l.b16 %v6716
      %v7139 = vunpack.c.h.b16 %v6716
      %v7140 = vunpack.c.l.b16 %v6717
      %v7141 = vunpack.c.h.b16 %v6717
      %v7142 = vunpack.c.l.b16 %v6718
      %v7143 = vunpack.c.h.b16 %v6718
      %v7144 = vunpack.c.l.b16 %v6719
      %v7145 = vunpack.c.h.b16 %v6719
      %v7146 = vunpack.c.l.b16 %v6720
      %v7147 = vunpack.c.h.b16 %v6720
      %v7148 = vunpack.c.l.b16 %v6721
      %v7149 = vunpack.c.h.b16 %v6721
      %v7150 = vunpack.c.l.b16 %v6722
      %v7151 = vunpack.c.h.b16 %v6722
      %v7152 = vunpack.c.l.b16 %v6723
      %v7153 = vunpack.c.h.b16 %v6723
      %v7154 = vunpack.c.l.b16 %v6724
      %v7155 = vunpack.c.h.b16 %v6724
      %v7156 = vunpack.c.l.b16 %v6725
      %v7157 = vunpack.c.h.b16 %v6725
      %v7158 = vunpack.c.l.b16 %v6726
      %v7159 = vunpack.c.h.b16 %v6726
      %v7160 = vunpack.c.l.b16 %v6727
      %v7161 = vunpack.c.h.b16 %v6727
      %v7162 = vunpack.c.l.b16 %v6728
      %v7163 = vunpack.c.h.b16 %v6728
      %v7164 = vunpack.c.l.b16 %v6729
      %v7165 = vunpack.c.h.b16 %v6729
      %v7166 = vunpack.c.l.b16 %v6730
      %v7167 = vunpack.c.h.b16 %v6730
      %v7168 = vunpack.c.l.b16 %v6731
      %v7169 = vunpack.c.h.b16 %v6731
      %v7170 = vunpack.c.l.b16 %v6732
      %v7171 = vunpack.c.h.b16 %v6732
      %v7172 = vunpack.c.l.b16 %v6733
      %v7173 = vunpack.c.h.b16 %v6733
      %v7174 = vunpack.c.l.b16 %v6734
      %v7175 = vunpack.c.h.b16 %v6734
      %v7176 = vunpack.c.l.b16 %v6735
      %v7177 = vunpack.c.h.b16 %v6735
      %v7178 = vunpack.c.l.b16 %v6736
      %v7179 = vunpack.c.h.b16 %v6736
      %v7180 = vunpack.c.l.b16 %v6737
      %v7181 = vunpack.c.h.b16 %v6737
      %v7182 = vunpack.c.l.b16 %v6738
      %v7183 = vunpack.c.h.b16 %v6738
      %v7184 = vunpack.c.l.b16 %v6739
      %v7185 = vunpack.c.h.b16 %v6739
      %v7186 = vunpack.c.l.b16 %v6740
      %v7187 = vunpack.c.h.b16 %v6740
      %v7188 = vunpack.c.l.b16 %v6741
      %v7189 = vunpack.c.h.b16 %v6741
      %v7190 = vunpack.c.l.b16 %v6742
      %v7191 = vunpack.c.h.b16 %v6742
      %v7192 = vunpack.c.l.b16 %v6743
      %v7193 = vunpack.c.h.b16 %v6743
      %v7194 = vunpack.c.l.b16 %v6744
      %v7195 = vunpack.c.h.b16 %v6744
      %v7196 = vunpack.c.l.b16 %v6745
      %v7197 = vunpack.c.h.b16 %v6745
      %v7198 = vunpack.c.l.b16 %v6746
      %v7199 = vunpack.c.h.b16 %v6746
      %v7200 = vunpack.c.l.b16 %v6747
      %v7201 = vunpack.c.h.b16 %v6747
      %v7202 = vunpack.c.l.b16 %v6748
      %v7203 = vunpack.c.h.b16 %v6748
      %v7204 = vunpack.c.l.b16 %v6749
      %v7205 = vunpack.c.h.b16 %v6749
      %v7206 = vunpack.c.l.b16 %v6750
      %v7207 = vunpack.c.h.b16 %v6750
      %v7208 = vunpack.c.l.b16 %v6751
      %v7209 = vunpack.c.h.b16 %v6751
      %v7210 = vunpack.c.l.b16 %v6752
      %v7211 = vunpack.c.h.b16 %v6752
      %v7212 = vunpack.c.l.b16 %v6753
      %v7213 = vunpack.c.h.b16 %v6753
      %v7214 = vunpack.c.l.b16 %v6754
      %v7215 = vunpack.c.h.b16 %v6754
      %v7216 = vunpack.c.l.b16 %v6755
      %v7217 = vunpack.c.h.b16 %v6755
      %v7218 = vpack.c.b16 %v6966, %v6962
      %v7219 = vpack.c.b16 %v6967, %v6963
      %v7220 = vpack.c.b16 %v6968, %v6964
      %v7221 = vpack.c.b16 %v6969, %v6965
      %v7222 = vpack.c.b16 %v6974, %v6970
      %v7223 = vpack.c.b16 %v6975, %v6971
      %v7224 = vpack.c.b16 %v6976, %v6972
      %v7225 = vpack.c.b16 %v6977, %v6973
      %v7226 = vpack.c.b16 %v6982, %v6978
      %v7227 = vpack.c.b16 %v6983, %v6979
      %v7228 = vpack.c.b16 %v6984, %v6980
      %v7229 = vpack.c.b16 %v6985, %v6981
      %v7230 = vpack.c.b16 %v6990, %v6986
      %v7231 = vpack.c.b16 %v6991, %v6987
      %v7232 = vpack.c.b16 %v6992, %v6988
      %v7233 = vpack.c.b16 %v6993, %v6989
      %v7234 = vpack.c.b16 %v6998, %v6994
      %v7235 = vpack.c.b16 %v6999, %v6995
      %v7236 = vpack.c.b16 %v7000, %v6996
      %v7237 = vpack.c.b16 %v7001, %v6997
      %v7238 = vpack.c.b16 %v7006, %v7002
      %v7239 = vpack.c.b16 %v7007, %v7003
      %v7240 = vpack.c.b16 %v7008, %v7004
      %v7241 = vpack.c.b16 %v7009, %v7005
      %v7242 = vpack.c.b16 %v7014, %v7010
      %v7243 = vpack.c.b16 %v7015, %v7011
      %v7244 = vpack.c.b16 %v7016, %v7012
      %v7245 = vpack.c.b16 %v7017, %v7013
      %v7246 = vpack.c.b16 %v7022, %v7018
      %v7247 = vpack.c.b16 %v7023, %v7019
      %v7248 = vpack.c.b16 %v7024, %v7020
      %v7249 = vpack.c.b16 %v7025, %v7021
      %v7250 = vpack.c.b16 %v7030, %v7026
      %v7251 = vpack.c.b16 %v7031, %v7027
      %v7252 = vpack.c.b16 %v7032, %v7028
      %v7253 = vpack.c.b16 %v7033, %v7029
      %v7254 = vpack.c.b16 %v7038, %v7034
      %v7255 = vpack.c.b16 %v7039, %v7035
      %v7256 = vpack.c.b16 %v7040, %v7036
      %v7257 = vpack.c.b16 %v7041, %v7037
      %v7258 = vpack.c.b16 %v7046, %v7042
      %v7259 = vpack.c.b16 %v7047, %v7043
      %v7260 = vpack.c.b16 %v7048, %v7044
      %v7261 = vpack.c.b16 %v7049, %v7045
      %v7262 = vpack.c.b16 %v7054, %v7050
      %v7263 = vpack.c.b16 %v7055, %v7051
      %v7264 = vpack.c.b16 %v7056, %v7052
      %v7265 = vpack.c.b16 %v7057, %v7053
      %v7266 = vpack.c.b16 %v7062, %v7058
      %v7267 = vpack.c.b16 %v7063, %v7059
      %v7268 = vpack.c.b16 %v7064, %v7060
      %v7269 = vpack.c.b16 %v7065, %v7061
      %v7270 = vpack.c.b16 %v7070, %v7066
      %v7271 = vpack.c.b16 %v7071, %v7067
      %v7272 = vpack.c.b16 %v7072, %v7068
      %v7273 = vpack.c.b16 %v7073, %v7069
      %v7274 = vpack.c.b16 %v7078, %v7074
      %v7275 = vpack.c.b16 %v7079, %v7075
      %v7276 = vpack.c.b16 %v7080, %v7076
      %v7277 = vpack.c.b16 %v7081, %v7077
      %v7278 = vpack.c.b16 %v7086, %v7082
      %v7279 = vpack.c.b16 %v7087, %v7083
      %v7280 = vpack.c.b16 %v7088, %v7084
      %v7281 = vpack.c.b16 %v7089, %v7085
      %v7282 = vpack.c.b16 %v7094, %v7090
      %v7283 = vpack.c.b16 %v7095, %v7091
      %v7284 = vpack.c.b16 %v7096, %v7092
      %v7285 = vpack.c.b16 %v7097, %v7093
      %v7286 = vpack.c.b16 %v7102, %v7098
      %v7287 = vpack.c.b16 %v7103, %v7099
      %v7288 = vpack.c.b16 %v7104, %v7100
      %v7289 = vpack.c.b16 %v7105, %v7101
      %v7290 = vpack.c.b16 %v7110, %v7106
      %v7291 = vpack.c.b16 %v7111, %v7107
      %v7292 = vpack.c.b16 %v7112, %v7108
      %v7293 = vpack.c.b16 %v7113, %v7109
      %v7294 = vpack.c.b16 %v7118, %v7114
      %v7295 = vpack.c.b16 %v7119, %v7115
      %v7296 = vpack.c.b16 %v7120, %v7116
      %v7297 = vpack.c.b16 %v7121, %v7117
      %v7298 = vpack.c.b16 %v7126, %v7122
      %v7299 = vpack.c.b16 %v7127, %v7123
      %v7300 = vpack.c.b16 %v7128, %v7124
      %v7301 = vpack.c.b16 %v7129, %v7125
      %v7302 = vpack.c.b16 %v7134, %v7130
      %v7303 = vpack.c.b16 %v7135, %v7131
      %v7304 = vpack.c.b16 %v7136, %v7132
      %v7305 = vpack.c.b16 %v7137, %v7133
      %v7306 = vpack.c.b16 %v7142, %v7138
      %v7307 = vpack.c.b16 %v7143, %v7139
      %v7308 = vpack.c.b16 %v7144, %v7140
      %v7309 = vpack.c.b16 %v7145, %v7141
      %v7310 = vpack.c.b16 %v7150, %v7146
      %v7311 = vpack.c.b16 %v7151, %v7147
      %v7312 = vpack.c.b16 %v7152, %v7148
      %v7313 = vpack.c.b16 %v7153, %v7149
      %v7314 = vpack.c.b16 %v7158, %v7154
      %v7315 = vpack.c.b16 %v7159, %v7155
      %v7316 = vpack.c.b16 %v7160, %v7156
      %v7317 = vpack.c.b16 %v7161, %v7157
      %v7318 = vpack.c.b16 %v7166, %v7162
      %v7319 = vpack.c.b16 %v7167, %v7163
      %v7320 = vpack.c.b16 %v7168, %v7164
      %v7321 = vpack.c.b16 %v7169, %v7165
      %v7322 = vpack.c.b16 %v7174, %v7170
      %v7323 = vpack.c.b16 %v7175, %v7171
      %v7324 = vpack.c.b16 %v7176, %v7172
      %v7325 = vpack.c.b16 %v7177, %v7173
      %v7326 = vpack.c.b16 %v7182, %v7178
      %v7327 = vpack.c.b16 %v7183, %v7179
      %v7328 = vpack.c.b16 %v7184, %v7180
      %v7329 = vpack.c.b16 %v7185, %v7181
      %v7330 = vpack.c.b16 %v7190, %v7186
      %v7331 = vpack.c.b16 %v7191, %v7187
      %v7332 = vpack.c.b16 %v7192, %v7188
      %v7333 = vpack.c.b16 %v7193, %v7189
      %v7334 = vpack.c.b16 %v7198, %v7194
      %v7335 = vpack.c.b16 %v7199, %v7195
      %v7336 = vpack.c.b16 %v7200, %v7196
      %v7337 = vpack.c.b16 %v7201, %v7197
      %v7338 = vpack.c.b16 %v7206, %v7202
      %v7339 = vpack.c.b16 %v7207, %v7203
      %v7340 = vpack.c.b16 %v7208, %v7204
      %v7341 = vpack.c.b16 %v7209, %v7205
      %v7342 = vpack.c.b16 %v7214, %v7210
      %v7343 = vpack.c.b16 %v7215, %v7211
      %v7344 = vpack.c.b16 %v7216, %v7212
      %v7345 = vpack.c.b16 %v7217, %v7213
      %7474 = vmatprep.subr.bf16.mxu0 %v7219
      %7475 = vmatpush1.bf16.msra.mxu0 %v7218
      %7476 = vmatprep.subr.bf16.mxu0 %v7223
      %7477 = vmatpush1.bf16.msra.mxu0 %v7222
      %7478 = vmatprep.subr.bf16.mxu0 %v7227
      %7479 = vmatpush1.bf16.msra.mxu0 %v7226
      %7480 = vmatprep.subr.bf16.mxu0 %v7231
      %7481 = vmatpush1.bf16.msra.mxu0 %v7230
      %7482 = vmatprep.subr.bf16.mxu0 %v7235
      %7483 = vmatpush1.bf16.msra.mxu0 %v7234
      %7484 = vmatprep.subr.bf16.mxu0 %v7239
      %7485 = vmatpush1.bf16.msra.mxu0 %v7238
      %7486 = vmatprep.subr.bf16.mxu0 %v7243
      %7487 = vmatpush1.bf16.msra.mxu0 %v7242
      %7488 = vmatprep.subr.bf16.mxu0 %v7247
      %7489 = vmatpush1.bf16.msra.mxu0 %v7246
      %7490 = vmatprep.subr.bf16.mxu0 %v7251
      %7491 = vmatpush1.bf16.msra.mxu0 %v7250
      %7492 = vmatprep.subr.bf16.mxu0 %v7255
      %7493 = vmatpush1.bf16.msra.mxu0 %v7254
      %7494 = vmatprep.subr.bf16.mxu0 %v7259
      %7495 = vmatpush1.bf16.msra.mxu0 %v7258
      %7496 = vmatprep.subr.bf16.mxu0 %v7263
      %7497 = vmatpush1.bf16.msra.mxu0 %v7262
      %7498 = vmatprep.subr.bf16.mxu0 %v7267
      %7499 = vmatpush1.bf16.msra.mxu0 %v7266
      %7500 = vmatprep.subr.bf16.mxu0 %v7271
      %7501 = vmatpush1.bf16.msra.mxu0 %v7270
      %7502 = vmatprep.subr.bf16.mxu0 %v7275
      %7503 = vmatpush1.bf16.msra.mxu0 %v7274
      %7504 = vmatprep.subr.bf16.mxu0 %v7279
      %7505 = vmatpush1.bf16.msra.mxu0 %v7278
      %7506 = vmatprep.mubr.bf16.mxu0 %v6805
      %7507 = vmatmul.mubr.bf16.gmra.mrb[0].mxu0 %v6793
      %v7508 = vpop.f32.mrb[0].mxu0
      %v7509 = vadd.f32 0.0, %v7508
      %v7510 = vpop.f32.mrb[0].mxu0
      %v7511 = vadd.f32 0.0, %v7510
      %v7512 = vpop.f32.mrb[0].mxu0
      %v7513 = vadd.f32 0.0, %v7512
      %v7514 = vpop.f32.mrb[0].mxu0
      %v7515 = vadd.f32 0.0, %v7514
      %7516 = vdwg.mxu0
      %7517 = vmatprep.subr.bf16.mxu0 %v7283
      %7518 = vmatpush1.bf16.msra.mxu0 %v7282
      %7519 = vmatprep.subr.bf16.mxu0 %v7287
      %7520 = vmatpush1.bf16.msra.mxu0 %v7286
      %7521 = vmatprep.subr.bf16.mxu0 %v7291
      %7522 = vmatpush1.bf16.msra.mxu0 %v7290
      %7523 = vmatprep.subr.bf16.mxu0 %v7295
      %7524 = vmatpush1.bf16.msra.mxu0 %v7294
      %7525 = vmatprep.subr.bf16.mxu0 %v7299
      %7526 = vmatpush1.bf16.msra.mxu0 %v7298
      %7527 = vmatprep.subr.bf16.mxu0 %v7303
      %7528 = vmatpush1.bf16.msra.mxu0 %v7302
      %7529 = vmatprep.subr.bf16.mxu0 %v7307
      %7530 = vmatpush1.bf16.msra.mxu0 %v7306
      %7531 = vmatprep.subr.bf16.mxu0 %v7311
      %7532 = vmatpush1.bf16.msra.mxu0 %v7310
      %7533 = vmatprep.subr.bf16.mxu0 %v7315
      %7534 = vmatpush1.bf16.msra.mxu0 %v7314
      %7535 = vmatprep.subr.bf16.mxu0 %v7319
      %7536 = vmatpush1.bf16.msra.mxu0 %v7318
      %7537 = vmatprep.subr.bf16.mxu0 %v7323
      %7538 = vmatpush1.bf16.msra.mxu0 %v7322
      %7539 = vmatprep.subr.bf16.mxu0 %v7327
      %7540 = vmatpush1.bf16.msra.mxu0 %v7326
      %7541 = vmatprep.subr.bf16.mxu0 %v7331
      %7542 = vmatpush1.bf16.msra.mxu0 %v7330
      %7543 = vmatprep.subr.bf16.mxu0 %v7335
      %7544 = vmatpush1.bf16.msra.mxu0 %v7334
      %7545 = vmatprep.subr.bf16.mxu0 %v7339
      %7546 = vmatpush1.bf16.msra.mxu0 %v7338
      %7547 = vmatprep.subr.bf16.mxu0 %v7343
      %7548 = vmatpush1.bf16.msra.mxu0 %v7342
      %7549 = vmatprep.mubr.bf16.mxu0 %v6829
      %7550 = vmatmul.mubr.bf16.gmra.mrb[0].mxu0 %v6817
      %v7551 = vpop.f32.mrb[0].mxu0
      %v7552 = vadd.f32 %v7509, %v7551
      %v7553 = vpop.f32.mrb[0].mxu0
      %v7554 = vadd.f32 %v7511, %v7553
      %v7555 = vpop.f32.mrb[0].mxu0
      %v7556 = vadd.f32 %v7513, %v7555
      %v7557 = vpop.f32.mrb[0].mxu0
      %v7558 = vadd.f32 %v7515, %v7557
      %7559 = vdwg.mxu0
      %7560 = vmatprep.subr.bf16.mxu0 %v7221
      %7561 = vmatpush1.bf16.msra.mxu0 %v7220
      %7562 = vmatprep.subr.bf16.mxu0 %v7225
      %7563 = vmatpush1.bf16.msra.mxu0 %v7224
      %7564 = vmatprep.subr.bf16.mxu0 %v7229
      %7565 = vmatpush1.bf16.msra.mxu0 %v7228
      %7566 = vmatprep.subr.bf16.mxu0 %v7233
      %7567 = vmatpush1.bf16.msra.mxu0 %v7232
      %7568 = vmatprep.subr.bf16.mxu0 %v7237
      %7569 = vmatpush1.bf16.msra.mxu0 %v7236
      %7570 = vmatprep.subr.bf16.mxu0 %v7241
      %7571 = vmatpush1.bf16.msra.mxu0 %v7240
      %7572 = vmatprep.subr.bf16.mxu0 %v7245
      %7573 = vmatpush1.bf16.msra.mxu0 %v7244
      %7574 = vmatprep.subr.bf16.mxu0 %v7249
      %7575 = vmatpush1.bf16.msra.mxu0 %v7248
      %7576 = vmatprep.subr.bf16.mxu0 %v7253
      %7577 = vmatpush1.bf16.msra.mxu0 %v7252
      %7578 = vmatprep.subr.bf16.mxu0 %v7257
      %7579 = vmatpush1.bf16.msra.mxu0 %v7256
      %7580 = vmatprep.subr.bf16.mxu0 %v7261
      %7581 = vmatpush1.bf16.msra.mxu0 %v7260
      %7582 = vmatprep.subr.bf16.mxu0 %v7265
      %7583 = vmatpush1.bf16.msra.mxu0 %v7264
      %7584 = vmatprep.subr.bf16.mxu0 %v7269
      %7585 = vmatpush1.bf16.msra.mxu0 %v7268
      %7586 = vmatprep.subr.bf16.mxu0 %v7273
      %7587 = vmatpush1.bf16.msra.mxu0 %v7272
      %7588 = vmatprep.subr.bf16.mxu0 %v7277
      %7589 = vmatpush1.bf16.msra.mxu0 %v7276
      %7590 = vmatprep.subr.bf16.mxu0 %v7281
      %7591 = vmatpush1.bf16.msra.mxu0 %v7280
      %7592 = vmatprep.mubr.bf16.mxu0 %v6805
      %7593 = vmatmul.mubr.bf16.gmra.mrb[0].mxu0 %v6793
      %v7594 = vpop.f32.mrb[0].mxu0
      %v7595 = vadd.f32 0.0, %v7594
      %v7596 = vpop.f32.mrb[0].mxu0
      %v7597 = vadd.f32 0.0, %v7596
      %v7598 = vpop.f32.mrb[0].mxu0
      %v7599 = vadd.f32 0.0, %v7598
      %v7600 = vpop.f32.mrb[0].mxu0
      %v7601 = vadd.f32 0.0, %v7600
      %7602 = vdwg.mxu0
      %7603 = vmatprep.subr.bf16.mxu0 %v7285
      %7604 = vmatpush1.bf16.msra.mxu0 %v7284
      %7605 = vmatprep.subr.bf16.mxu0 %v7289
      %7606 = vmatpush1.bf16.msra.mxu0 %v7288
      %7607 = vmatprep.subr.bf16.mxu0 %v7293
      %7608 = vmatpush1.bf16.msra.mxu0 %v7292
      %7609 = vmatprep.subr.bf16.mxu0 %v7297
      %7610 = vmatpush1.bf16.msra.mxu0 %v7296
      %7611 = vmatprep.subr.bf16.mxu0 %v7301
      %7612 = vmatpush1.bf16.msra.mxu0 %v7300
      %7613 = vmatprep.subr.bf16.mxu0 %v7305
      %7614 = vmatpush1.bf16.msra.mxu0 %v7304
      %7615 = vmatprep.subr.bf16.mxu0 %v7309
      %7616 = vmatpush1.bf16.msra.mxu0 %v7308
      %7617 = vmatprep.subr.bf16.mxu0 %v7313
      %7618 = vmatpush1.bf16.msra.mxu0 %v7312
      %7619 = vmatprep.subr.bf16.mxu0 %v7317
      %7620 = vmatpush1.bf16.msra.mxu0 %v7316
      %7621 = vmatprep.subr.bf16.mxu0 %v7321
      %7622 = vmatpush1.bf16.msra.mxu0 %v7320
      %7623 = vmatprep.subr.bf16.mxu0 %v7325
      %7624 = vmatpush1.bf16.msra.mxu0 %v7324
      %7625 = vmatprep.subr.bf16.mxu0 %v7329
      %7626 = vmatpush1.bf16.msra.mxu0 %v7328
      %7627 = vmatprep.subr.bf16.mxu0 %v7333
      %7628 = vmatpush1.bf16.msra.mxu0 %v7332
      %7629 = vmatprep.subr.bf16.mxu0 %v7337
      %7630 = vmatpush1.bf16.msra.mxu0 %v7336
      %7631 = vmatprep.subr.bf16.mxu0 %v7341
      %7632 = vmatpush1.bf16.msra.mxu0 %v7340
      %7633 = vmatprep.subr.bf16.mxu0 %v7345
      %7634 = vmatpush1.bf16.msra.mxu0 %v7344
      %7635 = vmatprep.mubr.bf16.mxu0 %v6829
      %7636 = vmatmul.mubr.bf16.gmra.mrb[0].mxu0 %v6817
      %v7637 = vpop.f32.mrb[0].mxu0
      %v7638 = vadd.f32 %v7595, %v7637
      %v7639 = vpop.f32.mrb[0].mxu0
      %v7640 = vadd.f32 %v7597, %v7639
      %v7641 = vpop.f32.mrb[0].mxu0
      %v7642 = vadd.f32 %v7599, %v7641
      %v7643 = vpop.f32.mrb[0].mxu0
      %v7644 = vadd.f32 %v7601, %v7643
      %7645 = vdwg.mxu0
      %v7778 = vunpack.c.l.b16 %v6497
      %v7779 = vunpack.c.h.b16 %v6497
      %v7780 = vunpack.c.l.b16 %v6498
      %v7781 = vunpack.c.h.b16 %v6498
      %v7782 = vunpack.c.l.b16 %v6499
      %v7783 = vunpack.c.h.b16 %v6499
      %v7784 = vunpack.c.l.b16 %v6500
      %v7785 = vunpack.c.h.b16 %v6500
      %v7786 = vunpack.c.l.b16 %v6501
      %v7787 = vunpack.c.h.b16 %v6501
      %v7788 = vunpack.c.l.b16 %v6502
      %v7789 = vunpack.c.h.b16 %v6502
      %v7790 = vunpack.c.l.b16 %v6503
      %v7791 = vunpack.c.h.b16 %v6503
      %v7792 = vunpack.c.l.b16 %v6504
      %v7793 = vunpack.c.h.b16 %v6504
      %v7794 = vunpack.c.l.b16 %v6505
      %v7795 = vunpack.c.h.b16 %v6505
      %v7796 = vunpack.c.l.b16 %v6506
      %v7797 = vunpack.c.h.b16 %v6506
      %v7798 = vunpack.c.l.b16 %v6507
      %v7799 = vunpack.c.h.b16 %v6507
      %v7800 = vunpack.c.l.b16 %v6508
      %v7801 = vunpack.c.h.b16 %v6508
      %v7802 = vunpack.c.l.b16 %v6509
      %v7803 = vunpack.c.h.b16 %v6509
      %v7804 = vunpack.c.l.b16 %v6510
      %v7805 = vunpack.c.h.b16 %v6510
      %v7806 = vunpack.c.l.b16 %v6511
      %v7807 = vunpack.c.h.b16 %v6511
      %v7808 = vunpack.c.l.b16 %v6512
      %v7809 = vunpack.c.h.b16 %v6512
      %v7810 = vunpack.c.l.b16 %v6513
      %v7811 = vunpack.c.h.b16 %v6513
      %v7812 = vunpack.c.l.b16 %v6514
      %v7813 = vunpack.c.h.b16 %v6514
      %v7814 = vunpack.c.l.b16 %v6515
      %v7815 = vunpack.c.h.b16 %v6515
      %v7816 = vunpack.c.l.b16 %v6516
      %v7817 = vunpack.c.h.b16 %v6516
      %v7818 = vunpack.c.l.b16 %v6517
      %v7819 = vunpack.c.h.b16 %v6517
      %v7820 = vunpack.c.l.b16 %v6518
      %v7821 = vunpack.c.h.b16 %v6518
      %v7822 = vunpack.c.l.b16 %v6519
      %v7823 = vunpack.c.h.b16 %v6519
      %v7824 = vunpack.c.l.b16 %v6520
      %v7825 = vunpack.c.h.b16 %v6520
      %v7826 = vunpack.c.l.b16 %v6521
      %v7827 = vunpack.c.h.b16 %v6521
      %v7828 = vunpack.c.l.b16 %v6522
      %v7829 = vunpack.c.h.b16 %v6522
      %v7830 = vunpack.c.l.b16 %v6523
      %v7831 = vunpack.c.h.b16 %v6523
      %v7832 = vunpack.c.l.b16 %v6524
      %v7833 = vunpack.c.h.b16 %v6524
      %v7834 = vunpack.c.l.b16 %v6525
      %v7835 = vunpack.c.h.b16 %v6525
      %v7836 = vunpack.c.l.b16 %v6526
      %v7837 = vunpack.c.h.b16 %v6526
      %v7838 = vunpack.c.l.b16 %v6527
      %v7839 = vunpack.c.h.b16 %v6527
      %v7840 = vunpack.c.l.b16 %v6528
      %v7841 = vunpack.c.h.b16 %v6528
      %v7842 = vunpack.c.l.b16 %v6529
      %v7843 = vunpack.c.h.b16 %v6529
      %v7844 = vunpack.c.l.b16 %v6530
      %v7845 = vunpack.c.h.b16 %v6530
      %v7846 = vunpack.c.l.b16 %v6531
      %v7847 = vunpack.c.h.b16 %v6531
      %v7848 = vunpack.c.l.b16 %v6532
      %v7849 = vunpack.c.h.b16 %v6532
      %v7850 = vunpack.c.l.b16 %v6533
      %v7851 = vunpack.c.h.b16 %v6533
      %v7852 = vunpack.c.l.b16 %v6534
      %v7853 = vunpack.c.h.b16 %v6534
      %v7854 = vunpack.c.l.b16 %v6535
      %v7855 = vunpack.c.h.b16 %v6535
      %v7856 = vunpack.c.l.b16 %v6536
      %v7857 = vunpack.c.h.b16 %v6536
      %v7858 = vunpack.c.l.b16 %v6537
      %v7859 = vunpack.c.h.b16 %v6537
      %v7860 = vunpack.c.l.b16 %v6538
      %v7861 = vunpack.c.h.b16 %v6538
      %v7862 = vunpack.c.l.b16 %v6539
      %v7863 = vunpack.c.h.b16 %v6539
      %v7864 = vunpack.c.l.b16 %v6540
      %v7865 = vunpack.c.h.b16 %v6540
      %v7866 = vunpack.c.l.b16 %v6541
      %v7867 = vunpack.c.h.b16 %v6541
      %v7868 = vunpack.c.l.b16 %v6542
      %v7869 = vunpack.c.h.b16 %v6542
      %v7870 = vunpack.c.l.b16 %v6543
      %v7871 = vunpack.c.h.b16 %v6543
      %v7872 = vunpack.c.l.b16 %v6544
      %v7873 = vunpack.c.h.b16 %v6544
      %v7874 = vunpack.c.l.b16 %v6545
      %v7875 = vunpack.c.h.b16 %v6545
      %v7876 = vunpack.c.l.b16 %v6546
      %v7877 = vunpack.c.h.b16 %v6546
      %v7878 = vunpack.c.l.b16 %v6547
      %v7879 = vunpack.c.h.b16 %v6547
      %v7880 = vunpack.c.l.b16 %v6548
      %v7881 = vunpack.c.h.b16 %v6548
      %v7882 = vunpack.c.l.b16 %v6549
      %v7883 = vunpack.c.h.b16 %v6549
      %v7884 = vunpack.c.l.b16 %v6550
      %v7885 = vunpack.c.h.b16 %v6550
      %v7886 = vunpack.c.l.b16 %v6551
      %v7887 = vunpack.c.h.b16 %v6551
      %v7888 = vunpack.c.l.b16 %v6552
      %v7889 = vunpack.c.h.b16 %v6552
      %v7890 = vunpack.c.l.b16 %v6553
      %v7891 = vunpack.c.h.b16 %v6553
      %v7892 = vunpack.c.l.b16 %v6554
      %v7893 = vunpack.c.h.b16 %v6554
      %v7894 = vunpack.c.l.b16 %v6555
      %v7895 = vunpack.c.h.b16 %v6555
      %v7896 = vunpack.c.l.b16 %v6556
      %v7897 = vunpack.c.h.b16 %v6556
      %v7898 = vunpack.c.l.b16 %v6557
      %v7899 = vunpack.c.h.b16 %v6557
      %v7900 = vunpack.c.l.b16 %v6558
      %v7901 = vunpack.c.h.b16 %v6558
      %v7902 = vunpack.c.l.b16 %v6559
      %v7903 = vunpack.c.h.b16 %v6559
      %v7904 = vunpack.c.l.b16 %v6560
      %v7905 = vunpack.c.h.b16 %v6560
      %v7906 = vunpack.c.l.b16 %v6561
      %v7907 = vunpack.c.h.b16 %v6561
      %v7908 = vunpack.c.l.b16 %v6562
      %v7909 = vunpack.c.h.b16 %v6562
      %v7910 = vunpack.c.l.b16 %v6563
      %v7911 = vunpack.c.h.b16 %v6563
      %v7912 = vunpack.c.l.b16 %v6564
      %v7913 = vunpack.c.h.b16 %v6564
      %v7914 = vunpack.c.l.b16 %v6565
      %v7915 = vunpack.c.h.b16 %v6565
      %v7916 = vunpack.c.l.b16 %v6566
      %v7917 = vunpack.c.h.b16 %v6566
      %v7918 = vunpack.c.l.b16 %v6567
      %v7919 = vunpack.c.h.b16 %v6567
      %v7920 = vunpack.c.l.b16 %v6568
      %v7921 = vunpack.c.h.b16 %v6568
      %v7922 = vunpack.c.l.b16 %v6569
      %v7923 = vunpack.c.h.b16 %v6569
      %v7924 = vunpack.c.l.b16 %v6570
      %v7925 = vunpack.c.h.b16 %v6570
      %v7926 = vunpack.c.l.b16 %v6571
      %v7927 = vunpack.c.h.b16 %v6571
      %v7928 = vunpack.c.l.b16 %v6572
      %v7929 = vunpack.c.h.b16 %v6572
      %v7930 = vunpack.c.l.b16 %v6573
      %v7931 = vunpack.c.h.b16 %v6573
      %v7932 = vunpack.c.l.b16 %v6574
      %v7933 = vunpack.c.h.b16 %v6574
      %v7934 = vunpack.c.l.b16 %v6575
      %v7935 = vunpack.c.h.b16 %v6575
      %v7936 = vunpack.c.l.b16 %v6576
      %v7937 = vunpack.c.h.b16 %v6576
      %v7938 = vunpack.c.l.b16 %v6577
      %v7939 = vunpack.c.h.b16 %v6577
      %v7940 = vunpack.c.l.b16 %v6578
      %v7941 = vunpack.c.h.b16 %v6578
      %v7942 = vunpack.c.l.b16 %v6579
      %v7943 = vunpack.c.h.b16 %v6579
      %v7944 = vunpack.c.l.b16 %v6580
      %v7945 = vunpack.c.h.b16 %v6580
      %v7946 = vunpack.c.l.b16 %v6581
      %v7947 = vunpack.c.h.b16 %v6581
      %v7948 = vunpack.c.l.b16 %v6582
      %v7949 = vunpack.c.h.b16 %v6582
      %v7950 = vunpack.c.l.b16 %v6583
      %v7951 = vunpack.c.h.b16 %v6583
      %v7952 = vunpack.c.l.b16 %v6584
      %v7953 = vunpack.c.h.b16 %v6584
      %v7954 = vunpack.c.l.b16 %v6585
      %v7955 = vunpack.c.h.b16 %v6585
      %v7956 = vunpack.c.l.b16 %v6586
      %v7957 = vunpack.c.h.b16 %v6586
      %v7958 = vunpack.c.l.b16 %v6587
      %v7959 = vunpack.c.h.b16 %v6587
      %v7960 = vunpack.c.l.b16 %v6588
      %v7961 = vunpack.c.h.b16 %v6588
      %v7962 = vunpack.c.l.b16 %v6589
      %v7963 = vunpack.c.h.b16 %v6589
      %v7964 = vunpack.c.l.b16 %v6590
      %v7965 = vunpack.c.h.b16 %v6590
      %v7966 = vunpack.c.l.b16 %v6591
      %v7967 = vunpack.c.h.b16 %v6591
      %v7968 = vunpack.c.l.b16 %v6592
      %v7969 = vunpack.c.h.b16 %v6592
      %v7970 = vunpack.c.l.b16 %v6593
      %v7971 = vunpack.c.h.b16 %v6593
      %v7972 = vunpack.c.l.b16 %v6594
      %v7973 = vunpack.c.h.b16 %v6594
      %v7974 = vunpack.c.l.b16 %v6595
      %v7975 = vunpack.c.h.b16 %v6595
      %v7976 = vunpack.c.l.b16 %v6596
      %v7977 = vunpack.c.h.b16 %v6596
      %v7978 = vunpack.c.l.b16 %v6597
      %v7979 = vunpack.c.h.b16 %v6597
      %v7980 = vunpack.c.l.b16 %v6598
      %v7981 = vunpack.c.h.b16 %v6598
      %v7982 = vunpack.c.l.b16 %v6599
      %v7983 = vunpack.c.h.b16 %v6599
      %v7984 = vunpack.c.l.b16 %v6600
      %v7985 = vunpack.c.h.b16 %v6600
      %v7986 = vunpack.c.l.b16 %v6601
      %v7987 = vunpack.c.h.b16 %v6601
      %v7988 = vunpack.c.l.b16 %v6602
      %v7989 = vunpack.c.h.b16 %v6602
      %v7990 = vunpack.c.l.b16 %v6603
      %v7991 = vunpack.c.h.b16 %v6603
      %v7992 = vunpack.c.l.b16 %v6604
      %v7993 = vunpack.c.h.b16 %v6604
      %v7994 = vunpack.c.l.b16 %v6605
      %v7995 = vunpack.c.h.b16 %v6605
      %v7996 = vunpack.c.l.b16 %v6606
      %v7997 = vunpack.c.h.b16 %v6606
      %v7998 = vunpack.c.l.b16 %v6607
      %v7999 = vunpack.c.h.b16 %v6607
      %v8000 = vunpack.c.l.b16 %v6608
      %v8001 = vunpack.c.h.b16 %v6608
      %v8002 = vunpack.c.l.b16 %v6609
      %v8003 = vunpack.c.h.b16 %v6609
      %v8004 = vunpack.c.l.b16 %v6610
      %v8005 = vunpack.c.h.b16 %v6610
      %v8006 = vunpack.c.l.b16 %v6611
      %v8007 = vunpack.c.h.b16 %v6611
      %v8008 = vunpack.c.l.b16 %v6612
      %v8009 = vunpack.c.h.b16 %v6612
      %v8010 = vunpack.c.l.b16 %v6613
      %v8011 = vunpack.c.h.b16 %v6613
      %v8012 = vunpack.c.l.b16 %v6614
      %v8013 = vunpack.c.h.b16 %v6614
      %v8014 = vunpack.c.l.b16 %v6615
      %v8015 = vunpack.c.h.b16 %v6615
      %v8016 = vunpack.c.l.b16 %v6616
      %v8017 = vunpack.c.h.b16 %v6616
      %v8018 = vunpack.c.l.b16 %v6617
      %v8019 = vunpack.c.h.b16 %v6617
      %v8020 = vunpack.c.l.b16 %v6618
      %v8021 = vunpack.c.h.b16 %v6618
      %v8022 = vunpack.c.l.b16 %v6619
      %v8023 = vunpack.c.h.b16 %v6619
      %v8024 = vunpack.c.l.b16 %v6620
      %v8025 = vunpack.c.h.b16 %v6620
      %v8026 = vunpack.c.l.b16 %v6621
      %v8027 = vunpack.c.h.b16 %v6621
      %v8028 = vunpack.c.l.b16 %v6622
      %v8029 = vunpack.c.h.b16 %v6622
      %v8030 = vunpack.c.l.b16 %v6623
      %v8031 = vunpack.c.h.b16 %v6623
      %v8032 = vunpack.c.l.b16 %v6624
      %v8033 = vunpack.c.h.b16 %v6624
      %v8034 = vpack.c.b16 %v7782, %v7778
      %v8035 = vpack.c.b16 %v7783, %v7779
      %v8036 = vpack.c.b16 %v7784, %v7780
      %v8037 = vpack.c.b16 %v7785, %v7781
      %v8038 = vpack.c.b16 %v7790, %v7786
      %v8039 = vpack.c.b16 %v7791, %v7787
      %v8040 = vpack.c.b16 %v7792, %v7788
      %v8041 = vpack.c.b16 %v7793, %v7789
      %v8042 = vpack.c.b16 %v7798, %v7794
      %v8043 = vpack.c.b16 %v7799, %v7795
      %v8044 = vpack.c.b16 %v7800, %v7796
      %v8045 = vpack.c.b16 %v7801, %v7797
      %v8046 = vpack.c.b16 %v7806, %v7802
      %v8047 = vpack.c.b16 %v7807, %v7803
      %v8048 = vpack.c.b16 %v7808, %v7804
      %v8049 = vpack.c.b16 %v7809, %v7805
      %v8050 = vpack.c.b16 %v7814, %v7810
      %v8051 = vpack.c.b16 %v7815, %v7811
      %v8052 = vpack.c.b16 %v7816, %v7812
      %v8053 = vpack.c.b16 %v7817, %v7813
      %v8054 = vpack.c.b16 %v7822, %v7818
      %v8055 = vpack.c.b16 %v7823, %v7819
      %v8056 = vpack.c.b16 %v7824, %v7820
      %v8057 = vpack.c.b16 %v7825, %v7821
      %v8058 = vpack.c.b16 %v7830, %v7826
      %v8059 = vpack.c.b16 %v7831, %v7827
      %v8060 = vpack.c.b16 %v7832, %v7828
      %v8061 = vpack.c.b16 %v7833, %v7829
      %v8062 = vpack.c.b16 %v7838, %v7834
      %v8063 = vpack.c.b16 %v7839, %v7835
      %v8064 = vpack.c.b16 %v7840, %v7836
      %v8065 = vpack.c.b16 %v7841, %v7837
      %v8066 = vpack.c.b16 %v7846, %v7842
      %v8067 = vpack.c.b16 %v7847, %v7843
      %v8068 = vpack.c.b16 %v7848, %v7844
      %v8069 = vpack.c.b16 %v7849, %v7845
      %v8070 = vpack.c.b16 %v7854, %v7850
      %v8071 = vpack.c.b16 %v7855, %v7851
      %v8072 = vpack.c.b16 %v7856, %v7852
      %v8073 = vpack.c.b16 %v7857, %v7853
      %v8074 = vpack.c.b16 %v7862, %v7858
      %v8075 = vpack.c.b16 %v7863, %v7859
      %v8076 = vpack.c.b16 %v7864, %v7860
      %v8077 = vpack.c.b16 %v7865, %v7861
      %v8078 = vpack.c.b16 %v7870, %v7866
      %v8079 = vpack.c.b16 %v7871, %v7867
      %v8080 = vpack.c.b16 %v7872, %v7868
      %v8081 = vpack.c.b16 %v7873, %v7869
      %v8082 = vpack.c.b16 %v7878, %v7874
      %v8083 = vpack.c.b16 %v7879, %v7875
      %v8084 = vpack.c.b16 %v7880, %v7876
      %v8085 = vpack.c.b16 %v7881, %v7877
      %v8086 = vpack.c.b16 %v7886, %v7882
      %v8087 = vpack.c.b16 %v7887, %v7883
      %v8088 = vpack.c.b16 %v7888, %v7884
      %v8089 = vpack.c.b16 %v7889, %v7885
      %v8090 = vpack.c.b16 %v7894, %v7890
      %v8091 = vpack.c.b16 %v7895, %v7891
      %v8092 = vpack.c.b16 %v7896, %v7892
      %v8093 = vpack.c.b16 %v7897, %v7893
      %v8094 = vpack.c.b16 %v7902, %v7898
      %v8095 = vpack.c.b16 %v7903, %v7899
      %v8096 = vpack.c.b16 %v7904, %v7900
      %v8097 = vpack.c.b16 %v7905, %v7901
      %v8098 = vpack.c.b16 %v7910, %v7906
      %v8099 = vpack.c.b16 %v7911, %v7907
      %v8100 = vpack.c.b16 %v7912, %v7908
      %v8101 = vpack.c.b16 %v7913, %v7909
      %v8102 = vpack.c.b16 %v7918, %v7914
      %v8103 = vpack.c.b16 %v7919, %v7915
      %v8104 = vpack.c.b16 %v7920, %v7916
      %v8105 = vpack.c.b16 %v7921, %v7917
      %v8106 = vpack.c.b16 %v7926, %v7922
      %v8107 = vpack.c.b16 %v7927, %v7923
      %v8108 = vpack.c.b16 %v7928, %v7924
      %v8109 = vpack.c.b16 %v7929, %v7925
      %v8110 = vpack.c.b16 %v7934, %v7930
      %v8111 = vpack.c.b16 %v7935, %v7931
      %v8112 = vpack.c.b16 %v7936, %v7932
      %v8113 = vpack.c.b16 %v7937, %v7933
      %v8114 = vpack.c.b16 %v7942, %v7938
      %v8115 = vpack.c.b16 %v7943, %v7939
      %v8116 = vpack.c.b16 %v7944, %v7940
      %v8117 = vpack.c.b16 %v7945, %v7941
      %v8118 = vpack.c.b16 %v7950, %v7946
      %v8119 = vpack.c.b16 %v7951, %v7947
      %v8120 = vpack.c.b16 %v7952, %v7948
      %v8121 = vpack.c.b16 %v7953, %v7949
      %v8122 = vpack.c.b16 %v7958, %v7954
      %v8123 = vpack.c.b16 %v7959, %v7955
      %v8124 = vpack.c.b16 %v7960, %v7956
      %v8125 = vpack.c.b16 %v7961, %v7957
      %v8126 = vpack.c.b16 %v7966, %v7962
      %v8127 = vpack.c.b16 %v7967, %v7963
      %v8128 = vpack.c.b16 %v7968, %v7964
      %v8129 = vpack.c.b16 %v7969, %v7965
      %v8130 = vpack.c.b16 %v7974, %v7970
      %v8131 = vpack.c.b16 %v7975, %v7971
      %v8132 = vpack.c.b16 %v7976, %v7972
      %v8133 = vpack.c.b16 %v7977, %v7973
      %v8134 = vpack.c.b16 %v7982, %v7978
      %v8135 = vpack.c.b16 %v7983, %v7979
      %v8136 = vpack.c.b16 %v7984, %v7980
      %v8137 = vpack.c.b16 %v7985, %v7981
      %v8138 = vpack.c.b16 %v7990, %v7986
      %v8139 = vpack.c.b16 %v7991, %v7987
      %v8140 = vpack.c.b16 %v7992, %v7988
      %v8141 = vpack.c.b16 %v7993, %v7989
      %v8142 = vpack.c.b16 %v7998, %v7994
      %v8143 = vpack.c.b16 %v7999, %v7995
      %v8144 = vpack.c.b16 %v8000, %v7996
      %v8145 = vpack.c.b16 %v8001, %v7997
      %v8146 = vpack.c.b16 %v8006, %v8002
      %v8147 = vpack.c.b16 %v8007, %v8003
      %v8148 = vpack.c.b16 %v8008, %v8004
      %v8149 = vpack.c.b16 %v8009, %v8005
      %v8150 = vpack.c.b16 %v8014, %v8010
      %v8151 = vpack.c.b16 %v8015, %v8011
      %v8152 = vpack.c.b16 %v8016, %v8012
      %v8153 = vpack.c.b16 %v8017, %v8013
      %v8154 = vpack.c.b16 %v8022, %v8018
      %v8155 = vpack.c.b16 %v8023, %v8019
      %v8156 = vpack.c.b16 %v8024, %v8020
      %v8157 = vpack.c.b16 %v8025, %v8021
      %v8158 = vpack.c.b16 %v8030, %v8026
      %v8159 = vpack.c.b16 %v8031, %v8027
      %v8160 = vpack.c.b16 %v8032, %v8028
      %v8161 = vpack.c.b16 %v8033, %v8029
      %8290 = vmatprep.subr.bf16.mxu0 %v8035
      %8291 = vmatpush1.bf16.msra.mxu0 %v8034
      %8292 = vmatprep.subr.bf16.mxu0 %v8039
      %8293 = vmatpush1.bf16.msra.mxu0 %v8038
      %8294 = vmatprep.subr.bf16.mxu0 %v8043
      %8295 = vmatpush1.bf16.msra.mxu0 %v8042
      %8296 = vmatprep.subr.bf16.mxu0 %v8047
      %8297 = vmatpush1.bf16.msra.mxu0 %v8046
      %8298 = vmatprep.subr.bf16.mxu0 %v8051
      %8299 = vmatpush1.bf16.msra.mxu0 %v8050
      %8300 = vmatprep.subr.bf16.mxu0 %v8055
      %8301 = vmatpush1.bf16.msra.mxu0 %v8054
      %8302 = vmatprep.subr.bf16.mxu0 %v8059
      %8303 = vmatpush1.bf16.msra.mxu0 %v8058
      %8304 = vmatprep.subr.bf16.mxu0 %v8063
      %8305 = vmatpush1.bf16.msra.mxu0 %v8062
      %8306 = vmatprep.subr.bf16.mxu0 %v8067
      %8307 = vmatpush1.bf16.msra.mxu0 %v8066
      %8308 = vmatprep.subr.bf16.mxu0 %v8071
      %8309 = vmatpush1.bf16.msra.mxu0 %v8070
      %8310 = vmatprep.subr.bf16.mxu0 %v8075
      %8311 = vmatpush1.bf16.msra.mxu0 %v8074
      %8312 = vmatprep.subr.bf16.mxu0 %v8079
      %8313 = vmatpush1.bf16.msra.mxu0 %v8078
      %8314 = vmatprep.subr.bf16.mxu0 %v8083
      %8315 = vmatpush1.bf16.msra.mxu0 %v8082
      %8316 = vmatprep.subr.bf16.mxu0 %v8087
      %8317 = vmatpush1.bf16.msra.mxu0 %v8086
      %8318 = vmatprep.subr.bf16.mxu0 %v8091
      %8319 = vmatpush1.bf16.msra.mxu0 %v8090
      %8320 = vmatprep.subr.bf16.mxu0 %v8095
      %8321 = vmatpush1.bf16.msra.mxu0 %v8094
      %8322 = vmatprep.mubr.bf16.mxu0 %v6775
      %8323 = vmatmul.mubr.bf16.gmra.mrb[0].mxu0 %v6774
      %v8324 = vpop.f32.mrb[0].mxu0
      %v8325 = vadd.f32 %v7552, %v8324
      %v8326 = vpop.f32.mrb[0].mxu0
      %v8327 = vadd.f32 %v7554, %v8326
      %v8328 = vpop.f32.mrb[0].mxu0
      %v8329 = vadd.f32 %v7556, %v8328
      %v8330 = vpop.f32.mrb[0].mxu0
      %v8331 = vadd.f32 %v7558, %v8330
      %8332 = vdwg.mxu0
      %8333 = vmatprep.subr.bf16.mxu0 %v8099
      %8334 = vmatpush1.bf16.msra.mxu0 %v8098
      %8335 = vmatprep.subr.bf16.mxu0 %v8103
      %8336 = vmatpush1.bf16.msra.mxu0 %v8102
      %8337 = vmatprep.subr.bf16.mxu0 %v8107
      %8338 = vmatpush1.bf16.msra.mxu0 %v8106
      %8339 = vmatprep.subr.bf16.mxu0 %v8111
      %8340 = vmatpush1.bf16.msra.mxu0 %v8110
      %8341 = vmatprep.subr.bf16.mxu0 %v8115
      %8342 = vmatpush1.bf16.msra.mxu0 %v8114
      %8343 = vmatprep.subr.bf16.mxu0 %v8119
      %8344 = vmatpush1.bf16.msra.mxu0 %v8118
      %8345 = vmatprep.subr.bf16.mxu0 %v8123
      %8346 = vmatpush1.bf16.msra.mxu0 %v8122
      %8347 = vmatprep.subr.bf16.mxu0 %v8127
      %8348 = vmatpush1.bf16.msra.mxu0 %v8126
      %8349 = vmatprep.subr.bf16.mxu0 %v8131
      %8350 = vmatpush1.bf16.msra.mxu0 %v8130
      %8351 = vmatprep.subr.bf16.mxu0 %v8135
      %8352 = vmatpush1.bf16.msra.mxu0 %v8134
      %8353 = vmatprep.subr.bf16.mxu0 %v8139
      %8354 = vmatpush1.bf16.msra.mxu0 %v8138
      %8355 = vmatprep.subr.bf16.mxu0 %v8143
      %8356 = vmatpush1.bf16.msra.mxu0 %v8142
      %8357 = vmatprep.subr.bf16.mxu0 %v8147
      %8358 = vmatpush1.bf16.msra.mxu0 %v8146
      %8359 = vmatprep.subr.bf16.mxu0 %v8151
      %8360 = vmatpush1.bf16.msra.mxu0 %v8150
      %8361 = vmatprep.subr.bf16.mxu0 %v8155
      %8362 = vmatpush1.bf16.msra.mxu0 %v8154
      %8363 = vmatprep.subr.bf16.mxu0 %v8159
      %8364 = vmatpush1.bf16.msra.mxu0 %v8158
      %8365 = vmatprep.mubr.bf16.mxu0 %v6777
      %8366 = vmatmul.mubr.bf16.gmra.mrb[0].mxu0 %v6776
      %v8367 = vpop.f32.mrb[0].mxu0
      %v8368 = vadd.f32 %v8325, %v8367
      %v8369 = vpop.f32.mrb[0].mxu0
      %v8370 = vadd.f32 %v8327, %v8369
      %v8371 = vpop.f32.mrb[0].mxu0
      %v8372 = vadd.f32 %v8329, %v8371
      %v8373 = vpop.f32.mrb[0].mxu0
      %v8374 = vadd.f32 %v8331, %v8373
      %8375 = vdwg.mxu0
      %8376 = vmatprep.subr.bf16.mxu0 %v8037
      %8377 = vmatpush1.bf16.msra.mxu0 %v8036
      %8378 = vmatprep.subr.bf16.mxu0 %v8041
      %8379 = vmatpush1.bf16.msra.mxu0 %v8040
      %8380 = vmatprep.subr.bf16.mxu0 %v8045
      %8381 = vmatpush1.bf16.msra.mxu0 %v8044
      %8382 = vmatprep.subr.bf16.mxu0 %v8049
      %8383 = vmatpush1.bf16.msra.mxu0 %v8048
      %8384 = vmatprep.subr.bf16.mxu0 %v8053
      %8385 = vmatpush1.bf16.msra.mxu0 %v8052
      %8386 = vmatprep.subr.bf16.mxu0 %v8057
      %8387 = vmatpush1.bf16.msra.mxu0 %v8056
      %8388 = vmatprep.subr.bf16.mxu0 %v8061
      %8389 = vmatpush1.bf16.msra.mxu0 %v8060
      %8390 = vmatprep.subr.bf16.mxu0 %v8065
      %8391 = vmatpush1.bf16.msra.mxu0 %v8064
      %8392 = vmatprep.subr.bf16.mxu0 %v8069
      %8393 = vmatpush1.bf16.msra.mxu0 %v8068
      %8394 = vmatprep.subr.bf16.mxu0 %v8073
      %8395 = vmatpush1.bf16.msra.mxu0 %v8072
      %8396 = vmatprep.subr.bf16.mxu0 %v8077
      %8397 = vmatpush1.bf16.msra.mxu0 %v8076
      %8398 = vmatprep.subr.bf16.mxu0 %v8081
      %8399 = vmatpush1.bf16.msra.mxu0 %v8080
      %8400 = vmatprep.subr.bf16.mxu0 %v8085
      %8401 = vmatpush1.bf16.msra.mxu0 %v8084
      %8402 = vmatprep.subr.bf16.mxu0 %v8089
      %8403 = vmatpush1.bf16.msra.mxu0 %v8088
      %8404 = vmatprep.subr.bf16.mxu0 %v8093
      %8405 = vmatpush1.bf16.msra.mxu0 %v8092
      %8406 = vmatprep.subr.bf16.mxu0 %v8097
      %8407 = vmatpush1.bf16.msra.mxu0 %v8096
      %8408 = vmatprep.mubr.bf16.mxu0 %v6775
      %8409 = vmatmul.mubr.bf16.gmra.mrb[0].mxu0 %v6774
      %v8410 = vpop.f32.mrb[0].mxu0
      %v8411 = vadd.f32 %v7638, %v8410
      %v8412 = vpop.f32.mrb[0].mxu0
      %v8413 = vadd.f32 %v7640, %v8412
      %v8414 = vpop.f32.mrb[0].mxu0
      %v8415 = vadd.f32 %v7642, %v8414
      %v8416 = vpop.f32.mrb[0].mxu0
      %v8417 = vadd.f32 %v7644, %v8416
      %8418 = vdwg.mxu0
      %8419 = vmatprep.subr.bf16.mxu0 %v8101
      %8420 = vmatpush1.bf16.msra.mxu0 %v8100
      %8421 = vmatprep.subr.bf16.mxu0 %v8105
      %8422 = vmatpush1.bf16.msra.mxu0 %v8104
      %8423 = vmatprep.subr.bf16.mxu0 %v8109
      %8424 = vmatpush1.bf16.msra.mxu0 %v8108
      %8425 = vmatprep.subr.bf16.mxu0 %v8113
      %8426 = vmatpush1.bf16.msra.mxu0 %v8112
      %8427 = vmatprep.subr.bf16.mxu0 %v8117
      %8428 = vmatpush1.bf16.msra.mxu0 %v8116
      %8429 = vmatprep.subr.bf16.mxu0 %v8121
      %8430 = vmatpush1.bf16.msra.mxu0 %v8120
      %8431 = vmatprep.subr.bf16.mxu0 %v8125
      %8432 = vmatpush1.bf16.msra.mxu0 %v8124
      %8433 = vmatprep.subr.bf16.mxu0 %v8129
      %8434 = vmatpush1.bf16.msra.mxu0 %v8128
      %8435 = vmatprep.subr.bf16.mxu0 %v8133
      %8436 = vmatpush1.bf16.msra.mxu0 %v8132
      %8437 = vmatprep.subr.bf16.mxu0 %v8137
      %8438 = vmatpush1.bf16.msra.mxu0 %v8136
      %8439 = vmatprep.subr.bf16.mxu0 %v8141
      %8440 = vmatpush1.bf16.msra.mxu0 %v8140
      %8441 = vmatprep.subr.bf16.mxu0 %v8145
      %8442 = vmatpush1.bf16.msra.mxu0 %v8144
      %8443 = vmatprep.subr.bf16.mxu0 %v8149
      %8444 = vmatpush1.bf16.msra.mxu0 %v8148
      %8445 = vmatprep.subr.bf16.mxu0 %v8153
      %8446 = vmatpush1.bf16.msra.mxu0 %v8152
      %8447 = vmatprep.subr.bf16.mxu0 %v8157
      %8448 = vmatpush1.bf16.msra.mxu0 %v8156
      %8449 = vmatprep.subr.bf16.mxu0 %v8161
      %8450 = vmatpush1.bf16.msra.mxu0 %v8160
      %8451 = vmatprep.mubr.bf16.mxu0 %v6777
      %8452 = vmatmul.mubr.bf16.gmra.mrb[0].mxu0 %v6776
      %v8453 = vpop.f32.mrb[0].mxu0
      %v8454 = vadd.f32 %v8411, %v8453
      %v8455 = vpop.f32.mrb[0].mxu0
      %v8456 = vadd.f32 %v8413, %v8455
      %v8457 = vpop.f32.mrb[0].mxu0
      %v8458 = vadd.f32 %v8415, %v8457
      %v8459 = vpop.f32.mrb[0].mxu0
      %v8460 = vadd.f32 %v8417, %v8459
      %8461 = vdwg.mxu0
      %v8462 = vld [vmem:[#allocation2] sm:$0xee]
      %v8463 = vld [vmem:[#allocation2 + $0x8] sm:$0xee]
      %s8464 = scalar_lea.vmem %s5, 2048
      %v8465 = vld [vmem:[%s8464] sm:$0xff]
      %v8466 = vld [vmem:[%s8464 + $0x8] sm:$0xff]
      %v8467 = vld [vmem:[%s8464 + $0x10] sm:$0xff]
      %v8468 = vld [vmem:[%s8464 + $0x18] sm:$0xff]
      %v8469 = vld [vmem:[%s8464 + $0x20] sm:$0xff]
      %v8470 = vld [vmem:[%s8464 + $0x28] sm:$0xff]
      %v8471 = vld [vmem:[%s8464 + $0x30] sm:$0xff]
      %v8472 = vld [vmem:[%s8464 + $0x38] sm:$0xff]
      %v8473 = vld [vmem:[%s8464 + $0x40] sm:$0xff]
      %v8474 = vld [vmem:[%s8464 + $0x48] sm:$0xff]
      %v8475 = vld [vmem:[%s8464 + $0x50] sm:$0xff]
      %v8476 = vld [vmem:[%s8464 + $0x58] sm:$0xff]
      %v8477 = vld [vmem:[%s8464 + $0x60] sm:$0xff]
      %v8478 = vld [vmem:[%s8464 + $0x68] sm:$0xff]
      %v8479 = vld [vmem:[%s8464 + $0x70] sm:$0xff]
      %v8480 = vld [vmem:[%s8464 + $0x78] sm:$0xff]
      %v8481 = vld [vmem:[%s8464 + $0x80] sm:$0xff]
      %v8482 = vld [vmem:[%s8464 + $0x88] sm:$0xff]
      %v8483 = vld [vmem:[%s8464 + $0x90] sm:$0xff]
      %v8484 = vld [vmem:[%s8464 + $0x98] sm:$0xff]
      %v8485 = vld [vmem:[%s8464 + $0xa0] sm:$0xff]
      %v8486 = vld [vmem:[%s8464 + $0xa8] sm:$0xff]
      %v8487 = vld [vmem:[%s8464 + $0xb0] sm:$0xff]
      %v8488 = vld [vmem:[%s8464 + $0xb8] sm:$0xff]
      %v8489 = vld [vmem:[%s8464 + $0xc0] sm:$0xff]
      %v8490 = vld [vmem:[%s8464 + $0xc8] sm:$0xff]
      %v8491 = vld [vmem:[%s8464 + $0xd0] sm:$0xff]
      %v8492 = vld [vmem:[%s8464 + $0xd8] sm:$0xff]
      %v8493 = vld [vmem:[%s8464 + $0xe0] sm:$0xff]
      %v8494 = vld [vmem:[%s8464 + $0xe8] sm:$0xff]
      %v8495 = vld [vmem:[%s8464 + $0xf0] sm:$0xff]
      %v8496 = vld [vmem:[%s8464 + $0xf8] sm:$0xff]
      %v8497 = vld [vmem:[%s8464 + $0x100] sm:$0xff]
      %v8498 = vld [vmem:[%s8464 + $0x108] sm:$0xff]
      %v8499 = vld [vmem:[%s8464 + $0x110] sm:$0xff]
      %v8500 = vld [vmem:[%s8464 + $0x118] sm:$0xff]
      %v8501 = vld [vmem:[%s8464 + $0x120] sm:$0xff]
      %v8502 = vld [vmem:[%s8464 + $0x128] sm:$0xff]
      %v8503 = vld [vmem:[%s8464 + $0x130] sm:$0xff]
      %v8504 = vld [vmem:[%s8464 + $0x138] sm:$0xff]
      %v8505 = vld [vmem:[%s8464 + $0x140] sm:$0xff]
      %v8506 = vld [vmem:[%s8464 + $0x148] sm:$0xff]
      %v8507 = vld [vmem:[%s8464 + $0x150] sm:$0xff]
      %v8508 = vld [vmem:[%s8464 + $0x158] sm:$0xff]
      %v8509 = vld [vmem:[%s8464 + $0x160] sm:$0xff]
      %v8510 = vld [vmem:[%s8464 + $0x168] sm:$0xff]
      %v8511 = vld [vmem:[%s8464 + $0x170] sm:$0xff]
      %v8512 = vld [vmem:[%s8464 + $0x178] sm:$0xff]
      %v8513 = vld [vmem:[%s8464 + $0x180] sm:$0xff]
      %v8514 = vld [vmem:[%s8464 + $0x188] sm:$0xff]
      %v8515 = vld [vmem:[%s8464 + $0x190] sm:$0xff]
      %v8516 = vld [vmem:[%s8464 + $0x198] sm:$0xff]
      %v8517 = vld [vmem:[%s8464 + $0x1a0] sm:$0xff]
      %v8518 = vld [vmem:[%s8464 + $0x1a8] sm:$0xff]
      %v8519 = vld [vmem:[%s8464 + $0x1b0] sm:$0xff]
      %v8520 = vld [vmem:[%s8464 + $0x1b8] sm:$0xff]
      %v8521 = vld [vmem:[%s8464 + $0x1c0] sm:$0xff]
      %v8522 = vld [vmem:[%s8464 + $0x1c8] sm:$0xff]
      %v8523 = vld [vmem:[%s8464 + $0x1d0] sm:$0xff]
      %v8524 = vld [vmem:[%s8464 + $0x1d8] sm:$0xff]
      %v8525 = vld [vmem:[%s8464 + $0x1e0] sm:$0xff]
      %v8526 = vld [vmem:[%s8464 + $0x1e8] sm:$0xff]
      %v8527 = vld [vmem:[%s8464 + $0x1f0] sm:$0xff]
      %v8528 = vld [vmem:[%s8464 + $0x1f8] sm:$0xff]
      %v8529 = vld [vmem:[%s8464 + $0x200] sm:$0xff]
      %v8530 = vld [vmem:[%s8464 + $0x208] sm:$0xff]
      %v8531 = vld [vmem:[%s8464 + $0x210] sm:$0xff]
      %v8532 = vld [vmem:[%s8464 + $0x218] sm:$0xff]
      %v8533 = vld [vmem:[%s8464 + $0x220] sm:$0xff]
      %v8534 = vld [vmem:[%s8464 + $0x228] sm:$0xff]
      %v8535 = vld [vmem:[%s8464 + $0x230] sm:$0xff]
      %v8536 = vld [vmem:[%s8464 + $0x238] sm:$0xff]
      %v8537 = vld [vmem:[%s8464 + $0x240] sm:$0xff]
      %v8538 = vld [vmem:[%s8464 + $0x248] sm:$0xff]
      %v8539 = vld [vmem:[%s8464 + $0x250] sm:$0xff]
      %v8540 = vld [vmem:[%s8464 + $0x258] sm:$0xff]
      %v8541 = vld [vmem:[%s8464 + $0x260] sm:$0xff]
      %v8542 = vld [vmem:[%s8464 + $0x268] sm:$0xff]
      %v8543 = vld [vmem:[%s8464 + $0x270] sm:$0xff]
      %v8544 = vld [vmem:[%s8464 + $0x278] sm:$0xff]
      %v8545 = vld [vmem:[%s8464 + $0x280] sm:$0xff]
      %v8546 = vld [vmem:[%s8464 + $0x288] sm:$0xff]
      %v8547 = vld [vmem:[%s8464 + $0x290] sm:$0xff]
      %v8548 = vld [vmem:[%s8464 + $0x298] sm:$0xff]
      %v8549 = vld [vmem:[%s8464 + $0x2a0] sm:$0xff]
      %v8550 = vld [vmem:[%s8464 + $0x2a8] sm:$0xff]
      %v8551 = vld [vmem:[%s8464 + $0x2b0] sm:$0xff]
      %v8552 = vld [vmem:[%s8464 + $0x2b8] sm:$0xff]
      %v8553 = vld [vmem:[%s8464 + $0x2c0] sm:$0xff]
      %v8554 = vld [vmem:[%s8464 + $0x2c8] sm:$0xff]
      %v8555 = vld [vmem:[%s8464 + $0x2d0] sm:$0xff]
      %v8556 = vld [vmem:[%s8464 + $0x2d8] sm:$0xff]
      %v8557 = vld [vmem:[%s8464 + $0x2e0] sm:$0xff]
      %v8558 = vld [vmem:[%s8464 + $0x2e8] sm:$0xff]
      %v8559 = vld [vmem:[%s8464 + $0x2f0] sm:$0xff]
      %v8560 = vld [vmem:[%s8464 + $0x2f8] sm:$0xff]
      %v8561 = vld [vmem:[%s8464 + $0x300] sm:$0xff]
      %v8562 = vld [vmem:[%s8464 + $0x308] sm:$0xff]
      %v8563 = vld [vmem:[%s8464 + $0x310] sm:$0xff]
      %v8564 = vld [vmem:[%s8464 + $0x318] sm:$0xff]
      %v8565 = vld [vmem:[%s8464 + $0x320] sm:$0xff]
      %v8566 = vld [vmem:[%s8464 + $0x328] sm:$0xff]
      %v8567 = vld [vmem:[%s8464 + $0x330] sm:$0xff]
      %v8568 = vld [vmem:[%s8464 + $0x338] sm:$0xff]
      %v8569 = vld [vmem:[%s8464 + $0x340] sm:$0xff]
      %v8570 = vld [vmem:[%s8464 + $0x348] sm:$0xff]
      %v8571 = vld [vmem:[%s8464 + $0x350] sm:$0xff]
      %v8572 = vld [vmem:[%s8464 + $0x358] sm:$0xff]
      %v8573 = vld [vmem:[%s8464 + $0x360] sm:$0xff]
      %v8574 = vld [vmem:[%s8464 + $0x368] sm:$0xff]
      %v8575 = vld [vmem:[%s8464 + $0x370] sm:$0xff]
      %v8576 = vld [vmem:[%s8464 + $0x378] sm:$0xff]
      %v8577 = vld [vmem:[%s8464 + $0x380] sm:$0xff]
      %v8578 = vld [vmem:[%s8464 + $0x388] sm:$0xff]
      %v8579 = vld [vmem:[%s8464 + $0x390] sm:$0xff]
      %v8580 = vld [vmem:[%s8464 + $0x398] sm:$0xff]
      %v8581 = vld [vmem:[%s8464 + $0x3a0] sm:$0xff]
      %v8582 = vld [vmem:[%s8464 + $0x3a8] sm:$0xff]
      %v8583 = vld [vmem:[%s8464 + $0x3b0] sm:$0xff]
      %v8584 = vld [vmem:[%s8464 + $0x3b8] sm:$0xff]
      %v8585 = vld [vmem:[%s8464 + $0x3c0] sm:$0xff]
      %v8586 = vld [vmem:[%s8464 + $0x3c8] sm:$0xff]
      %v8587 = vld [vmem:[%s8464 + $0x3d0] sm:$0xff]
      %v8588 = vld [vmem:[%s8464 + $0x3d8] sm:$0xff]
      %v8589 = vld [vmem:[%s8464 + $0x3e0] sm:$0xff]
      %v8590 = vld [vmem:[%s8464 + $0x3e8] sm:$0xff]
      %v8591 = vld [vmem:[%s8464 + $0x3f0] sm:$0xff]
      %v8592 = vld [vmem:[%s8464 + $0x3f8] sm:$0xff]
      %v8595 = vunpack.c.l.b16 %v8462
      %v8596 = vunpack.c.h.b16 %v8462
      %v8597 = vunpack.c.l.b16 %v8463
      %v8598 = vunpack.c.h.b16 %v8463
      %v8599 = vpack.c.b16 %v6766, %v8595
      %v8600 = vpack.c.b16 %v6767, %v8596
      %v8601 = vpack.c.b16 %v6768, %v8597
      %v8602 = vpack.c.b16 %v6769, %v8598
      %v8603 = vrot.slane %v8599, 1
      %v8604 = vrot.slane %v6778, 1
      %v8605 = vsel %vm2480, %v8603, %v8604
      %v8606 = vrot.slane %v8600, 1
      %v8607 = vrot.slane %v6779, 1
      %v8608 = vsel %vm2480, %v8606, %v8607
      %v8609 = vrot.slane %v8601, 1
      %v8610 = vrot.slane %v6780, 1
      %v8611 = vsel %vm2480, %v8609, %v8610
      %v8612 = vrot.slane %v8602, 1
      %v8613 = vrot.slane %v6781, 1
      %v8614 = vsel %vm2480, %v8612, %v8613
      %v8747 = vunpack.c.l.b16 %v8465
      %v8748 = vunpack.c.h.b16 %v8465
      %v8749 = vunpack.c.l.b16 %v8466
      %v8750 = vunpack.c.h.b16 %v8466
      %v8751 = vunpack.c.l.b16 %v8467
      %v8752 = vunpack.c.h.b16 %v8467
      %v8753 = vunpack.c.l.b16 %v8468
      %v8754 = vunpack.c.h.b16 %v8468
      %v8755 = vunpack.c.l.b16 %v8469
      %v8756 = vunpack.c.h.b16 %v8469
      %v8757 = vunpack.c.l.b16 %v8470
      %v8758 = vunpack.c.h.b16 %v8470
      %v8759 = vunpack.c.l.b16 %v8471
      %v8760 = vunpack.c.h.b16 %v8471
      %v8761 = vunpack.c.l.b16 %v8472
      %v8762 = vunpack.c.h.b16 %v8472
      %v8763 = vunpack.c.l.b16 %v8473
      %v8764 = vunpack.c.h.b16 %v8473
      %v8765 = vunpack.c.l.b16 %v8474
      %v8766 = vunpack.c.h.b16 %v8474
      %v8767 = vunpack.c.l.b16 %v8475
      %v8768 = vunpack.c.h.b16 %v8475
      %v8769 = vunpack.c.l.b16 %v8476
      %v8770 = vunpack.c.h.b16 %v8476
      %v8771 = vunpack.c.l.b16 %v8477
      %v8772 = vunpack.c.h.b16 %v8477
      %v8773 = vunpack.c.l.b16 %v8478
      %v8774 = vunpack.c.h.b16 %v8478
      %v8775 = vunpack.c.l.b16 %v8479
      %v8776 = vunpack.c.h.b16 %v8479
      %v8777 = vunpack.c.l.b16 %v8480
      %v8778 = vunpack.c.h.b16 %v8480
      %v8779 = vunpack.c.l.b16 %v8481
      %v8780 = vunpack.c.h.b16 %v8481
      %v8781 = vunpack.c.l.b16 %v8482
      %v8782 = vunpack.c.h.b16 %v8482
      %v8783 = vunpack.c.l.b16 %v8483
      %v8784 = vunpack.c.h.b16 %v8483
      %v8785 = vunpack.c.l.b16 %v8484
      %v8786 = vunpack.c.h.b16 %v8484
      %v8787 = vunpack.c.l.b16 %v8485
      %v8788 = vunpack.c.h.b16 %v8485
      %v8789 = vunpack.c.l.b16 %v8486
      %v8790 = vunpack.c.h.b16 %v8486
      %v8791 = vunpack.c.l.b16 %v8487
      %v8792 = vunpack.c.h.b16 %v8487
      %v8793 = vunpack.c.l.b16 %v8488
      %v8794 = vunpack.c.h.b16 %v8488
      %v8795 = vunpack.c.l.b16 %v8489
      %v8796 = vunpack.c.h.b16 %v8489
      %v8797 = vunpack.c.l.b16 %v8490
      %v8798 = vunpack.c.h.b16 %v8490
      %v8799 = vunpack.c.l.b16 %v8491
      %v8800 = vunpack.c.h.b16 %v8491
      %v8801 = vunpack.c.l.b16 %v8492
      %v8802 = vunpack.c.h.b16 %v8492
      %v8803 = vunpack.c.l.b16 %v8493
      %v8804 = vunpack.c.h.b16 %v8493
      %v8805 = vunpack.c.l.b16 %v8494
      %v8806 = vunpack.c.h.b16 %v8494
      %v8807 = vunpack.c.l.b16 %v8495
      %v8808 = vunpack.c.h.b16 %v8495
      %v8809 = vunpack.c.l.b16 %v8496
      %v8810 = vunpack.c.h.b16 %v8496
      %v8811 = vunpack.c.l.b16 %v8497
      %v8812 = vunpack.c.h.b16 %v8497
      %v8813 = vunpack.c.l.b16 %v8498
      %v8814 = vunpack.c.h.b16 %v8498
      %v8815 = vunpack.c.l.b16 %v8499
      %v8816 = vunpack.c.h.b16 %v8499
      %v8817 = vunpack.c.l.b16 %v8500
      %v8818 = vunpack.c.h.b16 %v8500
      %v8819 = vunpack.c.l.b16 %v8501
      %v8820 = vunpack.c.h.b16 %v8501
      %v8821 = vunpack.c.l.b16 %v8502
      %v8822 = vunpack.c.h.b16 %v8502
      %v8823 = vunpack.c.l.b16 %v8503
      %v8824 = vunpack.c.h.b16 %v8503
      %v8825 = vunpack.c.l.b16 %v8504
      %v8826 = vunpack.c.h.b16 %v8504
      %v8827 = vunpack.c.l.b16 %v8505
      %v8828 = vunpack.c.h.b16 %v8505
      %v8829 = vunpack.c.l.b16 %v8506
      %v8830 = vunpack.c.h.b16 %v8506
      %v8831 = vunpack.c.l.b16 %v8507
      %v8832 = vunpack.c.h.b16 %v8507
      %v8833 = vunpack.c.l.b16 %v8508
      %v8834 = vunpack.c.h.b16 %v8508
      %v8835 = vunpack.c.l.b16 %v8509
      %v8836 = vunpack.c.h.b16 %v8509
      %v8837 = vunpack.c.l.b16 %v8510
      %v8838 = vunpack.c.h.b16 %v8510
      %v8839 = vunpack.c.l.b16 %v8511
      %v8840 = vunpack.c.h.b16 %v8511
      %v8841 = vunpack.c.l.b16 %v8512
      %v8842 = vunpack.c.h.b16 %v8512
      %v8843 = vunpack.c.l.b16 %v8513
      %v8844 = vunpack.c.h.b16 %v8513
      %v8845 = vunpack.c.l.b16 %v8514
      %v8846 = vunpack.c.h.b16 %v8514
      %v8847 = vunpack.c.l.b16 %v8515
      %v8848 = vunpack.c.h.b16 %v8515
      %v8849 = vunpack.c.l.b16 %v8516
      %v8850 = vunpack.c.h.b16 %v8516
      %v8851 = vunpack.c.l.b16 %v8517
      %v8852 = vunpack.c.h.b16 %v8517
      %v8853 = vunpack.c.l.b16 %v8518
      %v8854 = vunpack.c.h.b16 %v8518
      %v8855 = vunpack.c.l.b16 %v8519
      %v8856 = vunpack.c.h.b16 %v8519
      %v8857 = vunpack.c.l.b16 %v8520
      %v8858 = vunpack.c.h.b16 %v8520
      %v8859 = vunpack.c.l.b16 %v8521
      %v8860 = vunpack.c.h.b16 %v8521
      %v8861 = vunpack.c.l.b16 %v8522
      %v8862 = vunpack.c.h.b16 %v8522
      %v8863 = vunpack.c.l.b16 %v8523
      %v8864 = vunpack.c.h.b16 %v8523
      %v8865 = vunpack.c.l.b16 %v8524
      %v8866 = vunpack.c.h.b16 %v8524
      %v8867 = vunpack.c.l.b16 %v8525
      %v8868 = vunpack.c.h.b16 %v8525
      %v8869 = vunpack.c.l.b16 %v8526
      %v8870 = vunpack.c.h.b16 %v8526
      %v8871 = vunpack.c.l.b16 %v8527
      %v8872 = vunpack.c.h.b16 %v8527
      %v8873 = vunpack.c.l.b16 %v8528
      %v8874 = vunpack.c.h.b16 %v8528
      %v8875 = vunpack.c.l.b16 %v8529
      %v8876 = vunpack.c.h.b16 %v8529
      %v8877 = vunpack.c.l.b16 %v8530
      %v8878 = vunpack.c.h.b16 %v8530
      %v8879 = vunpack.c.l.b16 %v8531
      %v8880 = vunpack.c.h.b16 %v8531
      %v8881 = vunpack.c.l.b16 %v8532
      %v8882 = vunpack.c.h.b16 %v8532
      %v8883 = vunpack.c.l.b16 %v8533
      %v8884 = vunpack.c.h.b16 %v8533
      %v8885 = vunpack.c.l.b16 %v8534
      %v8886 = vunpack.c.h.b16 %v8534
      %v8887 = vunpack.c.l.b16 %v8535
      %v8888 = vunpack.c.h.b16 %v8535
      %v8889 = vunpack.c.l.b16 %v8536
      %v8890 = vunpack.c.h.b16 %v8536
      %v8891 = vunpack.c.l.b16 %v8537
      %v8892 = vunpack.c.h.b16 %v8537
      %v8893 = vunpack.c.l.b16 %v8538
      %v8894 = vunpack.c.h.b16 %v8538
      %v8895 = vunpack.c.l.b16 %v8539
      %v8896 = vunpack.c.h.b16 %v8539
      %v8897 = vunpack.c.l.b16 %v8540
      %v8898 = vunpack.c.h.b16 %v8540
      %v8899 = vunpack.c.l.b16 %v8541
      %v8900 = vunpack.c.h.b16 %v8541
      %v8901 = vunpack.c.l.b16 %v8542
      %v8902 = vunpack.c.h.b16 %v8542
      %v8903 = vunpack.c.l.b16 %v8543
      %v8904 = vunpack.c.h.b16 %v8543
      %v8905 = vunpack.c.l.b16 %v8544
      %v8906 = vunpack.c.h.b16 %v8544
      %v8907 = vunpack.c.l.b16 %v8545
      %v8908 = vunpack.c.h.b16 %v8545
      %v8909 = vunpack.c.l.b16 %v8546
      %v8910 = vunpack.c.h.b16 %v8546
      %v8911 = vunpack.c.l.b16 %v8547
      %v8912 = vunpack.c.h.b16 %v8547
      %v8913 = vunpack.c.l.b16 %v8548
      %v8914 = vunpack.c.h.b16 %v8548
      %v8915 = vunpack.c.l.b16 %v8549
      %v8916 = vunpack.c.h.b16 %v8549
      %v8917 = vunpack.c.l.b16 %v8550
      %v8918 = vunpack.c.h.b16 %v8550
      %v8919 = vunpack.c.l.b16 %v8551
      %v8920 = vunpack.c.h.b16 %v8551
      %v8921 = vunpack.c.l.b16 %v8552
      %v8922 = vunpack.c.h.b16 %v8552
      %v8923 = vunpack.c.l.b16 %v8553
      %v8924 = vunpack.c.h.b16 %v8553
      %v8925 = vunpack.c.l.b16 %v8554
      %v8926 = vunpack.c.h.b16 %v8554
      %v8927 = vunpack.c.l.b16 %v8555
      %v8928 = vunpack.c.h.b16 %v8555
      %v8929 = vunpack.c.l.b16 %v8556
      %v8930 = vunpack.c.h.b16 %v8556
      %v8931 = vunpack.c.l.b16 %v8557
      %v8932 = vunpack.c.h.b16 %v8557
      %v8933 = vunpack.c.l.b16 %v8558
      %v8934 = vunpack.c.h.b16 %v8558
      %v8935 = vunpack.c.l.b16 %v8559
      %v8936 = vunpack.c.h.b16 %v8559
      %v8937 = vunpack.c.l.b16 %v8560
      %v8938 = vunpack.c.h.b16 %v8560
      %v8939 = vunpack.c.l.b16 %v8561
      %v8940 = vunpack.c.h.b16 %v8561
      %v8941 = vunpack.c.l.b16 %v8562
      %v8942 = vunpack.c.h.b16 %v8562
      %v8943 = vunpack.c.l.b16 %v8563
      %v8944 = vunpack.c.h.b16 %v8563
      %v8945 = vunpack.c.l.b16 %v8564
      %v8946 = vunpack.c.h.b16 %v8564
      %v8947 = vunpack.c.l.b16 %v8565
      %v8948 = vunpack.c.h.b16 %v8565
      %v8949 = vunpack.c.l.b16 %v8566
      %v8950 = vunpack.c.h.b16 %v8566
      %v8951 = vunpack.c.l.b16 %v8567
      %v8952 = vunpack.c.h.b16 %v8567
      %v8953 = vunpack.c.l.b16 %v8568
      %v8954 = vunpack.c.h.b16 %v8568
      %v8955 = vunpack.c.l.b16 %v8569
      %v8956 = vunpack.c.h.b16 %v8569
      %v8957 = vunpack.c.l.b16 %v8570
      %v8958 = vunpack.c.h.b16 %v8570
      %v8959 = vunpack.c.l.b16 %v8571
      %v8960 = vunpack.c.h.b16 %v8571
      %v8961 = vunpack.c.l.b16 %v8572
      %v8962 = vunpack.c.h.b16 %v8572
      %v8963 = vunpack.c.l.b16 %v8573
      %v8964 = vunpack.c.h.b16 %v8573
      %v8965 = vunpack.c.l.b16 %v8574
      %v8966 = vunpack.c.h.b16 %v8574
      %v8967 = vunpack.c.l.b16 %v8575
      %v8968 = vunpack.c.h.b16 %v8575
      %v8969 = vunpack.c.l.b16 %v8576
      %v8970 = vunpack.c.h.b16 %v8576
      %v8971 = vunpack.c.l.b16 %v8577
      %v8972 = vunpack.c.h.b16 %v8577
      %v8973 = vunpack.c.l.b16 %v8578
      %v8974 = vunpack.c.h.b16 %v8578
      %v8975 = vunpack.c.l.b16 %v8579
      %v8976 = vunpack.c.h.b16 %v8579
      %v8977 = vunpack.c.l.b16 %v8580
      %v8978 = vunpack.c.h.b16 %v8580
      %v8979 = vunpack.c.l.b16 %v8581
      %v8980 = vunpack.c.h.b16 %v8581
      %v8981 = vunpack.c.l.b16 %v8582
      %v8982 = vunpack.c.h.b16 %v8582
      %v8983 = vunpack.c.l.b16 %v8583
      %v8984 = vunpack.c.h.b16 %v8583
      %v8985 = vunpack.c.l.b16 %v8584
      %v8986 = vunpack.c.h.b16 %v8584
      %v8987 = vunpack.c.l.b16 %v8585
      %v8988 = vunpack.c.h.b16 %v8585
      %v8989 = vunpack.c.l.b16 %v8586
      %v8990 = vunpack.c.h.b16 %v8586
      %v8991 = vunpack.c.l.b16 %v8587
      %v8992 = vunpack.c.h.b16 %v8587
      %v8993 = vunpack.c.l.b16 %v8588
      %v8994 = vunpack.c.h.b16 %v8588
      %v8995 = vunpack.c.l.b16 %v8589
      %v8996 = vunpack.c.h.b16 %v8589
      %v8997 = vunpack.c.l.b16 %v8590
      %v8998 = vunpack.c.h.b16 %v8590
      %v8999 = vunpack.c.l.b16 %v8591
      %v9000 = vunpack.c.h.b16 %v8591
      %v9001 = vunpack.c.l.b16 %v8592
      %v9002 = vunpack.c.h.b16 %v8592
      %v9003 = vpack.c.b16 %v8751, %v8747
      %v9004 = vpack.c.b16 %v8752, %v8748
      %v9005 = vpack.c.b16 %v8753, %v8749
      %v9006 = vpack.c.b16 %v8754, %v8750
      %v9007 = vpack.c.b16 %v8759, %v8755
      %v9008 = vpack.c.b16 %v8760, %v8756
      %v9009 = vpack.c.b16 %v8761, %v8757
      %v9010 = vpack.c.b16 %v8762, %v8758
      %v9011 = vpack.c.b16 %v8767, %v8763
      %v9012 = vpack.c.b16 %v8768, %v8764
      %v9013 = vpack.c.b16 %v8769, %v8765
      %v9014 = vpack.c.b16 %v8770, %v8766
      %v9015 = vpack.c.b16 %v8775, %v8771
      %v9016 = vpack.c.b16 %v8776, %v8772
      %v9017 = vpack.c.b16 %v8777, %v8773
      %v9018 = vpack.c.b16 %v8778, %v8774
      %v9019 = vpack.c.b16 %v8783, %v8779
      %v9020 = vpack.c.b16 %v8784, %v8780
      %v9021 = vpack.c.b16 %v8785, %v8781
      %v9022 = vpack.c.b16 %v8786, %v8782
      %v9023 = vpack.c.b16 %v8791, %v8787
      %v9024 = vpack.c.b16 %v8792, %v8788
      %v9025 = vpack.c.b16 %v8793, %v8789
      %v9026 = vpack.c.b16 %v8794, %v8790
      %v9027 = vpack.c.b16 %v8799, %v8795
      %v9028 = vpack.c.b16 %v8800, %v8796
      %v9029 = vpack.c.b16 %v8801, %v8797
      %v9030 = vpack.c.b16 %v8802, %v8798
      %v9031 = vpack.c.b16 %v8807, %v8803
      %v9032 = vpack.c.b16 %v8808, %v8804
      %v9033 = vpack.c.b16 %v8809, %v8805
      %v9034 = vpack.c.b16 %v8810, %v8806
      %v9035 = vpack.c.b16 %v8815, %v8811
      %v9036 = vpack.c.b16 %v8816, %v8812
      %v9037 = vpack.c.b16 %v8817, %v8813
      %v9038 = vpack.c.b16 %v8818, %v8814
      %v9039 = vpack.c.b16 %v8823, %v8819
      %v9040 = vpack.c.b16 %v8824, %v8820
      %v9041 = vpack.c.b16 %v8825, %v8821
      %v9042 = vpack.c.b16 %v8826, %v8822
      %v9043 = vpack.c.b16 %v8831, %v8827
      %v9044 = vpack.c.b16 %v8832, %v8828
      %v9045 = vpack.c.b16 %v8833, %v8829
      %v9046 = vpack.c.b16 %v8834, %v8830
      %v9047 = vpack.c.b16 %v8839, %v8835
      %v9048 = vpack.c.b16 %v8840, %v8836
      %v9049 = vpack.c.b16 %v8841, %v8837
      %v9050 = vpack.c.b16 %v8842, %v8838
      %v9051 = vpack.c.b16 %v8847, %v8843
      %v9052 = vpack.c.b16 %v8848, %v8844
      %v9053 = vpack.c.b16 %v8849, %v8845
      %v9054 = vpack.c.b16 %v8850, %v8846
      %v9055 = vpack.c.b16 %v8855, %v8851
      %v9056 = vpack.c.b16 %v8856, %v8852
      %v9057 = vpack.c.b16 %v8857, %v8853
      %v9058 = vpack.c.b16 %v8858, %v8854
      %v9059 = vpack.c.b16 %v8863, %v8859
      %v9060 = vpack.c.b16 %v8864, %v8860
      %v9061 = vpack.c.b16 %v8865, %v8861
      %v9062 = vpack.c.b16 %v8866, %v8862
      %v9063 = vpack.c.b16 %v8871, %v8867
      %v9064 = vpack.c.b16 %v8872, %v8868
      %v9065 = vpack.c.b16 %v8873, %v8869
      %v9066 = vpack.c.b16 %v8874, %v8870
      %v9067 = vpack.c.b16 %v8879, %v8875
      %v9068 = vpack.c.b16 %v8880, %v8876
      %v9069 = vpack.c.b16 %v8881, %v8877
      %v9070 = vpack.c.b16 %v8882, %v8878
      %v9071 = vpack.c.b16 %v8887, %v8883
      %v9072 = vpack.c.b16 %v8888, %v8884
      %v9073 = vpack.c.b16 %v8889, %v8885
      %v9074 = vpack.c.b16 %v8890, %v8886
      %v9075 = vpack.c.b16 %v8895, %v8891
      %v9076 = vpack.c.b16 %v8896, %v8892
      %v9077 = vpack.c.b16 %v8897, %v8893
      %v9078 = vpack.c.b16 %v8898, %v8894
      %v9079 = vpack.c.b16 %v8903, %v8899
      %v9080 = vpack.c.b16 %v8904, %v8900
      %v9081 = vpack.c.b16 %v8905, %v8901
      %v9082 = vpack.c.b16 %v8906, %v8902
      %v9083 = vpack.c.b16 %v8911, %v8907
      %v9084 = vpack.c.b16 %v8912, %v8908
      %v9085 = vpack.c.b16 %v8913, %v8909
      %v9086 = vpack.c.b16 %v8914, %v8910
      %v9087 = vpack.c.b16 %v8919, %v8915
      %v9088 = vpack.c.b16 %v8920, %v8916
      %v9089 = vpack.c.b16 %v8921, %v8917
      %v9090 = vpack.c.b16 %v8922, %v8918
      %v9091 = vpack.c.b16 %v8927, %v8923
      %v9092 = vpack.c.b16 %v8928, %v8924
      %v9093 = vpack.c.b16 %v8929, %v8925
      %v9094 = vpack.c.b16 %v8930, %v8926
      %v9095 = vpack.c.b16 %v8935, %v8931
      %v9096 = vpack.c.b16 %v8936, %v8932
      %v9097 = vpack.c.b16 %v8937, %v8933
      %v9098 = vpack.c.b16 %v8938, %v8934
      %v9099 = vpack.c.b16 %v8943, %v8939
      %v9100 = vpack.c.b16 %v8944, %v8940
      %v9101 = vpack.c.b16 %v8945, %v8941
      %v9102 = vpack.c.b16 %v8946, %v8942
      %v9103 = vpack.c.b16 %v8951, %v8947
      %v9104 = vpack.c.b16 %v8952, %v8948
      %v9105 = vpack.c.b16 %v8953, %v8949
      %v9106 = vpack.c.b16 %v8954, %v8950
      %v9107 = vpack.c.b16 %v8959, %v8955
      %v9108 = vpack.c.b16 %v8960, %v8956
      %v9109 = vpack.c.b16 %v8961, %v8957
      %v9110 = vpack.c.b16 %v8962, %v8958
      %v9111 = vpack.c.b16 %v8967, %v8963
      %v9112 = vpack.c.b16 %v8968, %v8964
      %v9113 = vpack.c.b16 %v8969, %v8965
      %v9114 = vpack.c.b16 %v8970, %v8966
      %v9115 = vpack.c.b16 %v8975, %v8971
      %v9116 = vpack.c.b16 %v8976, %v8972
      %v9117 = vpack.c.b16 %v8977, %v8973
      %v9118 = vpack.c.b16 %v8978, %v8974
      %v9119 = vpack.c.b16 %v8983, %v8979
      %v9120 = vpack.c.b16 %v8984, %v8980
      %v9121 = vpack.c.b16 %v8985, %v8981
      %v9122 = vpack.c.b16 %v8986, %v8982
      %v9123 = vpack.c.b16 %v8991, %v8987
      %v9124 = vpack.c.b16 %v8992, %v8988
      %v9125 = vpack.c.b16 %v8993, %v8989
      %v9126 = vpack.c.b16 %v8994, %v8990
      %v9127 = vpack.c.b16 %v8999, %v8995
      %v9128 = vpack.c.b16 %v9000, %v8996
      %v9129 = vpack.c.b16 %v9001, %v8997
      %v9130 = vpack.c.b16 %v9002, %v8998
      %9259 = vmatprep.subr.bf16.mxu0 %v9004
      %9260 = vmatpush1.bf16.msra.mxu0 %v9003
      %9261 = vmatprep.subr.bf16.mxu0 %v9008
      %9262 = vmatpush1.bf16.msra.mxu0 %v9007
      %9263 = vmatprep.subr.bf16.mxu0 %v9012
      %9264 = vmatpush1.bf16.msra.mxu0 %v9011
      %9265 = vmatprep.subr.bf16.mxu0 %v9016
      %9266 = vmatpush1.bf16.msra.mxu0 %v9015
      %9267 = vmatprep.subr.bf16.mxu0 %v9020
      %9268 = vmatpush1.bf16.msra.mxu0 %v9019
      %9269 = vmatprep.subr.bf16.mxu0 %v9024
      %9270 = vmatpush1.bf16.msra.mxu0 %v9023
      %9271 = vmatprep.subr.bf16.mxu0 %v9028
      %9272 = vmatpush1.bf16.msra.mxu0 %v9027
      %9273 = vmatprep.subr.bf16.mxu0 %v9032
      %9274 = vmatpush1.bf16.msra.mxu0 %v9031
      %9275 = vmatprep.subr.bf16.mxu0 %v9036
      %9276 = vmatpush1.bf16.msra.mxu0 %v9035
      %9277 = vmatprep.subr.bf16.mxu0 %v9040
      %9278 = vmatpush1.bf16.msra.mxu0 %v9039
      %9279 = vmatprep.subr.bf16.mxu0 %v9044
      %9280 = vmatpush1.bf16.msra.mxu0 %v9043
      %9281 = vmatprep.subr.bf16.mxu0 %v9048
      %9282 = vmatpush1.bf16.msra.mxu0 %v9047
      %9283 = vmatprep.subr.bf16.mxu0 %v9052
      %9284 = vmatpush1.bf16.msra.mxu0 %v9051
      %9285 = vmatprep.subr.bf16.mxu0 %v9056
      %9286 = vmatpush1.bf16.msra.mxu0 %v9055
      %9287 = vmatprep.subr.bf16.mxu0 %v9060
      %9288 = vmatpush1.bf16.msra.mxu0 %v9059
      %9289 = vmatprep.subr.bf16.mxu0 %v9064
      %9290 = vmatpush1.bf16.msra.mxu0 %v9063
      %9291 = vmatprep.mubr.bf16.mxu0 %v8608
      %9292 = vmatmul.mubr.bf16.gmra.mrb[0].mxu0 %v8605
      %v9293 = vpop.f32.mrb[0].mxu0
      %v9294 = vadd.f32 0.0, %v9293
      %v9295 = vpop.f32.mrb[0].mxu0
      %v9296 = vadd.f32 0.0, %v9295
      %v9297 = vpop.f32.mrb[0].mxu0
      %v9298 = vadd.f32 0.0, %v9297
      %v9299 = vpop.f32.mrb[0].mxu0
      %v9300 = vadd.f32 0.0, %v9299
      %9301 = vdwg.mxu0
      %9302 = vmatprep.subr.bf16.mxu0 %v9068
      %9303 = vmatpush1.bf16.msra.mxu0 %v9067
      %9304 = vmatprep.subr.bf16.mxu0 %v9072
      %9305 = vmatpush1.bf16.msra.mxu0 %v9071
      %9306 = vmatprep.subr.bf16.mxu0 %v9076
      %9307 = vmatpush1.bf16.msra.mxu0 %v9075
      %9308 = vmatprep.subr.bf16.mxu0 %v9080
      %9309 = vmatpush1.bf16.msra.mxu0 %v9079
      %9310 = vmatprep.subr.bf16.mxu0 %v9084
      %9311 = vmatpush1.bf16.msra.mxu0 %v9083
      %9312 = vmatprep.subr.bf16.mxu0 %v9088
      %9313 = vmatpush1.bf16.msra.mxu0 %v9087
      %9314 = vmatprep.subr.bf16.mxu0 %v9092
      %9315 = vmatpush1.bf16.msra.mxu0 %v9091
      %9316 = vmatprep.subr.bf16.mxu0 %v9096
      %9317 = vmatpush1.bf16.msra.mxu0 %v9095
      %9318 = vmatprep.subr.bf16.mxu0 %v9100
      %9319 = vmatpush1.bf16.msra.mxu0 %v9099
      %9320 = vmatprep.subr.bf16.mxu0 %v9104
      %9321 = vmatpush1.bf16.msra.mxu0 %v9103
      %9322 = vmatprep.subr.bf16.mxu0 %v9108
      %9323 = vmatpush1.bf16.msra.mxu0 %v9107
      %9324 = vmatprep.subr.bf16.mxu0 %v9112
      %9325 = vmatpush1.bf16.msra.mxu0 %v9111
      %9326 = vmatprep.subr.bf16.mxu0 %v9116
      %9327 = vmatpush1.bf16.msra.mxu0 %v9115
      %9328 = vmatprep.subr.bf16.mxu0 %v9120
      %9329 = vmatpush1.bf16.msra.mxu0 %v9119
      %9330 = vmatprep.subr.bf16.mxu0 %v9124
      %9331 = vmatpush1.bf16.msra.mxu0 %v9123
      %9332 = vmatprep.subr.bf16.mxu0 %v9128
      %9333 = vmatpush1.bf16.msra.mxu0 %v9127
      %9334 = vmatprep.mubr.bf16.mxu0 %v8614
      %9335 = vmatmul.mubr.bf16.gmra.mrb[0].mxu0 %v8611
      %v9336 = vpop.f32.mrb[0].mxu0
      %v9337 = vadd.f32 %v9294, %v9336
      %v9338 = vpop.f32.mrb[0].mxu0
      %v9339 = vadd.f32 %v9296, %v9338
      %v9340 = vpop.f32.mrb[0].mxu0
      %v9341 = vadd.f32 %v9298, %v9340
      %v9342 = vpop.f32.mrb[0].mxu0
      %v9343 = vadd.f32 %v9300, %v9342
      %9344 = vdwg.mxu0
      %9345 = vmatprep.subr.bf16.mxu0 %v9006
      %9346 = vmatpush1.bf16.msra.mxu0 %v9005
      %9347 = vmatprep.subr.bf16.mxu0 %v9010
      %9348 = vmatpush1.bf16.msra.mxu0 %v9009
      %9349 = vmatprep.subr.bf16.mxu0 %v9014
      %9350 = vmatpush1.bf16.msra.mxu0 %v9013
      %9351 = vmatprep.subr.bf16.mxu0 %v9018
      %9352 = vmatpush1.bf16.msra.mxu0 %v9017
      %9353 = vmatprep.subr.bf16.mxu0 %v9022
      %9354 = vmatpush1.bf16.msra.mxu0 %v9021
      %9355 = vmatprep.subr.bf16.mxu0 %v9026
      %9356 = vmatpush1.bf16.msra.mxu0 %v9025
      %9357 = vmatprep.subr.bf16.mxu0 %v9030
      %9358 = vmatpush1.bf16.msra.mxu0 %v9029
      %9359 = vmatprep.subr.bf16.mxu0 %v9034
      %9360 = vmatpush1.bf16.msra.mxu0 %v9033
      %9361 = vmatprep.subr.bf16.mxu0 %v9038
      %9362 = vmatpush1.bf16.msra.mxu0 %v9037
      %9363 = vmatprep.subr.bf16.mxu0 %v9042
      %9364 = vmatpush1.bf16.msra.mxu0 %v9041
      %9365 = vmatprep.subr.bf16.mxu0 %v9046
      %9366 = vmatpush1.bf16.msra.mxu0 %v9045
      %9367 = vmatprep.subr.bf16.mxu0 %v9050
      %9368 = vmatpush1.bf16.msra.mxu0 %v9049
      %9369 = vmatprep.subr.bf16.mxu0 %v9054
      %9370 = vmatpush1.bf16.msra.mxu0 %v9053
      %9371 = vmatprep.subr.bf16.mxu0 %v9058
      %9372 = vmatpush1.bf16.msra.mxu0 %v9057
      %9373 = vmatprep.subr.bf16.mxu0 %v9062
      %9374 = vmatpush1.bf16.msra.mxu0 %v9061
      %9375 = vmatprep.subr.bf16.mxu0 %v9066
      %9376 = vmatpush1.bf16.msra.mxu0 %v9065
      %9377 = vmatprep.mubr.bf16.mxu0 %v8608
      %9378 = vmatmul.mubr.bf16.gmra.mrb[0].mxu0 %v8605
      %v9379 = vpop.f32.mrb[0].mxu0
      %v9380 = vadd.f32 0.0, %v9379
      %v9381 = vpop.f32.mrb[0].mxu0
      %v9382 = vadd.f32 0.0, %v9381
      %v9383 = vpop.f32.mrb[0].mxu0
      %v9384 = vadd.f32 0.0, %v9383
      %v9385 = vpop.f32.mrb[0].mxu0
      %v9386 = vadd.f32 0.0, %v9385
      %9387 = vdwg.mxu0
      %9388 = vmatprep.subr.bf16.mxu0 %v9070
      %9389 = vmatpush1.bf16.msra.mxu0 %v9069
      %9390 = vmatprep.subr.bf16.mxu0 %v9074
      %9391 = vmatpush1.bf16.msra.mxu0 %v9073
      %9392 = vmatprep.subr.bf16.mxu0 %v9078
      %9393 = vmatpush1.bf16.msra.mxu0 %v9077
      %9394 = vmatprep.subr.bf16.mxu0 %v9082
      %9395 = vmatpush1.bf16.msra.mxu0 %v9081
      %9396 = vmatprep.subr.bf16.mxu0 %v9086
      %9397 = vmatpush1.bf16.msra.mxu0 %v9085
      %9398 = vmatprep.subr.bf16.mxu0 %v9090
      %9399 = vmatpush1.bf16.msra.mxu0 %v9089
      %9400 = vmatprep.subr.bf16.mxu0 %v9094
      %9401 = vmatpush1.bf16.msra.mxu0 %v9093
      %9402 = vmatprep.subr.bf16.mxu0 %v9098
      %9403 = vmatpush1.bf16.msra.mxu0 %v9097
      %9404 = vmatprep.subr.bf16.mxu0 %v9102
      %9405 = vmatpush1.bf16.msra.mxu0 %v9101
      %9406 = vmatprep.subr.bf16.mxu0 %v9106
      %9407 = vmatpush1.bf16.msra.mxu0 %v9105
      %9408 = vmatprep.subr.bf16.mxu0 %v9110
      %9409 = vmatpush1.bf16.msra.mxu0 %v9109
      %9410 = vmatprep.subr.bf16.mxu0 %v9114
      %9411 = vmatpush1.bf16.msra.mxu0 %v9113
      %9412 = vmatprep.subr.bf16.mxu0 %v9118
      %9413 = vmatpush1.bf16.msra.mxu0 %v9117
      %9414 = vmatprep.subr.bf16.mxu0 %v9122
      %9415 = vmatpush1.bf16.msra.mxu0 %v9121
      %9416 = vmatprep.subr.bf16.mxu0 %v9126
      %9417 = vmatpush1.bf16.msra.mxu0 %v9125
      %9418 = vmatprep.subr.bf16.mxu0 %v9130
      %9419 = vmatpush1.bf16.msra.mxu0 %v9129
      %9420 = vmatprep.mubr.bf16.mxu0 %v8614
      %9421 = vmatmul.mubr.bf16.gmra.mrb[0].mxu0 %v8611
      %v9422 = vpop.f32.mrb[0].mxu0
      %v9423 = vadd.f32 %v9380, %v9422
      %v9424 = vpop.f32.mrb[0].mxu0
      %v9425 = vadd.f32 %v9382, %v9424
      %v9426 = vpop.f32.mrb[0].mxu0
      %v9427 = vadd.f32 %v9384, %v9426
      %v9428 = vpop.f32.mrb[0].mxu0
      %v9429 = vadd.f32 %v9386, %v9428
      %9430 = vdwg.mxu0
      %v9431 = vadd.f32 %v8368, %v9337
      %v9432 = vadd.f32 %v8370, %v9339
      %v9433 = vadd.f32 %v8454, %v9423
      %v9434 = vadd.f32 %v8456, %v9425
      %v9435 = vadd.f32 %v8372, %v9341
      %v9436 = vadd.f32 %v8374, %v9343
      %v9437 = vadd.f32 %v8458, %v9427
      %v9438 = vadd.f32 %v8460, %v9429
      %v9439 = vld [vmem:[%s6] sm:$0xf]
      %v9441 = vlaneseq
      %v9442 = vshrl.u32 %v9441, 7
      %v9443 = vsub.s32 0, %v9442
      %v9444 = vrot.slane %v9439, %v9443
      %v9445 = vlaneseq
      %v9446 = vshrl.u32 %v9445, 7
      %v9447 = vsub.s32 1, %v9446
      %v9448 = vrot.slane %v9439, %v9447
      %v9449 = vlaneseq
      %v9450 = vshrl.u32 %v9449, 7
      %v9451 = vsub.s32 2, %v9450
      %v9452 = vrot.slane %v9439, %v9451
      %v9453 = vlaneseq
      %v9454 = vshrl.u32 %v9453, 7
      %v9455 = vsub.s32 3, %v9454
      %v9456 = vrot.slane %v9439, %v9455
      %v9461 = vadd.f32 %v9431, %v9444
      %v9462 = vadd.f32 %v9432, %v9448
      %v9463 = vadd.f32 %v9433, %v9452
      %v9464 = vadd.f32 %v9434, %v9456
      %v9465 = vadd.f32 %v9435, %v9444
      %v9466 = vadd.f32 %v9436, %v9448
      %v9467 = vadd.f32 %v9437, %v9452
      %v9468 = vadd.f32 %v9438, %v9456
      %9469 = vst [vmem:[%s278] sm:$0xff] %v9461
      %9470 = vst [vmem:[%s278 + $0x8] sm:$0xff] %v9462
      %9471 = vst [vmem:[%s278 + $0x10] sm:$0xff] %v9463
      %9472 = vst [vmem:[%s278 + $0x18] sm:$0xff] %v9464
      %9473 = vst [vmem:[%s278 + $0x20] sm:$0xff] %v9465
      %9474 = vst [vmem:[%s278 + $0x28] sm:$0xff] %v9466
      %9475 = vst [vmem:[%s278 + $0x30] sm:$0xff] %v9467
      %9476 = vst [vmem:[%s278 + $0x38] sm:$0xff] %v9468
      %p9477 = scmp.lt.s32.totalorder %s18, 1
      %s9478 = scalar_select %p9477, %s18, 1
      %s9479 = smul.addr %s9478, 8
      %s9480 = smul.addr %s9479, 8
      %s9481 = scalar_lea.vmem %s7, %s9480
      // Predicated region
      $region49: #{lastlayer2_forward.1} parent=47 // pred_check
        %p9482 = pneg %p188
      $region50: #{lastlayer2_forward.1} parent=47 // pred_check_branch
        %9484 = sbr.rel (%p9482) target = $region52
      $region51: #{lastlayer2_forward.1} parent=47 // pred_region
        _
      $region52: #{lastlayer2_forward.1} parent=47 // pred_fallthru
        _
    $region48: #{lastlayer2_forward.1} parent=5 // pred_fallthru
      _
    %p9485 = scmp.le.s32.totalorder 2, %s13
    // Predicated region
    $region53: #{lastlayer2_forward.1} parent=5 // pred_check
      %p9486 = pneg %p9485
    $region54: #{lastlayer2_forward.1} parent=5 // pred_check_branch
      %9488 = sbr.rel (%p9486) target = $region56
    $region55: #{lastlayer2_forward.1} parent=5 // pred_region
      %s9489 = ssub.s32 %s13, 2
      // Predicated region
      $region57: #{lastlayer2_forward.1} parent=55 // pred_check
        %p9490 = pneg %p194
      $region58: #{lastlayer2_forward.1} parent=55 // pred_check_branch
        %9492 = sbr.rel (%p9490) target = $region60
      $region59: #{lastlayer2_forward.1} parent=55 // pred_region
        %p9493 = scmp.lt.s32.totalorder %s19, 1
        %s9494 = scalar_select %p9493, %s19, 1
        %s9495 = smul.addr %s9494, 8
        %s9496 = smul.addr %s9495, 8
        %s9497 = scalar_lea.vmem %s7, %s9496
      $region60: #{lastlayer2_forward.1} parent=55 // pred_fallthru
        _
    $region56: #{lastlayer2_forward.1} parent=5 // pred_fallthru
      _
  $region6: #{lastlayer2_forward.1} parent=0 // loop_footer
    %s17 = sadd.s32 1, %s13
  $region7: #{lastlayer2_forward.1} parent=0 // loop_footer_branch
    %12 = sbr.rel target = $region3
  $region8: #{lastlayer2_forward.1} parent=0 // loop_exit
    _

</llo_original>
